<compile_context>
chip_gen: v7x
topology: tpu7x:2x2x1
jax: 0.10.0
libtpu: 0.0.40
codegen_flags: <defaults>
</compile_context>

<pallas_src>
import jax
import jax.numpy as jnp
from jax.experimental import pallas as pl
from jax.experimental.pallas import tpu as pltpu

# ---------------- shapes (small, consistent with the module) ----------------
B = 2                       # batch
IN_C = 4                    # input channels
PATCH = 8                   # patch_size (cfgs[2])
DATA = 64                   # data_size (signal length)
GRID = DATA // PATCH        # 8 patches
EMBED = IN_C * PATCH        # 32 = embed_dim = last_channels
N_TOK = GRID + 1            # 9 tokens (cls + patches)
DEPTH = 2                   # cfgs[0]
HEADS = 4                   # cfgs[1]
HEAD_DIM = EMBED // HEADS   # 8
MLP_HIDDEN = int(EMBED * 4.0)   # 128
NUM_CLS = 5
EPS = 1e-6
SCALE = HEAD_DIM ** -0.5


# ---------------- math helpers ----------------
def _layernorm(x, gamma, beta, eps=EPS):
    mu = jnp.mean(x, axis=-1, keepdims=True)
    var = jnp.mean(jnp.square(x - mu), axis=-1, keepdims=True)
    return (x - mu) * jax.lax.rsqrt(var + eps) * gamma + beta


def _gelu(x):
    # tanh-approximation GELU (intentional approximation of torch's exact-erf
    # GELU, |err| < 1e-3; moves the transcendental onto the free EUP slot).
    c = 0.7978845608028654  # sqrt(2/pi)
    return 0.5 * x * (1.0 + jnp.tanh(c * (x + 0.044715 * x * x * x)))


def _softmax_ref(x):
    x = x - jnp.max(x, axis=-1, keepdims=True)
    e = jnp.exp(x)
    return e / jnp.sum(e, axis=-1, keepdims=True)


def _softmax_k(x):
    # Kernel-side softmax: approximate reciprocal runs on the EUP bundle slot.
    x = x - jnp.max(x, axis=-1, keepdims=True)
    e = jnp.exp(x)
    return e * pl.reciprocal(jnp.sum(e, axis=-1, keepdims=True), approx=True)


# ---------------- fused Pallas kernel (whole forward pass) ----------------
def vit_fused_kernel(xp_ref, pe_w_ref, pe_b_ref, pe_g_ref, pe_be_ref,
                     cls_ref, pos_ref,
                     ln1w_ref, ln1b_ref, qkvw_ref, qkvb_ref,
                     projw_ref, projb_ref, ln2w_ref, ln2b_ref,
                     fc1w_ref, fc1b_ref, fc2w_ref, fc2b_ref,
                     fn_g_ref, fn_b_ref, hw_ref, hb_ref,
                     out_ref, tok_ref, attn_ref):
    # ---- patch embed: Conv1d(k=stride=PATCH) == per-patch matmul, B folded
    #      into the sublane dim -> a single (B*GRID, C*P) @ (C*P, EMBED) dot.
    y = jnp.dot(xp_ref[...], pe_w_ref[...],
                preferred_element_type=jnp.float32) + pe_b_ref[...]
    y = _layernorm(y, pe_g_ref[...], pe_be_ref[...])           # (B*GRID, EMBED)

    # ---- assemble [cls | patches] + pos_embed entirely in VMEM scratch ----
    pos = pos_ref[...]                                          # (N_TOK, EMBED)
    cls_row = cls_ref[...] + pos[0:1, :]                        # (1, EMBED)
    for b in range(B):
        tok_ref[b * N_TOK:b * N_TOK + 1, :] = cls_row
        tok_ref[b * N_TOK + 1:(b + 1) * N_TOK, :] = (
            y[b * GRID:(b + 1) * GRID, :] + pos[1:N_TOK, :])
    x = tok_ref[...]                                            # (B*N_TOK, EMBED)

    # ---- transformer blocks: DEPTH statically unrolled, weights resident ----
    for d in range(DEPTH):
        # attention branch: x + proj(multi_head_attn(LN1(x)))
        xn = _layernorm(x, ln1w_ref[d], ln1b_ref[d])
        qkv = jnp.dot(xn, qkvw_ref[d],
                      preferred_element_type=jnp.float32) + qkvb_ref[d]
        q = qkv[:, 0 * EMBED:1 * EMBED]
        k = qkv[:, 1 * EMBED:2 * EMBED]
        v = qkv[:, 2 * EMBED:3 * EMBED]
        # per-(batch, head) attention; each head output is written straight
        # into its lane range of the VMEM scratch (no concatenate).
        for b in range(B):
            rs = slice(b * N_TOK, (b + 1) * N_TOK)
            for h in range(HEADS):
                cs = slice(h * HEAD_DIM, (h + 1) * HEAD_DIM)
                qh, kh, vh = q[rs, cs], k[rs, cs], v[rs, cs]
                s = jax.lax.dot_general(
                    qh, kh, (((1,), (1,)), ((), ())),
                    preferred_element_type=jnp.float32) * SCALE
                p = _softmax_k(s)
                attn_ref[rs, cs] = jnp.dot(
                    p, vh, preferred_element_type=jnp.float32)
        x = x + (jnp.dot(attn_ref[...], projw_ref[d],
                         preferred_element_type=jnp.float32) + projb_ref[d])

        # MLP branch: x + fc2(GELU(fc1(LN2(x))))
        xn2 = _layernorm(x, ln2w_ref[d], ln2b_ref[d])
        hdn = _gelu(jnp.dot(xn2, fc1w_ref[d],
                            preferred_element_type=jnp.float32) + fc1b_ref[d])
        x = x + (jnp.dot(hdn, fc2w_ref[d],
                         preferred_element_type=jnp.float32) + fc2b_ref[d])

    # ---- final LayerNorm on cls tokens + Linear(EMBED->NUM_CLS) + Softmax ----
    for b in range(B):
        xc = _layernorm(x[b * N_TOK:b * N_TOK + 1, :],
                        fn_g_ref[...], fn_b_ref[...])           # (1, EMBED)
        logits = jnp.dot(xc, hw_ref[...],
                         preferred_element_type=jnp.float32) + hb_ref[...]
        out_ref[b:b + 1, :] = _softmax_k(logits)


# ---------------- pallas_call wrapper ----------------
def _full(shape):
    nd = len(shape)
    return pl.BlockSpec(shape, lambda *_: (0,) * nd)


def extract_patches(x):
    # (B, C, L) -> (B*GRID, C*PATCH): the Conv1d(k=stride=PATCH) im2col (layout glue).
    xp = x.reshape(B, IN_C, GRID, PATCH).transpose(0, 2, 1, 3)
    return xp.reshape(B * GRID, IN_C * PATCH)


def vit_forward_pallas(x, params):
    xp = extract_patches(x)
    return pl.pallas_call(
        vit_fused_kernel,
        out_shape=jax.ShapeDtypeStruct((B, NUM_CLS), jnp.float32),
        grid=(1,),
        in_specs=[
            _full((B * GRID, IN_C * PATCH)),                      # patches
            _full((IN_C * PATCH, EMBED)), _full((1, EMBED)),      # patch-embed w/b
            _full((1, EMBED)), _full((1, EMBED)),                 # patch-embed LN
            _full((1, EMBED)), _full((N_TOK, EMBED)),             # cls / pos
            _full((DEPTH, 1, EMBED)), _full((DEPTH, 1, EMBED)),   # ln1
            _full((DEPTH, EMBED, 3 * EMBED)), _full((DEPTH, 1, 3 * EMBED)),  # qkv
            _full((DEPTH, EMBED, EMBED)), _full((DEPTH, 1, EMBED)),          # proj
            _full((DEPTH, 1, EMBED)), _full((DEPTH, 1, EMBED)),   # ln2
            _full((DEPTH, EMBED, MLP_HIDDEN)), _full((DEPTH, 1, MLP_HIDDEN)),  # fc1
            _full((DEPTH, MLP_HIDDEN, EMBED)), _full((DEPTH, 1, EMBED)),       # fc2
            _full((1, EMBED)), _full((1, EMBED)),                 # final LN
            _full((EMBED, NUM_CLS)), _full((1, NUM_CLS)),         # head
        ],
        out_specs=_full((B, NUM_CLS)),
        scratch_shapes=[
            pltpu.VMEM((B * N_TOK, EMBED), jnp.float32),   # token assembly buffer
            pltpu.VMEM((B * N_TOK, EMBED), jnp.float32),   # attention head outputs
        ],
        compiler_params=pltpu.CompilerParams(
            dimension_semantics=("arbitrary",)),
    )(xp, params["pe_w"], params["pe_b"], params["pe_ln_g"], params["pe_ln_b"],
      params["cls_token"], params["pos_embed"],
      params["ln1w"], params["ln1b"], params["qkvw"], params["qkvb"],
      params["projw"], params["projb"], params["ln2w"], params["ln2b"],
      params["fc1w"], params["fc1b"], params["fc2w"], params["fc2b"],
      params["fn_g"], params["fn_b"], params["head_w"], params["head_b"])


# ---------------- parameter construction (deterministic, synthetic) ----------
def make_params():
    kit = iter(jax.random.split(jax.random.PRNGKey(42), 64))

    def nrm(shape, scale=0.02):
        return scale * jax.random.normal(next(kit), shape, dtype=jnp.float32)

    p = {}
    # PatchEmbed: Conv1d(IN_C, EMBED, k=PATCH, stride=PATCH) -> matmul weight
    conv_w = nrm((EMBED, IN_C, PATCH))                           # torch layout
    p["pe_w"] = conv_w.reshape(EMBED, IN_C * PATCH).T            # (C*P, EMBED)
    p["pe_b"] = nrm((1, EMBED))
    p["pe_ln_g"] = 1.0 + nrm((1, EMBED))
    p["pe_ln_b"] = nrm((1, EMBED))

    # cls token / positional embedding (zeros in __init__; randomized here)
    p["cls_token"] = nrm((1, EMBED))
    p["pos_embed"] = nrm((N_TOK, EMBED))

    # DEPTH-stacked transformer block weights (resident in VMEM, DMA'd once)
    def stacked(shape, shift=0.0):
        return jnp.stack([shift + nrm(shape) for _ in range(DEPTH)], axis=0)

    p["ln1w"] = stacked((1, EMBED), 1.0)
    p["ln1b"] = stacked((1, EMBED))
    p["qkvw"] = stacked((EMBED, 3 * EMBED))
    p["qkvb"] = stacked((1, 3 * EMBED))
    p["projw"] = stacked((EMBED, EMBED))
    p["projb"] = stacked((1, EMBED))
    p["ln2w"] = stacked((1, EMBED), 1.0)
    p["ln2b"] = stacked((1, EMBED))
    p["fc1w"] = stacked((EMBED, MLP_HIDDEN))
    p["fc1b"] = stacked((1, MLP_HIDDEN))
    p["fc2w"] = stacked((MLP_HIDDEN, EMBED))
    p["fc2b"] = stacked((1, EMBED))

    # final norm + classifier (h_args=None -> Linear + Softmax)
    p["fn_g"] = 1.0 + nrm((1, EMBED))
    p["fn_b"] = nrm((1, EMBED))
    p["head_w"] = nrm((EMBED, NUM_CLS))
    p["head_b"] = nrm((1, NUM_CLS))
    return p


# ---------------- pure-JAX reference (same math, no Pallas) ----------------
def vit_forward_ref(x, params):
    xp = extract_patches(x).reshape(B, GRID, IN_C * PATCH)
    y = xp @ params["pe_w"] + params["pe_b"]
    y = _layernorm(y, params["pe_ln_g"], params["pe_ln_b"])
    cls = jnp.broadcast_to(params["cls_token"][None], (B, 1, EMBED))
    t = jnp.concatenate([cls, y], axis=1) + params["pos_embed"][None]
    for d in range(DEPTH):
        xn = _layernorm(t, params["ln1w"][d], params["ln1b"][d])
        qkv = xn @ params["qkvw"][d] + params["qkvb"][d]
        q, k, v = jnp.split(qkv, 3, axis=-1)

        def to_heads(a):
            return a.reshape(B, N_TOK, HEADS, HEAD_DIM).transpose(0, 2, 1, 3)

        q, k, v = to_heads(q), to_heads(k), to_heads(v)
        att = _softmax_ref(jnp.einsum("bhqd,bhkd->bhqk", q, k) * SCALE)
        o = jnp.einsum("bhqk,bhkd->bhqd", att, v)
        o = o.transpose(0, 2, 1, 3).reshape(B, N_TOK, EMBED)
        t = t + (o @ params["projw"][d] + params["projb"][d])
        xn2 = _layernorm(t, params["ln2w"][d], params["ln2b"][d])
        h = _gelu(xn2 @ params["fc1w"][d] + params["fc1b"][d])
        t = t + (h @ params["fc2w"][d] + params["fc2b"][d])
    xc = _layernorm(t[:, 0, :], params["fn_g"], params["fn_b"])
    return _softmax_ref(xc @ params["head_w"] + params["head_b"])


# ---------------- main ----------------
if __name__ == "__main__":
    params = make_params()
    x = jax.random.normal(jax.random.PRNGKey(0), (B, IN_C, DATA), dtype=jnp.float32)

    fwd = jax.jit(vit_forward_pallas)
    out = jax.block_until_ready(fwd(x, params))

    assert out.shape == (B, NUM_CLS), out.shape
    assert bool(jnp.all(jnp.isfinite(out)))
    # softmax rows must sum to ~1 (approx reciprocal in the kernel softmax)
    assert bool(jnp.allclose(jnp.sum(out, axis=-1), 1.0, atol=5e-3))
    # cross-check against a pure-JAX reference of the same forward pass
    ref = vit_forward_ref(x, params)
    assert bool(jnp.allclose(out, ref, atol=2e-3, rtol=2e-3))

    print("KERNEL_OK")
</pallas_src>

<mosaic_0001>
module attributes {stable_mosaic.version = 11 : i64} {
  func.func @vit_fused_kernel(%arg0: i32, %arg1: memref<16x32xf32, #tpu.memory_space<vmem>>, %arg2: memref<32x32xf32, #tpu.memory_space<vmem>>, %arg3: memref<1x32xf32, #tpu.memory_space<vmem>>, %arg4: memref<1x32xf32, #tpu.memory_space<vmem>>, %arg5: memref<1x32xf32, #tpu.memory_space<vmem>>, %arg6: memref<1x32xf32, #tpu.memory_space<vmem>>, %arg7: memref<9x32xf32, #tpu.memory_space<vmem>>, %arg8: memref<2x1x32xf32, #tpu.memory_space<vmem>>, %arg9: memref<2x1x32xf32, #tpu.memory_space<vmem>>, %arg10: memref<2x32x96xf32, #tpu.memory_space<vmem>>, %arg11: memref<2x1x96xf32, #tpu.memory_space<vmem>>, %arg12: memref<2x32x32xf32, #tpu.memory_space<vmem>>, %arg13: memref<2x1x32xf32, #tpu.memory_space<vmem>>, %arg14: memref<2x1x32xf32, #tpu.memory_space<vmem>>, %arg15: memref<2x1x32xf32, #tpu.memory_space<vmem>>, %arg16: memref<2x32x128xf32, #tpu.memory_space<vmem>>, %arg17: memref<2x1x128xf32, #tpu.memory_space<vmem>>, %arg18: memref<2x128x32xf32, #tpu.memory_space<vmem>>, %arg19: memref<2x1x32xf32, #tpu.memory_space<vmem>>, %arg20: memref<1x32xf32, #tpu.memory_space<vmem>>, %arg21: memref<1x32xf32, #tpu.memory_space<vmem>>, %arg22: memref<32x5xf32, #tpu.memory_space<vmem>>, %arg23: memref<1x5xf32, #tpu.memory_space<vmem>>, %arg24: memref<2x5xf32, #tpu.memory_space<vmem>>, %arg25: memref<18x32xf32, #tpu.memory_space<vmem>>, %arg26: memref<18x32xf32, #tpu.memory_space<vmem>>) attributes {dimension_semantics = [#tpu.dimension_semantics<arbitrary>], iteration_bounds = array<i64: 1>, scalar_prefetch = 0 : i64, scratch_operands = 2 : i64, tpu.core_type = #tpu.core_type<tc>, window_params = [{pipeline_mode = #tpu.pipeline_mode<synchronous>, transform_indices = @transform_0, window_bounds = array<i64: 16, 32>}, {pipeline_mode = #tpu.pipeline_mode<synchronous>, transform_indices = @transform_1, window_bounds = array<i64: 32, 32>}, {pipeline_mode = #tpu.pipeline_mode<synchronous>, transform_indices = @transform_2, window_bounds = array<i64: 1, 32>}, {pipeline_mode = #tpu.pipeline_mode<synchronous>, transform_indices = @transform_3, window_bounds = array<i64: 1, 32>}, {pipeline_mode = #tpu.pipeline_mode<synchronous>, transform_indices = @transform_4, window_bounds = array<i64: 1, 32>}, {pipeline_mode = #tpu.pipeline_mode<synchronous>, transform_indices = @transform_5, window_bounds = array<i64: 1, 32>}, {pipeline_mode = #tpu.pipeline_mode<synchronous>, transform_indices = @transform_6, window_bounds = array<i64: 9, 32>}, {pipeline_mode = #tpu.pipeline_mode<synchronous>, transform_indices = @transform_7, window_bounds = array<i64: 2, 1, 32>}, {pipeline_mode = #tpu.pipeline_mode<synchronous>, transform_indices = @transform_8, window_bounds = array<i64: 2, 1, 32>}, {pipeline_mode = #tpu.pipeline_mode<synchronous>, transform_indices = @transform_9, window_bounds = array<i64: 2, 32, 96>}, {pipeline_mode = #tpu.pipeline_mode<synchronous>, transform_indices = @transform_10, window_bounds = array<i64: 2, 1, 96>}, {pipeline_mode = #tpu.pipeline_mode<synchronous>, transform_indices = @transform_11, window_bounds = array<i64: 2, 32, 32>}, {pipeline_mode = #tpu.pipeline_mode<synchronous>, transform_indices = @transform_12, window_bounds = array<i64: 2, 1, 32>}, {pipeline_mode = #tpu.pipeline_mode<synchronous>, transform_indices = @transform_13, window_bounds = array<i64: 2, 1, 32>}, {pipeline_mode = #tpu.pipeline_mode<synchronous>, transform_indices = @transform_14, window_bounds = array<i64: 2, 1, 32>}, {pipeline_mode = #tpu.pipeline_mode<synchronous>, transform_indices = @transform_15, window_bounds = array<i64: 2, 32, 128>}, {pipeline_mode = #tpu.pipeline_mode<synchronous>, transform_indices = @transform_16, window_bounds = array<i64: 2, 1, 128>}, {pipeline_mode = #tpu.pipeline_mode<synchronous>, transform_indices = @transform_17, window_bounds = array<i64: 2, 128, 32>}, {pipeline_mode = #tpu.pipeline_mode<synchronous>, transform_indices = @transform_18, window_bounds = array<i64: 2, 1, 32>}, {pipeline_mode = #tpu.pipeline_mode<synchronous>, transform_indices = @transform_19, window_bounds = array<i64: 1, 32>}, {pipeline_mode = #tpu.pipeline_mode<synchronous>, transform_indices = @transform_20, window_bounds = array<i64: 1, 32>}, {pipeline_mode = #tpu.pipeline_mode<synchronous>, transform_indices = @transform_21, window_bounds = array<i64: 32, 5>}, {pipeline_mode = #tpu.pipeline_mode<synchronous>, transform_indices = @transform_22, window_bounds = array<i64: 1, 5>}, {pipeline_mode = #tpu.pipeline_mode<synchronous>, transform_indices = @transform_23, window_bounds = array<i64: 2, 5>}]} {
    %c0 = arith.constant 0 : index
    %c0_0 = arith.constant 0 : index
    %0 = vector.load %arg1[%c0, %c0_0] : memref<16x32xf32, #tpu.memory_space<vmem>>, vector<16x32xf32>
    %c0_1 = arith.constant 0 : index
    %c0_2 = arith.constant 0 : index
    %1 = vector.load %arg2[%c0_1, %c0_2] : memref<32x32xf32, #tpu.memory_space<vmem>>, vector<32x32xf32>
    %cst = arith.constant dense<0.000000e+00> : vector<16x32xf32>
    %2 = tpu.matmul %0, %1, %cst {dimension_numbers = #tpu.dot_dimension_numbers<[1], [0], [0], [1], [0, 0, 1, 1], [], []>} : vector<16x32xf32>, vector<32x32xf32>, vector<16x32xf32> -> vector<16x32xf32>
    %c0_3 = arith.constant 0 : index
    %c0_4 = arith.constant 0 : index
    %3 = vector.load %arg3[%c0_3, %c0_4] : memref<1x32xf32, #tpu.memory_space<vmem>>, vector<1x32xf32>
    %4 = vector.broadcast %3 : vector<1x32xf32> to vector<16x32xf32>
    %5 = arith.addf %2, %4 : vector<16x32xf32>
    %c0_5 = arith.constant 0 : index
    %c0_6 = arith.constant 0 : index
    %6 = vector.load %arg4[%c0_5, %c0_6] : memref<1x32xf32, #tpu.memory_space<vmem>>, vector<1x32xf32>
    %c0_7 = arith.constant 0 : index
    %c0_8 = arith.constant 0 : index
    %7 = vector.load %arg5[%c0_7, %c0_8] : memref<1x32xf32, #tpu.memory_space<vmem>>, vector<1x32xf32>
    %cst_9 = arith.constant dense<0.000000e+00> : vector<16xf32>
    %8 = vector.multi_reduction <add>, %5, %cst_9 [1] : vector<16x32xf32> to vector<16xf32>
    %9 = vector.shape_cast %8 : vector<16xf32> to vector<16x1xf32>
    %cst_10 = arith.constant 3.200000e+01 : f32
    %10 = vector.broadcast %cst_10 : f32 to vector<16x1xf32>
    %11 = arith.divf %9, %10 : vector<16x1xf32>
    %12 = vector.broadcast %11 : vector<16x1xf32> to vector<16x32xf32>
    %13 = arith.subf %5, %12 : vector<16x32xf32>
    %14 = arith.mulf %13, %13 : vector<16x32xf32>
    %cst_11 = arith.constant dense<0.000000e+00> : vector<16xf32>
    %15 = vector.multi_reduction <add>, %14, %cst_11 [1] : vector<16x32xf32> to vector<16xf32>
    %16 = vector.shape_cast %15 : vector<16xf32> to vector<16x1xf32>
    %cst_12 = arith.constant 3.200000e+01 : f32
    %17 = vector.broadcast %cst_12 : f32 to vector<16x1xf32>
    %18 = arith.divf %16, %17 : vector<16x1xf32>
    %19 = vector.broadcast %11 : vector<16x1xf32> to vector<16x32xf32>
    %20 = arith.subf %5, %19 : vector<16x32xf32>
    %cst_13 = arith.constant 9.99999997E-7 : f32
    %21 = vector.broadcast %cst_13 : f32 to vector<16x1xf32>
    %22 = arith.addf %18, %21 : vector<16x1xf32>
    %23 = math.rsqrt %22 : vector<16x1xf32>
    %24 = vector.broadcast %23 : vector<16x1xf32> to vector<16x32xf32>
    %25 = arith.mulf %20, %24 : vector<16x32xf32>
    %26 = vector.broadcast %6 : vector<1x32xf32> to vector<16x32xf32>
    %27 = arith.mulf %25, %26 : vector<16x32xf32>
    %28 = vector.broadcast %7 : vector<1x32xf32> to vector<16x32xf32>
    %29 = arith.addf %27, %28 : vector<16x32xf32>
    %c0_14 = arith.constant 0 : index
    %c0_15 = arith.constant 0 : index
    %30 = vector.load %arg7[%c0_14, %c0_15] : memref<9x32xf32, #tpu.memory_space<vmem>>, vector<9x32xf32>
    %c0_16 = arith.constant 0 : index
    %c0_17 = arith.constant 0 : index
    %31 = vector.load %arg6[%c0_16, %c0_17] : memref<1x32xf32, #tpu.memory_space<vmem>>, vector<1x32xf32>
    %32 = vector.extract_strided_slice %30 {offsets = [0, 0], sizes = [1, 32], strides = [1, 1]} : vector<9x32xf32> to vector<1x32xf32>
    %33 = arith.addf %31, %32 : vector<1x32xf32>
    %c0_18 = arith.constant 0 : index
    %c0_19 = arith.constant 0 : index
    %34 = vector.load %arg25[%c0_18, %c0_19] : memref<18x32xf32, #tpu.memory_space<vmem>>, vector<1x32xf32>
    tpu.vector_store %arg25[%c0_18, %c0_19], %33 {strides = array<i32>} : memref<18x32xf32, #tpu.memory_space<vmem>>, vector<1x32xf32>,
    %35 = vector.extract_strided_slice %29 {offsets = [0, 0], sizes = [8, 32], strides = [1, 1]} : vector<16x32xf32> to vector<8x32xf32>
    %36 = vector.extract_strided_slice %30 {offsets = [1, 0], sizes = [8, 32], strides = [1, 1]} : vector<9x32xf32> to vector<8x32xf32>
    %37 = arith.addf %35, %36 : vector<8x32xf32>
    %c1 = arith.constant 1 : index
    %c0_20 = arith.constant 0 : index
    %38 = vector.load %arg25[%c1, %c0_20] : memref<18x32xf32, #tpu.memory_space<vmem>>, vector<8x32xf32>
    tpu.vector_store %arg25[%c1, %c0_20], %37 {strides = array<i32>} : memref<18x32xf32, #tpu.memory_space<vmem>>, vector<8x32xf32>,
    %c9 = arith.constant 9 : index
    %c0_21 = arith.constant 0 : index
    %39 = vector.load %arg25[%c9, %c0_21] : memref<18x32xf32, #tpu.memory_space<vmem>>, vector<1x32xf32>
    tpu.vector_store %arg25[%c9, %c0_21], %33 {strides = array<i32>} : memref<18x32xf32, #tpu.memory_space<vmem>>, vector<1x32xf32>,
    %40 = vector.extract_strided_slice %29 {offsets = [8, 0], sizes = [8, 32], strides = [1, 1]} : vector<16x32xf32> to vector<8x32xf32>
    %41 = vector.extract_strided_slice %30 {offsets = [1, 0], sizes = [8, 32], strides = [1, 1]} : vector<9x32xf32> to vector<8x32xf32>
    %42 = arith.addf %40, %41 : vector<8x32xf32>
    %c10 = arith.constant 10 : index
    %c0_22 = arith.constant 0 : index
    %43 = vector.load %arg25[%c10, %c0_22] : memref<18x32xf32, #tpu.memory_space<vmem>>, vector<8x32xf32>
    tpu.vector_store %arg25[%c10, %c0_22], %42 {strides = array<i32>} : memref<18x32xf32, #tpu.memory_space<vmem>>, vector<8x32xf32>,
    %c0_23 = arith.constant 0 : index
    %c0_24 = arith.constant 0 : index
    %44 = vector.load %arg25[%c0_23, %c0_24] : memref<18x32xf32, #tpu.memory_space<vmem>>, vector<18x32xf32>
    %c0_25 = arith.constant 0 : index
    %c0_26 = arith.constant 0 : index
    %c0_27 = arith.constant 0 : index
    %45 = vector.load %arg8[%c0_25, %c0_26, %c0_27] : memref<2x1x32xf32, #tpu.memory_space<vmem>>, vector<1x1x32xf32>
    %46 = vector.shape_cast %45 : vector<1x1x32xf32> to vector<1x32xf32>
    %c0_28 = arith.constant 0 : index
    %c0_29 = arith.constant 0 : index
    %c0_30 = arith.constant 0 : index
    %47 = vector.load %arg9[%c0_28, %c0_29, %c0_30] : memref<2x1x32xf32, #tpu.memory_space<vmem>>, vector<1x1x32xf32>
    %48 = vector.shape_cast %47 : vector<1x1x32xf32> to vector<1x32xf32>
    %cst_31 = arith.constant dense<0.000000e+00> : vector<18xf32>
    %49 = vector.multi_reduction <add>, %44, %cst_31 [1] : vector<18x32xf32> to vector<18xf32>
    %50 = vector.shape_cast %49 : vector<18xf32> to vector<18x1xf32>
    %cst_32 = arith.constant 3.200000e+01 : f32
    %51 = vector.broadcast %cst_32 : f32 to vector<18x1xf32>
    %52 = arith.divf %50, %51 : vector<18x1xf32>
    %53 = vector.broadcast %52 : vector<18x1xf32> to vector<18x32xf32>
    %54 = arith.subf %44, %53 : vector<18x32xf32>
    %55 = arith.mulf %54, %54 : vector<18x32xf32>
    %cst_33 = arith.constant dense<0.000000e+00> : vector<18xf32>
    %56 = vector.multi_reduction <add>, %55, %cst_33 [1] : vector<18x32xf32> to vector<18xf32>
    %57 = vector.shape_cast %56 : vector<18xf32> to vector<18x1xf32>
    %cst_34 = arith.constant 3.200000e+01 : f32
    %58 = vector.broadcast %cst_34 : f32 to vector<18x1xf32>
    %59 = arith.divf %57, %58 : vector<18x1xf32>
    %60 = vector.broadcast %52 : vector<18x1xf32> to vector<18x32xf32>
    %61 = arith.subf %44, %60 : vector<18x32xf32>
    %cst_35 = arith.constant 9.99999997E-7 : f32
    %62 = vector.broadcast %cst_35 : f32 to vector<18x1xf32>
    %63 = arith.addf %59, %62 : vector<18x1xf32>
    %64 = math.rsqrt %63 : vector<18x1xf32>
    %65 = vector.broadcast %64 : vector<18x1xf32> to vector<18x32xf32>
    %66 = arith.mulf %61, %65 : vector<18x32xf32>
    %67 = vector.broadcast %46 : vector<1x32xf32> to vector<18x32xf32>
    %68 = arith.mulf %66, %67 : vector<18x32xf32>
    %69 = vector.broadcast %48 : vector<1x32xf32> to vector<18x32xf32>
    %70 = arith.addf %68, %69 : vector<18x32xf32>
    %c0_36 = arith.constant 0 : index
    %c0_37 = arith.constant 0 : index
    %c0_38 = arith.constant 0 : index
    %71 = vector.load %arg10[%c0_36, %c0_37, %c0_38] : memref<2x32x96xf32, #tpu.memory_space<vmem>>, vector<1x32x96xf32>
    %72 = vector.shape_cast %71 : vector<1x32x96xf32> to vector<32x96xf32>
    %cst_39 = arith.constant dense<0.000000e+00> : vector<18x96xf32>
    %73 = tpu.matmul %70, %72, %cst_39 {dimension_numbers = #tpu.dot_dimension_numbers<[1], [0], [0], [1], [0, 0, 1, 1], [], []>} : vector<18x32xf32>, vector<32x96xf32>, vector<18x96xf32> -> vector<18x96xf32>
    %c0_40 = arith.constant 0 : index
    %c0_41 = arith.constant 0 : index
    %c0_42 = arith.constant 0 : index
    %74 = vector.load %arg11[%c0_40, %c0_41, %c0_42] : memref<2x1x96xf32, #tpu.memory_space<vmem>>, vector<1x1x96xf32>
    %75 = vector.shape_cast %74 : vector<1x1x96xf32> to vector<1x96xf32>
    %76 = vector.broadcast %75 : vector<1x96xf32> to vector<18x96xf32>
    %77 = arith.addf %73, %76 : vector<18x96xf32>
    %78 = vector.extract_strided_slice %77 {offsets = [0, 0], sizes = [18, 32], strides = [1, 1]} : vector<18x96xf32> to vector<18x32xf32>
    %79 = vector.extract_strided_slice %77 {offsets = [0, 32], sizes = [18, 32], strides = [1, 1]} : vector<18x96xf32> to vector<18x32xf32>
    %80 = vector.extract_strided_slice %77 {offsets = [0, 64], sizes = [18, 32], strides = [1, 1]} : vector<18x96xf32> to vector<18x32xf32>
    %81 = vector.extract_strided_slice %78 {offsets = [0, 0], sizes = [9, 8], strides = [1, 1]} : vector<18x32xf32> to vector<9x8xf32>
    %82 = vector.extract_strided_slice %79 {offsets = [0, 0], sizes = [9, 8], strides = [1, 1]} : vector<18x32xf32> to vector<9x8xf32>
    %83 = vector.extract_strided_slice %80 {offsets = [0, 0], sizes = [9, 8], strides = [1, 1]} : vector<18x32xf32> to vector<9x8xf32>
    %cst_43 = arith.constant dense<0.000000e+00> : vector<9x9xf32>
    %84 = tpu.matmul %81, %82, %cst_43 {dimension_numbers = #tpu.dot_dimension_numbers<[1], [1], [0], [0], [0, 0, 1, 0], [], []>} : vector<9x8xf32>, vector<9x8xf32>, vector<9x9xf32> -> vector<9x9xf32>
    %cst_44 = arith.constant 0.353553385 : f32
    %85 = vector.broadcast %cst_44 : f32 to vector<9x9xf32>
    %86 = arith.mulf %84, %85 : vector<9x9xf32>
    %cst_45 = arith.constant dense<0xFF800000> : vector<9xf32>
    %87 = vector.multi_reduction <maximumf>, %86, %cst_45 [1] : vector<9x9xf32> to vector<9xf32>
    %88 = vector.shape_cast %87 : vector<9xf32> to vector<9x1xf32>
    %89 = vector.broadcast %88 : vector<9x1xf32> to vector<9x9xf32>
    %90 = arith.subf %86, %89 : vector<9x9xf32>
    %91 = math.exp %90 : vector<9x9xf32>
    %cst_46 = arith.constant dense<0.000000e+00> : vector<9xf32>
    %92 = vector.multi_reduction <add>, %91, %cst_46 [1] : vector<9x9xf32> to vector<9xf32>
    %93 = vector.shape_cast %92 : vector<9xf32> to vector<9x1xf32>
    %94 = tpu.reciprocal %93 {approx = true} : vector<9x1xf32> -> vector<9x1xf32>
    %95 = vector.broadcast %94 : vector<9x1xf32> to vector<9x9xf32>
    %96 = arith.mulf %91, %95 : vector<9x9xf32>
    %cst_47 = arith.constant dense<0.000000e+00> : vector<9x8xf32>
    %97 = tpu.matmul %96, %83, %cst_47 {dimension_numbers = #tpu.dot_dimension_numbers<[1], [0], [0], [1], [0, 0, 1, 1], [], []>} : vector<9x9xf32>, vector<9x8xf32>, vector<9x8xf32> -> vector<9x8xf32>
    %c0_48 = arith.constant 0 : index
    %c0_49 = arith.constant 0 : index
    %98 = vector.load %arg26[%c0_48, %c0_49] : memref<18x32xf32, #tpu.memory_space<vmem>>, vector<9x8xf32>
    tpu.vector_store %arg26[%c0_48, %c0_49], %97 {strides = array<i32>} : memref<18x32xf32, #tpu.memory_space<vmem>>, vector<9x8xf32>,
    %99 = vector.extract_strided_slice %78 {offsets = [0, 8], sizes = [9, 8], strides = [1, 1]} : vector<18x32xf32> to vector<9x8xf32>
    %100 = vector.extract_strided_slice %79 {offsets = [0, 8], sizes = [9, 8], strides = [1, 1]} : vector<18x32xf32> to vector<9x8xf32>
    %101 = vector.extract_strided_slice %80 {offsets = [0, 8], sizes = [9, 8], strides = [1, 1]} : vector<18x32xf32> to vector<9x8xf32>
    %cst_50 = arith.constant dense<0.000000e+00> : vector<9x9xf32>
    %102 = tpu.matmul %99, %100, %cst_50 {dimension_numbers = #tpu.dot_dimension_numbers<[1], [1], [0], [0], [0, 0, 1, 0], [], []>} : vector<9x8xf32>, vector<9x8xf32>, vector<9x9xf32> -> vector<9x9xf32>
    %cst_51 = arith.constant 0.353553385 : f32
    %103 = vector.broadcast %cst_51 : f32 to vector<9x9xf32>
    %104 = arith.mulf %102, %103 : vector<9x9xf32>
    %cst_52 = arith.constant dense<0xFF800000> : vector<9xf32>
    %105 = vector.multi_reduction <maximumf>, %104, %cst_52 [1] : vector<9x9xf32> to vector<9xf32>
    %106 = vector.shape_cast %105 : vector<9xf32> to vector<9x1xf32>
    %107 = vector.broadcast %106 : vector<9x1xf32> to vector<9x9xf32>
    %108 = arith.subf %104, %107 : vector<9x9xf32>
    %109 = math.exp %108 : vector<9x9xf32>
    %cst_53 = arith.constant dense<0.000000e+00> : vector<9xf32>
    %110 = vector.multi_reduction <add>, %109, %cst_53 [1] : vector<9x9xf32> to vector<9xf32>
    %111 = vector.shape_cast %110 : vector<9xf32> to vector<9x1xf32>
    %112 = tpu.reciprocal %111 {approx = true} : vector<9x1xf32> -> vector<9x1xf32>
    %113 = vector.broadcast %112 : vector<9x1xf32> to vector<9x9xf32>
    %114 = arith.mulf %109, %113 : vector<9x9xf32>
    %cst_54 = arith.constant dense<0.000000e+00> : vector<9x8xf32>
    %115 = tpu.matmul %114, %101, %cst_54 {dimension_numbers = #tpu.dot_dimension_numbers<[1], [0], [0], [1], [0, 0, 1, 1], [], []>} : vector<9x9xf32>, vector<9x8xf32>, vector<9x8xf32> -> vector<9x8xf32>
    %c0_55 = arith.constant 0 : index
    %c8 = arith.constant 8 : index
    %116 = vector.load %arg26[%c0_55, %c8] : memref<18x32xf32, #tpu.memory_space<vmem>>, vector<9x8xf32>
    tpu.vector_store %arg26[%c0_55, %c8], %115 {strides = array<i32>} : memref<18x32xf32, #tpu.memory_space<vmem>>, vector<9x8xf32>,
    %117 = vector.extract_strided_slice %78 {offsets = [0, 16], sizes = [9, 8], strides = [1, 1]} : vector<18x32xf32> to vector<9x8xf32>
    %118 = vector.extract_strided_slice %79 {offsets = [0, 16], sizes = [9, 8], strides = [1, 1]} : vector<18x32xf32> to vector<9x8xf32>
    %119 = vector.extract_strided_slice %80 {offsets = [0, 16], sizes = [9, 8], strides = [1, 1]} : vector<18x32xf32> to vector<9x8xf32>
    %cst_56 = arith.constant dense<0.000000e+00> : vector<9x9xf32>
    %120 = tpu.matmul %117, %118, %cst_56 {dimension_numbers = #tpu.dot_dimension_numbers<[1], [1], [0], [0], [0, 0, 1, 0], [], []>} : vector<9x8xf32>, vector<9x8xf32>, vector<9x9xf32> -> vector<9x9xf32>
    %cst_57 = arith.constant 0.353553385 : f32
    %121 = vector.broadcast %cst_57 : f32 to vector<9x9xf32>
    %122 = arith.mulf %120, %121 : vector<9x9xf32>
    %cst_58 = arith.constant dense<0xFF800000> : vector<9xf32>
    %123 = vector.multi_reduction <maximumf>, %122, %cst_58 [1] : vector<9x9xf32> to vector<9xf32>
    %124 = vector.shape_cast %123 : vector<9xf32> to vector<9x1xf32>
    %125 = vector.broadcast %124 : vector<9x1xf32> to vector<9x9xf32>
    %126 = arith.subf %122, %125 : vector<9x9xf32>
    %127 = math.exp %126 : vector<9x9xf32>
    %cst_59 = arith.constant dense<0.000000e+00> : vector<9xf32>
    %128 = vector.multi_reduction <add>, %127, %cst_59 [1] : vector<9x9xf32> to vector<9xf32>
    %129 = vector.shape_cast %128 : vector<9xf32> to vector<9x1xf32>
    %130 = tpu.reciprocal %129 {approx = true} : vector<9x1xf32> -> vector<9x1xf32>
    %131 = vector.broadcast %130 : vector<9x1xf32> to vector<9x9xf32>
    %132 = arith.mulf %127, %131 : vector<9x9xf32>
    %cst_60 = arith.constant dense<0.000000e+00> : vector<9x8xf32>
    %133 = tpu.matmul %132, %119, %cst_60 {dimension_numbers = #tpu.dot_dimension_numbers<[1], [0], [0], [1], [0, 0, 1, 1], [], []>} : vector<9x9xf32>, vector<9x8xf32>, vector<9x8xf32> -> vector<9x8xf32>
    %c0_61 = arith.constant 0 : index
    %c16 = arith.constant 16 : index
    %134 = vector.load %arg26[%c0_61, %c16] : memref<18x32xf32, #tpu.memory_space<vmem>>, vector<9x8xf32>
    tpu.vector_store %arg26[%c0_61, %c16], %133 {strides = array<i32>} : memref<18x32xf32, #tpu.memory_space<vmem>>, vector<9x8xf32>,
    %135 = vector.extract_strided_slice %78 {offsets = [0, 24], sizes = [9, 8], strides = [1, 1]} : vector<18x32xf32> to vector<9x8xf32>
    %136 = vector.extract_strided_slice %79 {offsets = [0, 24], sizes = [9, 8], strides = [1, 1]} : vector<18x32xf32> to vector<9x8xf32>
    %137 = vector.extract_strided_slice %80 {offsets = [0, 24], sizes = [9, 8], strides = [1, 1]} : vector<18x32xf32> to vector<9x8xf32>
    %cst_62 = arith.constant dense<0.000000e+00> : vector<9x9xf32>
    %138 = tpu.matmul %135, %136, %cst_62 {dimension_numbers = #tpu.dot_dimension_numbers<[1], [1], [0], [0], [0, 0, 1, 0], [], []>} : vector<9x8xf32>, vector<9x8xf32>, vector<9x9xf32> -> vector<9x9xf32>
    %cst_63 = arith.constant 0.353553385 : f32
    %139 = vector.broadcast %cst_63 : f32 to vector<9x9xf32>
    %140 = arith.mulf %138, %139 : vector<9x9xf32>
    %cst_64 = arith.constant dense<0xFF800000> : vector<9xf32>
    %141 = vector.multi_reduction <maximumf>, %140, %cst_64 [1] : vector<9x9xf32> to vector<9xf32>
    %142 = vector.shape_cast %141 : vector<9xf32> to vector<9x1xf32>
    %143 = vector.broadcast %142 : vector<9x1xf32> to vector<9x9xf32>
    %144 = arith.subf %140, %143 : vector<9x9xf32>
    %145 = math.exp %144 : vector<9x9xf32>
    %cst_65 = arith.constant dense<0.000000e+00> : vector<9xf32>
    %146 = vector.multi_reduction <add>, %145, %cst_65 [1] : vector<9x9xf32> to vector<9xf32>
    %147 = vector.shape_cast %146 : vector<9xf32> to vector<9x1xf32>
    %148 = tpu.reciprocal %147 {approx = true} : vector<9x1xf32> -> vector<9x1xf32>
    %149 = vector.broadcast %148 : vector<9x1xf32> to vector<9x9xf32>
    %150 = arith.mulf %145, %149 : vector<9x9xf32>
    %cst_66 = arith.constant dense<0.000000e+00> : vector<9x8xf32>
    %151 = tpu.matmul %150, %137, %cst_66 {dimension_numbers = #tpu.dot_dimension_numbers<[1], [0], [0], [1], [0, 0, 1, 1], [], []>} : vector<9x9xf32>, vector<9x8xf32>, vector<9x8xf32> -> vector<9x8xf32>
    %c0_67 = arith.constant 0 : index
    %c24 = arith.constant 24 : index
    %152 = vector.load %arg26[%c0_67, %c24] : memref<18x32xf32, #tpu.memory_space<vmem>>, vector<9x8xf32>
    tpu.vector_store %arg26[%c0_67, %c24], %151 {strides = array<i32>} : memref<18x32xf32, #tpu.memory_space<vmem>>, vector<9x8xf32>,
    %153 = vector.extract_strided_slice %78 {offsets = [9, 0], sizes = [9, 8], strides = [1, 1]} : vector<18x32xf32> to vector<9x8xf32>
    %154 = vector.extract_strided_slice %79 {offsets = [9, 0], sizes = [9, 8], strides = [1, 1]} : vector<18x32xf32> to vector<9x8xf32>
    %155 = vector.extract_strided_slice %80 {offsets = [9, 0], sizes = [9, 8], strides = [1, 1]} : vector<18x32xf32> to vector<9x8xf32>
    %cst_68 = arith.constant dense<0.000000e+00> : vector<9x9xf32>
    %156 = tpu.matmul %153, %154, %cst_68 {dimension_numbers = #tpu.dot_dimension_numbers<[1], [1], [0], [0], [0, 0, 1, 0], [], []>} : vector<9x8xf32>, vector<9x8xf32>, vector<9x9xf32> -> vector<9x9xf32>
    %cst_69 = arith.constant 0.353553385 : f32
    %157 = vector.broadcast %cst_69 : f32 to vector<9x9xf32>
    %158 = arith.mulf %156, %157 : vector<9x9xf32>
    %cst_70 = arith.constant dense<0xFF800000> : vector<9xf32>
    %159 = vector.multi_reduction <maximumf>, %158, %cst_70 [1] : vector<9x9xf32> to vector<9xf32>
    %160 = vector.shape_cast %159 : vector<9xf32> to vector<9x1xf32>
    %161 = vector.broadcast %160 : vector<9x1xf32> to vector<9x9xf32>
    %162 = arith.subf %158, %161 : vector<9x9xf32>
    %163 = math.exp %162 : vector<9x9xf32>
    %cst_71 = arith.constant dense<0.000000e+00> : vector<9xf32>
    %164 = vector.multi_reduction <add>, %163, %cst_71 [1] : vector<9x9xf32> to vector<9xf32>
    %165 = vector.shape_cast %164 : vector<9xf32> to vector<9x1xf32>
    %166 = tpu.reciprocal %165 {approx = true} : vector<9x1xf32> -> vector<9x1xf32>
    %167 = vector.broadcast %166 : vector<9x1xf32> to vector<9x9xf32>
    %168 = arith.mulf %163, %167 : vector<9x9xf32>
    %cst_72 = arith.constant dense<0.000000e+00> : vector<9x8xf32>
    %169 = tpu.matmul %168, %155, %cst_72 {dimension_numbers = #tpu.dot_dimension_numbers<[1], [0], [0], [1], [0, 0, 1, 1], [], []>} : vector<9x9xf32>, vector<9x8xf32>, vector<9x8xf32> -> vector<9x8xf32>
    %c9_73 = arith.constant 9 : index
    %c0_74 = arith.constant 0 : index
    %170 = vector.load %arg26[%c9_73, %c0_74] : memref<18x32xf32, #tpu.memory_space<vmem>>, vector<9x8xf32>
    tpu.vector_store %arg26[%c9_73, %c0_74], %169 {strides = array<i32>} : memref<18x32xf32, #tpu.memory_space<vmem>>, vector<9x8xf32>,
    %171 = vector.extract_strided_slice %78 {offsets = [9, 8], sizes = [9, 8], strides = [1, 1]} : vector<18x32xf32> to vector<9x8xf32>
    %172 = vector.extract_strided_slice %79 {offsets = [9, 8], sizes = [9, 8], strides = [1, 1]} : vector<18x32xf32> to vector<9x8xf32>
    %173 = vector.extract_strided_slice %80 {offsets = [9, 8], sizes = [9, 8], strides = [1, 1]} : vector<18x32xf32> to vector<9x8xf32>
    %cst_75 = arith.constant dense<0.000000e+00> : vector<9x9xf32>
    %174 = tpu.matmul %171, %172, %cst_75 {dimension_numbers = #tpu.dot_dimension_numbers<[1], [1], [0], [0], [0, 0, 1, 0], [], []>} : vector<9x8xf32>, vector<9x8xf32>, vector<9x9xf32> -> vector<9x9xf32>
    %cst_76 = arith.constant 0.353553385 : f32
    %175 = vector.broadcast %cst_76 : f32 to vector<9x9xf32>
    %176 = arith.mulf %174, %175 : vector<9x9xf32>
    %cst_77 = arith.constant dense<0xFF800000> : vector<9xf32>
    %177 = vector.multi_reduction <maximumf>, %176, %cst_77 [1] : vector<9x9xf32> to vector<9xf32>
    %178 = vector.shape_cast %177 : vector<9xf32> to vector<9x1xf32>
    %179 = vector.broadcast %178 : vector<9x1xf32> to vector<9x9xf32>
    %180 = arith.subf %176, %179 : vector<9x9xf32>
    %181 = math.exp %180 : vector<9x9xf32>
    %cst_78 = arith.constant dense<0.000000e+00> : vector<9xf32>
    %182 = vector.multi_reduction <add>, %181, %cst_78 [1] : vector<9x9xf32> to vector<9xf32>
    %183 = vector.shape_cast %182 : vector<9xf32> to vector<9x1xf32>
    %184 = tpu.reciprocal %183 {approx = true} : vector<9x1xf32> -> vector<9x1xf32>
    %185 = vector.broadcast %184 : vector<9x1xf32> to vector<9x9xf32>
    %186 = arith.mulf %181, %185 : vector<9x9xf32>
    %cst_79 = arith.constant dense<0.000000e+00> : vector<9x8xf32>
    %187 = tpu.matmul %186, %173, %cst_79 {dimension_numbers = #tpu.dot_dimension_numbers<[1], [0], [0], [1], [0, 0, 1, 1], [], []>} : vector<9x9xf32>, vector<9x8xf32>, vector<9x8xf32> -> vector<9x8xf32>
    %c9_80 = arith.constant 9 : index
    %c8_81 = arith.constant 8 : index
    %188 = vector.load %arg26[%c9_80, %c8_81] : memref<18x32xf32, #tpu.memory_space<vmem>>, vector<9x8xf32>
    tpu.vector_store %arg26[%c9_80, %c8_81], %187 {strides = array<i32>} : memref<18x32xf32, #tpu.memory_space<vmem>>, vector<9x8xf32>,
    %189 = vector.extract_strided_slice %78 {offsets = [9, 16], sizes = [9, 8], strides = [1, 1]} : vector<18x32xf32> to vector<9x8xf32>
    %190 = vector.extract_strided_slice %79 {offsets = [9, 16], sizes = [9, 8], strides = [1, 1]} : vector<18x32xf32> to vector<9x8xf32>
    %191 = vector.extract_strided_slice %80 {offsets = [9, 16], sizes = [9, 8], strides = [1, 1]} : vector<18x32xf32> to vector<9x8xf32>
    %cst_82 = arith.constant dense<0.000000e+00> : vector<9x9xf32>
    %192 = tpu.matmul %189, %190, %cst_82 {dimension_numbers = #tpu.dot_dimension_numbers<[1], [1], [0], [0], [0, 0, 1, 0], [], []>} : vector<9x8xf32>, vector<9x8xf32>, vector<9x9xf32> -> vector<9x9xf32>
    %cst_83 = arith.constant 0.353553385 : f32
    %193 = vector.broadcast %cst_83 : f32 to vector<9x9xf32>
    %194 = arith.mulf %192, %193 : vector<9x9xf32>
    %cst_84 = arith.constant dense<0xFF800000> : vector<9xf32>
    %195 = vector.multi_reduction <maximumf>, %194, %cst_84 [1] : vector<9x9xf32> to vector<9xf32>
    %196 = vector.shape_cast %195 : vector<9xf32> to vector<9x1xf32>
    %197 = vector.broadcast %196 : vector<9x1xf32> to vector<9x9xf32>
    %198 = arith.subf %194, %197 : vector<9x9xf32>
    %199 = math.exp %198 : vector<9x9xf32>
    %cst_85 = arith.constant dense<0.000000e+00> : vector<9xf32>
    %200 = vector.multi_reduction <add>, %199, %cst_85 [1] : vector<9x9xf32> to vector<9xf32>
    %201 = vector.shape_cast %200 : vector<9xf32> to vector<9x1xf32>
    %202 = tpu.reciprocal %201 {approx = true} : vector<9x1xf32> -> vector<9x1xf32>
    %203 = vector.broadcast %202 : vector<9x1xf32> to vector<9x9xf32>
    %204 = arith.mulf %199, %203 : vector<9x9xf32>
    %cst_86 = arith.constant dense<0.000000e+00> : vector<9x8xf32>
    %205 = tpu.matmul %204, %191, %cst_86 {dimension_numbers = #tpu.dot_dimension_numbers<[1], [0], [0], [1], [0, 0, 1, 1], [], []>} : vector<9x9xf32>, vector<9x8xf32>, vector<9x8xf32> -> vector<9x8xf32>
    %c9_87 = arith.constant 9 : index
    %c16_88 = arith.constant 16 : index
    %206 = vector.load %arg26[%c9_87, %c16_88] : memref<18x32xf32, #tpu.memory_space<vmem>>, vector<9x8xf32>
    tpu.vector_store %arg26[%c9_87, %c16_88], %205 {strides = array<i32>} : memref<18x32xf32, #tpu.memory_space<vmem>>, vector<9x8xf32>,
    %207 = vector.extract_strided_slice %78 {offsets = [9, 24], sizes = [9, 8], strides = [1, 1]} : vector<18x32xf32> to vector<9x8xf32>
    %208 = vector.extract_strided_slice %79 {offsets = [9, 24], sizes = [9, 8], strides = [1, 1]} : vector<18x32xf32> to vector<9x8xf32>
    %209 = vector.extract_strided_slice %80 {offsets = [9, 24], sizes = [9, 8], strides = [1, 1]} : vector<18x32xf32> to vector<9x8xf32>
    %cst_89 = arith.constant dense<0.000000e+00> : vector<9x9xf32>
    %210 = tpu.matmul %207, %208, %cst_89 {dimension_numbers = #tpu.dot_dimension_numbers<[1], [1], [0], [0], [0, 0, 1, 0], [], []>} : vector<9x8xf32>, vector<9x8xf32>, vector<9x9xf32> -> vector<9x9xf32>
    %cst_90 = arith.constant 0.353553385 : f32
    %211 = vector.broadcast %cst_90 : f32 to vector<9x9xf32>
    %212 = arith.mulf %210, %211 : vector<9x9xf32>
    %cst_91 = arith.constant dense<0xFF800000> : vector<9xf32>
    %213 = vector.multi_reduction <maximumf>, %212, %cst_91 [1] : vector<9x9xf32> to vector<9xf32>
    %214 = vector.shape_cast %213 : vector<9xf32> to vector<9x1xf32>
    %215 = vector.broadcast %214 : vector<9x1xf32> to vector<9x9xf32>
    %216 = arith.subf %212, %215 : vector<9x9xf32>
    %217 = math.exp %216 : vector<9x9xf32>
    %cst_92 = arith.constant dense<0.000000e+00> : vector<9xf32>
    %218 = vector.multi_reduction <add>, %217, %cst_92 [1] : vector<9x9xf32> to vector<9xf32>
    %219 = vector.shape_cast %218 : vector<9xf32> to vector<9x1xf32>
    %220 = tpu.reciprocal %219 {approx = true} : vector<9x1xf32> -> vector<9x1xf32>
    %221 = vector.broadcast %220 : vector<9x1xf32> to vector<9x9xf32>
    %222 = arith.mulf %217, %221 : vector<9x9xf32>
    %cst_93 = arith.constant dense<0.000000e+00> : vector<9x8xf32>
    %223 = tpu.matmul %222, %209, %cst_93 {dimension_numbers = #tpu.dot_dimension_numbers<[1], [0], [0], [1], [0, 0, 1, 1], [], []>} : vector<9x9xf32>, vector<9x8xf32>, vector<9x8xf32> -> vector<9x8xf32>
    %c9_94 = arith.constant 9 : index
    %c24_95 = arith.constant 24 : index
    %224 = vector.load %arg26[%c9_94, %c24_95] : memref<18x32xf32, #tpu.memory_space<vmem>>, vector<9x8xf32>
    tpu.vector_store %arg26[%c9_94, %c24_95], %223 {strides = array<i32>} : memref<18x32xf32, #tpu.memory_space<vmem>>, vector<9x8xf32>,
    %c0_96 = arith.constant 0 : index
    %c0_97 = arith.constant 0 : index
    %225 = vector.load %arg26[%c0_96, %c0_97] : memref<18x32xf32, #tpu.memory_space<vmem>>, vector<18x32xf32>
    %c0_98 = arith.constant 0 : index
    %c0_99 = arith.constant 0 : index
    %c0_100 = arith.constant 0 : index
    %226 = vector.load %arg12[%c0_98, %c0_99, %c0_100] : memref<2x32x32xf32, #tpu.memory_space<vmem>>, vector<1x32x32xf32>
    %227 = vector.shape_cast %226 : vector<1x32x32xf32> to vector<32x32xf32>
    %cst_101 = arith.constant dense<0.000000e+00> : vector<18x32xf32>
    %228 = tpu.matmul %225, %227, %cst_101 {dimension_numbers = #tpu.dot_dimension_numbers<[1], [0], [0], [1], [0, 0, 1, 1], [], []>} : vector<18x32xf32>, vector<32x32xf32>, vector<18x32xf32> -> vector<18x32xf32>
    %c0_102 = arith.constant 0 : index
    %c0_103 = arith.constant 0 : index
    %c0_104 = arith.constant 0 : index
    %229 = vector.load %arg13[%c0_102, %c0_103, %c0_104] : memref<2x1x32xf32, #tpu.memory_space<vmem>>, vector<1x1x32xf32>
    %230 = vector.shape_cast %229 : vector<1x1x32xf32> to vector<1x32xf32>
    %231 = vector.broadcast %230 : vector<1x32xf32> to vector<18x32xf32>
    %232 = arith.addf %228, %231 : vector<18x32xf32>
    %233 = arith.addf %44, %232 : vector<18x32xf32>
    %c0_105 = arith.constant 0 : index
    %c0_106 = arith.constant 0 : index
    %c0_107 = arith.constant 0 : index
    %234 = vector.load %arg14[%c0_105, %c0_106, %c0_107] : memref<2x1x32xf32, #tpu.memory_space<vmem>>, vector<1x1x32xf32>
    %235 = vector.shape_cast %234 : vector<1x1x32xf32> to vector<1x32xf32>
    %c0_108 = arith.constant 0 : index
    %c0_109 = arith.constant 0 : index
    %c0_110 = arith.constant 0 : index
    %236 = vector.load %arg15[%c0_108, %c0_109, %c0_110] : memref<2x1x32xf32, #tpu.memory_space<vmem>>, vector<1x1x32xf32>
    %237 = vector.shape_cast %236 : vector<1x1x32xf32> to vector<1x32xf32>
    %cst_111 = arith.constant dense<0.000000e+00> : vector<18xf32>
    %238 = vector.multi_reduction <add>, %233, %cst_111 [1] : vector<18x32xf32> to vector<18xf32>
    %239 = vector.shape_cast %238 : vector<18xf32> to vector<18x1xf32>
    %cst_112 = arith.constant 3.200000e+01 : f32
    %240 = vector.broadcast %cst_112 : f32 to vector<18x1xf32>
    %241 = arith.divf %239, %240 : vector<18x1xf32>
    %242 = vector.broadcast %241 : vector<18x1xf32> to vector<18x32xf32>
    %243 = arith.subf %233, %242 : vector<18x32xf32>
    %244 = arith.mulf %243, %243 : vector<18x32xf32>
    %cst_113 = arith.constant dense<0.000000e+00> : vector<18xf32>
    %245 = vector.multi_reduction <add>, %244, %cst_113 [1] : vector<18x32xf32> to vector<18xf32>
    %246 = vector.shape_cast %245 : vector<18xf32> to vector<18x1xf32>
    %cst_114 = arith.constant 3.200000e+01 : f32
    %247 = vector.broadcast %cst_114 : f32 to vector<18x1xf32>
    %248 = arith.divf %246, %247 : vector<18x1xf32>
    %249 = vector.broadcast %241 : vector<18x1xf32> to vector<18x32xf32>
    %250 = arith.subf %233, %249 : vector<18x32xf32>
    %cst_115 = arith.constant 9.99999997E-7 : f32
    %251 = vector.broadcast %cst_115 : f32 to vector<18x1xf32>
    %252 = arith.addf %248, %251 : vector<18x1xf32>
    %253 = math.rsqrt %252 : vector<18x1xf32>
    %254 = vector.broadcast %253 : vector<18x1xf32> to vector<18x32xf32>
    %255 = arith.mulf %250, %254 : vector<18x32xf32>
    %256 = vector.broadcast %235 : vector<1x32xf32> to vector<18x32xf32>
    %257 = arith.mulf %255, %256 : vector<18x32xf32>
    %258 = vector.broadcast %237 : vector<1x32xf32> to vector<18x32xf32>
    %259 = arith.addf %257, %258 : vector<18x32xf32>
    %c0_116 = arith.constant 0 : index
    %c0_117 = arith.constant 0 : index
    %c0_118 = arith.constant 0 : index
    %260 = vector.load %arg16[%c0_116, %c0_117, %c0_118] : memref<2x32x128xf32, #tpu.memory_space<vmem>>, vector<1x32x128xf32>
    %261 = vector.shape_cast %260 : vector<1x32x128xf32> to vector<32x128xf32>
    %cst_119 = arith.constant dense<0.000000e+00> : vector<18x128xf32>
    %262 = tpu.matmul %259, %261, %cst_119 {dimension_numbers = #tpu.dot_dimension_numbers<[1], [0], [0], [1], [0, 0, 1, 1], [], []>} : vector<18x32xf32>, vector<32x128xf32>, vector<18x128xf32> -> vector<18x128xf32>
    %c0_120 = arith.constant 0 : index
    %c0_121 = arith.constant 0 : index
    %c0_122 = arith.constant 0 : index
    %263 = vector.load %arg17[%c0_120, %c0_121, %c0_122] : memref<2x1x128xf32, #tpu.memory_space<vmem>>, vector<1x1x128xf32>
    %264 = vector.shape_cast %263 : vector<1x1x128xf32> to vector<1x128xf32>
    %265 = vector.broadcast %264 : vector<1x128xf32> to vector<18x128xf32>
    %266 = arith.addf %262, %265 : vector<18x128xf32>
    %cst_123 = arith.constant 5.000000e-01 : f32
    %267 = vector.broadcast %cst_123 : f32 to vector<18x128xf32>
    %268 = arith.mulf %267, %266 : vector<18x128xf32>
    %cst_124 = arith.constant 4.471500e-02 : f32
    %269 = vector.broadcast %cst_124 : f32 to vector<18x128xf32>
    %270 = arith.mulf %269, %266 : vector<18x128xf32>
    %271 = arith.mulf %270, %266 : vector<18x128xf32>
    %272 = arith.mulf %271, %266 : vector<18x128xf32>
    %273 = arith.addf %266, %272 : vector<18x128xf32>
    %cst_125 = arith.constant 0.797884583 : f32
    %274 = vector.broadcast %cst_125 : f32 to vector<18x128xf32>
    %275 = arith.mulf %274, %273 : vector<18x128xf32>
    %276 = math.tanh %275 : vector<18x128xf32>
    %cst_126 = arith.constant 1.000000e+00 : f32
    %277 = vector.broadcast %cst_126 : f32 to vector<18x128xf32>
    %278 = arith.addf %277, %276 : vector<18x128xf32>
    %279 = arith.mulf %268, %278 : vector<18x128xf32>
    %c0_127 = arith.constant 0 : index
    %c0_128 = arith.constant 0 : index
    %c0_129 = arith.constant 0 : index
    %280 = vector.load %arg18[%c0_127, %c0_128, %c0_129] : memref<2x128x32xf32, #tpu.memory_space<vmem>>, vector<1x128x32xf32>
    %281 = vector.shape_cast %280 : vector<1x128x32xf32> to vector<128x32xf32>
    %cst_130 = arith.constant dense<0.000000e+00> : vector<18x32xf32>
    %282 = tpu.matmul %279, %281, %cst_130 {dimension_numbers = #tpu.dot_dimension_numbers<[1], [0], [0], [1], [0, 0, 1, 1], [], []>} : vector<18x128xf32>, vector<128x32xf32>, vector<18x32xf32> -> vector<18x32xf32>
    %c0_131 = arith.constant 0 : index
    %c0_132 = arith.constant 0 : index
    %c0_133 = arith.constant 0 : index
    %283 = vector.load %arg19[%c0_131, %c0_132, %c0_133] : memref<2x1x32xf32, #tpu.memory_space<vmem>>, vector<1x1x32xf32>
    %284 = vector.shape_cast %283 : vector<1x1x32xf32> to vector<1x32xf32>
    %285 = vector.broadcast %284 : vector<1x32xf32> to vector<18x32xf32>
    %286 = arith.addf %282, %285 : vector<18x32xf32>
    %287 = arith.addf %233, %286 : vector<18x32xf32>
    %c1_134 = arith.constant 1 : index
    %c0_135 = arith.constant 0 : index
    %c0_136 = arith.constant 0 : index
    %288 = vector.load %arg8[%c1_134, %c0_135, %c0_136] : memref<2x1x32xf32, #tpu.memory_space<vmem>>, vector<1x1x32xf32>
    %289 = vector.shape_cast %288 : vector<1x1x32xf32> to vector<1x32xf32>
    %c1_137 = arith.constant 1 : index
    %c0_138 = arith.constant 0 : index
    %c0_139 = arith.constant 0 : index
    %290 = vector.load %arg9[%c1_137, %c0_138, %c0_139] : memref<2x1x32xf32, #tpu.memory_space<vmem>>, vector<1x1x32xf32>
    %291 = vector.shape_cast %290 : vector<1x1x32xf32> to vector<1x32xf32>
    %cst_140 = arith.constant dense<0.000000e+00> : vector<18xf32>
    %292 = vector.multi_reduction <add>, %287, %cst_140 [1] : vector<18x32xf32> to vector<18xf32>
    %293 = vector.shape_cast %292 : vector<18xf32> to vector<18x1xf32>
    %cst_141 = arith.constant 3.200000e+01 : f32
    %294 = vector.broadcast %cst_141 : f32 to vector<18x1xf32>
    %295 = arith.divf %293, %294 : vector<18x1xf32>
    %296 = vector.broadcast %295 : vector<18x1xf32> to vector<18x32xf32>
    %297 = arith.subf %287, %296 : vector<18x32xf32>
    %298 = arith.mulf %297, %297 : vector<18x32xf32>
    %cst_142 = arith.constant dense<0.000000e+00> : vector<18xf32>
    %299 = vector.multi_reduction <add>, %298, %cst_142 [1] : vector<18x32xf32> to vector<18xf32>
    %300 = vector.shape_cast %299 : vector<18xf32> to vector<18x1xf32>
    %cst_143 = arith.constant 3.200000e+01 : f32
    %301 = vector.broadcast %cst_143 : f32 to vector<18x1xf32>
    %302 = arith.divf %300, %301 : vector<18x1xf32>
    %303 = vector.broadcast %295 : vector<18x1xf32> to vector<18x32xf32>
    %304 = arith.subf %287, %303 : vector<18x32xf32>
    %cst_144 = arith.constant 9.99999997E-7 : f32
    %305 = vector.broadcast %cst_144 : f32 to vector<18x1xf32>
    %306 = arith.addf %302, %305 : vector<18x1xf32>
    %307 = math.rsqrt %306 : vector<18x1xf32>
    %308 = vector.broadcast %307 : vector<18x1xf32> to vector<18x32xf32>
    %309 = arith.mulf %304, %308 : vector<18x32xf32>
    %310 = vector.broadcast %289 : vector<1x32xf32> to vector<18x32xf32>
    %311 = arith.mulf %309, %310 : vector<18x32xf32>
    %312 = vector.broadcast %291 : vector<1x32xf32> to vector<18x32xf32>
    %313 = arith.addf %311, %312 : vector<18x32xf32>
    %c1_145 = arith.constant 1 : index
    %c0_146 = arith.constant 0 : index
    %c0_147 = arith.constant 0 : index
    %314 = vector.load %arg10[%c1_145, %c0_146, %c0_147] : memref<2x32x96xf32, #tpu.memory_space<vmem>>, vector<1x32x96xf32>
    %315 = vector.shape_cast %314 : vector<1x32x96xf32> to vector<32x96xf32>
    %cst_148 = arith.constant dense<0.000000e+00> : vector<18x96xf32>
    %316 = tpu.matmul %313, %315, %cst_148 {dimension_numbers = #tpu.dot_dimension_numbers<[1], [0], [0], [1], [0, 0, 1, 1], [], []>} : vector<18x32xf32>, vector<32x96xf32>, vector<18x96xf32> -> vector<18x96xf32>
    %c1_149 = arith.constant 1 : index
    %c0_150 = arith.constant 0 : index
    %c0_151 = arith.constant 0 : index
    %317 = vector.load %arg11[%c1_149, %c0_150, %c0_151] : memref<2x1x96xf32, #tpu.memory_space<vmem>>, vector<1x1x96xf32>
    %318 = vector.shape_cast %317 : vector<1x1x96xf32> to vector<1x96xf32>
    %319 = vector.broadcast %318 : vector<1x96xf32> to vector<18x96xf32>
    %320 = arith.addf %316, %319 : vector<18x96xf32>
    %321 = vector.extract_strided_slice %320 {offsets = [0, 0], sizes = [18, 32], strides = [1, 1]} : vector<18x96xf32> to vector<18x32xf32>
    %322 = vector.extract_strided_slice %320 {offsets = [0, 32], sizes = [18, 32], strides = [1, 1]} : vector<18x96xf32> to vector<18x32xf32>
    %323 = vector.extract_strided_slice %320 {offsets = [0, 64], sizes = [18, 32], strides = [1, 1]} : vector<18x96xf32> to vector<18x32xf32>
    %324 = vector.extract_strided_slice %321 {offsets = [0, 0], sizes = [9, 8], strides = [1, 1]} : vector<18x32xf32> to vector<9x8xf32>
    %325 = vector.extract_strided_slice %322 {offsets = [0, 0], sizes = [9, 8], strides = [1, 1]} : vector<18x32xf32> to vector<9x8xf32>
    %326 = vector.extract_strided_slice %323 {offsets = [0, 0], sizes = [9, 8], strides = [1, 1]} : vector<18x32xf32> to vector<9x8xf32>
    %cst_152 = arith.constant dense<0.000000e+00> : vector<9x9xf32>
    %327 = tpu.matmul %324, %325, %cst_152 {dimension_numbers = #tpu.dot_dimension_numbers<[1], [1], [0], [0], [0, 0, 1, 0], [], []>} : vector<9x8xf32>, vector<9x8xf32>, vector<9x9xf32> -> vector<9x9xf32>
    %cst_153 = arith.constant 0.353553385 : f32
    %328 = vector.broadcast %cst_153 : f32 to vector<9x9xf32>
    %329 = arith.mulf %327, %328 : vector<9x9xf32>
    %cst_154 = arith.constant dense<0xFF800000> : vector<9xf32>
    %330 = vector.multi_reduction <maximumf>, %329, %cst_154 [1] : vector<9x9xf32> to vector<9xf32>
    %331 = vector.shape_cast %330 : vector<9xf32> to vector<9x1xf32>
    %332 = vector.broadcast %331 : vector<9x1xf32> to vector<9x9xf32>
    %333 = arith.subf %329, %332 : vector<9x9xf32>
    %334 = math.exp %333 : vector<9x9xf32>
    %cst_155 = arith.constant dense<0.000000e+00> : vector<9xf32>
    %335 = vector.multi_reduction <add>, %334, %cst_155 [1] : vector<9x9xf32> to vector<9xf32>
    %336 = vector.shape_cast %335 : vector<9xf32> to vector<9x1xf32>
    %337 = tpu.reciprocal %336 {approx = true} : vector<9x1xf32> -> vector<9x1xf32>
    %338 = vector.broadcast %337 : vector<9x1xf32> to vector<9x9xf32>
    %339 = arith.mulf %334, %338 : vector<9x9xf32>
    %cst_156 = arith.constant dense<0.000000e+00> : vector<9x8xf32>
    %340 = tpu.matmul %339, %326, %cst_156 {dimension_numbers = #tpu.dot_dimension_numbers<[1], [0], [0], [1], [0, 0, 1, 1], [], []>} : vector<9x9xf32>, vector<9x8xf32>, vector<9x8xf32> -> vector<9x8xf32>
    %c0_157 = arith.constant 0 : index
    %c0_158 = arith.constant 0 : index
    %341 = vector.load %arg26[%c0_157, %c0_158] : memref<18x32xf32, #tpu.memory_space<vmem>>, vector<9x8xf32>
    tpu.vector_store %arg26[%c0_157, %c0_158], %340 {strides = array<i32>} : memref<18x32xf32, #tpu.memory_space<vmem>>, vector<9x8xf32>,
    %342 = vector.extract_strided_slice %321 {offsets = [0, 8], sizes = [9, 8], strides = [1, 1]} : vector<18x32xf32> to vector<9x8xf32>
    %343 = vector.extract_strided_slice %322 {offsets = [0, 8], sizes = [9, 8], strides = [1, 1]} : vector<18x32xf32> to vector<9x8xf32>
    %344 = vector.extract_strided_slice %323 {offsets = [0, 8], sizes = [9, 8], strides = [1, 1]} : vector<18x32xf32> to vector<9x8xf32>
    %cst_159 = arith.constant dense<0.000000e+00> : vector<9x9xf32>
    %345 = tpu.matmul %342, %343, %cst_159 {dimension_numbers = #tpu.dot_dimension_numbers<[1], [1], [0], [0], [0, 0, 1, 0], [], []>} : vector<9x8xf32>, vector<9x8xf32>, vector<9x9xf32> -> vector<9x9xf32>
    %cst_160 = arith.constant 0.353553385 : f32
    %346 = vector.broadcast %cst_160 : f32 to vector<9x9xf32>
    %347 = arith.mulf %345, %346 : vector<9x9xf32>
    %cst_161 = arith.constant dense<0xFF800000> : vector<9xf32>
    %348 = vector.multi_reduction <maximumf>, %347, %cst_161 [1] : vector<9x9xf32> to vector<9xf32>
    %349 = vector.shape_cast %348 : vector<9xf32> to vector<9x1xf32>
    %350 = vector.broadcast %349 : vector<9x1xf32> to vector<9x9xf32>
    %351 = arith.subf %347, %350 : vector<9x9xf32>
    %352 = math.exp %351 : vector<9x9xf32>
    %cst_162 = arith.constant dense<0.000000e+00> : vector<9xf32>
    %353 = vector.multi_reduction <add>, %352, %cst_162 [1] : vector<9x9xf32> to vector<9xf32>
    %354 = vector.shape_cast %353 : vector<9xf32> to vector<9x1xf32>
    %355 = tpu.reciprocal %354 {approx = true} : vector<9x1xf32> -> vector<9x1xf32>
    %356 = vector.broadcast %355 : vector<9x1xf32> to vector<9x9xf32>
    %357 = arith.mulf %352, %356 : vector<9x9xf32>
    %cst_163 = arith.constant dense<0.000000e+00> : vector<9x8xf32>
    %358 = tpu.matmul %357, %344, %cst_163 {dimension_numbers = #tpu.dot_dimension_numbers<[1], [0], [0], [1], [0, 0, 1, 1], [], []>} : vector<9x9xf32>, vector<9x8xf32>, vector<9x8xf32> -> vector<9x8xf32>
    %c0_164 = arith.constant 0 : index
    %c8_165 = arith.constant 8 : index
    %359 = vector.load %arg26[%c0_164, %c8_165] : memref<18x32xf32, #tpu.memory_space<vmem>>, vector<9x8xf32>
    tpu.vector_store %arg26[%c0_164, %c8_165], %358 {strides = array<i32>} : memref<18x32xf32, #tpu.memory_space<vmem>>, vector<9x8xf32>,
    %360 = vector.extract_strided_slice %321 {offsets = [0, 16], sizes = [9, 8], strides = [1, 1]} : vector<18x32xf32> to vector<9x8xf32>
    %361 = vector.extract_strided_slice %322 {offsets = [0, 16], sizes = [9, 8], strides = [1, 1]} : vector<18x32xf32> to vector<9x8xf32>
    %362 = vector.extract_strided_slice %323 {offsets = [0, 16], sizes = [9, 8], strides = [1, 1]} : vector<18x32xf32> to vector<9x8xf32>
    %cst_166 = arith.constant dense<0.000000e+00> : vector<9x9xf32>
    %363 = tpu.matmul %360, %361, %cst_166 {dimension_numbers = #tpu.dot_dimension_numbers<[1], [1], [0], [0], [0, 0, 1, 0], [], []>} : vector<9x8xf32>, vector<9x8xf32>, vector<9x9xf32> -> vector<9x9xf32>
    %cst_167 = arith.constant 0.353553385 : f32
    %364 = vector.broadcast %cst_167 : f32 to vector<9x9xf32>
    %365 = arith.mulf %363, %364 : vector<9x9xf32>
    %cst_168 = arith.constant dense<0xFF800000> : vector<9xf32>
    %366 = vector.multi_reduction <maximumf>, %365, %cst_168 [1] : vector<9x9xf32> to vector<9xf32>
    %367 = vector.shape_cast %366 : vector<9xf32> to vector<9x1xf32>
    %368 = vector.broadcast %367 : vector<9x1xf32> to vector<9x9xf32>
    %369 = arith.subf %365, %368 : vector<9x9xf32>
    %370 = math.exp %369 : vector<9x9xf32>
    %cst_169 = arith.constant dense<0.000000e+00> : vector<9xf32>
    %371 = vector.multi_reduction <add>, %370, %cst_169 [1] : vector<9x9xf32> to vector<9xf32>
    %372 = vector.shape_cast %371 : vector<9xf32> to vector<9x1xf32>
    %373 = tpu.reciprocal %372 {approx = true} : vector<9x1xf32> -> vector<9x1xf32>
    %374 = vector.broadcast %373 : vector<9x1xf32> to vector<9x9xf32>
    %375 = arith.mulf %370, %374 : vector<9x9xf32>
    %cst_170 = arith.constant dense<0.000000e+00> : vector<9x8xf32>
    %376 = tpu.matmul %375, %362, %cst_170 {dimension_numbers = #tpu.dot_dimension_numbers<[1], [0], [0], [1], [0, 0, 1, 1], [], []>} : vector<9x9xf32>, vector<9x8xf32>, vector<9x8xf32> -> vector<9x8xf32>
    %c0_171 = arith.constant 0 : index
    %c16_172 = arith.constant 16 : index
    %377 = vector.load %arg26[%c0_171, %c16_172] : memref<18x32xf32, #tpu.memory_space<vmem>>, vector<9x8xf32>
    tpu.vector_store %arg26[%c0_171, %c16_172], %376 {strides = array<i32>} : memref<18x32xf32, #tpu.memory_space<vmem>>, vector<9x8xf32>,
    %378 = vector.extract_strided_slice %321 {offsets = [0, 24], sizes = [9, 8], strides = [1, 1]} : vector<18x32xf32> to vector<9x8xf32>
    %379 = vector.extract_strided_slice %322 {offsets = [0, 24], sizes = [9, 8], strides = [1, 1]} : vector<18x32xf32> to vector<9x8xf32>
    %380 = vector.extract_strided_slice %323 {offsets = [0, 24], sizes = [9, 8], strides = [1, 1]} : vector<18x32xf32> to vector<9x8xf32>
    %cst_173 = arith.constant dense<0.000000e+00> : vector<9x9xf32>
    %381 = tpu.matmul %378, %379, %cst_173 {dimension_numbers = #tpu.dot_dimension_numbers<[1], [1], [0], [0], [0, 0, 1, 0], [], []>} : vector<9x8xf32>, vector<9x8xf32>, vector<9x9xf32> -> vector<9x9xf32>
    %cst_174 = arith.constant 0.353553385 : f32
    %382 = vector.broadcast %cst_174 : f32 to vector<9x9xf32>
    %383 = arith.mulf %381, %382 : vector<9x9xf32>
    %cst_175 = arith.constant dense<0xFF800000> : vector<9xf32>
    %384 = vector.multi_reduction <maximumf>, %383, %cst_175 [1] : vector<9x9xf32> to vector<9xf32>
    %385 = vector.shape_cast %384 : vector<9xf32> to vector<9x1xf32>
    %386 = vector.broadcast %385 : vector<9x1xf32> to vector<9x9xf32>
    %387 = arith.subf %383, %386 : vector<9x9xf32>
    %388 = math.exp %387 : vector<9x9xf32>
    %cst_176 = arith.constant dense<0.000000e+00> : vector<9xf32>
    %389 = vector.multi_reduction <add>, %388, %cst_176 [1] : vector<9x9xf32> to vector<9xf32>
    %390 = vector.shape_cast %389 : vector<9xf32> to vector<9x1xf32>
    %391 = tpu.reciprocal %390 {approx = true} : vector<9x1xf32> -> vector<9x1xf32>
    %392 = vector.broadcast %391 : vector<9x1xf32> to vector<9x9xf32>
    %393 = arith.mulf %388, %392 : vector<9x9xf32>
    %cst_177 = arith.constant dense<0.000000e+00> : vector<9x8xf32>
    %394 = tpu.matmul %393, %380, %cst_177 {dimension_numbers = #tpu.dot_dimension_numbers<[1], [0], [0], [1], [0, 0, 1, 1], [], []>} : vector<9x9xf32>, vector<9x8xf32>, vector<9x8xf32> -> vector<9x8xf32>
    %c0_178 = arith.constant 0 : index
    %c24_179 = arith.constant 24 : index
    %395 = vector.load %arg26[%c0_178, %c24_179] : memref<18x32xf32, #tpu.memory_space<vmem>>, vector<9x8xf32>
    tpu.vector_store %arg26[%c0_178, %c24_179], %394 {strides = array<i32>} : memref<18x32xf32, #tpu.memory_space<vmem>>, vector<9x8xf32>,
    %396 = vector.extract_strided_slice %321 {offsets = [9, 0], sizes = [9, 8], strides = [1, 1]} : vector<18x32xf32> to vector<9x8xf32>
    %397 = vector.extract_strided_slice %322 {offsets = [9, 0], sizes = [9, 8], strides = [1, 1]} : vector<18x32xf32> to vector<9x8xf32>
    %398 = vector.extract_strided_slice %323 {offsets = [9, 0], sizes = [9, 8], strides = [1, 1]} : vector<18x32xf32> to vector<9x8xf32>
    %cst_180 = arith.constant dense<0.000000e+00> : vector<9x9xf32>
    %399 = tpu.matmul %396, %397, %cst_180 {dimension_numbers = #tpu.dot_dimension_numbers<[1], [1], [0], [0], [0, 0, 1, 0], [], []>} : vector<9x8xf32>, vector<9x8xf32>, vector<9x9xf32> -> vector<9x9xf32>
    %cst_181 = arith.constant 0.353553385 : f32
    %400 = vector.broadcast %cst_181 : f32 to vector<9x9xf32>
    %401 = arith.mulf %399, %400 : vector<9x9xf32>
    %cst_182 = arith.constant dense<0xFF800000> : vector<9xf32>
    %402 = vector.multi_reduction <maximumf>, %401, %cst_182 [1] : vector<9x9xf32> to vector<9xf32>
    %403 = vector.shape_cast %402 : vector<9xf32> to vector<9x1xf32>
    %404 = vector.broadcast %403 : vector<9x1xf32> to vector<9x9xf32>
    %405 = arith.subf %401, %404 : vector<9x9xf32>
    %406 = math.exp %405 : vector<9x9xf32>
    %cst_183 = arith.constant dense<0.000000e+00> : vector<9xf32>
    %407 = vector.multi_reduction <add>, %406, %cst_183 [1] : vector<9x9xf32> to vector<9xf32>
    %408 = vector.shape_cast %407 : vector<9xf32> to vector<9x1xf32>
    %409 = tpu.reciprocal %408 {approx = true} : vector<9x1xf32> -> vector<9x1xf32>
    %410 = vector.broadcast %409 : vector<9x1xf32> to vector<9x9xf32>
    %411 = arith.mulf %406, %410 : vector<9x9xf32>
    %cst_184 = arith.constant dense<0.000000e+00> : vector<9x8xf32>
    %412 = tpu.matmul %411, %398, %cst_184 {dimension_numbers = #tpu.dot_dimension_numbers<[1], [0], [0], [1], [0, 0, 1, 1], [], []>} : vector<9x9xf32>, vector<9x8xf32>, vector<9x8xf32> -> vector<9x8xf32>
    %c9_185 = arith.constant 9 : index
    %c0_186 = arith.constant 0 : index
    %413 = vector.load %arg26[%c9_185, %c0_186] : memref<18x32xf32, #tpu.memory_space<vmem>>, vector<9x8xf32>
    tpu.vector_store %arg26[%c9_185, %c0_186], %412 {strides = array<i32>} : memref<18x32xf32, #tpu.memory_space<vmem>>, vector<9x8xf32>,
    %414 = vector.extract_strided_slice %321 {offsets = [9, 8], sizes = [9, 8], strides = [1, 1]} : vector<18x32xf32> to vector<9x8xf32>
    %415 = vector.extract_strided_slice %322 {offsets = [9, 8], sizes = [9, 8], strides = [1, 1]} : vector<18x32xf32> to vector<9x8xf32>
    %416 = vector.extract_strided_slice %323 {offsets = [9, 8], sizes = [9, 8], strides = [1, 1]} : vector<18x32xf32> to vector<9x8xf32>
    %cst_187 = arith.constant dense<0.000000e+00> : vector<9x9xf32>
    %417 = tpu.matmul %414, %415, %cst_187 {dimension_numbers = #tpu.dot_dimension_numbers<[1], [1], [0], [0], [0, 0, 1, 0], [], []>} : vector<9x8xf32>, vector<9x8xf32>, vector<9x9xf32> -> vector<9x9xf32>
    %cst_188 = arith.constant 0.353553385 : f32
    %418 = vector.broadcast %cst_188 : f32 to vector<9x9xf32>
    %419 = arith.mulf %417, %418 : vector<9x9xf32>
    %cst_189 = arith.constant dense<0xFF800000> : vector<9xf32>
    %420 = vector.multi_reduction <maximumf>, %419, %cst_189 [1] : vector<9x9xf32> to vector<9xf32>
    %421 = vector.shape_cast %420 : vector<9xf32> to vector<9x1xf32>
    %422 = vector.broadcast %421 : vector<9x1xf32> to vector<9x9xf32>
    %423 = arith.subf %419, %422 : vector<9x9xf32>
    %424 = math.exp %423 : vector<9x9xf32>
    %cst_190 = arith.constant dense<0.000000e+00> : vector<9xf32>
    %425 = vector.multi_reduction <add>, %424, %cst_190 [1] : vector<9x9xf32> to vector<9xf32>
    %426 = vector.shape_cast %425 : vector<9xf32> to vector<9x1xf32>
    %427 = tpu.reciprocal %426 {approx = true} : vector<9x1xf32> -> vector<9x1xf32>
    %428 = vector.broadcast %427 : vector<9x1xf32> to vector<9x9xf32>
    %429 = arith.mulf %424, %428 : vector<9x9xf32>
    %cst_191 = arith.constant dense<0.000000e+00> : vector<9x8xf32>
    %430 = tpu.matmul %429, %416, %cst_191 {dimension_numbers = #tpu.dot_dimension_numbers<[1], [0], [0], [1], [0, 0, 1, 1], [], []>} : vector<9x9xf32>, vector<9x8xf32>, vector<9x8xf32> -> vector<9x8xf32>
    %c9_192 = arith.constant 9 : index
    %c8_193 = arith.constant 8 : index
    %431 = vector.load %arg26[%c9_192, %c8_193] : memref<18x32xf32, #tpu.memory_space<vmem>>, vector<9x8xf32>
    tpu.vector_store %arg26[%c9_192, %c8_193], %430 {strides = array<i32>} : memref<18x32xf32, #tpu.memory_space<vmem>>, vector<9x8xf32>,
    %432 = vector.extract_strided_slice %321 {offsets = [9, 16], sizes = [9, 8], strides = [1, 1]} : vector<18x32xf32> to vector<9x8xf32>
    %433 = vector.extract_strided_slice %322 {offsets = [9, 16], sizes = [9, 8], strides = [1, 1]} : vector<18x32xf32> to vector<9x8xf32>
    %434 = vector.extract_strided_slice %323 {offsets = [9, 16], sizes = [9, 8], strides = [1, 1]} : vector<18x32xf32> to vector<9x8xf32>
    %cst_194 = arith.constant dense<0.000000e+00> : vector<9x9xf32>
    %435 = tpu.matmul %432, %433, %cst_194 {dimension_numbers = #tpu.dot_dimension_numbers<[1], [1], [0], [0], [0, 0, 1, 0], [], []>} : vector<9x8xf32>, vector<9x8xf32>, vector<9x9xf32> -> vector<9x9xf32>
    %cst_195 = arith.constant 0.353553385 : f32
    %436 = vector.broadcast %cst_195 : f32 to vector<9x9xf32>
    %437 = arith.mulf %435, %436 : vector<9x9xf32>
    %cst_196 = arith.constant dense<0xFF800000> : vector<9xf32>
    %438 = vector.multi_reduction <maximumf>, %437, %cst_196 [1] : vector<9x9xf32> to vector<9xf32>
    %439 = vector.shape_cast %438 : vector<9xf32> to vector<9x1xf32>
    %440 = vector.broadcast %439 : vector<9x1xf32> to vector<9x9xf32>
    %441 = arith.subf %437, %440 : vector<9x9xf32>
    %442 = math.exp %441 : vector<9x9xf32>
    %cst_197 = arith.constant dense<0.000000e+00> : vector<9xf32>
    %443 = vector.multi_reduction <add>, %442, %cst_197 [1] : vector<9x9xf32> to vector<9xf32>
    %444 = vector.shape_cast %443 : vector<9xf32> to vector<9x1xf32>
    %445 = tpu.reciprocal %444 {approx = true} : vector<9x1xf32> -> vector<9x1xf32>
    %446 = vector.broadcast %445 : vector<9x1xf32> to vector<9x9xf32>
    %447 = arith.mulf %442, %446 : vector<9x9xf32>
    %cst_198 = arith.constant dense<0.000000e+00> : vector<9x8xf32>
    %448 = tpu.matmul %447, %434, %cst_198 {dimension_numbers = #tpu.dot_dimension_numbers<[1], [0], [0], [1], [0, 0, 1, 1], [], []>} : vector<9x9xf32>, vector<9x8xf32>, vector<9x8xf32> -> vector<9x8xf32>
    %c9_199 = arith.constant 9 : index
    %c16_200 = arith.constant 16 : index
    %449 = vector.load %arg26[%c9_199, %c16_200] : memref<18x32xf32, #tpu.memory_space<vmem>>, vector<9x8xf32>
    tpu.vector_store %arg26[%c9_199, %c16_200], %448 {strides = array<i32>} : memref<18x32xf32, #tpu.memory_space<vmem>>, vector<9x8xf32>,
    %450 = vector.extract_strided_slice %321 {offsets = [9, 24], sizes = [9, 8], strides = [1, 1]} : vector<18x32xf32> to vector<9x8xf32>
    %451 = vector.extract_strided_slice %322 {offsets = [9, 24], sizes = [9, 8], strides = [1, 1]} : vector<18x32xf32> to vector<9x8xf32>
    %452 = vector.extract_strided_slice %323 {offsets = [9, 24], sizes = [9, 8], strides = [1, 1]} : vector<18x32xf32> to vector<9x8xf32>
    %cst_201 = arith.constant dense<0.000000e+00> : vector<9x9xf32>
    %453 = tpu.matmul %450, %451, %cst_201 {dimension_numbers = #tpu.dot_dimension_numbers<[1], [1], [0], [0], [0, 0, 1, 0], [], []>} : vector<9x8xf32>, vector<9x8xf32>, vector<9x9xf32> -> vector<9x9xf32>
    %cst_202 = arith.constant 0.353553385 : f32
    %454 = vector.broadcast %cst_202 : f32 to vector<9x9xf32>
    %455 = arith.mulf %453, %454 : vector<9x9xf32>
    %cst_203 = arith.constant dense<0xFF800000> : vector<9xf32>
    %456 = vector.multi_reduction <maximumf>, %455, %cst_203 [1] : vector<9x9xf32> to vector<9xf32>
    %457 = vector.shape_cast %456 : vector<9xf32> to vector<9x1xf32>
    %458 = vector.broadcast %457 : vector<9x1xf32> to vector<9x9xf32>
    %459 = arith.subf %455, %458 : vector<9x9xf32>
    %460 = math.exp %459 : vector<9x9xf32>
    %cst_204 = arith.constant dense<0.000000e+00> : vector<9xf32>
    %461 = vector.multi_reduction <add>, %460, %cst_204 [1] : vector<9x9xf32> to vector<9xf32>
    %462 = vector.shape_cast %461 : vector<9xf32> to vector<9x1xf32>
    %463 = tpu.reciprocal %462 {approx = true} : vector<9x1xf32> -> vector<9x1xf32>
    %464 = vector.broadcast %463 : vector<9x1xf32> to vector<9x9xf32>
    %465 = arith.mulf %460, %464 : vector<9x9xf32>
    %cst_205 = arith.constant dense<0.000000e+00> : vector<9x8xf32>
    %466 = tpu.matmul %465, %452, %cst_205 {dimension_numbers = #tpu.dot_dimension_numbers<[1], [0], [0], [1], [0, 0, 1, 1], [], []>} : vector<9x9xf32>, vector<9x8xf32>, vector<9x8xf32> -> vector<9x8xf32>
    %c9_206 = arith.constant 9 : index
    %c24_207 = arith.constant 24 : index
    %467 = vector.load %arg26[%c9_206, %c24_207] : memref<18x32xf32, #tpu.memory_space<vmem>>, vector<9x8xf32>
    tpu.vector_store %arg26[%c9_206, %c24_207], %466 {strides = array<i32>} : memref<18x32xf32, #tpu.memory_space<vmem>>, vector<9x8xf32>,
    %c0_208 = arith.constant 0 : index
    %c0_209 = arith.constant 0 : index
    %468 = vector.load %arg26[%c0_208, %c0_209] : memref<18x32xf32, #tpu.memory_space<vmem>>, vector<18x32xf32>
    %c1_210 = arith.constant 1 : index
    %c0_211 = arith.constant 0 : index
    %c0_212 = arith.constant 0 : index
    %469 = vector.load %arg12[%c1_210, %c0_211, %c0_212] : memref<2x32x32xf32, #tpu.memory_space<vmem>>, vector<1x32x32xf32>
    %470 = vector.shape_cast %469 : vector<1x32x32xf32> to vector<32x32xf32>
    %cst_213 = arith.constant dense<0.000000e+00> : vector<18x32xf32>
    %471 = tpu.matmul %468, %470, %cst_213 {dimension_numbers = #tpu.dot_dimension_numbers<[1], [0], [0], [1], [0, 0, 1, 1], [], []>} : vector<18x32xf32>, vector<32x32xf32>, vector<18x32xf32> -> vector<18x32xf32>
    %c1_214 = arith.constant 1 : index
    %c0_215 = arith.constant 0 : index
    %c0_216 = arith.constant 0 : index
    %472 = vector.load %arg13[%c1_214, %c0_215, %c0_216] : memref<2x1x32xf32, #tpu.memory_space<vmem>>, vector<1x1x32xf32>
    %473 = vector.shape_cast %472 : vector<1x1x32xf32> to vector<1x32xf32>
    %474 = vector.broadcast %473 : vector<1x32xf32> to vector<18x32xf32>
    %475 = arith.addf %471, %474 : vector<18x32xf32>
    %476 = arith.addf %287, %475 : vector<18x32xf32>
    %c1_217 = arith.constant 1 : index
    %c0_218 = arith.constant 0 : index
    %c0_219 = arith.constant 0 : index
    %477 = vector.load %arg14[%c1_217, %c0_218, %c0_219] : memref<2x1x32xf32, #tpu.memory_space<vmem>>, vector<1x1x32xf32>
    %478 = vector.shape_cast %477 : vector<1x1x32xf32> to vector<1x32xf32>
    %c1_220 = arith.constant 1 : index
    %c0_221 = arith.constant 0 : index
    %c0_222 = arith.constant 0 : index
    %479 = vector.load %arg15[%c1_220, %c0_221, %c0_222] : memref<2x1x32xf32, #tpu.memory_space<vmem>>, vector<1x1x32xf32>
    %480 = vector.shape_cast %479 : vector<1x1x32xf32> to vector<1x32xf32>
    %cst_223 = arith.constant dense<0.000000e+00> : vector<18xf32>
    %481 = vector.multi_reduction <add>, %476, %cst_223 [1] : vector<18x32xf32> to vector<18xf32>
    %482 = vector.shape_cast %481 : vector<18xf32> to vector<18x1xf32>
    %cst_224 = arith.constant 3.200000e+01 : f32
    %483 = vector.broadcast %cst_224 : f32 to vector<18x1xf32>
    %484 = arith.divf %482, %483 : vector<18x1xf32>
    %485 = vector.broadcast %484 : vector<18x1xf32> to vector<18x32xf32>
    %486 = arith.subf %476, %485 : vector<18x32xf32>
    %487 = arith.mulf %486, %486 : vector<18x32xf32>
    %cst_225 = arith.constant dense<0.000000e+00> : vector<18xf32>
    %488 = vector.multi_reduction <add>, %487, %cst_225 [1] : vector<18x32xf32> to vector<18xf32>
    %489 = vector.shape_cast %488 : vector<18xf32> to vector<18x1xf32>
    %cst_226 = arith.constant 3.200000e+01 : f32
    %490 = vector.broadcast %cst_226 : f32 to vector<18x1xf32>
    %491 = arith.divf %489, %490 : vector<18x1xf32>
    %492 = vector.broadcast %484 : vector<18x1xf32> to vector<18x32xf32>
    %493 = arith.subf %476, %492 : vector<18x32xf32>
    %cst_227 = arith.constant 9.99999997E-7 : f32
    %494 = vector.broadcast %cst_227 : f32 to vector<18x1xf32>
    %495 = arith.addf %491, %494 : vector<18x1xf32>
    %496 = math.rsqrt %495 : vector<18x1xf32>
    %497 = vector.broadcast %496 : vector<18x1xf32> to vector<18x32xf32>
    %498 = arith.mulf %493, %497 : vector<18x32xf32>
    %499 = vector.broadcast %478 : vector<1x32xf32> to vector<18x32xf32>
    %500 = arith.mulf %498, %499 : vector<18x32xf32>
    %501 = vector.broadcast %480 : vector<1x32xf32> to vector<18x32xf32>
    %502 = arith.addf %500, %501 : vector<18x32xf32>
    %c1_228 = arith.constant 1 : index
    %c0_229 = arith.constant 0 : index
    %c0_230 = arith.constant 0 : index
    %503 = vector.load %arg16[%c1_228, %c0_229, %c0_230] : memref<2x32x128xf32, #tpu.memory_space<vmem>>, vector<1x32x128xf32>
    %504 = vector.shape_cast %503 : vector<1x32x128xf32> to vector<32x128xf32>
    %cst_231 = arith.constant dense<0.000000e+00> : vector<18x128xf32>
    %505 = tpu.matmul %502, %504, %cst_231 {dimension_numbers = #tpu.dot_dimension_numbers<[1], [0], [0], [1], [0, 0, 1, 1], [], []>} : vector<18x32xf32>, vector<32x128xf32>, vector<18x128xf32> -> vector<18x128xf32>
    %c1_232 = arith.constant 1 : index
    %c0_233 = arith.constant 0 : index
    %c0_234 = arith.constant 0 : index
    %506 = vector.load %arg17[%c1_232, %c0_233, %c0_234] : memref<2x1x128xf32, #tpu.memory_space<vmem>>, vector<1x1x128xf32>
    %507 = vector.shape_cast %506 : vector<1x1x128xf32> to vector<1x128xf32>
    %508 = vector.broadcast %507 : vector<1x128xf32> to vector<18x128xf32>
    %509 = arith.addf %505, %508 : vector<18x128xf32>
    %cst_235 = arith.constant 5.000000e-01 : f32
    %510 = vector.broadcast %cst_235 : f32 to vector<18x128xf32>
    %511 = arith.mulf %510, %509 : vector<18x128xf32>
    %cst_236 = arith.constant 4.471500e-02 : f32
    %512 = vector.broadcast %cst_236 : f32 to vector<18x128xf32>
    %513 = arith.mulf %512, %509 : vector<18x128xf32>
    %514 = arith.mulf %513, %509 : vector<18x128xf32>
    %515 = arith.mulf %514, %509 : vector<18x128xf32>
    %516 = arith.addf %509, %515 : vector<18x128xf32>
    %cst_237 = arith.constant 0.797884583 : f32
    %517 = vector.broadcast %cst_237 : f32 to vector<18x128xf32>
    %518 = arith.mulf %517, %516 : vector<18x128xf32>
    %519 = math.tanh %518 : vector<18x128xf32>
    %cst_238 = arith.constant 1.000000e+00 : f32
    %520 = vector.broadcast %cst_238 : f32 to vector<18x128xf32>
    %521 = arith.addf %520, %519 : vector<18x128xf32>
    %522 = arith.mulf %511, %521 : vector<18x128xf32>
    %c1_239 = arith.constant 1 : index
    %c0_240 = arith.constant 0 : index
    %c0_241 = arith.constant 0 : index
    %523 = vector.load %arg18[%c1_239, %c0_240, %c0_241] : memref<2x128x32xf32, #tpu.memory_space<vmem>>, vector<1x128x32xf32>
    %524 = vector.shape_cast %523 : vector<1x128x32xf32> to vector<128x32xf32>
    %cst_242 = arith.constant dense<0.000000e+00> : vector<18x32xf32>
    %525 = tpu.matmul %522, %524, %cst_242 {dimension_numbers = #tpu.dot_dimension_numbers<[1], [0], [0], [1], [0, 0, 1, 1], [], []>} : vector<18x128xf32>, vector<128x32xf32>, vector<18x32xf32> -> vector<18x32xf32>
    %c1_243 = arith.constant 1 : index
    %c0_244 = arith.constant 0 : index
    %c0_245 = arith.constant 0 : index
    %526 = vector.load %arg19[%c1_243, %c0_244, %c0_245] : memref<2x1x32xf32, #tpu.memory_space<vmem>>, vector<1x1x32xf32>
    %527 = vector.shape_cast %526 : vector<1x1x32xf32> to vector<1x32xf32>
    %528 = vector.broadcast %527 : vector<1x32xf32> to vector<18x32xf32>
    %529 = arith.addf %525, %528 : vector<18x32xf32>
    %530 = arith.addf %476, %529 : vector<18x32xf32>
    %531 = vector.extract_strided_slice %530 {offsets = [0, 0], sizes = [1, 32], strides = [1, 1]} : vector<18x32xf32> to vector<1x32xf32>
    %c0_246 = arith.constant 0 : index
    %c0_247 = arith.constant 0 : index
    %532 = vector.load %arg20[%c0_246, %c0_247] : memref<1x32xf32, #tpu.memory_space<vmem>>, vector<1x32xf32>
    %c0_248 = arith.constant 0 : index
    %c0_249 = arith.constant 0 : index
    %533 = vector.load %arg21[%c0_248, %c0_249] : memref<1x32xf32, #tpu.memory_space<vmem>>, vector<1x32xf32>
    %cst_250 = arith.constant dense<0.000000e+00> : vector<1xf32>
    %534 = vector.multi_reduction <add>, %531, %cst_250 [1] : vector<1x32xf32> to vector<1xf32>
    %535 = vector.shape_cast %534 : vector<1xf32> to vector<1x1xf32>
    %cst_251 = arith.constant 3.200000e+01 : f32
    %536 = vector.broadcast %cst_251 : f32 to vector<1x1xf32>
    %537 = arith.divf %535, %536 : vector<1x1xf32>
    %538 = vector.broadcast %537 : vector<1x1xf32> to vector<1x32xf32>
    %539 = arith.subf %531, %538 : vector<1x32xf32>
    %540 = arith.mulf %539, %539 : vector<1x32xf32>
    %cst_252 = arith.constant dense<0.000000e+00> : vector<1xf32>
    %541 = vector.multi_reduction <add>, %540, %cst_252 [1] : vector<1x32xf32> to vector<1xf32>
    %542 = vector.shape_cast %541 : vector<1xf32> to vector<1x1xf32>
    %cst_253 = arith.constant 3.200000e+01 : f32
    %543 = vector.broadcast %cst_253 : f32 to vector<1x1xf32>
    %544 = arith.divf %542, %543 : vector<1x1xf32>
    %545 = vector.broadcast %537 : vector<1x1xf32> to vector<1x32xf32>
    %546 = arith.subf %531, %545 : vector<1x32xf32>
    %cst_254 = arith.constant 9.99999997E-7 : f32
    %547 = vector.broadcast %cst_254 : f32 to vector<1x1xf32>
    %548 = arith.addf %544, %547 : vector<1x1xf32>
    %549 = math.rsqrt %548 : vector<1x1xf32>
    %550 = vector.broadcast %549 : vector<1x1xf32> to vector<1x32xf32>
    %551 = arith.mulf %546, %550 : vector<1x32xf32>
    %552 = arith.mulf %551, %532 : vector<1x32xf32>
    %553 = arith.addf %552, %533 : vector<1x32xf32>
    %c0_255 = arith.constant 0 : index
    %c0_256 = arith.constant 0 : index
    %554 = vector.load %arg22[%c0_255, %c0_256] : memref<32x5xf32, #tpu.memory_space<vmem>>, vector<32x5xf32>
    %cst_257 = arith.constant dense<0.000000e+00> : vector<1x5xf32>
    %555 = tpu.matmul %553, %554, %cst_257 {dimension_numbers = #tpu.dot_dimension_numbers<[1], [0], [0], [1], [0, 0, 1, 1], [], []>} : vector<1x32xf32>, vector<32x5xf32>, vector<1x5xf32> -> vector<1x5xf32>
    %c0_258 = arith.constant 0 : index
    %c0_259 = arith.constant 0 : index
    %556 = vector.load %arg23[%c0_258, %c0_259] : memref<1x5xf32, #tpu.memory_space<vmem>>, vector<1x5xf32>
    %557 = arith.addf %555, %556 : vector<1x5xf32>
    %cst_260 = arith.constant dense<0xFF800000> : vector<1xf32>
    %558 = vector.multi_reduction <maximumf>, %557, %cst_260 [1] : vector<1x5xf32> to vector<1xf32>
    %559 = vector.shape_cast %558 : vector<1xf32> to vector<1x1xf32>
    %560 = vector.broadcast %559 : vector<1x1xf32> to vector<1x5xf32>
    %561 = arith.subf %557, %560 : vector<1x5xf32>
    %562 = math.exp %561 : vector<1x5xf32>
    %cst_261 = arith.constant dense<0.000000e+00> : vector<1xf32>
    %563 = vector.multi_reduction <add>, %562, %cst_261 [1] : vector<1x5xf32> to vector<1xf32>
    %564 = vector.shape_cast %563 : vector<1xf32> to vector<1x1xf32>
    %565 = tpu.reciprocal %564 {approx = true} : vector<1x1xf32> -> vector<1x1xf32>
    %566 = vector.broadcast %565 : vector<1x1xf32> to vector<1x5xf32>
    %567 = arith.mulf %562, %566 : vector<1x5xf32>
    %c0_262 = arith.constant 0 : index
    %c0_263 = arith.constant 0 : index
    %568 = vector.load %arg24[%c0_262, %c0_263] : memref<2x5xf32, #tpu.memory_space<vmem>>, vector<1x5xf32>
    tpu.vector_store %arg24[%c0_262, %c0_263], %567 {strides = array<i32>} : memref<2x5xf32, #tpu.memory_space<vmem>>, vector<1x5xf32>,
    %569 = vector.extract_strided_slice %530 {offsets = [9, 0], sizes = [1, 32], strides = [1, 1]} : vector<18x32xf32> to vector<1x32xf32>
    %c0_264 = arith.constant 0 : index
    %c0_265 = arith.constant 0 : index
    %570 = vector.load %arg20[%c0_264, %c0_265] : memref<1x32xf32, #tpu.memory_space<vmem>>, vector<1x32xf32>
    %c0_266 = arith.constant 0 : index
    %c0_267 = arith.constant 0 : index
    %571 = vector.load %arg21[%c0_266, %c0_267] : memref<1x32xf32, #tpu.memory_space<vmem>>, vector<1x32xf32>
    %cst_268 = arith.constant dense<0.000000e+00> : vector<1xf32>
    %572 = vector.multi_reduction <add>, %569, %cst_268 [1] : vector<1x32xf32> to vector<1xf32>
    %573 = vector.shape_cast %572 : vector<1xf32> to vector<1x1xf32>
    %cst_269 = arith.constant 3.200000e+01 : f32
    %574 = vector.broadcast %cst_269 : f32 to vector<1x1xf32>
    %575 = arith.divf %573, %574 : vector<1x1xf32>
    %576 = vector.broadcast %575 : vector<1x1xf32> to vector<1x32xf32>
    %577 = arith.subf %569, %576 : vector<1x32xf32>
    %578 = arith.mulf %577, %577 : vector<1x32xf32>
    %cst_270 = arith.constant dense<0.000000e+00> : vector<1xf32>
    %579 = vector.multi_reduction <add>, %578, %cst_270 [1] : vector<1x32xf32> to vector<1xf32>
    %580 = vector.shape_cast %579 : vector<1xf32> to vector<1x1xf32>
    %cst_271 = arith.constant 3.200000e+01 : f32
    %581 = vector.broadcast %cst_271 : f32 to vector<1x1xf32>
    %582 = arith.divf %580, %581 : vector<1x1xf32>
    %583 = vector.broadcast %575 : vector<1x1xf32> to vector<1x32xf32>
    %584 = arith.subf %569, %583 : vector<1x32xf32>
    %cst_272 = arith.constant 9.99999997E-7 : f32
    %585 = vector.broadcast %cst_272 : f32 to vector<1x1xf32>
    %586 = arith.addf %582, %585 : vector<1x1xf32>
    %587 = math.rsqrt %586 : vector<1x1xf32>
    %588 = vector.broadcast %587 : vector<1x1xf32> to vector<1x32xf32>
    %589 = arith.mulf %584, %588 : vector<1x32xf32>
    %590 = arith.mulf %589, %570 : vector<1x32xf32>
    %591 = arith.addf %590, %571 : vector<1x32xf32>
    %c0_273 = arith.constant 0 : index
    %c0_274 = arith.constant 0 : index
    %592 = vector.load %arg22[%c0_273, %c0_274] : memref<32x5xf32, #tpu.memory_space<vmem>>, vector<32x5xf32>
    %cst_275 = arith.constant dense<0.000000e+00> : vector<1x5xf32>
    %593 = tpu.matmul %591, %592, %cst_275 {dimension_numbers = #tpu.dot_dimension_numbers<[1], [0], [0], [1], [0, 0, 1, 1], [], []>} : vector<1x32xf32>, vector<32x5xf32>, vector<1x5xf32> -> vector<1x5xf32>
    %c0_276 = arith.constant 0 : index
    %c0_277 = arith.constant 0 : index
    %594 = vector.load %arg23[%c0_276, %c0_277] : memref<1x5xf32, #tpu.memory_space<vmem>>, vector<1x5xf32>
    %595 = arith.addf %593, %594 : vector<1x5xf32>
    %cst_278 = arith.constant dense<0xFF800000> : vector<1xf32>
    %596 = vector.multi_reduction <maximumf>, %595, %cst_278 [1] : vector<1x5xf32> to vector<1xf32>
    %597 = vector.shape_cast %596 : vector<1xf32> to vector<1x1xf32>
    %598 = vector.broadcast %597 : vector<1x1xf32> to vector<1x5xf32>
    %599 = arith.subf %595, %598 : vector<1x5xf32>
    %600 = math.exp %599 : vector<1x5xf32>
    %cst_279 = arith.constant dense<0.000000e+00> : vector<1xf32>
    %601 = vector.multi_reduction <add>, %600, %cst_279 [1] : vector<1x5xf32> to vector<1xf32>
    %602 = vector.shape_cast %601 : vector<1xf32> to vector<1x1xf32>
    %603 = tpu.reciprocal %602 {approx = true} : vector<1x1xf32> -> vector<1x1xf32>
    %604 = vector.broadcast %603 : vector<1x1xf32> to vector<1x5xf32>
    %605 = arith.mulf %600, %604 : vector<1x5xf32>
    %c1_280 = arith.constant 1 : index
    %c0_281 = arith.constant 0 : index
    %606 = vector.load %arg24[%c1_280, %c0_281] : memref<2x5xf32, #tpu.memory_space<vmem>>, vector<1x5xf32>
    tpu.vector_store %arg24[%c1_280, %c0_281], %605 {strides = array<i32>} : memref<2x5xf32, #tpu.memory_space<vmem>>, vector<1x5xf32>,
    return
  }
  func.func @transform_0(%arg0: i32) -> (i32, i32) {
    %c0_i32 = arith.constant 0 : i32
    %c0_i32_0 = arith.constant 0 : i32
    %c0_i32_1 = arith.constant 0 : i32
    return %c0_i32, %c0_i32_0 : i32, i32
  }
  func.func @transform_1(%arg0: i32) -> (i32, i32) {
    %c0_i32 = arith.constant 0 : i32
    %c0_i32_0 = arith.constant 0 : i32
    %c0_i32_1 = arith.constant 0 : i32
    return %c0_i32, %c0_i32_0 : i32, i32
  }
  func.func @transform_2(%arg0: i32) -> (i32, i32) {
    %c0_i32 = arith.constant 0 : i32
    %c0_i32_0 = arith.constant 0 : i32
    %c0_i32_1 = arith.constant 0 : i32
    return %c0_i32, %c0_i32_0 : i32, i32
  }
  func.func @transform_3(%arg0: i32) -> (i32, i32) {
    %c0_i32 = arith.constant 0 : i32
    %c0_i32_0 = arith.constant 0 : i32
    %c0_i32_1 = arith.constant 0 : i32
    return %c0_i32, %c0_i32_0 : i32, i32
  }
  func.func @transform_4(%arg0: i32) -> (i32, i32) {
    %c0_i32 = arith.constant 0 : i32
    %c0_i32_0 = arith.constant 0 : i32
    %c0_i32_1 = arith.constant 0 : i32
    return %c0_i32, %c0_i32_0 : i32, i32
  }
  func.func @transform_5(%arg0: i32) -> (i32, i32) {
    %c0_i32 = arith.constant 0 : i32
    %c0_i32_0 = arith.constant 0 : i32
    %c0_i32_1 = arith.constant 0 : i32
    return %c0_i32, %c0_i32_0 : i32, i32
  }
  func.func @transform_6(%arg0: i32) -> (i32, i32) {
    %c0_i32 = arith.constant 0 : i32
    %c0_i32_0 = arith.constant 0 : i32
    %c0_i32_1 = arith.constant 0 : i32
    return %c0_i32, %c0_i32_0 : i32, i32
  }
  func.func @transform_7(%arg0: i32) -> (i32, i32, i32) {
    %c0_i32 = arith.constant 0 : i32
    %c0_i32_0 = arith.constant 0 : i32
    %c0_i32_1 = arith.constant 0 : i32
    %c0_i32_2 = arith.constant 0 : i32
    return %c0_i32, %c0_i32_0, %c0_i32_1 : i32, i32, i32
  }
  func.func @transform_8(%arg0: i32) -> (i32, i32, i32) {
    %c0_i32 = arith.constant 0 : i32
    %c0_i32_0 = arith.constant 0 : i32
    %c0_i32_1 = arith.constant 0 : i32
    %c0_i32_2 = arith.constant 0 : i32
    return %c0_i32, %c0_i32_0, %c0_i32_1 : i32, i32, i32
  }
  func.func @transform_9(%arg0: i32) -> (i32, i32, i32) {
    %c0_i32 = arith.constant 0 : i32
    %c0_i32_0 = arith.constant 0 : i32
    %c0_i32_1 = arith.constant 0 : i32
    %c0_i32_2 = arith.constant 0 : i32
    return %c0_i32, %c0_i32_0, %c0_i32_1 : i32, i32, i32
  }
  func.func @transform_10(%arg0: i32) -> (i32, i32, i32) {
    %c0_i32 = arith.constant 0 : i32
    %c0_i32_0 = arith.constant 0 : i32
    %c0_i32_1 = arith.constant 0 : i32
    %c0_i32_2 = arith.constant 0 : i32
    return %c0_i32, %c0_i32_0, %c0_i32_1 : i32, i32, i32
  }
  func.func @transform_11(%arg0: i32) -> (i32, i32, i32) {
    %c0_i32 = arith.constant 0 : i32
    %c0_i32_0 = arith.constant 0 : i32
    %c0_i32_1 = arith.constant 0 : i32
    %c0_i32_2 = arith.constant 0 : i32
    return %c0_i32, %c0_i32_0, %c0_i32_1 : i32, i32, i32
  }
  func.func @transform_12(%arg0: i32) -> (i32, i32, i32) {
    %c0_i32 = arith.constant 0 : i32
    %c0_i32_0 = arith.constant 0 : i32
    %c0_i32_1 = arith.constant 0 : i32
    %c0_i32_2 = arith.constant 0 : i32
    return %c0_i32, %c0_i32_0, %c0_i32_1 : i32, i32, i32
  }
  func.func @transform_13(%arg0: i32) -> (i32, i32, i32) {
    %c0_i32 = arith.constant 0 : i32
    %c0_i32_0 = arith.constant 0 : i32
    %c0_i32_1 = arith.constant 0 : i32
    %c0_i32_2 = arith.constant 0 : i32
    return %c0_i32, %c0_i32_0, %c0_i32_1 : i32, i32, i32
  }
  func.func @transform_14(%arg0: i32) -> (i32, i32, i32) {
    %c0_i32 = arith.constant 0 : i32
    %c0_i32_0 = arith.constant 0 : i32
    %c0_i32_1 = arith.constant 0 : i32
    %c0_i32_2 = arith.constant 0 : i32
    return %c0_i32, %c0_i32_0, %c0_i32_1 : i32, i32, i32
  }
  func.func @transform_15(%arg0: i32) -> (i32, i32, i32) {
    %c0_i32 = arith.constant 0 : i32
    %c0_i32_0 = arith.constant 0 : i32
    %c0_i32_1 = arith.constant 0 : i32
    %c0_i32_2 = arith.constant 0 : i32
    return %c0_i32, %c0_i32_0, %c0_i32_1 : i32, i32, i32
  }
  func.func @transform_16(%arg0: i32) -> (i32, i32, i32) {
    %c0_i32 = arith.constant 0 : i32
    %c0_i32_0 = arith.constant 0 : i32
    %c0_i32_1 = arith.constant 0 : i32
    %c0_i32_2 = arith.constant 0 : i32
    return %c0_i32, %c0_i32_0, %c0_i32_1 : i32, i32, i32
  }
  func.func @transform_17(%arg0: i32) -> (i32, i32, i32) {
    %c0_i32 = arith.constant 0 : i32
    %c0_i32_0 = arith.constant 0 : i32
    %c0_i32_1 = arith.constant 0 : i32
    %c0_i32_2 = arith.constant 0 : i32
    return %c0_i32, %c0_i32_0, %c0_i32_1 : i32, i32, i32
  }
  func.func @transform_18(%arg0: i32) -> (i32, i32, i32) {
    %c0_i32 = arith.constant 0 : i32
    %c0_i32_0 = arith.constant 0 : i32
    %c0_i32_1 = arith.constant 0 : i32
    %c0_i32_2 = arith.constant 0 : i32
    return %c0_i32, %c0_i32_0, %c0_i32_1 : i32, i32, i32
  }
  func.func @transform_19(%arg0: i32) -> (i32, i32) {
    %c0_i32 = arith.constant 0 : i32
    %c0_i32_0 = arith.constant 0 : i32
    %c0_i32_1 = arith.constant 0 : i32
    return %c0_i32, %c0_i32_0 : i32, i32
  }
  func.func @transform_20(%arg0: i32) -> (i32, i32) {
    %c0_i32 = arith.constant 0 : i32
    %c0_i32_0 = arith.constant 0 : i32
    %c0_i32_1 = arith.constant 0 : i32
    return %c0_i32, %c0_i32_0 : i32, i32
  }
  func.func @transform_21(%arg0: i32) -> (i32, i32) {
    %c0_i32 = arith.constant 0 : i32
    %c0_i32_0 = arith.constant 0 : i32
    %c0_i32_1 = arith.constant 0 : i32
    return %c0_i32, %c0_i32_0 : i32, i32
  }
  func.func @transform_22(%arg0: i32) -> (i32, i32) {
    %c0_i32 = arith.constant 0 : i32
    %c0_i32_0 = arith.constant 0 : i32
    %c0_i32_1 = arith.constant 0 : i32
    return %c0_i32, %c0_i32_0 : i32, i32
  }
  func.func @transform_23(%arg0: i32) -> (i32, i32) {
    %c0_i32 = arith.constant 0 : i32
    %c0_i32_0 = arith.constant 0 : i32
    %c0_i32_1 = arith.constant 0 : i32
    return %c0_i32, %c0_i32_0 : i32, i32
  }
}

</mosaic_0001>

<llo_original>
// kernel: vit_forward_pallas.1
$region0: #{vit_forward_pallas.1}
  #allocation0 [shape = 'u32[]', space=smem, size = 0x4, offset = 0x4, fixed_abs, tag = 'smem constant byte address 0x4 - core index']
  #allocation1 [shape = 'u32[144,128]{1,0:T(1,128)}', space=vmem, size = 0x12000, scoped, tag = 'internal scratch']
  #allocation2 [shape = 'f32[18,32]{1,0:T(8,128)}', space=vmem, size = 0x3000, scoped, tag = 'scratch operand']
  #allocation3 [shape = 'f32[18,32]{1,0:T(8,128)}', space=vmem, size = 0x3000, scoped, tag = 'scratch operand']
  %s0 = inlined_call_operand.vmem [shape: f32[16,32], index: 0, kind: input, shape index: {}]
  %s1 = inlined_call_operand.vmem [shape: f32[32,32], index: 1, kind: input, shape index: {}]
  %s2 = inlined_call_operand.vmem [shape: f32[1,32], index: 2, kind: input, shape index: {}]
  %s3 = inlined_call_operand.vmem [shape: f32[1,32], index: 3, kind: input, shape index: {}]
  %s4 = inlined_call_operand.vmem [shape: f32[1,32], index: 4, kind: input, shape index: {}]
  %s5 = inlined_call_operand.vmem [shape: f32[1,32], index: 5, kind: input, shape index: {}]
  %s6 = inlined_call_operand.vmem [shape: f32[9,32], index: 6, kind: input, shape index: {}]
  %s7 = inlined_call_operand.vmem [shape: f32[2,1,32], index: 7, kind: input, shape index: {}]
  %s8 = inlined_call_operand.vmem [shape: f32[2,1,32], index: 8, kind: input, shape index: {}]
  %s9 = inlined_call_operand.vmem [shape: f32[2,32,96], index: 9, kind: input, shape index: {}]
  %s10 = inlined_call_operand.vmem [shape: f32[2,1,96], index: 10, kind: input, shape index: {}]
  %s11 = inlined_call_operand.vmem [shape: f32[2,32,32], index: 11, kind: input, shape index: {}]
  %s12 = inlined_call_operand.vmem [shape: f32[2,1,32], index: 12, kind: input, shape index: {}]
  %s13 = inlined_call_operand.vmem [shape: f32[2,1,32], index: 13, kind: input, shape index: {}]
  %s14 = inlined_call_operand.vmem [shape: f32[2,1,32], index: 14, kind: input, shape index: {}]
  %s15 = inlined_call_operand.vmem [shape: f32[2,32,128], index: 15, kind: input, shape index: {}]
  %s16 = inlined_call_operand.vmem [shape: f32[2,1,128], index: 16, kind: input, shape index: {}]
  %s17 = inlined_call_operand.vmem [shape: f32[2,128,32], index: 17, kind: input, shape index: {}]
  %s18 = inlined_call_operand.vmem [shape: f32[2,1,32], index: 18, kind: input, shape index: {}]
  %s19 = inlined_call_operand.vmem [shape: f32[1,32], index: 19, kind: input, shape index: {}]
  %s20 = inlined_call_operand.vmem [shape: f32[1,32], index: 20, kind: input, shape index: {}]
  %s21 = inlined_call_operand.vmem [shape: f32[32,5], index: 21, kind: input, shape index: {}]
  %s22 = inlined_call_operand.vmem [shape: f32[1,5], index: 22, kind: input, shape index: {}]
  %s23 = inlined_call_operand.hbm [shape: f32[2,5], index: 23, kind: output, shape index: {}]
  %s24 = sld [smem:[#allocation0]]
  $region102: #{vit_forward_pallas.1} parent=0
    _
  %s26 = ssub.s32 1, %s24
  %s27 = scalar_select 0, %s26, %s24
  $region1: #{vit_forward_pallas.1} parent=0
    #allocation4 [shape = 'u8[1024]{0}', space=vmem, size = 0x400, scoped, tag = 'output window, operand 0, single buffered']
    #allocation5 [shape = 's32[1]{0}', space=sflag, size = 0x4, scoped, tag = 'scoped memory for vit_forward_pallas.1']
    %28 = vsyncpa [#allocation5], 0
    // Predicated region
    $region2: #{vit_forward_pallas.1} parent=1 // pred_check
      _
    $region3: #{vit_forward_pallas.1} parent=1 // pred_check_branch
      %30 = sbr.rel (0) target = $region5
    $region4: #{vit_forward_pallas.1} parent=1 // pred_region
      _
    $region5: #{vit_forward_pallas.1} parent=1 // pred_fallthru
      _
    // Predicated region
    $region6: #{vit_forward_pallas.1} parent=1 // pred_check
      _
    $region7: #{vit_forward_pallas.1} parent=1 // pred_check_branch
      %32 = sbr.rel (0) target = $region9
    $region8: #{vit_forward_pallas.1} parent=1 // pred_region
      _
    $region9: #{vit_forward_pallas.1} parent=1 // pred_fallthru
      _
    // Predicated region
    $region10: #{vit_forward_pallas.1} parent=1 // pred_check
      _
    $region11: #{vit_forward_pallas.1} parent=1 // pred_check_branch
      %34 = sbr.rel (0) target = $region13
    $region12: #{vit_forward_pallas.1} parent=1 // pred_region
      _
    $region13: #{vit_forward_pallas.1} parent=1 // pred_fallthru
      _
    // Predicated region
    $region14: #{vit_forward_pallas.1} parent=1 // pred_check
      _
    $region15: #{vit_forward_pallas.1} parent=1 // pred_check_branch
      %36 = sbr.rel (0) target = $region17
    $region16: #{vit_forward_pallas.1} parent=1 // pred_region
      _
    $region17: #{vit_forward_pallas.1} parent=1 // pred_fallthru
      _
    // Predicated region
    $region18: #{vit_forward_pallas.1} parent=1 // pred_check
      _
    $region19: #{vit_forward_pallas.1} parent=1 // pred_check_branch
      %38 = sbr.rel (0) target = $region21
    $region20: #{vit_forward_pallas.1} parent=1 // pred_region
      _
    $region21: #{vit_forward_pallas.1} parent=1 // pred_fallthru
      _
    // Predicated region
    $region22: #{vit_forward_pallas.1} parent=1 // pred_check
      _
    $region23: #{vit_forward_pallas.1} parent=1 // pred_check_branch
      %40 = sbr.rel (0) target = $region25
    $region24: #{vit_forward_pallas.1} parent=1 // pred_region
      _
    $region25: #{vit_forward_pallas.1} parent=1 // pred_fallthru
      _
    // Predicated region
    $region26: #{vit_forward_pallas.1} parent=1 // pred_check
      _
    $region27: #{vit_forward_pallas.1} parent=1 // pred_check_branch
      %42 = sbr.rel (0) target = $region29
    $region28: #{vit_forward_pallas.1} parent=1 // pred_region
      _
    $region29: #{vit_forward_pallas.1} parent=1 // pred_fallthru
      _
    // Predicated region
    $region30: #{vit_forward_pallas.1} parent=1 // pred_check
      _
    $region31: #{vit_forward_pallas.1} parent=1 // pred_check_branch
      %44 = sbr.rel (0) target = $region33
    $region32: #{vit_forward_pallas.1} parent=1 // pred_region
      _
    $region33: #{vit_forward_pallas.1} parent=1 // pred_fallthru
      _
    // Predicated region
    $region34: #{vit_forward_pallas.1} parent=1 // pred_check
      _
    $region35: #{vit_forward_pallas.1} parent=1 // pred_check_branch
      %46 = sbr.rel (0) target = $region37
    $region36: #{vit_forward_pallas.1} parent=1 // pred_region
      _
    $region37: #{vit_forward_pallas.1} parent=1 // pred_fallthru
      _
    // Predicated region
    $region38: #{vit_forward_pallas.1} parent=1 // pred_check
      _
    $region39: #{vit_forward_pallas.1} parent=1 // pred_check_branch
      %48 = sbr.rel (0) target = $region41
    $region40: #{vit_forward_pallas.1} parent=1 // pred_region
      _
    $region41: #{vit_forward_pallas.1} parent=1 // pred_fallthru
      _
    // Predicated region
    $region42: #{vit_forward_pallas.1} parent=1 // pred_check
      _
    $region43: #{vit_forward_pallas.1} parent=1 // pred_check_branch
      %50 = sbr.rel (0) target = $region45
    $region44: #{vit_forward_pallas.1} parent=1 // pred_region
      _
    $region45: #{vit_forward_pallas.1} parent=1 // pred_fallthru
      _
    // Predicated region
    $region46: #{vit_forward_pallas.1} parent=1 // pred_check
      _
    $region47: #{vit_forward_pallas.1} parent=1 // pred_check_branch
      %52 = sbr.rel (0) target = $region49
    $region48: #{vit_forward_pallas.1} parent=1 // pred_region
      _
    $region49: #{vit_forward_pallas.1} parent=1 // pred_fallthru
      _
    // Predicated region
    $region50: #{vit_forward_pallas.1} parent=1 // pred_check
      _
    $region51: #{vit_forward_pallas.1} parent=1 // pred_check_branch
      %54 = sbr.rel (0) target = $region53
    $region52: #{vit_forward_pallas.1} parent=1 // pred_region
      _
    $region53: #{vit_forward_pallas.1} parent=1 // pred_fallthru
      _
    // Predicated region
    $region54: #{vit_forward_pallas.1} parent=1 // pred_check
      _
    $region55: #{vit_forward_pallas.1} parent=1 // pred_check_branch
      %56 = sbr.rel (0) target = $region57
    $region56: #{vit_forward_pallas.1} parent=1 // pred_region
      _
    $region57: #{vit_forward_pallas.1} parent=1 // pred_fallthru
      _
    // Predicated region
    $region58: #{vit_forward_pallas.1} parent=1 // pred_check
      _
    $region59: #{vit_forward_pallas.1} parent=1 // pred_check_branch
      %58 = sbr.rel (0) target = $region61
    $region60: #{vit_forward_pallas.1} parent=1 // pred_region
      _
    $region61: #{vit_forward_pallas.1} parent=1 // pred_fallthru
      _
    // Predicated region
    $region62: #{vit_forward_pallas.1} parent=1 // pred_check
      _
    $region63: #{vit_forward_pallas.1} parent=1 // pred_check_branch
      %60 = sbr.rel (0) target = $region65
    $region64: #{vit_forward_pallas.1} parent=1 // pred_region
      _
    $region65: #{vit_forward_pallas.1} parent=1 // pred_fallthru
      _
    // Predicated region
    $region66: #{vit_forward_pallas.1} parent=1 // pred_check
      _
    $region67: #{vit_forward_pallas.1} parent=1 // pred_check_branch
      %62 = sbr.rel (0) target = $region69
    $region68: #{vit_forward_pallas.1} parent=1 // pred_region
      _
    $region69: #{vit_forward_pallas.1} parent=1 // pred_fallthru
      _
    // Predicated region
    $region70: #{vit_forward_pallas.1} parent=1 // pred_check
      _
    $region71: #{vit_forward_pallas.1} parent=1 // pred_check_branch
      %64 = sbr.rel (0) target = $region73
    $region72: #{vit_forward_pallas.1} parent=1 // pred_region
      _
    $region73: #{vit_forward_pallas.1} parent=1 // pred_fallthru
      _
    // Predicated region
    $region74: #{vit_forward_pallas.1} parent=1 // pred_check
      _
    $region75: #{vit_forward_pallas.1} parent=1 // pred_check_branch
      %66 = sbr.rel (0) target = $region77
    $region76: #{vit_forward_pallas.1} parent=1 // pred_region
      _
    $region77: #{vit_forward_pallas.1} parent=1 // pred_fallthru
      _
    // Predicated region
    $region78: #{vit_forward_pallas.1} parent=1 // pred_check
      _
    $region79: #{vit_forward_pallas.1} parent=1 // pred_check_branch
      %68 = sbr.rel (0) target = $region81
    $region80: #{vit_forward_pallas.1} parent=1 // pred_region
      _
    $region81: #{vit_forward_pallas.1} parent=1 // pred_fallthru
      _
    // Predicated region
    $region82: #{vit_forward_pallas.1} parent=1 // pred_check
      _
    $region83: #{vit_forward_pallas.1} parent=1 // pred_check_branch
      %70 = sbr.rel (0) target = $region85
    $region84: #{vit_forward_pallas.1} parent=1 // pred_region
      _
    $region85: #{vit_forward_pallas.1} parent=1 // pred_fallthru
      _
    // Predicated region
    $region86: #{vit_forward_pallas.1} parent=1 // pred_check
      _
    $region87: #{vit_forward_pallas.1} parent=1 // pred_check_branch
      %72 = sbr.rel (0) target = $region89
    $region88: #{vit_forward_pallas.1} parent=1 // pred_region
      _
    $region89: #{vit_forward_pallas.1} parent=1 // pred_fallthru
      _
    // Predicated region
    $region90: #{vit_forward_pallas.1} parent=1 // pred_check
      _
    $region91: #{vit_forward_pallas.1} parent=1 // pred_check_branch
      %74 = sbr.rel (0) target = $region93
    $region92: #{vit_forward_pallas.1} parent=1 // pred_region
      _
    $region93: #{vit_forward_pallas.1} parent=1 // pred_fallthru
      _
    %v75 = vld [vmem:[%s0] sm:$0xff]
    %v76 = vld [vmem:[%s0 + $0x8] sm:$0xff]
    %v77 = vld [vmem:[%s1] sm:$0xff]
    %v78 = vld [vmem:[%s1 + $0x8] sm:$0xff]
    %v79 = vld [vmem:[%s1 + $0x10] sm:$0xff]
    %v80 = vld [vmem:[%s1 + $0x18] sm:$0xff]
    %v81 = vld [vmem:[%s2] sm:$0x1]
    %v83 = vlaneseq
    %v84 = vshrl.u32 %v83, 7
    %v85 = vsub.s32 0, %v84
    %v86 = vrot.slane %v81, %v85
    %vm88 = vcmask 261120
    %v90 = vsel %vm88, %v75, 0
    %v93 = vsel %vm88, %v76, 0
    %95 = vmatprep.subr.mxu0 0.0
    %96 = vmatpush1.msra.mxu0 %v77
    %97 = vmatprep.subr.mxu0 0.0
    %98 = vmatpush1.msra.mxu0 %v78
    %99 = vmatprep.subr.mxu0 0.0
    %100 = vmatpush1.msra.mxu0 %v79
    %101 = vmatprep.subr.mxu0 0.0
    %102 = vmatpush1.msra.mxu0 %v80
    %103 = vmatprep.subr.mxu0 0.0
    %104 = vmatpush1.msra.mxu0 0.0
    %105 = vmatprep.subr.mxu0 0.0
    %106 = vmatpush1.msra.mxu0 0.0
    %107 = vmatprep.subr.mxu0 0.0
    %108 = vmatpush1.msra.mxu0 0.0
    %109 = vmatprep.subr.mxu0 0.0
    %110 = vmatpush1.msra.mxu0 0.0
    %111 = vmatprep.subr.mxu0 0.0
    %112 = vmatpush1.msra.mxu0 0.0
    %113 = vmatprep.subr.mxu0 0.0
    %114 = vmatpush1.msra.mxu0 0.0
    %115 = vmatprep.subr.mxu0 0.0
    %116 = vmatpush1.msra.mxu0 0.0
    %117 = vmatprep.subr.mxu0 0.0
    %118 = vmatpush1.msra.mxu0 0.0
    %119 = vmatprep.subr.mxu0 0.0
    %120 = vmatpush1.msra.mxu0 0.0
    %121 = vmatprep.subr.mxu0 0.0
    %122 = vmatpush1.msra.mxu0 0.0
    %123 = vmatprep.subr.mxu0 0.0
    %124 = vmatpush1.msra.mxu0 0.0
    %125 = vmatprep.subr.mxu0 0.0
    %126 = vmatpush1.msra.mxu0 0.0
    %127 = vmatprep.subr.mxu0 0.0
    %128 = vmatpush1.msra.mxu0 0.0
    %129 = vmatprep.subr.mxu0 0.0
    %130 = vmatpush1.msra.mxu0 0.0
    %131 = vmatprep.subr.mxu0 0.0
    %132 = vmatpush1.msra.mxu0 0.0
    %133 = vmatprep.subr.mxu0 0.0
    %134 = vmatpush1.msra.mxu0 0.0
    %135 = vmatprep.subr.mxu0 0.0
    %136 = vmatpush1.msra.mxu0 0.0
    %137 = vmatprep.subr.mxu0 0.0
    %138 = vmatpush1.msra.mxu0 0.0
    %139 = vmatprep.subr.mxu0 0.0
    %140 = vmatpush1.msra.mxu0 0.0
    %141 = vmatprep.subr.mxu0 0.0
    %142 = vmatpush1.msra.mxu0 0.0
    %143 = vmatprep.subr.mxu0 0.0
    %144 = vmatpush1.msra.mxu0 0.0
    %145 = vmatprep.subr.mxu0 0.0
    %146 = vmatpush1.msra.mxu0 0.0
    %147 = vmatprep.subr.mxu0 0.0
    %148 = vmatpush1.msra.mxu0 0.0
    %149 = vmatprep.subr.mxu0 0.0
    %150 = vmatpush1.msra.mxu0 0.0
    %151 = vmatprep.subr.mxu0 0.0
    %152 = vmatpush1.msra.mxu0 0.0
    %153 = vmatprep.subr.mxu0 0.0
    %154 = vmatpush1.msra.mxu0 0.0
    %155 = vmatprep.subr.mxu0 0.0
    %156 = vmatpush1.msra.mxu0 0.0
    %157 = vmatprep.subr.mxu0 0.0
    %158 = vmatpush1.msra.mxu0 0.0
    %159 = vmatprep.mubr.f32.mxu0 0.0
    %160 = vmatmul.mubr.f32.gmra.mrb[0].mxu0 %v90
    %v161 = vpop.f32.mrb[0].mxu0
    %v162 = vadd.f32 %v86, %v161
    %v163 = vpop.f32.mrb[0].mxu0
    %164 = vmatprep.mubr.f32.mxu0 0.0
    %165 = vmatmul.mubr.f32.gmra.mrb[0].mxu0 %v93
    %v166 = vpop.f32.mrb[0].mxu0
    %v167 = vadd.f32 %v86, %v166
    %v168 = vpop.f32.mrb[0].mxu0
    %169 = vdwg.mxu0
    %v170 = vld [vmem:[%s3] sm:$0x1]
    %v171 = vld [vmem:[%s4] sm:$0x1]
    %v172 = vsel %vm88, %v162, 0.0
    %173 = vadd.xlane.f32.xlu0 %v172
    %v174 = vpop.xlane.xlu0 %173
    %v175 = vsel %vm88, %v167, 0.0
    %176 = vadd.xlane.f32.xlu0 %v175
    %v177 = vpop.xlane.xlu0 %176
    %v178 = vrcp.pop 32.0
    %v179 = vmul.f32 %v174, %v178
    %v180 = vmul.f32 %v177, %v178
    %v181 = vsub.f32 %v162, %v179
    %v182 = vsub.f32 %v167, %v180
    %v183 = vmul.f32 %v181, %v181
    %v184 = vmul.f32 %v182, %v182
    %v185 = vsel %vm88, %v183, 0.0
    %186 = vadd.xlane.f32.xlu0 %v185
    %v187 = vpop.xlane.xlu0 %186
    %v188 = vsel %vm88, %v184, 0.0
    %189 = vadd.xlane.f32.xlu0 %v188
    %v190 = vpop.xlane.xlu0 %189
    %v191 = vmul.f32 %v187, %v178
    %v192 = vmul.f32 %v190, %v178
    %v193 = vadd.f32 %v191, 1e-06
    %v194 = vadd.f32 %v192, 1e-06
    %v195 = vrsqrt.pop %v193
    %v196 = vrsqrt.pop %v194
    %v197 = vmul.f32 %v181, %v195
    %v198 = vmul.f32 %v182, %v196
    %v200 = vlaneseq
    %v201 = vshrl.u32 %v200, 7
    %v202 = vsub.s32 0, %v201
    %v203 = vrot.slane %v170, %v202
    %v205 = vmul.f32 %v197, %v203
    %v206 = vmul.f32 %v198, %v203
    %v208 = vlaneseq
    %v209 = vshrl.u32 %v208, 7
    %v210 = vsub.s32 0, %v209
    %v211 = vrot.slane %v171, %v210
    %v213 = vadd.f32 %v205, %v211
    %v214 = vadd.f32 %v206, %v211
    %v215 = vld [vmem:[%s6] sm:$0xff]
    %v216 = vld [vmem:[%s6 + $0x8] sm:$0x1]
    %v217 = vld [vmem:[%s5] sm:$0x1]
    %v218 = vadd.f32 %v217, %v215
    %vm219 = vcmask 253952
    %220 = vst.msk [vmem:[#allocation2] sm:$0x1] %vm219, %v218
    %vm223 = vcmask 1046528
    %v224 = vrot.slane %v215, 1
    %v225 = vrot.slane %v216, 1
    %v226 = vsel %vm223, %v224, %v225
    %v228 = vadd.f32 %v213, %v226
    %229 = vst.msk [vmem:[#allocation2 + $0x1] sm:$0xff] %vm88, %v228
    %230 = vst.msk [vmem:[#allocation2 + $0x9] sm:$0x1] %vm219, %v218
    %v231 = vadd.f32 %v214, %v226
    %232 = vst.msk [vmem:[#allocation2 + $0xa] sm:$0xff] %vm88, %v231
    %v233 = vld [vmem:[#allocation2] sm:$0xff]
    %v234 = vld [vmem:[#allocation2 + $0x8] sm:$0xff]
    %v235 = vld [vmem:[#allocation2 + $0x10] sm:$0x3]
    %v236 = vld [vmem:[%s7] sm:$0x1]
    %v237 = vld [vmem:[%s8] sm:$0x1]
    %v238 = vsel %vm88, %v233, 0.0
    %239 = vadd.xlane.f32.xlu0 %v238
    %v240 = vpop.xlane.xlu0 %239
    %v241 = vsel %vm88, %v234, 0.0
    %242 = vadd.xlane.f32.xlu0 %v241
    %v243 = vpop.xlane.xlu0 %242
    %vm244 = vcmask 254976
    %v245 = vsel %vm244, %v235, 0.0
    %246 = vadd.xlane.f32.xlu0 %v245
    %v247 = vpop.xlane.xlu0 %246
    %v248 = vmul.f32 %v240, %v178
    %v249 = vmul.f32 %v243, %v178
    %v250 = vmul.f32 %v247, %v178
    %v251 = vsub.f32 %v233, %v248
    %v252 = vsub.f32 %v234, %v249
    %v253 = vsub.f32 %v235, %v250
    %v254 = vmul.f32 %v251, %v251
    %v255 = vmul.f32 %v252, %v252
    %v256 = vmul.f32 %v253, %v253
    %v257 = vsel %vm88, %v254, 0.0
    %258 = vadd.xlane.f32.xlu0 %v257
    %v259 = vpop.xlane.xlu0 %258
    %v260 = vsel %vm88, %v255, 0.0
    %261 = vadd.xlane.f32.xlu0 %v260
    %v262 = vpop.xlane.xlu0 %261
    %v263 = vsel %vm244, %v256, 0.0
    %264 = vadd.xlane.f32.xlu0 %v263
    %v265 = vpop.xlane.xlu0 %264
    %v266 = vmul.f32 %v259, %v178
    %v267 = vmul.f32 %v262, %v178
    %v268 = vmul.f32 %v265, %v178
    %v269 = vadd.f32 %v266, 1e-06
    %v270 = vadd.f32 %v267, 1e-06
    %v271 = vadd.f32 %v268, 1e-06
    %v272 = vrsqrt.pop %v269
    %v273 = vrsqrt.pop %v270
    %v274 = vrsqrt.pop %v271
    %v275 = vmul.f32 %v251, %v272
    %v276 = vmul.f32 %v252, %v273
    %v277 = vmul.f32 %v253, %v274
    %v279 = vlaneseq
    %v280 = vshrl.u32 %v279, 7
    %v281 = vsub.s32 0, %v280
    %v282 = vrot.slane %v236, %v281
    %v284 = vmul.f32 %v275, %v282
    %v285 = vmul.f32 %v276, %v282
    %v286 = vmul.f32 %v277, %v282
    %v288 = vlaneseq
    %v289 = vshrl.u32 %v288, 7
    %v290 = vsub.s32 0, %v289
    %v291 = vrot.slane %v237, %v290
    %v293 = vadd.f32 %v284, %v291
    %v294 = vadd.f32 %v285, %v291
    %v295 = vadd.f32 %v286, %v291
    %v296 = vld [vmem:[%s9] sm:$0xff]
    %v297 = vld [vmem:[%s9 + $0x8] sm:$0xff]
    %v298 = vld [vmem:[%s9 + $0x10] sm:$0xff]
    %v299 = vld [vmem:[%s9 + $0x18] sm:$0xff]
    %v300 = vld [vmem:[%s10] sm:$0x1]
    %v302 = vlaneseq
    %v303 = vshrl.u32 %v302, 7
    %v304 = vsub.s32 0, %v303
    %v305 = vrot.slane %v300, %v304
    %v308 = vsel %vm88, %v293, 0
    %v311 = vsel %vm88, %v294, 0
    %v314 = vsel %vm88, %v295, 0
    %316 = vmatprep.subr.mxu0 0.0
    %317 = vmatpush1.msra.mxu0 %v296
    %318 = vmatprep.subr.mxu0 0.0
    %319 = vmatpush1.msra.mxu0 %v297
    %320 = vmatprep.subr.mxu0 0.0
    %321 = vmatpush1.msra.mxu0 %v298
    %322 = vmatprep.subr.mxu0 0.0
    %323 = vmatpush1.msra.mxu0 %v299
    %324 = vmatprep.subr.mxu0 0.0
    %325 = vmatpush1.msra.mxu0 0.0
    %326 = vmatprep.subr.mxu0 0.0
    %327 = vmatpush1.msra.mxu0 0.0
    %328 = vmatprep.subr.mxu0 0.0
    %329 = vmatpush1.msra.mxu0 0.0
    %330 = vmatprep.subr.mxu0 0.0
    %331 = vmatpush1.msra.mxu0 0.0
    %332 = vmatprep.subr.mxu0 0.0
    %333 = vmatpush1.msra.mxu0 0.0
    %334 = vmatprep.subr.mxu0 0.0
    %335 = vmatpush1.msra.mxu0 0.0
    %336 = vmatprep.subr.mxu0 0.0
    %337 = vmatpush1.msra.mxu0 0.0
    %338 = vmatprep.subr.mxu0 0.0
    %339 = vmatpush1.msra.mxu0 0.0
    %340 = vmatprep.subr.mxu0 0.0
    %341 = vmatpush1.msra.mxu0 0.0
    %342 = vmatprep.subr.mxu0 0.0
    %343 = vmatpush1.msra.mxu0 0.0
    %344 = vmatprep.subr.mxu0 0.0
    %345 = vmatpush1.msra.mxu0 0.0
    %346 = vmatprep.subr.mxu0 0.0
    %347 = vmatpush1.msra.mxu0 0.0
    %348 = vmatprep.subr.mxu0 0.0
    %349 = vmatpush1.msra.mxu0 0.0
    %350 = vmatprep.subr.mxu0 0.0
    %351 = vmatpush1.msra.mxu0 0.0
    %352 = vmatprep.subr.mxu0 0.0
    %353 = vmatpush1.msra.mxu0 0.0
    %354 = vmatprep.subr.mxu0 0.0
    %355 = vmatpush1.msra.mxu0 0.0
    %356 = vmatprep.subr.mxu0 0.0
    %357 = vmatpush1.msra.mxu0 0.0
    %358 = vmatprep.subr.mxu0 0.0
    %359 = vmatpush1.msra.mxu0 0.0
    %360 = vmatprep.subr.mxu0 0.0
    %361 = vmatpush1.msra.mxu0 0.0
    %362 = vmatprep.subr.mxu0 0.0
    %363 = vmatpush1.msra.mxu0 0.0
    %364 = vmatprep.subr.mxu0 0.0
    %365 = vmatpush1.msra.mxu0 0.0
    %366 = vmatprep.subr.mxu0 0.0
    %367 = vmatpush1.msra.mxu0 0.0
    %368 = vmatprep.subr.mxu0 0.0
    %369 = vmatpush1.msra.mxu0 0.0
    %370 = vmatprep.subr.mxu0 0.0
    %371 = vmatpush1.msra.mxu0 0.0
    %372 = vmatprep.subr.mxu0 0.0
    %373 = vmatpush1.msra.mxu0 0.0
    %374 = vmatprep.subr.mxu0 0.0
    %375 = vmatpush1.msra.mxu0 0.0
    %376 = vmatprep.subr.mxu0 0.0
    %377 = vmatpush1.msra.mxu0 0.0
    %378 = vmatprep.subr.mxu0 0.0
    %379 = vmatpush1.msra.mxu0 0.0
    %380 = vmatprep.mubr.f32.mxu0 0.0
    %381 = vmatmul.mubr.f32.gmra.mrb[0].mxu0 %v308
    %v382 = vpop.f32.mrb[0].mxu0
    %v383 = vadd.f32 %v305, %v382
    %v384 = vpop.f32.mrb[0].mxu0
    %385 = vmatprep.mubr.f32.mxu0 0.0
    %386 = vmatmul.mubr.f32.gmra.mrb[0].mxu0 %v311
    %v387 = vpop.f32.mrb[0].mxu0
    %v388 = vadd.f32 %v305, %v387
    %v389 = vpop.f32.mrb[0].mxu0
    %390 = vmatprep.mubr.f32.mxu0 0.0
    %391 = vmatmul.mubr.f32.gmra.mrb[0].mxu0 %v314
    %v392 = vpop.f32.mrb[0].mxu0
    %v393 = vadd.f32 %v305, %v392
    %v394 = vpop.f32.mrb[0].mxu0
    %395 = vdwg.mxu0
    %398 = vrot.lane.b32.xlu0 %v383, 96
    %v399 = vpop.permute.xlu0 %398
    %400 = vrot.lane.b32.xlu0 %v388, 96
    %v401 = vpop.permute.xlu0 %400
    %vm402 = vcmask 64512
    %v403 = vsel %vm402, %v383, 0
    %v405 = vsel %vm402, %v388, 0
    %v407 = vsel %vm402, %v399, 0
    %v409 = vsel %vm402, %v401, 0
    %411 = vmatprep.subr.mxu0 0.0
    %412 = vmatpush1.xpose.msra.mxu0 %v407
    %413 = vmatprep.subr.mxu0 0.0
    %414 = vmatpush1.xpose.msra.mxu0 %v409
    %415 = vmatprep.subr.mxu0 0.0
    %416 = vmatpush1.xpose.msra.mxu0 0.0
    %417 = vmatprep.subr.mxu0 0.0
    %418 = vmatpush1.xpose.msra.mxu0 0.0
    %419 = vmatprep.subr.mxu0 0.0
    %420 = vmatpush1.xpose.msra.mxu0 0.0
    %421 = vmatprep.subr.mxu0 0.0
    %422 = vmatpush1.xpose.msra.mxu0 0.0
    %423 = vmatprep.subr.mxu0 0.0
    %424 = vmatpush1.xpose.msra.mxu0 0.0
    %425 = vmatprep.subr.mxu0 0.0
    %426 = vmatpush1.xpose.msra.mxu0 0.0
    %427 = vmatprep.subr.mxu0 0.0
    %428 = vmatpush1.xpose.msra.mxu0 0.0
    %429 = vmatprep.subr.mxu0 0.0
    %430 = vmatpush1.xpose.msra.mxu0 0.0
    %431 = vmatprep.subr.mxu0 0.0
    %432 = vmatpush1.xpose.msra.mxu0 0.0
    %433 = vmatprep.subr.mxu0 0.0
    %434 = vmatpush1.xpose.msra.mxu0 0.0
    %435 = vmatprep.subr.mxu0 0.0
    %436 = vmatpush1.xpose.msra.mxu0 0.0
    %437 = vmatprep.subr.mxu0 0.0
    %438 = vmatpush1.xpose.msra.mxu0 0.0
    %439 = vmatprep.subr.mxu0 0.0
    %440 = vmatpush1.xpose.msra.mxu0 0.0
    %441 = vmatprep.subr.mxu0 0.0
    %442 = vmatpush1.xpose.msra.mxu0 0.0
    %443 = vmatprep.subr.mxu0 0.0
    %444 = vmatpush1.xpose.msra.mxu0 0.0
    %445 = vmatprep.subr.mxu0 0.0
    %446 = vmatpush1.xpose.msra.mxu0 0.0
    %447 = vmatprep.subr.mxu0 0.0
    %448 = vmatpush1.xpose.msra.mxu0 0.0
    %449 = vmatprep.subr.mxu0 0.0
    %450 = vmatpush1.xpose.msra.mxu0 0.0
    %451 = vmatprep.subr.mxu0 0.0
    %452 = vmatpush1.xpose.msra.mxu0 0.0
    %453 = vmatprep.subr.mxu0 0.0
    %454 = vmatpush1.xpose.msra.mxu0 0.0
    %455 = vmatprep.subr.mxu0 0.0
    %456 = vmatpush1.xpose.msra.mxu0 0.0
    %457 = vmatprep.subr.mxu0 0.0
    %458 = vmatpush1.xpose.msra.mxu0 0.0
    %459 = vmatprep.subr.mxu0 0.0
    %460 = vmatpush1.xpose.msra.mxu0 0.0
    %461 = vmatprep.subr.mxu0 0.0
    %462 = vmatpush1.xpose.msra.mxu0 0.0
    %463 = vmatprep.subr.mxu0 0.0
    %464 = vmatpush1.xpose.msra.mxu0 0.0
    %465 = vmatprep.subr.mxu0 0.0
    %466 = vmatpush1.xpose.msra.mxu0 0.0
    %467 = vmatprep.subr.mxu0 0.0
    %468 = vmatpush1.xpose.msra.mxu0 0.0
    %469 = vmatprep.subr.mxu0 0.0
    %470 = vmatpush1.xpose.msra.mxu0 0.0
    %471 = vmatprep.subr.mxu0 0.0
    %472 = vmatpush1.xpose.msra.mxu0 0.0
    %473 = vmatprep.subr.mxu0 0.0
    %474 = vmatpush1.xpose.msra.mxu0 0.0
    %475 = vmatprep.mubr.f32.mxu0 0.0
    %476 = vmatmul.mubr.f32.gmra.mrb[0].mxu0 %v403
    %v477 = vpop.f32.mrb[0].mxu0
    %v478 = vadd.f32 0.0, %v477
    %v479 = vpop.f32.mrb[0].mxu0
    %480 = vmatprep.mubr.f32.mxu0 0.0
    %481 = vmatmul.mubr.f32.gmra.mrb[0].mxu0 %v405
    %v482 = vpop.f32.mrb[0].mxu0
    %v483 = vadd.f32 0.0, %v482
    %v484 = vpop.f32.mrb[0].mxu0
    %485 = vdwg.mxu0
    %v486 = vmul.f32 %v478, 0.35355338
    %v487 = vmul.f32 %v483, 0.35355338
    %vm488 = vcmask 72704
    %v489 = vsel %vm488, %v486, -inf
    %490 = vmax.xlane.f32.xlu0 %v489
    %v491 = vpop.xlane.xlu0 %490
    %vm492 = vcmask 65536
    %v493 = vsel %vm492, %v487, -inf
    %494 = vmax.xlane.f32.xlu0 %v493
    %v495 = vpop.xlane.xlu0 %494
    %v496 = vsub.f32 %v486, %v491
    %v497 = vsub.f32 %v487, %v495
    %v498 = vmul.f32 %v496, 1.442695
    %v499 = vpow.pop %v498
    %v500 = vmul.f32 %v497, 1.442695
    %v501 = vpow.pop %v500
    %v502 = vsel %vm488, %v499, 0.0
    %503 = vadd.xlane.f32.xlu0 %v502
    %v504 = vpop.xlane.xlu0 %503
    %v505 = vsel %vm492, %v501, 0.0
    %506 = vadd.xlane.f32.xlu0 %v505
    %v507 = vpop.xlane.xlu0 %506
    %v508 = vrcp.pop %v504
    %v509 = vrcp.pop %v507
    %v510 = vmul.f32 %v499, %v508
    %v511 = vmul.f32 %v501, %v509
    %512 = vrot.lane.b32.xlu0 %v383, 64
    %v513 = vpop.permute.xlu0 %512
    %514 = vrot.lane.b32.xlu0 %v388, 64
    %v515 = vpop.permute.xlu0 %514
    %v518 = vsel %vm488, %v510, 0
    %v521 = vsel %vm488, %v511, 0
    %vm523 = vcmask 1040384
    %v524 = vsel %vm523, %v515, 0
    %526 = vmatprep.subr.mxu0 0.0
    %527 = vmatpush1.msra.mxu0 %v513
    %528 = vmatprep.subr.mxu0 0.0
    %529 = vmatpush1.msra.mxu0 %v524
    %530 = vmatprep.subr.mxu0 0.0
    %531 = vmatpush1.msra.mxu0 0.0
    %532 = vmatprep.subr.mxu0 0.0
    %533 = vmatpush1.msra.mxu0 0.0
    %534 = vmatprep.subr.mxu0 0.0
    %535 = vmatpush1.msra.mxu0 0.0
    %536 = vmatprep.subr.mxu0 0.0
    %537 = vmatpush1.msra.mxu0 0.0
    %538 = vmatprep.subr.mxu0 0.0
    %539 = vmatpush1.msra.mxu0 0.0
    %540 = vmatprep.subr.mxu0 0.0
    %541 = vmatpush1.msra.mxu0 0.0
    %542 = vmatprep.subr.mxu0 0.0
    %543 = vmatpush1.msra.mxu0 0.0
    %544 = vmatprep.subr.mxu0 0.0
    %545 = vmatpush1.msra.mxu0 0.0
    %546 = vmatprep.subr.mxu0 0.0
    %547 = vmatpush1.msra.mxu0 0.0
    %548 = vmatprep.subr.mxu0 0.0
    %549 = vmatpush1.msra.mxu0 0.0
    %550 = vmatprep.subr.mxu0 0.0
    %551 = vmatpush1.msra.mxu0 0.0
    %552 = vmatprep.subr.mxu0 0.0
    %553 = vmatpush1.msra.mxu0 0.0
    %554 = vmatprep.subr.mxu0 0.0
    %555 = vmatpush1.msra.mxu0 0.0
    %556 = vmatprep.subr.mxu0 0.0
    %557 = vmatpush1.msra.mxu0 0.0
    %558 = vmatprep.subr.mxu0 0.0
    %559 = vmatpush1.msra.mxu0 0.0
    %560 = vmatprep.subr.mxu0 0.0
    %561 = vmatpush1.msra.mxu0 0.0
    %562 = vmatprep.subr.mxu0 0.0
    %563 = vmatpush1.msra.mxu0 0.0
    %564 = vmatprep.subr.mxu0 0.0
    %565 = vmatpush1.msra.mxu0 0.0
    %566 = vmatprep.subr.mxu0 0.0
    %567 = vmatpush1.msra.mxu0 0.0
    %568 = vmatprep.subr.mxu0 0.0
    %569 = vmatpush1.msra.mxu0 0.0
    %570 = vmatprep.subr.mxu0 0.0
    %571 = vmatpush1.msra.mxu0 0.0
    %572 = vmatprep.subr.mxu0 0.0
    %573 = vmatpush1.msra.mxu0 0.0
    %574 = vmatprep.subr.mxu0 0.0
    %575 = vmatpush1.msra.mxu0 0.0
    %576 = vmatprep.subr.mxu0 0.0
    %577 = vmatpush1.msra.mxu0 0.0
    %578 = vmatprep.subr.mxu0 0.0
    %579 = vmatpush1.msra.mxu0 0.0
    %580 = vmatprep.subr.mxu0 0.0
    %581 = vmatpush1.msra.mxu0 0.0
    %582 = vmatprep.subr.mxu0 0.0
    %583 = vmatpush1.msra.mxu0 0.0
    %584 = vmatprep.subr.mxu0 0.0
    %585 = vmatpush1.msra.mxu0 0.0
    %586 = vmatprep.subr.mxu0 0.0
    %587 = vmatpush1.msra.mxu0 0.0
    %588 = vmatprep.subr.mxu0 0.0
    %589 = vmatpush1.msra.mxu0 0.0
    %590 = vmatprep.mubr.f32.mxu0 0.0
    %591 = vmatmul.mubr.f32.gmra.mrb[0].mxu0 %v518
    %v592 = vpop.f32.mrb[0].mxu0
    %v593 = vadd.f32 0.0, %v592
    %v594 = vpop.f32.mrb[0].mxu0
    %595 = vmatprep.mubr.f32.mxu0 0.0
    %596 = vmatmul.mubr.f32.gmra.mrb[0].mxu0 %v521
    %v597 = vpop.f32.mrb[0].mxu0
    %v598 = vadd.f32 0.0, %v597
    %v599 = vpop.f32.mrb[0].mxu0
    %600 = vdwg.mxu0
    %601 = vst.msk [vmem:[#allocation3] sm:$0xff] %vm402, %v593
    %vm602 = vcmask 57344
    %603 = vst.msk [vmem:[#allocation3 + $0x8] sm:$0x1] %vm602, %v598
    %604 = vrot.lane.b32.xlu0 %v383, 120
    %v605 = vpop.permute.xlu0 %604
    %606 = vrot.lane.b32.xlu0 %v388, 120
    %v607 = vpop.permute.xlu0 %606
    %608 = vrot.lane.b32.xlu0 %v383, 88
    %v609 = vpop.permute.xlu0 %608
    %610 = vrot.lane.b32.xlu0 %v388, 88
    %v611 = vpop.permute.xlu0 %610
    %v612 = vsel %vm402, %v605, 0
    %v614 = vsel %vm402, %v607, 0
    %v616 = vsel %vm402, %v609, 0
    %v618 = vsel %vm402, %v611, 0
    %620 = vmatprep.subr.mxu0 0.0
    %621 = vmatpush1.xpose.msra.mxu0 %v616
    %622 = vmatprep.subr.mxu0 0.0
    %623 = vmatpush1.xpose.msra.mxu0 %v618
    %624 = vmatprep.subr.mxu0 0.0
    %625 = vmatpush1.xpose.msra.mxu0 0.0
    %626 = vmatprep.subr.mxu0 0.0
    %627 = vmatpush1.xpose.msra.mxu0 0.0
    %628 = vmatprep.subr.mxu0 0.0
    %629 = vmatpush1.xpose.msra.mxu0 0.0
    %630 = vmatprep.subr.mxu0 0.0
    %631 = vmatpush1.xpose.msra.mxu0 0.0
    %632 = vmatprep.subr.mxu0 0.0
    %633 = vmatpush1.xpose.msra.mxu0 0.0
    %634 = vmatprep.subr.mxu0 0.0
    %635 = vmatpush1.xpose.msra.mxu0 0.0
    %636 = vmatprep.subr.mxu0 0.0
    %637 = vmatpush1.xpose.msra.mxu0 0.0
    %638 = vmatprep.subr.mxu0 0.0
    %639 = vmatpush1.xpose.msra.mxu0 0.0
    %640 = vmatprep.subr.mxu0 0.0
    %641 = vmatpush1.xpose.msra.mxu0 0.0
    %642 = vmatprep.subr.mxu0 0.0
    %643 = vmatpush1.xpose.msra.mxu0 0.0
    %644 = vmatprep.subr.mxu0 0.0
    %645 = vmatpush1.xpose.msra.mxu0 0.0
    %646 = vmatprep.subr.mxu0 0.0
    %647 = vmatpush1.xpose.msra.mxu0 0.0
    %648 = vmatprep.subr.mxu0 0.0
    %649 = vmatpush1.xpose.msra.mxu0 0.0
    %650 = vmatprep.subr.mxu0 0.0
    %651 = vmatpush1.xpose.msra.mxu0 0.0
    %652 = vmatprep.subr.mxu0 0.0
    %653 = vmatpush1.xpose.msra.mxu0 0.0
    %654 = vmatprep.subr.mxu0 0.0
    %655 = vmatpush1.xpose.msra.mxu0 0.0
    %656 = vmatprep.subr.mxu0 0.0
    %657 = vmatpush1.xpose.msra.mxu0 0.0
    %658 = vmatprep.subr.mxu0 0.0
    %659 = vmatpush1.xpose.msra.mxu0 0.0
    %660 = vmatprep.subr.mxu0 0.0
    %661 = vmatpush1.xpose.msra.mxu0 0.0
    %662 = vmatprep.subr.mxu0 0.0
    %663 = vmatpush1.xpose.msra.mxu0 0.0
    %664 = vmatprep.subr.mxu0 0.0
    %665 = vmatpush1.xpose.msra.mxu0 0.0
    %666 = vmatprep.subr.mxu0 0.0
    %667 = vmatpush1.xpose.msra.mxu0 0.0
    %668 = vmatprep.subr.mxu0 0.0
    %669 = vmatpush1.xpose.msra.mxu0 0.0
    %670 = vmatprep.subr.mxu0 0.0
    %671 = vmatpush1.xpose.msra.mxu0 0.0
    %672 = vmatprep.subr.mxu0 0.0
    %673 = vmatpush1.xpose.msra.mxu0 0.0
    %674 = vmatprep.subr.mxu0 0.0
    %675 = vmatpush1.xpose.msra.mxu0 0.0
    %676 = vmatprep.subr.mxu0 0.0
    %677 = vmatpush1.xpose.msra.mxu0 0.0
    %678 = vmatprep.subr.mxu0 0.0
    %679 = vmatpush1.xpose.msra.mxu0 0.0
    %680 = vmatprep.subr.mxu0 0.0
    %681 = vmatpush1.xpose.msra.mxu0 0.0
    %682 = vmatprep.subr.mxu0 0.0
    %683 = vmatpush1.xpose.msra.mxu0 0.0
    %684 = vmatprep.mubr.f32.mxu0 0.0
    %685 = vmatmul.mubr.f32.gmra.mrb[0].mxu0 %v612
    %v686 = vpop.f32.mrb[0].mxu0
    %v687 = vadd.f32 0.0, %v686
    %v688 = vpop.f32.mrb[0].mxu0
    %689 = vmatprep.mubr.f32.mxu0 0.0
    %690 = vmatmul.mubr.f32.gmra.mrb[0].mxu0 %v614
    %v691 = vpop.f32.mrb[0].mxu0
    %v692 = vadd.f32 0.0, %v691
    %v693 = vpop.f32.mrb[0].mxu0
    %694 = vdwg.mxu0
    %v695 = vmul.f32 %v687, 0.35355338
    %v696 = vmul.f32 %v692, 0.35355338
    %v697 = vsel %vm488, %v695, -inf
    %698 = vmax.xlane.f32.xlu0 %v697
    %v699 = vpop.xlane.xlu0 %698
    %v700 = vsel %vm492, %v696, -inf
    %701 = vmax.xlane.f32.xlu0 %v700
    %v702 = vpop.xlane.xlu0 %701
    %v703 = vsub.f32 %v695, %v699
    %v704 = vsub.f32 %v696, %v702
    %v705 = vmul.f32 %v703, 1.442695
    %v706 = vpow.pop %v705
    %v707 = vmul.f32 %v704, 1.442695
    %v708 = vpow.pop %v707
    %v709 = vsel %vm488, %v706, 0.0
    %710 = vadd.xlane.f32.xlu0 %v709
    %v711 = vpop.xlane.xlu0 %710
    %v712 = vsel %vm492, %v708, 0.0
    %713 = vadd.xlane.f32.xlu0 %v712
    %v714 = vpop.xlane.xlu0 %713
    %v715 = vrcp.pop %v711
    %v716 = vrcp.pop %v714
    %v717 = vmul.f32 %v706, %v715
    %v718 = vmul.f32 %v708, %v716
    %719 = vrot.lane.b32.xlu0 %v383, 56
    %v720 = vpop.permute.xlu0 %719
    %721 = vrot.lane.b32.xlu0 %v388, 56
    %v722 = vpop.permute.xlu0 %721
    %v725 = vsel %vm488, %v717, 0
    %v728 = vsel %vm488, %v718, 0
    %v730 = vsel %vm523, %v722, 0
    %732 = vmatprep.subr.mxu0 0.0
    %733 = vmatpush1.msra.mxu0 %v720
    %734 = vmatprep.subr.mxu0 0.0
    %735 = vmatpush1.msra.mxu0 %v730
    %736 = vmatprep.subr.mxu0 0.0
    %737 = vmatpush1.msra.mxu0 0.0
    %738 = vmatprep.subr.mxu0 0.0
    %739 = vmatpush1.msra.mxu0 0.0
    %740 = vmatprep.subr.mxu0 0.0
    %741 = vmatpush1.msra.mxu0 0.0
    %742 = vmatprep.subr.mxu0 0.0
    %743 = vmatpush1.msra.mxu0 0.0
    %744 = vmatprep.subr.mxu0 0.0
    %745 = vmatpush1.msra.mxu0 0.0
    %746 = vmatprep.subr.mxu0 0.0
    %747 = vmatpush1.msra.mxu0 0.0
    %748 = vmatprep.subr.mxu0 0.0
    %749 = vmatpush1.msra.mxu0 0.0
    %750 = vmatprep.subr.mxu0 0.0
    %751 = vmatpush1.msra.mxu0 0.0
    %752 = vmatprep.subr.mxu0 0.0
    %753 = vmatpush1.msra.mxu0 0.0
    %754 = vmatprep.subr.mxu0 0.0
    %755 = vmatpush1.msra.mxu0 0.0
    %756 = vmatprep.subr.mxu0 0.0
    %757 = vmatpush1.msra.mxu0 0.0
    %758 = vmatprep.subr.mxu0 0.0
    %759 = vmatpush1.msra.mxu0 0.0
    %760 = vmatprep.subr.mxu0 0.0
    %761 = vmatpush1.msra.mxu0 0.0
    %762 = vmatprep.subr.mxu0 0.0
    %763 = vmatpush1.msra.mxu0 0.0
    %764 = vmatprep.subr.mxu0 0.0
    %765 = vmatpush1.msra.mxu0 0.0
    %766 = vmatprep.subr.mxu0 0.0
    %767 = vmatpush1.msra.mxu0 0.0
    %768 = vmatprep.subr.mxu0 0.0
    %769 = vmatpush1.msra.mxu0 0.0
    %770 = vmatprep.subr.mxu0 0.0
    %771 = vmatpush1.msra.mxu0 0.0
    %772 = vmatprep.subr.mxu0 0.0
    %773 = vmatpush1.msra.mxu0 0.0
    %774 = vmatprep.subr.mxu0 0.0
    %775 = vmatpush1.msra.mxu0 0.0
    %776 = vmatprep.subr.mxu0 0.0
    %777 = vmatpush1.msra.mxu0 0.0
    %778 = vmatprep.subr.mxu0 0.0
    %779 = vmatpush1.msra.mxu0 0.0
    %780 = vmatprep.subr.mxu0 0.0
    %781 = vmatpush1.msra.mxu0 0.0
    %782 = vmatprep.subr.mxu0 0.0
    %783 = vmatpush1.msra.mxu0 0.0
    %784 = vmatprep.subr.mxu0 0.0
    %785 = vmatpush1.msra.mxu0 0.0
    %786 = vmatprep.subr.mxu0 0.0
    %787 = vmatpush1.msra.mxu0 0.0
    %788 = vmatprep.subr.mxu0 0.0
    %789 = vmatpush1.msra.mxu0 0.0
    %790 = vmatprep.subr.mxu0 0.0
    %791 = vmatpush1.msra.mxu0 0.0
    %792 = vmatprep.subr.mxu0 0.0
    %793 = vmatpush1.msra.mxu0 0.0
    %794 = vmatprep.subr.mxu0 0.0
    %795 = vmatpush1.msra.mxu0 0.0
    %796 = vmatprep.mubr.f32.mxu0 0.0
    %797 = vmatmul.mubr.f32.gmra.mrb[0].mxu0 %v725
    %v798 = vpop.f32.mrb[0].mxu0
    %v799 = vadd.f32 0.0, %v798
    %v800 = vpop.f32.mrb[0].mxu0
    %801 = vmatprep.mubr.f32.mxu0 0.0
    %802 = vmatmul.mubr.f32.gmra.mrb[0].mxu0 %v728
    %v803 = vpop.f32.mrb[0].mxu0
    %v804 = vadd.f32 0.0, %v803
    %v805 = vpop.f32.mrb[0].mxu0
    %806 = vdwg.mxu0
    %809 = vrot.lane.b32.xlu0 %v799, 8
    %v810 = vpop.permute.xlu0 %809
    %811 = vrot.lane.b32.xlu0 %v804, 8
    %v812 = vpop.permute.xlu0 %811
    %vm815 = vcmask 130112
    %816 = vst.msk [vmem:[#allocation3] sm:$0xff] %vm815, %v810
    %vm817 = vcmask 122944
    %818 = vst.msk [vmem:[#allocation3 + $0x8] sm:$0x1] %vm817, %v812
    %819 = vrot.lane.b32.xlu0 %v383, 112
    %v820 = vpop.permute.xlu0 %819
    %821 = vrot.lane.b32.xlu0 %v388, 112
    %v822 = vpop.permute.xlu0 %821
    %823 = vrot.lane.b32.xlu0 %v383, 80
    %v824 = vpop.permute.xlu0 %823
    %825 = vrot.lane.b32.xlu0 %v388, 80
    %v826 = vpop.permute.xlu0 %825
    %v827 = vsel %vm402, %v820, 0
    %v829 = vsel %vm402, %v822, 0
    %v831 = vsel %vm402, %v824, 0
    %v833 = vsel %vm402, %v826, 0
    %835 = vmatprep.subr.mxu0 0.0
    %836 = vmatpush1.xpose.msra.mxu0 %v831
    %837 = vmatprep.subr.mxu0 0.0
    %838 = vmatpush1.xpose.msra.mxu0 %v833
    %839 = vmatprep.subr.mxu0 0.0
    %840 = vmatpush1.xpose.msra.mxu0 0.0
    %841 = vmatprep.subr.mxu0 0.0
    %842 = vmatpush1.xpose.msra.mxu0 0.0
    %843 = vmatprep.subr.mxu0 0.0
    %844 = vmatpush1.xpose.msra.mxu0 0.0
    %845 = vmatprep.subr.mxu0 0.0
    %846 = vmatpush1.xpose.msra.mxu0 0.0
    %847 = vmatprep.subr.mxu0 0.0
    %848 = vmatpush1.xpose.msra.mxu0 0.0
    %849 = vmatprep.subr.mxu0 0.0
    %850 = vmatpush1.xpose.msra.mxu0 0.0
    %851 = vmatprep.subr.mxu0 0.0
    %852 = vmatpush1.xpose.msra.mxu0 0.0
    %853 = vmatprep.subr.mxu0 0.0
    %854 = vmatpush1.xpose.msra.mxu0 0.0
    %855 = vmatprep.subr.mxu0 0.0
    %856 = vmatpush1.xpose.msra.mxu0 0.0
    %857 = vmatprep.subr.mxu0 0.0
    %858 = vmatpush1.xpose.msra.mxu0 0.0
    %859 = vmatprep.subr.mxu0 0.0
    %860 = vmatpush1.xpose.msra.mxu0 0.0
    %861 = vmatprep.subr.mxu0 0.0
    %862 = vmatpush1.xpose.msra.mxu0 0.0
    %863 = vmatprep.subr.mxu0 0.0
    %864 = vmatpush1.xpose.msra.mxu0 0.0
    %865 = vmatprep.subr.mxu0 0.0
    %866 = vmatpush1.xpose.msra.mxu0 0.0
    %867 = vmatprep.subr.mxu0 0.0
    %868 = vmatpush1.xpose.msra.mxu0 0.0
    %869 = vmatprep.subr.mxu0 0.0
    %870 = vmatpush1.xpose.msra.mxu0 0.0
    %871 = vmatprep.subr.mxu0 0.0
    %872 = vmatpush1.xpose.msra.mxu0 0.0
    %873 = vmatprep.subr.mxu0 0.0
    %874 = vmatpush1.xpose.msra.mxu0 0.0
    %875 = vmatprep.subr.mxu0 0.0
    %876 = vmatpush1.xpose.msra.mxu0 0.0
    %877 = vmatprep.subr.mxu0 0.0
    %878 = vmatpush1.xpose.msra.mxu0 0.0
    %879 = vmatprep.subr.mxu0 0.0
    %880 = vmatpush1.xpose.msra.mxu0 0.0
    %881 = vmatprep.subr.mxu0 0.0
    %882 = vmatpush1.xpose.msra.mxu0 0.0
    %883 = vmatprep.subr.mxu0 0.0
    %884 = vmatpush1.xpose.msra.mxu0 0.0
    %885 = vmatprep.subr.mxu0 0.0
    %886 = vmatpush1.xpose.msra.mxu0 0.0
    %887 = vmatprep.subr.mxu0 0.0
    %888 = vmatpush1.xpose.msra.mxu0 0.0
    %889 = vmatprep.subr.mxu0 0.0
    %890 = vmatpush1.xpose.msra.mxu0 0.0
    %891 = vmatprep.subr.mxu0 0.0
    %892 = vmatpush1.xpose.msra.mxu0 0.0
    %893 = vmatprep.subr.mxu0 0.0
    %894 = vmatpush1.xpose.msra.mxu0 0.0
    %895 = vmatprep.subr.mxu0 0.0
    %896 = vmatpush1.xpose.msra.mxu0 0.0
    %897 = vmatprep.subr.mxu0 0.0
    %898 = vmatpush1.xpose.msra.mxu0 0.0
    %899 = vmatprep.mubr.f32.mxu0 0.0
    %900 = vmatmul.mubr.f32.gmra.mrb[0].mxu0 %v827
    %v901 = vpop.f32.mrb[0].mxu0
    %v902 = vadd.f32 0.0, %v901
    %v903 = vpop.f32.mrb[0].mxu0
    %904 = vmatprep.mubr.f32.mxu0 0.0
    %905 = vmatmul.mubr.f32.gmra.mrb[0].mxu0 %v829
    %v906 = vpop.f32.mrb[0].mxu0
    %v907 = vadd.f32 0.0, %v906
    %v908 = vpop.f32.mrb[0].mxu0
    %909 = vdwg.mxu0
    %v910 = vmul.f32 %v902, 0.35355338
    %v911 = vmul.f32 %v907, 0.35355338
    %v912 = vsel %vm488, %v910, -inf
    %913 = vmax.xlane.f32.xlu0 %v912
    %v914 = vpop.xlane.xlu0 %913
    %v915 = vsel %vm492, %v911, -inf
    %916 = vmax.xlane.f32.xlu0 %v915
    %v917 = vpop.xlane.xlu0 %916
    %v918 = vsub.f32 %v910, %v914
    %v919 = vsub.f32 %v911, %v917
    %v920 = vmul.f32 %v918, 1.442695
    %v921 = vpow.pop %v920
    %v922 = vmul.f32 %v919, 1.442695
    %v923 = vpow.pop %v922
    %v924 = vsel %vm488, %v921, 0.0
    %925 = vadd.xlane.f32.xlu0 %v924
    %v926 = vpop.xlane.xlu0 %925
    %v927 = vsel %vm492, %v923, 0.0
    %928 = vadd.xlane.f32.xlu0 %v927
    %v929 = vpop.xlane.xlu0 %928
    %v930 = vrcp.pop %v926
    %v931 = vrcp.pop %v929
    %v932 = vmul.f32 %v921, %v930
    %v933 = vmul.f32 %v923, %v931
    %934 = vrot.lane.b32.xlu0 %v383, 48
    %v935 = vpop.permute.xlu0 %934
    %936 = vrot.lane.b32.xlu0 %v388, 48
    %v937 = vpop.permute.xlu0 %936
    %v940 = vsel %vm488, %v932, 0
    %v943 = vsel %vm488, %v933, 0
    %v945 = vsel %vm523, %v937, 0
    %947 = vmatprep.subr.mxu0 0.0
    %948 = vmatpush1.msra.mxu0 %v935
    %949 = vmatprep.subr.mxu0 0.0
    %950 = vmatpush1.msra.mxu0 %v945
    %951 = vmatprep.subr.mxu0 0.0
    %952 = vmatpush1.msra.mxu0 0.0
    %953 = vmatprep.subr.mxu0 0.0
    %954 = vmatpush1.msra.mxu0 0.0
    %955 = vmatprep.subr.mxu0 0.0
    %956 = vmatpush1.msra.mxu0 0.0
    %957 = vmatprep.subr.mxu0 0.0
    %958 = vmatpush1.msra.mxu0 0.0
    %959 = vmatprep.subr.mxu0 0.0
    %960 = vmatpush1.msra.mxu0 0.0
    %961 = vmatprep.subr.mxu0 0.0
    %962 = vmatpush1.msra.mxu0 0.0
    %963 = vmatprep.subr.mxu0 0.0
    %964 = vmatpush1.msra.mxu0 0.0
    %965 = vmatprep.subr.mxu0 0.0
    %966 = vmatpush1.msra.mxu0 0.0
    %967 = vmatprep.subr.mxu0 0.0
    %968 = vmatpush1.msra.mxu0 0.0
    %969 = vmatprep.subr.mxu0 0.0
    %970 = vmatpush1.msra.mxu0 0.0
    %971 = vmatprep.subr.mxu0 0.0
    %972 = vmatpush1.msra.mxu0 0.0
    %973 = vmatprep.subr.mxu0 0.0
    %974 = vmatpush1.msra.mxu0 0.0
    %975 = vmatprep.subr.mxu0 0.0
    %976 = vmatpush1.msra.mxu0 0.0
    %977 = vmatprep.subr.mxu0 0.0
    %978 = vmatpush1.msra.mxu0 0.0
    %979 = vmatprep.subr.mxu0 0.0
    %980 = vmatpush1.msra.mxu0 0.0
    %981 = vmatprep.subr.mxu0 0.0
    %982 = vmatpush1.msra.mxu0 0.0
    %983 = vmatprep.subr.mxu0 0.0
    %984 = vmatpush1.msra.mxu0 0.0
    %985 = vmatprep.subr.mxu0 0.0
    %986 = vmatpush1.msra.mxu0 0.0
    %987 = vmatprep.subr.mxu0 0.0
    %988 = vmatpush1.msra.mxu0 0.0
    %989 = vmatprep.subr.mxu0 0.0
    %990 = vmatpush1.msra.mxu0 0.0
    %991 = vmatprep.subr.mxu0 0.0
    %992 = vmatpush1.msra.mxu0 0.0
    %993 = vmatprep.subr.mxu0 0.0
    %994 = vmatpush1.msra.mxu0 0.0
    %995 = vmatprep.subr.mxu0 0.0
    %996 = vmatpush1.msra.mxu0 0.0
    %997 = vmatprep.subr.mxu0 0.0
    %998 = vmatpush1.msra.mxu0 0.0
    %999 = vmatprep.subr.mxu0 0.0
    %1000 = vmatpush1.msra.mxu0 0.0
    %1001 = vmatprep.subr.mxu0 0.0
    %1002 = vmatpush1.msra.mxu0 0.0
    %1003 = vmatprep.subr.mxu0 0.0
    %1004 = vmatpush1.msra.mxu0 0.0
    %1005 = vmatprep.subr.mxu0 0.0
    %1006 = vmatpush1.msra.mxu0 0.0
    %1007 = vmatprep.subr.mxu0 0.0
    %1008 = vmatpush1.msra.mxu0 0.0
    %1009 = vmatprep.subr.mxu0 0.0
    %1010 = vmatpush1.msra.mxu0 0.0
    %1011 = vmatprep.mubr.f32.mxu0 0.0
    %1012 = vmatmul.mubr.f32.gmra.mrb[0].mxu0 %v940
    %v1013 = vpop.f32.mrb[0].mxu0
    %v1014 = vadd.f32 0.0, %v1013
    %v1015 = vpop.f32.mrb[0].mxu0
    %1016 = vmatprep.mubr.f32.mxu0 0.0
    %1017 = vmatmul.mubr.f32.gmra.mrb[0].mxu0 %v943
    %v1018 = vpop.f32.mrb[0].mxu0
    %v1019 = vadd.f32 0.0, %v1018
    %v1020 = vpop.f32.mrb[0].mxu0
    %1021 = vdwg.mxu0
    %1024 = vrot.lane.b32.xlu0 %v1014, 16
    %v1025 = vpop.permute.xlu0 %1024
    %1026 = vrot.lane.b32.xlu0 %v1019, 16
    %v1027 = vpop.permute.xlu0 %1026
    %vm1030 = vcmask 195712
    %1031 = vst.msk [vmem:[#allocation3] sm:$0xff] %vm1030, %v1025
    %vm1032 = vcmask 188544
    %1033 = vst.msk [vmem:[#allocation3 + $0x8] sm:$0x1] %vm1032, %v1027
    %1034 = vrot.lane.b32.xlu0 %v383, 104
    %v1035 = vpop.permute.xlu0 %1034
    %1036 = vrot.lane.b32.xlu0 %v388, 104
    %v1037 = vpop.permute.xlu0 %1036
    %1038 = vrot.lane.b32.xlu0 %v383, 72
    %v1039 = vpop.permute.xlu0 %1038
    %1040 = vrot.lane.b32.xlu0 %v388, 72
    %v1041 = vpop.permute.xlu0 %1040
    %v1042 = vsel %vm402, %v1035, 0
    %v1044 = vsel %vm402, %v1037, 0
    %v1046 = vsel %vm402, %v1039, 0
    %v1048 = vsel %vm402, %v1041, 0
    %1050 = vmatprep.subr.mxu0 0.0
    %1051 = vmatpush1.xpose.msra.mxu0 %v1046
    %1052 = vmatprep.subr.mxu0 0.0
    %1053 = vmatpush1.xpose.msra.mxu0 %v1048
    %1054 = vmatprep.subr.mxu0 0.0
    %1055 = vmatpush1.xpose.msra.mxu0 0.0
    %1056 = vmatprep.subr.mxu0 0.0
    %1057 = vmatpush1.xpose.msra.mxu0 0.0
    %1058 = vmatprep.subr.mxu0 0.0
    %1059 = vmatpush1.xpose.msra.mxu0 0.0
    %1060 = vmatprep.subr.mxu0 0.0
    %1061 = vmatpush1.xpose.msra.mxu0 0.0
    %1062 = vmatprep.subr.mxu0 0.0
    %1063 = vmatpush1.xpose.msra.mxu0 0.0
    %1064 = vmatprep.subr.mxu0 0.0
    %1065 = vmatpush1.xpose.msra.mxu0 0.0
    %1066 = vmatprep.subr.mxu0 0.0
    %1067 = vmatpush1.xpose.msra.mxu0 0.0
    %1068 = vmatprep.subr.mxu0 0.0
    %1069 = vmatpush1.xpose.msra.mxu0 0.0
    %1070 = vmatprep.subr.mxu0 0.0
    %1071 = vmatpush1.xpose.msra.mxu0 0.0
    %1072 = vmatprep.subr.mxu0 0.0
    %1073 = vmatpush1.xpose.msra.mxu0 0.0
    %1074 = vmatprep.subr.mxu0 0.0
    %1075 = vmatpush1.xpose.msra.mxu0 0.0
    %1076 = vmatprep.subr.mxu0 0.0
    %1077 = vmatpush1.xpose.msra.mxu0 0.0
    %1078 = vmatprep.subr.mxu0 0.0
    %1079 = vmatpush1.xpose.msra.mxu0 0.0
    %1080 = vmatprep.subr.mxu0 0.0
    %1081 = vmatpush1.xpose.msra.mxu0 0.0
    %1082 = vmatprep.subr.mxu0 0.0
    %1083 = vmatpush1.xpose.msra.mxu0 0.0
    %1084 = vmatprep.subr.mxu0 0.0
    %1085 = vmatpush1.xpose.msra.mxu0 0.0
    %1086 = vmatprep.subr.mxu0 0.0
    %1087 = vmatpush1.xpose.msra.mxu0 0.0
    %1088 = vmatprep.subr.mxu0 0.0
    %1089 = vmatpush1.xpose.msra.mxu0 0.0
    %1090 = vmatprep.subr.mxu0 0.0
    %1091 = vmatpush1.xpose.msra.mxu0 0.0
    %1092 = vmatprep.subr.mxu0 0.0
    %1093 = vmatpush1.xpose.msra.mxu0 0.0
    %1094 = vmatprep.subr.mxu0 0.0
    %1095 = vmatpush1.xpose.msra.mxu0 0.0
    %1096 = vmatprep.subr.mxu0 0.0
    %1097 = vmatpush1.xpose.msra.mxu0 0.0
    %1098 = vmatprep.subr.mxu0 0.0
    %1099 = vmatpush1.xpose.msra.mxu0 0.0
    %1100 = vmatprep.subr.mxu0 0.0
    %1101 = vmatpush1.xpose.msra.mxu0 0.0
    %1102 = vmatprep.subr.mxu0 0.0
    %1103 = vmatpush1.xpose.msra.mxu0 0.0
    %1104 = vmatprep.subr.mxu0 0.0
    %1105 = vmatpush1.xpose.msra.mxu0 0.0
    %1106 = vmatprep.subr.mxu0 0.0
    %1107 = vmatpush1.xpose.msra.mxu0 0.0
    %1108 = vmatprep.subr.mxu0 0.0
    %1109 = vmatpush1.xpose.msra.mxu0 0.0
    %1110 = vmatprep.subr.mxu0 0.0
    %1111 = vmatpush1.xpose.msra.mxu0 0.0
    %1112 = vmatprep.subr.mxu0 0.0
    %1113 = vmatpush1.xpose.msra.mxu0 0.0
    %1114 = vmatprep.mubr.f32.mxu0 0.0
    %1115 = vmatmul.mubr.f32.gmra.mrb[0].mxu0 %v1042
    %v1116 = vpop.f32.mrb[0].mxu0
    %v1117 = vadd.f32 0.0, %v1116
    %v1118 = vpop.f32.mrb[0].mxu0
    %1119 = vmatprep.mubr.f32.mxu0 0.0
    %1120 = vmatmul.mubr.f32.gmra.mrb[0].mxu0 %v1044
    %v1121 = vpop.f32.mrb[0].mxu0
    %v1122 = vadd.f32 0.0, %v1121
    %v1123 = vpop.f32.mrb[0].mxu0
    %1124 = vdwg.mxu0
    %v1125 = vmul.f32 %v1117, 0.35355338
    %v1126 = vmul.f32 %v1122, 0.35355338
    %v1127 = vsel %vm488, %v1125, -inf
    %1128 = vmax.xlane.f32.xlu0 %v1127
    %v1129 = vpop.xlane.xlu0 %1128
    %v1130 = vsel %vm492, %v1126, -inf
    %1131 = vmax.xlane.f32.xlu0 %v1130
    %v1132 = vpop.xlane.xlu0 %1131
    %v1133 = vsub.f32 %v1125, %v1129
    %v1134 = vsub.f32 %v1126, %v1132
    %v1135 = vmul.f32 %v1133, 1.442695
    %v1136 = vpow.pop %v1135
    %v1137 = vmul.f32 %v1134, 1.442695
    %v1138 = vpow.pop %v1137
    %v1139 = vsel %vm488, %v1136, 0.0
    %1140 = vadd.xlane.f32.xlu0 %v1139
    %v1141 = vpop.xlane.xlu0 %1140
    %v1142 = vsel %vm492, %v1138, 0.0
    %1143 = vadd.xlane.f32.xlu0 %v1142
    %v1144 = vpop.xlane.xlu0 %1143
    %v1145 = vrcp.pop %v1141
    %v1146 = vrcp.pop %v1144
    %v1147 = vmul.f32 %v1136, %v1145
    %v1148 = vmul.f32 %v1138, %v1146
    %1149 = vrot.lane.b32.xlu0 %v383, 40
    %v1150 = vpop.permute.xlu0 %1149
    %1151 = vrot.lane.b32.xlu0 %v388, 40
    %v1152 = vpop.permute.xlu0 %1151
    %v1155 = vsel %vm488, %v1147, 0
    %v1158 = vsel %vm488, %v1148, 0
    %v1160 = vsel %vm523, %v1152, 0
    %1162 = vmatprep.subr.mxu0 0.0
    %1163 = vmatpush1.msra.mxu0 %v1150
    %1164 = vmatprep.subr.mxu0 0.0
    %1165 = vmatpush1.msra.mxu0 %v1160
    %1166 = vmatprep.subr.mxu0 0.0
    %1167 = vmatpush1.msra.mxu0 0.0
    %1168 = vmatprep.subr.mxu0 0.0
    %1169 = vmatpush1.msra.mxu0 0.0
    %1170 = vmatprep.subr.mxu0 0.0
    %1171 = vmatpush1.msra.mxu0 0.0
    %1172 = vmatprep.subr.mxu0 0.0
    %1173 = vmatpush1.msra.mxu0 0.0
    %1174 = vmatprep.subr.mxu0 0.0
    %1175 = vmatpush1.msra.mxu0 0.0
    %1176 = vmatprep.subr.mxu0 0.0
    %1177 = vmatpush1.msra.mxu0 0.0
    %1178 = vmatprep.subr.mxu0 0.0
    %1179 = vmatpush1.msra.mxu0 0.0
    %1180 = vmatprep.subr.mxu0 0.0
    %1181 = vmatpush1.msra.mxu0 0.0
    %1182 = vmatprep.subr.mxu0 0.0
    %1183 = vmatpush1.msra.mxu0 0.0
    %1184 = vmatprep.subr.mxu0 0.0
    %1185 = vmatpush1.msra.mxu0 0.0
    %1186 = vmatprep.subr.mxu0 0.0
    %1187 = vmatpush1.msra.mxu0 0.0
    %1188 = vmatprep.subr.mxu0 0.0
    %1189 = vmatpush1.msra.mxu0 0.0
    %1190 = vmatprep.subr.mxu0 0.0
    %1191 = vmatpush1.msra.mxu0 0.0
    %1192 = vmatprep.subr.mxu0 0.0
    %1193 = vmatpush1.msra.mxu0 0.0
    %1194 = vmatprep.subr.mxu0 0.0
    %1195 = vmatpush1.msra.mxu0 0.0
    %1196 = vmatprep.subr.mxu0 0.0
    %1197 = vmatpush1.msra.mxu0 0.0
    %1198 = vmatprep.subr.mxu0 0.0
    %1199 = vmatpush1.msra.mxu0 0.0
    %1200 = vmatprep.subr.mxu0 0.0
    %1201 = vmatpush1.msra.mxu0 0.0
    %1202 = vmatprep.subr.mxu0 0.0
    %1203 = vmatpush1.msra.mxu0 0.0
    %1204 = vmatprep.subr.mxu0 0.0
    %1205 = vmatpush1.msra.mxu0 0.0
    %1206 = vmatprep.subr.mxu0 0.0
    %1207 = vmatpush1.msra.mxu0 0.0
    %1208 = vmatprep.subr.mxu0 0.0
    %1209 = vmatpush1.msra.mxu0 0.0
    %1210 = vmatprep.subr.mxu0 0.0
    %1211 = vmatpush1.msra.mxu0 0.0
    %1212 = vmatprep.subr.mxu0 0.0
    %1213 = vmatpush1.msra.mxu0 0.0
    %1214 = vmatprep.subr.mxu0 0.0
    %1215 = vmatpush1.msra.mxu0 0.0
    %1216 = vmatprep.subr.mxu0 0.0
    %1217 = vmatpush1.msra.mxu0 0.0
    %1218 = vmatprep.subr.mxu0 0.0
    %1219 = vmatpush1.msra.mxu0 0.0
    %1220 = vmatprep.subr.mxu0 0.0
    %1221 = vmatpush1.msra.mxu0 0.0
    %1222 = vmatprep.subr.mxu0 0.0
    %1223 = vmatpush1.msra.mxu0 0.0
    %1224 = vmatprep.subr.mxu0 0.0
    %1225 = vmatpush1.msra.mxu0 0.0
    %1226 = vmatprep.mubr.f32.mxu0 0.0
    %1227 = vmatmul.mubr.f32.gmra.mrb[0].mxu0 %v1155
    %v1228 = vpop.f32.mrb[0].mxu0
    %v1229 = vadd.f32 0.0, %v1228
    %v1230 = vpop.f32.mrb[0].mxu0
    %1231 = vmatprep.mubr.f32.mxu0 0.0
    %1232 = vmatmul.mubr.f32.gmra.mrb[0].mxu0 %v1158
    %v1233 = vpop.f32.mrb[0].mxu0
    %v1234 = vadd.f32 0.0, %v1233
    %v1235 = vpop.f32.mrb[0].mxu0
    %1236 = vdwg.mxu0
    %1239 = vrot.lane.b32.xlu0 %v1229, 24
    %v1240 = vpop.permute.xlu0 %1239
    %1241 = vrot.lane.b32.xlu0 %v1234, 24
    %v1242 = vpop.permute.xlu0 %1241
    %vm1245 = vcmask 261312
    %1246 = vst.msk [vmem:[#allocation3] sm:$0xff] %vm1245, %v1240
    %vm1247 = vcmask 254144
    %1248 = vst.msk [vmem:[#allocation3 + $0x8] sm:$0x1] %vm1247, %v1242
    %v1250 = vrot.slane %v388, 1
    %v1251 = vrot.slane %v393, 1
    %v1252 = vsel %vm223, %v1250, %v1251
    %1253 = vrot.lane.b32.xlu0 %v1252, 96
    %v1254 = vpop.permute.xlu0 %1253
    %1255 = vrot.lane.b32.xlu0 %v1251, 96
    %v1256 = vpop.permute.xlu0 %1255
    %v1257 = vsel %vm402, %v1252, 0
    %v1259 = vsel %vm402, %v1251, 0
    %v1261 = vsel %vm402, %v1254, 0
    %v1263 = vsel %vm402, %v1256, 0
    %1265 = vmatprep.subr.mxu0 0.0
    %1266 = vmatpush1.xpose.msra.mxu0 %v1261
    %1267 = vmatprep.subr.mxu0 0.0
    %1268 = vmatpush1.xpose.msra.mxu0 %v1263
    %1269 = vmatprep.subr.mxu0 0.0
    %1270 = vmatpush1.xpose.msra.mxu0 0.0
    %1271 = vmatprep.subr.mxu0 0.0
    %1272 = vmatpush1.xpose.msra.mxu0 0.0
    %1273 = vmatprep.subr.mxu0 0.0
    %1274 = vmatpush1.xpose.msra.mxu0 0.0
    %1275 = vmatprep.subr.mxu0 0.0
    %1276 = vmatpush1.xpose.msra.mxu0 0.0
    %1277 = vmatprep.subr.mxu0 0.0
    %1278 = vmatpush1.xpose.msra.mxu0 0.0
    %1279 = vmatprep.subr.mxu0 0.0
    %1280 = vmatpush1.xpose.msra.mxu0 0.0
    %1281 = vmatprep.subr.mxu0 0.0
    %1282 = vmatpush1.xpose.msra.mxu0 0.0
    %1283 = vmatprep.subr.mxu0 0.0
    %1284 = vmatpush1.xpose.msra.mxu0 0.0
    %1285 = vmatprep.subr.mxu0 0.0
    %1286 = vmatpush1.xpose.msra.mxu0 0.0
    %1287 = vmatprep.subr.mxu0 0.0
    %1288 = vmatpush1.xpose.msra.mxu0 0.0
    %1289 = vmatprep.subr.mxu0 0.0
    %1290 = vmatpush1.xpose.msra.mxu0 0.0
    %1291 = vmatprep.subr.mxu0 0.0
    %1292 = vmatpush1.xpose.msra.mxu0 0.0
    %1293 = vmatprep.subr.mxu0 0.0
    %1294 = vmatpush1.xpose.msra.mxu0 0.0
    %1295 = vmatprep.subr.mxu0 0.0
    %1296 = vmatpush1.xpose.msra.mxu0 0.0
    %1297 = vmatprep.subr.mxu0 0.0
    %1298 = vmatpush1.xpose.msra.mxu0 0.0
    %1299 = vmatprep.subr.mxu0 0.0
    %1300 = vmatpush1.xpose.msra.mxu0 0.0
    %1301 = vmatprep.subr.mxu0 0.0
    %1302 = vmatpush1.xpose.msra.mxu0 0.0
    %1303 = vmatprep.subr.mxu0 0.0
    %1304 = vmatpush1.xpose.msra.mxu0 0.0
    %1305 = vmatprep.subr.mxu0 0.0
    %1306 = vmatpush1.xpose.msra.mxu0 0.0
    %1307 = vmatprep.subr.mxu0 0.0
    %1308 = vmatpush1.xpose.msra.mxu0 0.0
    %1309 = vmatprep.subr.mxu0 0.0
    %1310 = vmatpush1.xpose.msra.mxu0 0.0
    %1311 = vmatprep.subr.mxu0 0.0
    %1312 = vmatpush1.xpose.msra.mxu0 0.0
    %1313 = vmatprep.subr.mxu0 0.0
    %1314 = vmatpush1.xpose.msra.mxu0 0.0
    %1315 = vmatprep.subr.mxu0 0.0
    %1316 = vmatpush1.xpose.msra.mxu0 0.0
    %1317 = vmatprep.subr.mxu0 0.0
    %1318 = vmatpush1.xpose.msra.mxu0 0.0
    %1319 = vmatprep.subr.mxu0 0.0
    %1320 = vmatpush1.xpose.msra.mxu0 0.0
    %1321 = vmatprep.subr.mxu0 0.0
    %1322 = vmatpush1.xpose.msra.mxu0 0.0
    %1323 = vmatprep.subr.mxu0 0.0
    %1324 = vmatpush1.xpose.msra.mxu0 0.0
    %1325 = vmatprep.subr.mxu0 0.0
    %1326 = vmatpush1.xpose.msra.mxu0 0.0
    %1327 = vmatprep.subr.mxu0 0.0
    %1328 = vmatpush1.xpose.msra.mxu0 0.0
    %1329 = vmatprep.mubr.f32.mxu0 0.0
    %1330 = vmatmul.mubr.f32.gmra.mrb[0].mxu0 %v1257
    %v1331 = vpop.f32.mrb[0].mxu0
    %v1332 = vadd.f32 0.0, %v1331
    %v1333 = vpop.f32.mrb[0].mxu0
    %1334 = vmatprep.mubr.f32.mxu0 0.0
    %1335 = vmatmul.mubr.f32.gmra.mrb[0].mxu0 %v1259
    %v1336 = vpop.f32.mrb[0].mxu0
    %v1337 = vadd.f32 0.0, %v1336
    %v1338 = vpop.f32.mrb[0].mxu0
    %1339 = vdwg.mxu0
    %v1340 = vmul.f32 %v1332, 0.35355338
    %v1341 = vmul.f32 %v1337, 0.35355338
    %v1342 = vsel %vm488, %v1340, -inf
    %1343 = vmax.xlane.f32.xlu0 %v1342
    %v1344 = vpop.xlane.xlu0 %1343
    %v1345 = vsel %vm492, %v1341, -inf
    %1346 = vmax.xlane.f32.xlu0 %v1345
    %v1347 = vpop.xlane.xlu0 %1346
    %v1348 = vsub.f32 %v1340, %v1344
    %v1349 = vsub.f32 %v1341, %v1347
    %v1350 = vmul.f32 %v1348, 1.442695
    %v1351 = vpow.pop %v1350
    %v1352 = vmul.f32 %v1349, 1.442695
    %v1353 = vpow.pop %v1352
    %v1354 = vsel %vm488, %v1351, 0.0
    %1355 = vadd.xlane.f32.xlu0 %v1354
    %v1356 = vpop.xlane.xlu0 %1355
    %v1357 = vsel %vm492, %v1353, 0.0
    %1358 = vadd.xlane.f32.xlu0 %v1357
    %v1359 = vpop.xlane.xlu0 %1358
    %v1360 = vrcp.pop %v1356
    %v1361 = vrcp.pop %v1359
    %v1362 = vmul.f32 %v1351, %v1360
    %v1363 = vmul.f32 %v1353, %v1361
    %1364 = vrot.lane.b32.xlu0 %v1252, 64
    %v1365 = vpop.permute.xlu0 %1364
    %1366 = vrot.lane.b32.xlu0 %v1251, 64
    %v1367 = vpop.permute.xlu0 %1366
    %v1370 = vsel %vm488, %v1362, 0
    %v1373 = vsel %vm488, %v1363, 0
    %v1375 = vsel %vm523, %v1367, 0
    %1377 = vmatprep.subr.mxu0 0.0
    %1378 = vmatpush1.msra.mxu0 %v1365
    %1379 = vmatprep.subr.mxu0 0.0
    %1380 = vmatpush1.msra.mxu0 %v1375
    %1381 = vmatprep.subr.mxu0 0.0
    %1382 = vmatpush1.msra.mxu0 0.0
    %1383 = vmatprep.subr.mxu0 0.0
    %1384 = vmatpush1.msra.mxu0 0.0
    %1385 = vmatprep.subr.mxu0 0.0
    %1386 = vmatpush1.msra.mxu0 0.0
    %1387 = vmatprep.subr.mxu0 0.0
    %1388 = vmatpush1.msra.mxu0 0.0
    %1389 = vmatprep.subr.mxu0 0.0
    %1390 = vmatpush1.msra.mxu0 0.0
    %1391 = vmatprep.subr.mxu0 0.0
    %1392 = vmatpush1.msra.mxu0 0.0
    %1393 = vmatprep.subr.mxu0 0.0
    %1394 = vmatpush1.msra.mxu0 0.0
    %1395 = vmatprep.subr.mxu0 0.0
    %1396 = vmatpush1.msra.mxu0 0.0
    %1397 = vmatprep.subr.mxu0 0.0
    %1398 = vmatpush1.msra.mxu0 0.0
    %1399 = vmatprep.subr.mxu0 0.0
    %1400 = vmatpush1.msra.mxu0 0.0
    %1401 = vmatprep.subr.mxu0 0.0
    %1402 = vmatpush1.msra.mxu0 0.0
    %1403 = vmatprep.subr.mxu0 0.0
    %1404 = vmatpush1.msra.mxu0 0.0
    %1405 = vmatprep.subr.mxu0 0.0
    %1406 = vmatpush1.msra.mxu0 0.0
    %1407 = vmatprep.subr.mxu0 0.0
    %1408 = vmatpush1.msra.mxu0 0.0
    %1409 = vmatprep.subr.mxu0 0.0
    %1410 = vmatpush1.msra.mxu0 0.0
    %1411 = vmatprep.subr.mxu0 0.0
    %1412 = vmatpush1.msra.mxu0 0.0
    %1413 = vmatprep.subr.mxu0 0.0
    %1414 = vmatpush1.msra.mxu0 0.0
    %1415 = vmatprep.subr.mxu0 0.0
    %1416 = vmatpush1.msra.mxu0 0.0
    %1417 = vmatprep.subr.mxu0 0.0
    %1418 = vmatpush1.msra.mxu0 0.0
    %1419 = vmatprep.subr.mxu0 0.0
    %1420 = vmatpush1.msra.mxu0 0.0
    %1421 = vmatprep.subr.mxu0 0.0
    %1422 = vmatpush1.msra.mxu0 0.0
    %1423 = vmatprep.subr.mxu0 0.0
    %1424 = vmatpush1.msra.mxu0 0.0
    %1425 = vmatprep.subr.mxu0 0.0
    %1426 = vmatpush1.msra.mxu0 0.0
    %1427 = vmatprep.subr.mxu0 0.0
    %1428 = vmatpush1.msra.mxu0 0.0
    %1429 = vmatprep.subr.mxu0 0.0
    %1430 = vmatpush1.msra.mxu0 0.0
    %1431 = vmatprep.subr.mxu0 0.0
    %1432 = vmatpush1.msra.mxu0 0.0
    %1433 = vmatprep.subr.mxu0 0.0
    %1434 = vmatpush1.msra.mxu0 0.0
    %1435 = vmatprep.subr.mxu0 0.0
    %1436 = vmatpush1.msra.mxu0 0.0
    %1437 = vmatprep.subr.mxu0 0.0
    %1438 = vmatpush1.msra.mxu0 0.0
    %1439 = vmatprep.subr.mxu0 0.0
    %1440 = vmatpush1.msra.mxu0 0.0
    %1441 = vmatprep.mubr.f32.mxu0 0.0
    %1442 = vmatmul.mubr.f32.gmra.mrb[0].mxu0 %v1370
    %v1443 = vpop.f32.mrb[0].mxu0
    %v1444 = vadd.f32 0.0, %v1443
    %v1445 = vpop.f32.mrb[0].mxu0
    %1446 = vmatprep.mubr.f32.mxu0 0.0
    %1447 = vmatmul.mubr.f32.gmra.mrb[0].mxu0 %v1373
    %v1448 = vpop.f32.mrb[0].mxu0
    %v1449 = vadd.f32 0.0, %v1448
    %v1450 = vpop.f32.mrb[0].mxu0
    %1451 = vdwg.mxu0
    %1452 = vst.msk [vmem:[#allocation3 + $0x9] sm:$0xff] %vm402, %v1444
    %1453 = vst.msk [vmem:[#allocation3 + $0x11] sm:$0x1] %vm602, %v1449
    %1454 = vrot.lane.b32.xlu0 %v1252, 120
    %v1455 = vpop.permute.xlu0 %1454
    %1456 = vrot.lane.b32.xlu0 %v1251, 120
    %v1457 = vpop.permute.xlu0 %1456
    %1458 = vrot.lane.b32.xlu0 %v1252, 88
    %v1459 = vpop.permute.xlu0 %1458
    %1460 = vrot.lane.b32.xlu0 %v1251, 88
    %v1461 = vpop.permute.xlu0 %1460
    %v1462 = vsel %vm402, %v1455, 0
    %v1464 = vsel %vm402, %v1457, 0
    %v1466 = vsel %vm402, %v1459, 0
    %v1468 = vsel %vm402, %v1461, 0
    %1470 = vmatprep.subr.mxu0 0.0
    %1471 = vmatpush1.xpose.msra.mxu0 %v1466
    %1472 = vmatprep.subr.mxu0 0.0
    %1473 = vmatpush1.xpose.msra.mxu0 %v1468
    %1474 = vmatprep.subr.mxu0 0.0
    %1475 = vmatpush1.xpose.msra.mxu0 0.0
    %1476 = vmatprep.subr.mxu0 0.0
    %1477 = vmatpush1.xpose.msra.mxu0 0.0
    %1478 = vmatprep.subr.mxu0 0.0
    %1479 = vmatpush1.xpose.msra.mxu0 0.0
    %1480 = vmatprep.subr.mxu0 0.0
    %1481 = vmatpush1.xpose.msra.mxu0 0.0
    %1482 = vmatprep.subr.mxu0 0.0
    %1483 = vmatpush1.xpose.msra.mxu0 0.0
    %1484 = vmatprep.subr.mxu0 0.0
    %1485 = vmatpush1.xpose.msra.mxu0 0.0
    %1486 = vmatprep.subr.mxu0 0.0
    %1487 = vmatpush1.xpose.msra.mxu0 0.0
    %1488 = vmatprep.subr.mxu0 0.0
    %1489 = vmatpush1.xpose.msra.mxu0 0.0
    %1490 = vmatprep.subr.mxu0 0.0
    %1491 = vmatpush1.xpose.msra.mxu0 0.0
    %1492 = vmatprep.subr.mxu0 0.0
    %1493 = vmatpush1.xpose.msra.mxu0 0.0
    %1494 = vmatprep.subr.mxu0 0.0
    %1495 = vmatpush1.xpose.msra.mxu0 0.0
    %1496 = vmatprep.subr.mxu0 0.0
    %1497 = vmatpush1.xpose.msra.mxu0 0.0
    %1498 = vmatprep.subr.mxu0 0.0
    %1499 = vmatpush1.xpose.msra.mxu0 0.0
    %1500 = vmatprep.subr.mxu0 0.0
    %1501 = vmatpush1.xpose.msra.mxu0 0.0
    %1502 = vmatprep.subr.mxu0 0.0
    %1503 = vmatpush1.xpose.msra.mxu0 0.0
    %1504 = vmatprep.subr.mxu0 0.0
    %1505 = vmatpush1.xpose.msra.mxu0 0.0
    %1506 = vmatprep.subr.mxu0 0.0
    %1507 = vmatpush1.xpose.msra.mxu0 0.0
    %1508 = vmatprep.subr.mxu0 0.0
    %1509 = vmatpush1.xpose.msra.mxu0 0.0
    %1510 = vmatprep.subr.mxu0 0.0
    %1511 = vmatpush1.xpose.msra.mxu0 0.0
    %1512 = vmatprep.subr.mxu0 0.0
    %1513 = vmatpush1.xpose.msra.mxu0 0.0
    %1514 = vmatprep.subr.mxu0 0.0
    %1515 = vmatpush1.xpose.msra.mxu0 0.0
    %1516 = vmatprep.subr.mxu0 0.0
    %1517 = vmatpush1.xpose.msra.mxu0 0.0
    %1518 = vmatprep.subr.mxu0 0.0
    %1519 = vmatpush1.xpose.msra.mxu0 0.0
    %1520 = vmatprep.subr.mxu0 0.0
    %1521 = vmatpush1.xpose.msra.mxu0 0.0
    %1522 = vmatprep.subr.mxu0 0.0
    %1523 = vmatpush1.xpose.msra.mxu0 0.0
    %1524 = vmatprep.subr.mxu0 0.0
    %1525 = vmatpush1.xpose.msra.mxu0 0.0
    %1526 = vmatprep.subr.mxu0 0.0
    %1527 = vmatpush1.xpose.msra.mxu0 0.0
    %1528 = vmatprep.subr.mxu0 0.0
    %1529 = vmatpush1.xpose.msra.mxu0 0.0
    %1530 = vmatprep.subr.mxu0 0.0
    %1531 = vmatpush1.xpose.msra.mxu0 0.0
    %1532 = vmatprep.subr.mxu0 0.0
    %1533 = vmatpush1.xpose.msra.mxu0 0.0
    %1534 = vmatprep.mubr.f32.mxu0 0.0
    %1535 = vmatmul.mubr.f32.gmra.mrb[0].mxu0 %v1462
    %v1536 = vpop.f32.mrb[0].mxu0
    %v1537 = vadd.f32 0.0, %v1536
    %v1538 = vpop.f32.mrb[0].mxu0
    %1539 = vmatprep.mubr.f32.mxu0 0.0
    %1540 = vmatmul.mubr.f32.gmra.mrb[0].mxu0 %v1464
    %v1541 = vpop.f32.mrb[0].mxu0
    %v1542 = vadd.f32 0.0, %v1541
    %v1543 = vpop.f32.mrb[0].mxu0
    %1544 = vdwg.mxu0
    %v1545 = vmul.f32 %v1537, 0.35355338
    %v1546 = vmul.f32 %v1542, 0.35355338
    %v1547 = vsel %vm488, %v1545, -inf
    %1548 = vmax.xlane.f32.xlu0 %v1547
    %v1549 = vpop.xlane.xlu0 %1548
    %v1550 = vsel %vm492, %v1546, -inf
    %1551 = vmax.xlane.f32.xlu0 %v1550
    %v1552 = vpop.xlane.xlu0 %1551
    %v1553 = vsub.f32 %v1545, %v1549
    %v1554 = vsub.f32 %v1546, %v1552
    %v1555 = vmul.f32 %v1553, 1.442695
    %v1556 = vpow.pop %v1555
    %v1557 = vmul.f32 %v1554, 1.442695
    %v1558 = vpow.pop %v1557
    %v1559 = vsel %vm488, %v1556, 0.0
    %1560 = vadd.xlane.f32.xlu0 %v1559
    %v1561 = vpop.xlane.xlu0 %1560
    %v1562 = vsel %vm492, %v1558, 0.0
    %1563 = vadd.xlane.f32.xlu0 %v1562
    %v1564 = vpop.xlane.xlu0 %1563
    %v1565 = vrcp.pop %v1561
    %v1566 = vrcp.pop %v1564
    %v1567 = vmul.f32 %v1556, %v1565
    %v1568 = vmul.f32 %v1558, %v1566
    %1569 = vrot.lane.b32.xlu0 %v1252, 56
    %v1570 = vpop.permute.xlu0 %1569
    %1571 = vrot.lane.b32.xlu0 %v1251, 56
    %v1572 = vpop.permute.xlu0 %1571
    %v1575 = vsel %vm488, %v1567, 0
    %v1578 = vsel %vm488, %v1568, 0
    %v1580 = vsel %vm523, %v1572, 0
    %1582 = vmatprep.subr.mxu0 0.0
    %1583 = vmatpush1.msra.mxu0 %v1570
    %1584 = vmatprep.subr.mxu0 0.0
    %1585 = vmatpush1.msra.mxu0 %v1580
    %1586 = vmatprep.subr.mxu0 0.0
    %1587 = vmatpush1.msra.mxu0 0.0
    %1588 = vmatprep.subr.mxu0 0.0
    %1589 = vmatpush1.msra.mxu0 0.0
    %1590 = vmatprep.subr.mxu0 0.0
    %1591 = vmatpush1.msra.mxu0 0.0
    %1592 = vmatprep.subr.mxu0 0.0
    %1593 = vmatpush1.msra.mxu0 0.0
    %1594 = vmatprep.subr.mxu0 0.0
    %1595 = vmatpush1.msra.mxu0 0.0
    %1596 = vmatprep.subr.mxu0 0.0
    %1597 = vmatpush1.msra.mxu0 0.0
    %1598 = vmatprep.subr.mxu0 0.0
    %1599 = vmatpush1.msra.mxu0 0.0
    %1600 = vmatprep.subr.mxu0 0.0
    %1601 = vmatpush1.msra.mxu0 0.0
    %1602 = vmatprep.subr.mxu0 0.0
    %1603 = vmatpush1.msra.mxu0 0.0
    %1604 = vmatprep.subr.mxu0 0.0
    %1605 = vmatpush1.msra.mxu0 0.0
    %1606 = vmatprep.subr.mxu0 0.0
    %1607 = vmatpush1.msra.mxu0 0.0
    %1608 = vmatprep.subr.mxu0 0.0
    %1609 = vmatpush1.msra.mxu0 0.0
    %1610 = vmatprep.subr.mxu0 0.0
    %1611 = vmatpush1.msra.mxu0 0.0
    %1612 = vmatprep.subr.mxu0 0.0
    %1613 = vmatpush1.msra.mxu0 0.0
    %1614 = vmatprep.subr.mxu0 0.0
    %1615 = vmatpush1.msra.mxu0 0.0
    %1616 = vmatprep.subr.mxu0 0.0
    %1617 = vmatpush1.msra.mxu0 0.0
    %1618 = vmatprep.subr.mxu0 0.0
    %1619 = vmatpush1.msra.mxu0 0.0
    %1620 = vmatprep.subr.mxu0 0.0
    %1621 = vmatpush1.msra.mxu0 0.0
    %1622 = vmatprep.subr.mxu0 0.0
    %1623 = vmatpush1.msra.mxu0 0.0
    %1624 = vmatprep.subr.mxu0 0.0
    %1625 = vmatpush1.msra.mxu0 0.0
    %1626 = vmatprep.subr.mxu0 0.0
    %1627 = vmatpush1.msra.mxu0 0.0
    %1628 = vmatprep.subr.mxu0 0.0
    %1629 = vmatpush1.msra.mxu0 0.0
    %1630 = vmatprep.subr.mxu0 0.0
    %1631 = vmatpush1.msra.mxu0 0.0
    %1632 = vmatprep.subr.mxu0 0.0
    %1633 = vmatpush1.msra.mxu0 0.0
    %1634 = vmatprep.subr.mxu0 0.0
    %1635 = vmatpush1.msra.mxu0 0.0
    %1636 = vmatprep.subr.mxu0 0.0
    %1637 = vmatpush1.msra.mxu0 0.0
    %1638 = vmatprep.subr.mxu0 0.0
    %1639 = vmatpush1.msra.mxu0 0.0
    %1640 = vmatprep.subr.mxu0 0.0
    %1641 = vmatpush1.msra.mxu0 0.0
    %1642 = vmatprep.subr.mxu0 0.0
    %1643 = vmatpush1.msra.mxu0 0.0
    %1644 = vmatprep.subr.mxu0 0.0
    %1645 = vmatpush1.msra.mxu0 0.0
    %1646 = vmatprep.mubr.f32.mxu0 0.0
    %1647 = vmatmul.mubr.f32.gmra.mrb[0].mxu0 %v1575
    %v1648 = vpop.f32.mrb[0].mxu0
    %v1649 = vadd.f32 0.0, %v1648
    %v1650 = vpop.f32.mrb[0].mxu0
    %1651 = vmatprep.mubr.f32.mxu0 0.0
    %1652 = vmatmul.mubr.f32.gmra.mrb[0].mxu0 %v1578
    %v1653 = vpop.f32.mrb[0].mxu0
    %v1654 = vadd.f32 0.0, %v1653
    %v1655 = vpop.f32.mrb[0].mxu0
    %1656 = vdwg.mxu0
    %1659 = vrot.lane.b32.xlu0 %v1649, 8
    %v1660 = vpop.permute.xlu0 %1659
    %1661 = vrot.lane.b32.xlu0 %v1654, 8
    %v1662 = vpop.permute.xlu0 %1661
    %1665 = vst.msk [vmem:[#allocation3 + $0x9] sm:$0xff] %vm815, %v1660
    %1666 = vst.msk [vmem:[#allocation3 + $0x11] sm:$0x1] %vm817, %v1662
    %1667 = vrot.lane.b32.xlu0 %v1252, 112
    %v1668 = vpop.permute.xlu0 %1667
    %1669 = vrot.lane.b32.xlu0 %v1251, 112
    %v1670 = vpop.permute.xlu0 %1669
    %1671 = vrot.lane.b32.xlu0 %v1252, 80
    %v1672 = vpop.permute.xlu0 %1671
    %1673 = vrot.lane.b32.xlu0 %v1251, 80
    %v1674 = vpop.permute.xlu0 %1673
    %v1675 = vsel %vm402, %v1668, 0
    %v1677 = vsel %vm402, %v1670, 0
    %v1679 = vsel %vm402, %v1672, 0
    %v1681 = vsel %vm402, %v1674, 0
    %1683 = vmatprep.subr.mxu0 0.0
    %1684 = vmatpush1.xpose.msra.mxu0 %v1679
    %1685 = vmatprep.subr.mxu0 0.0
    %1686 = vmatpush1.xpose.msra.mxu0 %v1681
    %1687 = vmatprep.subr.mxu0 0.0
    %1688 = vmatpush1.xpose.msra.mxu0 0.0
    %1689 = vmatprep.subr.mxu0 0.0
    %1690 = vmatpush1.xpose.msra.mxu0 0.0
    %1691 = vmatprep.subr.mxu0 0.0
    %1692 = vmatpush1.xpose.msra.mxu0 0.0
    %1693 = vmatprep.subr.mxu0 0.0
    %1694 = vmatpush1.xpose.msra.mxu0 0.0
    %1695 = vmatprep.subr.mxu0 0.0
    %1696 = vmatpush1.xpose.msra.mxu0 0.0
    %1697 = vmatprep.subr.mxu0 0.0
    %1698 = vmatpush1.xpose.msra.mxu0 0.0
    %1699 = vmatprep.subr.mxu0 0.0
    %1700 = vmatpush1.xpose.msra.mxu0 0.0
    %1701 = vmatprep.subr.mxu0 0.0
    %1702 = vmatpush1.xpose.msra.mxu0 0.0
    %1703 = vmatprep.subr.mxu0 0.0
    %1704 = vmatpush1.xpose.msra.mxu0 0.0
    %1705 = vmatprep.subr.mxu0 0.0
    %1706 = vmatpush1.xpose.msra.mxu0 0.0
    %1707 = vmatprep.subr.mxu0 0.0
    %1708 = vmatpush1.xpose.msra.mxu0 0.0
    %1709 = vmatprep.subr.mxu0 0.0
    %1710 = vmatpush1.xpose.msra.mxu0 0.0
    %1711 = vmatprep.subr.mxu0 0.0
    %1712 = vmatpush1.xpose.msra.mxu0 0.0
    %1713 = vmatprep.subr.mxu0 0.0
    %1714 = vmatpush1.xpose.msra.mxu0 0.0
    %1715 = vmatprep.subr.mxu0 0.0
    %1716 = vmatpush1.xpose.msra.mxu0 0.0
    %1717 = vmatprep.subr.mxu0 0.0
    %1718 = vmatpush1.xpose.msra.mxu0 0.0
    %1719 = vmatprep.subr.mxu0 0.0
    %1720 = vmatpush1.xpose.msra.mxu0 0.0
    %1721 = vmatprep.subr.mxu0 0.0
    %1722 = vmatpush1.xpose.msra.mxu0 0.0
    %1723 = vmatprep.subr.mxu0 0.0
    %1724 = vmatpush1.xpose.msra.mxu0 0.0
    %1725 = vmatprep.subr.mxu0 0.0
    %1726 = vmatpush1.xpose.msra.mxu0 0.0
    %1727 = vmatprep.subr.mxu0 0.0
    %1728 = vmatpush1.xpose.msra.mxu0 0.0
    %1729 = vmatprep.subr.mxu0 0.0
    %1730 = vmatpush1.xpose.msra.mxu0 0.0
    %1731 = vmatprep.subr.mxu0 0.0
    %1732 = vmatpush1.xpose.msra.mxu0 0.0
    %1733 = vmatprep.subr.mxu0 0.0
    %1734 = vmatpush1.xpose.msra.mxu0 0.0
    %1735 = vmatprep.subr.mxu0 0.0
    %1736 = vmatpush1.xpose.msra.mxu0 0.0
    %1737 = vmatprep.subr.mxu0 0.0
    %1738 = vmatpush1.xpose.msra.mxu0 0.0
    %1739 = vmatprep.subr.mxu0 0.0
    %1740 = vmatpush1.xpose.msra.mxu0 0.0
    %1741 = vmatprep.subr.mxu0 0.0
    %1742 = vmatpush1.xpose.msra.mxu0 0.0
    %1743 = vmatprep.subr.mxu0 0.0
    %1744 = vmatpush1.xpose.msra.mxu0 0.0
    %1745 = vmatprep.subr.mxu0 0.0
    %1746 = vmatpush1.xpose.msra.mxu0 0.0
    %1747 = vmatprep.mubr.f32.mxu0 0.0
    %1748 = vmatmul.mubr.f32.gmra.mrb[0].mxu0 %v1675
    %v1749 = vpop.f32.mrb[0].mxu0
    %v1750 = vadd.f32 0.0, %v1749
    %v1751 = vpop.f32.mrb[0].mxu0
    %1752 = vmatprep.mubr.f32.mxu0 0.0
    %1753 = vmatmul.mubr.f32.gmra.mrb[0].mxu0 %v1677
    %v1754 = vpop.f32.mrb[0].mxu0
    %v1755 = vadd.f32 0.0, %v1754
    %v1756 = vpop.f32.mrb[0].mxu0
    %1757 = vdwg.mxu0
    %v1758 = vmul.f32 %v1750, 0.35355338
    %v1759 = vmul.f32 %v1755, 0.35355338
    %v1760 = vsel %vm488, %v1758, -inf
    %1761 = vmax.xlane.f32.xlu0 %v1760
    %v1762 = vpop.xlane.xlu0 %1761
    %v1763 = vsel %vm492, %v1759, -inf
    %1764 = vmax.xlane.f32.xlu0 %v1763
    %v1765 = vpop.xlane.xlu0 %1764
    %v1766 = vsub.f32 %v1758, %v1762
    %v1767 = vsub.f32 %v1759, %v1765
    %v1768 = vmul.f32 %v1766, 1.442695
    %v1769 = vpow.pop %v1768
    %v1770 = vmul.f32 %v1767, 1.442695
    %v1771 = vpow.pop %v1770
    %v1772 = vsel %vm488, %v1769, 0.0
    %1773 = vadd.xlane.f32.xlu0 %v1772
    %v1774 = vpop.xlane.xlu0 %1773
    %v1775 = vsel %vm492, %v1771, 0.0
    %1776 = vadd.xlane.f32.xlu0 %v1775
    %v1777 = vpop.xlane.xlu0 %1776
    %v1778 = vrcp.pop %v1774
    %v1779 = vrcp.pop %v1777
    %v1780 = vmul.f32 %v1769, %v1778
    %v1781 = vmul.f32 %v1771, %v1779
    %1782 = vrot.lane.b32.xlu0 %v1252, 48
    %v1783 = vpop.permute.xlu0 %1782
    %1784 = vrot.lane.b32.xlu0 %v1251, 48
    %v1785 = vpop.permute.xlu0 %1784
    %v1788 = vsel %vm488, %v1780, 0
    %v1791 = vsel %vm488, %v1781, 0
    %v1793 = vsel %vm523, %v1785, 0
    %1795 = vmatprep.subr.mxu0 0.0
    %1796 = vmatpush1.msra.mxu0 %v1783
    %1797 = vmatprep.subr.mxu0 0.0
    %1798 = vmatpush1.msra.mxu0 %v1793
    %1799 = vmatprep.subr.mxu0 0.0
    %1800 = vmatpush1.msra.mxu0 0.0
    %1801 = vmatprep.subr.mxu0 0.0
    %1802 = vmatpush1.msra.mxu0 0.0
    %1803 = vmatprep.subr.mxu0 0.0
    %1804 = vmatpush1.msra.mxu0 0.0
    %1805 = vmatprep.subr.mxu0 0.0
    %1806 = vmatpush1.msra.mxu0 0.0
    %1807 = vmatprep.subr.mxu0 0.0
    %1808 = vmatpush1.msra.mxu0 0.0
    %1809 = vmatprep.subr.mxu0 0.0
    %1810 = vmatpush1.msra.mxu0 0.0
    %1811 = vmatprep.subr.mxu0 0.0
    %1812 = vmatpush1.msra.mxu0 0.0
    %1813 = vmatprep.subr.mxu0 0.0
    %1814 = vmatpush1.msra.mxu0 0.0
    %1815 = vmatprep.subr.mxu0 0.0
    %1816 = vmatpush1.msra.mxu0 0.0
    %1817 = vmatprep.subr.mxu0 0.0
    %1818 = vmatpush1.msra.mxu0 0.0
    %1819 = vmatprep.subr.mxu0 0.0
    %1820 = vmatpush1.msra.mxu0 0.0
    %1821 = vmatprep.subr.mxu0 0.0
    %1822 = vmatpush1.msra.mxu0 0.0
    %1823 = vmatprep.subr.mxu0 0.0
    %1824 = vmatpush1.msra.mxu0 0.0
    %1825 = vmatprep.subr.mxu0 0.0
    %1826 = vmatpush1.msra.mxu0 0.0
    %1827 = vmatprep.subr.mxu0 0.0
    %1828 = vmatpush1.msra.mxu0 0.0
    %1829 = vmatprep.subr.mxu0 0.0
    %1830 = vmatpush1.msra.mxu0 0.0
    %1831 = vmatprep.subr.mxu0 0.0
    %1832 = vmatpush1.msra.mxu0 0.0
    %1833 = vmatprep.subr.mxu0 0.0
    %1834 = vmatpush1.msra.mxu0 0.0
    %1835 = vmatprep.subr.mxu0 0.0
    %1836 = vmatpush1.msra.mxu0 0.0
    %1837 = vmatprep.subr.mxu0 0.0
    %1838 = vmatpush1.msra.mxu0 0.0
    %1839 = vmatprep.subr.mxu0 0.0
    %1840 = vmatpush1.msra.mxu0 0.0
    %1841 = vmatprep.subr.mxu0 0.0
    %1842 = vmatpush1.msra.mxu0 0.0
    %1843 = vmatprep.subr.mxu0 0.0
    %1844 = vmatpush1.msra.mxu0 0.0
    %1845 = vmatprep.subr.mxu0 0.0
    %1846 = vmatpush1.msra.mxu0 0.0
    %1847 = vmatprep.subr.mxu0 0.0
    %1848 = vmatpush1.msra.mxu0 0.0
    %1849 = vmatprep.subr.mxu0 0.0
    %1850 = vmatpush1.msra.mxu0 0.0
    %1851 = vmatprep.subr.mxu0 0.0
    %1852 = vmatpush1.msra.mxu0 0.0
    %1853 = vmatprep.subr.mxu0 0.0
    %1854 = vmatpush1.msra.mxu0 0.0
    %1855 = vmatprep.subr.mxu0 0.0
    %1856 = vmatpush1.msra.mxu0 0.0
    %1857 = vmatprep.subr.mxu0 0.0
    %1858 = vmatpush1.msra.mxu0 0.0
    %1859 = vmatprep.mubr.f32.mxu0 0.0
    %1860 = vmatmul.mubr.f32.gmra.mrb[0].mxu0 %v1788
    %v1861 = vpop.f32.mrb[0].mxu0
    %v1862 = vadd.f32 0.0, %v1861
    %v1863 = vpop.f32.mrb[0].mxu0
    %1864 = vmatprep.mubr.f32.mxu0 0.0
    %1865 = vmatmul.mubr.f32.gmra.mrb[0].mxu0 %v1791
    %v1866 = vpop.f32.mrb[0].mxu0
    %v1867 = vadd.f32 0.0, %v1866
    %v1868 = vpop.f32.mrb[0].mxu0
    %1869 = vdwg.mxu0
    %1872 = vrot.lane.b32.xlu0 %v1862, 16
    %v1873 = vpop.permute.xlu0 %1872
    %1874 = vrot.lane.b32.xlu0 %v1867, 16
    %v1875 = vpop.permute.xlu0 %1874
    %1878 = vst.msk [vmem:[#allocation3 + $0x9] sm:$0xff] %vm1030, %v1873
    %1879 = vst.msk [vmem:[#allocation3 + $0x11] sm:$0x1] %vm1032, %v1875
    %1880 = vrot.lane.b32.xlu0 %v1252, 104
    %v1881 = vpop.permute.xlu0 %1880
    %1882 = vrot.lane.b32.xlu0 %v1251, 104
    %v1883 = vpop.permute.xlu0 %1882
    %1884 = vrot.lane.b32.xlu0 %v1252, 72
    %v1885 = vpop.permute.xlu0 %1884
    %1886 = vrot.lane.b32.xlu0 %v1251, 72
    %v1887 = vpop.permute.xlu0 %1886
    %v1888 = vsel %vm402, %v1881, 0
    %v1890 = vsel %vm402, %v1883, 0
    %v1892 = vsel %vm402, %v1885, 0
    %v1894 = vsel %vm402, %v1887, 0
    %1896 = vmatprep.subr.mxu0 0.0
    %1897 = vmatpush1.xpose.msra.mxu0 %v1892
    %1898 = vmatprep.subr.mxu0 0.0
    %1899 = vmatpush1.xpose.msra.mxu0 %v1894
    %1900 = vmatprep.subr.mxu0 0.0
    %1901 = vmatpush1.xpose.msra.mxu0 0.0
    %1902 = vmatprep.subr.mxu0 0.0
    %1903 = vmatpush1.xpose.msra.mxu0 0.0
    %1904 = vmatprep.subr.mxu0 0.0
    %1905 = vmatpush1.xpose.msra.mxu0 0.0
    %1906 = vmatprep.subr.mxu0 0.0
    %1907 = vmatpush1.xpose.msra.mxu0 0.0
    %1908 = vmatprep.subr.mxu0 0.0
    %1909 = vmatpush1.xpose.msra.mxu0 0.0
    %1910 = vmatprep.subr.mxu0 0.0
    %1911 = vmatpush1.xpose.msra.mxu0 0.0
    %1912 = vmatprep.subr.mxu0 0.0
    %1913 = vmatpush1.xpose.msra.mxu0 0.0
    %1914 = vmatprep.subr.mxu0 0.0
    %1915 = vmatpush1.xpose.msra.mxu0 0.0
    %1916 = vmatprep.subr.mxu0 0.0
    %1917 = vmatpush1.xpose.msra.mxu0 0.0
    %1918 = vmatprep.subr.mxu0 0.0
    %1919 = vmatpush1.xpose.msra.mxu0 0.0
    %1920 = vmatprep.subr.mxu0 0.0
    %1921 = vmatpush1.xpose.msra.mxu0 0.0
    %1922 = vmatprep.subr.mxu0 0.0
    %1923 = vmatpush1.xpose.msra.mxu0 0.0
    %1924 = vmatprep.subr.mxu0 0.0
    %1925 = vmatpush1.xpose.msra.mxu0 0.0
    %1926 = vmatprep.subr.mxu0 0.0
    %1927 = vmatpush1.xpose.msra.mxu0 0.0
    %1928 = vmatprep.subr.mxu0 0.0
    %1929 = vmatpush1.xpose.msra.mxu0 0.0
    %1930 = vmatprep.subr.mxu0 0.0
    %1931 = vmatpush1.xpose.msra.mxu0 0.0
    %1932 = vmatprep.subr.mxu0 0.0
    %1933 = vmatpush1.xpose.msra.mxu0 0.0
    %1934 = vmatprep.subr.mxu0 0.0
    %1935 = vmatpush1.xpose.msra.mxu0 0.0
    %1936 = vmatprep.subr.mxu0 0.0
    %1937 = vmatpush1.xpose.msra.mxu0 0.0
    %1938 = vmatprep.subr.mxu0 0.0
    %1939 = vmatpush1.xpose.msra.mxu0 0.0
    %1940 = vmatprep.subr.mxu0 0.0
    %1941 = vmatpush1.xpose.msra.mxu0 0.0
    %1942 = vmatprep.subr.mxu0 0.0
    %1943 = vmatpush1.xpose.msra.mxu0 0.0
    %1944 = vmatprep.subr.mxu0 0.0
    %1945 = vmatpush1.xpose.msra.mxu0 0.0
    %1946 = vmatprep.subr.mxu0 0.0
    %1947 = vmatpush1.xpose.msra.mxu0 0.0
    %1948 = vmatprep.subr.mxu0 0.0
    %1949 = vmatpush1.xpose.msra.mxu0 0.0
    %1950 = vmatprep.subr.mxu0 0.0
    %1951 = vmatpush1.xpose.msra.mxu0 0.0
    %1952 = vmatprep.subr.mxu0 0.0
    %1953 = vmatpush1.xpose.msra.mxu0 0.0
    %1954 = vmatprep.subr.mxu0 0.0
    %1955 = vmatpush1.xpose.msra.mxu0 0.0
    %1956 = vmatprep.subr.mxu0 0.0
    %1957 = vmatpush1.xpose.msra.mxu0 0.0
    %1958 = vmatprep.subr.mxu0 0.0
    %1959 = vmatpush1.xpose.msra.mxu0 0.0
    %1960 = vmatprep.mubr.f32.mxu0 0.0
    %1961 = vmatmul.mubr.f32.gmra.mrb[0].mxu0 %v1888
    %v1962 = vpop.f32.mrb[0].mxu0
    %v1963 = vadd.f32 0.0, %v1962
    %v1964 = vpop.f32.mrb[0].mxu0
    %1965 = vmatprep.mubr.f32.mxu0 0.0
    %1966 = vmatmul.mubr.f32.gmra.mrb[0].mxu0 %v1890
    %v1967 = vpop.f32.mrb[0].mxu0
    %v1968 = vadd.f32 0.0, %v1967
    %v1969 = vpop.f32.mrb[0].mxu0
    %1970 = vdwg.mxu0
    %v1971 = vmul.f32 %v1963, 0.35355338
    %v1972 = vmul.f32 %v1968, 0.35355338
    %v1973 = vsel %vm488, %v1971, -inf
    %1974 = vmax.xlane.f32.xlu0 %v1973
    %v1975 = vpop.xlane.xlu0 %1974
    %v1976 = vsel %vm492, %v1972, -inf
    %1977 = vmax.xlane.f32.xlu0 %v1976
    %v1978 = vpop.xlane.xlu0 %1977
    %v1979 = vsub.f32 %v1971, %v1975
    %v1980 = vsub.f32 %v1972, %v1978
    %v1981 = vmul.f32 %v1979, 1.442695
    %v1982 = vpow.pop %v1981
    %v1983 = vmul.f32 %v1980, 1.442695
    %v1984 = vpow.pop %v1983
    %v1985 = vsel %vm488, %v1982, 0.0
    %1986 = vadd.xlane.f32.xlu0 %v1985
    %v1987 = vpop.xlane.xlu0 %1986
    %v1988 = vsel %vm492, %v1984, 0.0
    %1989 = vadd.xlane.f32.xlu0 %v1988
    %v1990 = vpop.xlane.xlu0 %1989
    %v1991 = vrcp.pop %v1987
    %v1992 = vrcp.pop %v1990
    %v1993 = vmul.f32 %v1982, %v1991
    %v1994 = vmul.f32 %v1984, %v1992
    %1995 = vrot.lane.b32.xlu0 %v1252, 40
    %v1996 = vpop.permute.xlu0 %1995
    %1997 = vrot.lane.b32.xlu0 %v1251, 40
    %v1998 = vpop.permute.xlu0 %1997
    %v2001 = vsel %vm488, %v1993, 0
    %v2004 = vsel %vm488, %v1994, 0
    %v2006 = vsel %vm523, %v1998, 0
    %2008 = vmatprep.subr.mxu0 0.0
    %2009 = vmatpush1.msra.mxu0 %v1996
    %2010 = vmatprep.subr.mxu0 0.0
    %2011 = vmatpush1.msra.mxu0 %v2006
    %2012 = vmatprep.subr.mxu0 0.0
    %2013 = vmatpush1.msra.mxu0 0.0
    %2014 = vmatprep.subr.mxu0 0.0
    %2015 = vmatpush1.msra.mxu0 0.0
    %2016 = vmatprep.subr.mxu0 0.0
    %2017 = vmatpush1.msra.mxu0 0.0
    %2018 = vmatprep.subr.mxu0 0.0
    %2019 = vmatpush1.msra.mxu0 0.0
    %2020 = vmatprep.subr.mxu0 0.0
    %2021 = vmatpush1.msra.mxu0 0.0
    %2022 = vmatprep.subr.mxu0 0.0
    %2023 = vmatpush1.msra.mxu0 0.0
    %2024 = vmatprep.subr.mxu0 0.0
    %2025 = vmatpush1.msra.mxu0 0.0
    %2026 = vmatprep.subr.mxu0 0.0
    %2027 = vmatpush1.msra.mxu0 0.0
    %2028 = vmatprep.subr.mxu0 0.0
    %2029 = vmatpush1.msra.mxu0 0.0
    %2030 = vmatprep.subr.mxu0 0.0
    %2031 = vmatpush1.msra.mxu0 0.0
    %2032 = vmatprep.subr.mxu0 0.0
    %2033 = vmatpush1.msra.mxu0 0.0
    %2034 = vmatprep.subr.mxu0 0.0
    %2035 = vmatpush1.msra.mxu0 0.0
    %2036 = vmatprep.subr.mxu0 0.0
    %2037 = vmatpush1.msra.mxu0 0.0
    %2038 = vmatprep.subr.mxu0 0.0
    %2039 = vmatpush1.msra.mxu0 0.0
    %2040 = vmatprep.subr.mxu0 0.0
    %2041 = vmatpush1.msra.mxu0 0.0
    %2042 = vmatprep.subr.mxu0 0.0
    %2043 = vmatpush1.msra.mxu0 0.0
    %2044 = vmatprep.subr.mxu0 0.0
    %2045 = vmatpush1.msra.mxu0 0.0
    %2046 = vmatprep.subr.mxu0 0.0
    %2047 = vmatpush1.msra.mxu0 0.0
    %2048 = vmatprep.subr.mxu0 0.0
    %2049 = vmatpush1.msra.mxu0 0.0
    %2050 = vmatprep.subr.mxu0 0.0
    %2051 = vmatpush1.msra.mxu0 0.0
    %2052 = vmatprep.subr.mxu0 0.0
    %2053 = vmatpush1.msra.mxu0 0.0
    %2054 = vmatprep.subr.mxu0 0.0
    %2055 = vmatpush1.msra.mxu0 0.0
    %2056 = vmatprep.subr.mxu0 0.0
    %2057 = vmatpush1.msra.mxu0 0.0
    %2058 = vmatprep.subr.mxu0 0.0
    %2059 = vmatpush1.msra.mxu0 0.0
    %2060 = vmatprep.subr.mxu0 0.0
    %2061 = vmatpush1.msra.mxu0 0.0
    %2062 = vmatprep.subr.mxu0 0.0
    %2063 = vmatpush1.msra.mxu0 0.0
    %2064 = vmatprep.subr.mxu0 0.0
    %2065 = vmatpush1.msra.mxu0 0.0
    %2066 = vmatprep.subr.mxu0 0.0
    %2067 = vmatpush1.msra.mxu0 0.0
    %2068 = vmatprep.subr.mxu0 0.0
    %2069 = vmatpush1.msra.mxu0 0.0
    %2070 = vmatprep.subr.mxu0 0.0
    %2071 = vmatpush1.msra.mxu0 0.0
    %2072 = vmatprep.mubr.f32.mxu0 0.0
    %2073 = vmatmul.mubr.f32.gmra.mrb[0].mxu0 %v2001
    %v2074 = vpop.f32.mrb[0].mxu0
    %v2075 = vadd.f32 0.0, %v2074
    %v2076 = vpop.f32.mrb[0].mxu0
    %2077 = vmatprep.mubr.f32.mxu0 0.0
    %2078 = vmatmul.mubr.f32.gmra.mrb[0].mxu0 %v2004
    %v2079 = vpop.f32.mrb[0].mxu0
    %v2080 = vadd.f32 0.0, %v2079
    %v2081 = vpop.f32.mrb[0].mxu0
    %2082 = vdwg.mxu0
    %2085 = vrot.lane.b32.xlu0 %v2075, 24
    %v2086 = vpop.permute.xlu0 %2085
    %2087 = vrot.lane.b32.xlu0 %v2080, 24
    %v2088 = vpop.permute.xlu0 %2087
    %2091 = vst.msk [vmem:[#allocation3 + $0x9] sm:$0xff] %vm1245, %v2086
    %2092 = vst.msk [vmem:[#allocation3 + $0x11] sm:$0x1] %vm1247, %v2088
    %v2093 = vld [vmem:[#allocation3] sm:$0xff]
    %v2094 = vld [vmem:[#allocation3 + $0x8] sm:$0xff]
    %v2095 = vld [vmem:[#allocation3 + $0x10] sm:$0x3]
    %v2096 = vld [vmem:[%s11] sm:$0xff]
    %v2097 = vld [vmem:[%s11 + $0x8] sm:$0xff]
    %v2098 = vld [vmem:[%s11 + $0x10] sm:$0xff]
    %v2099 = vld [vmem:[%s11 + $0x18] sm:$0xff]
    %v2100 = vld [vmem:[%s12] sm:$0x1]
    %v2102 = vlaneseq
    %v2103 = vshrl.u32 %v2102, 7
    %v2104 = vsub.s32 0, %v2103
    %v2105 = vrot.slane %v2100, %v2104
    %v2108 = vsel %vm88, %v2093, 0
    %v2111 = vsel %vm88, %v2094, 0
    %v2114 = vsel %vm88, %v2095, 0
    %2116 = vmatprep.subr.mxu0 0.0
    %2117 = vmatpush1.msra.mxu0 %v2096
    %2118 = vmatprep.subr.mxu0 0.0
    %2119 = vmatpush1.msra.mxu0 %v2097
    %2120 = vmatprep.subr.mxu0 0.0
    %2121 = vmatpush1.msra.mxu0 %v2098
    %2122 = vmatprep.subr.mxu0 0.0
    %2123 = vmatpush1.msra.mxu0 %v2099
    %2124 = vmatprep.subr.mxu0 0.0
    %2125 = vmatpush1.msra.mxu0 0.0
    %2126 = vmatprep.subr.mxu0 0.0
    %2127 = vmatpush1.msra.mxu0 0.0
    %2128 = vmatprep.subr.mxu0 0.0
    %2129 = vmatpush1.msra.mxu0 0.0
    %2130 = vmatprep.subr.mxu0 0.0
    %2131 = vmatpush1.msra.mxu0 0.0
    %2132 = vmatprep.subr.mxu0 0.0
    %2133 = vmatpush1.msra.mxu0 0.0
    %2134 = vmatprep.subr.mxu0 0.0
    %2135 = vmatpush1.msra.mxu0 0.0
    %2136 = vmatprep.subr.mxu0 0.0
    %2137 = vmatpush1.msra.mxu0 0.0
    %2138 = vmatprep.subr.mxu0 0.0
    %2139 = vmatpush1.msra.mxu0 0.0
    %2140 = vmatprep.subr.mxu0 0.0
    %2141 = vmatpush1.msra.mxu0 0.0
    %2142 = vmatprep.subr.mxu0 0.0
    %2143 = vmatpush1.msra.mxu0 0.0
    %2144 = vmatprep.subr.mxu0 0.0
    %2145 = vmatpush1.msra.mxu0 0.0
    %2146 = vmatprep.subr.mxu0 0.0
    %2147 = vmatpush1.msra.mxu0 0.0
    %2148 = vmatprep.subr.mxu0 0.0
    %2149 = vmatpush1.msra.mxu0 0.0
    %2150 = vmatprep.subr.mxu0 0.0
    %2151 = vmatpush1.msra.mxu0 0.0
    %2152 = vmatprep.subr.mxu0 0.0
    %2153 = vmatpush1.msra.mxu0 0.0
    %2154 = vmatprep.subr.mxu0 0.0
    %2155 = vmatpush1.msra.mxu0 0.0
    %2156 = vmatprep.subr.mxu0 0.0
    %2157 = vmatpush1.msra.mxu0 0.0
    %2158 = vmatprep.subr.mxu0 0.0
    %2159 = vmatpush1.msra.mxu0 0.0
    %2160 = vmatprep.subr.mxu0 0.0
    %2161 = vmatpush1.msra.mxu0 0.0
    %2162 = vmatprep.subr.mxu0 0.0
    %2163 = vmatpush1.msra.mxu0 0.0
    %2164 = vmatprep.subr.mxu0 0.0
    %2165 = vmatpush1.msra.mxu0 0.0
    %2166 = vmatprep.subr.mxu0 0.0
    %2167 = vmatpush1.msra.mxu0 0.0
    %2168 = vmatprep.subr.mxu0 0.0
    %2169 = vmatpush1.msra.mxu0 0.0
    %2170 = vmatprep.subr.mxu0 0.0
    %2171 = vmatpush1.msra.mxu0 0.0
    %2172 = vmatprep.subr.mxu0 0.0
    %2173 = vmatpush1.msra.mxu0 0.0
    %2174 = vmatprep.subr.mxu0 0.0
    %2175 = vmatpush1.msra.mxu0 0.0
    %2176 = vmatprep.subr.mxu0 0.0
    %2177 = vmatpush1.msra.mxu0 0.0
    %2178 = vmatprep.subr.mxu0 0.0
    %2179 = vmatpush1.msra.mxu0 0.0
    %2180 = vmatprep.mubr.f32.mxu0 0.0
    %2181 = vmatmul.mubr.f32.gmra.mrb[0].mxu0 %v2108
    %v2182 = vpop.f32.mrb[0].mxu0
    %v2183 = vadd.f32 %v2105, %v2182
    %v2184 = vpop.f32.mrb[0].mxu0
    %2185 = vmatprep.mubr.f32.mxu0 0.0
    %2186 = vmatmul.mubr.f32.gmra.mrb[0].mxu0 %v2111
    %v2187 = vpop.f32.mrb[0].mxu0
    %v2188 = vadd.f32 %v2105, %v2187
    %v2189 = vpop.f32.mrb[0].mxu0
    %2190 = vmatprep.mubr.f32.mxu0 0.0
    %2191 = vmatmul.mubr.f32.gmra.mrb[0].mxu0 %v2114
    %v2192 = vpop.f32.mrb[0].mxu0
    %v2193 = vadd.f32 %v2105, %v2192
    %v2194 = vpop.f32.mrb[0].mxu0
    %2195 = vdwg.mxu0
    %v2196 = vadd.f32 %v233, %v2183
    %v2197 = vadd.f32 %v234, %v2188
    %v2198 = vadd.f32 %v235, %v2193
    %v2199 = vld [vmem:[%s13] sm:$0x1]
    %v2200 = vld [vmem:[%s14] sm:$0x1]
    %v2201 = vsel %vm88, %v2196, 0.0
    %2202 = vadd.xlane.f32.xlu0 %v2201
    %v2203 = vpop.xlane.xlu0 %2202
    %v2204 = vsel %vm88, %v2197, 0.0
    %2205 = vadd.xlane.f32.xlu0 %v2204
    %v2206 = vpop.xlane.xlu0 %2205
    %v2207 = vsel %vm244, %v2198, 0.0
    %2208 = vadd.xlane.f32.xlu0 %v2207
    %v2209 = vpop.xlane.xlu0 %2208
    %v2210 = vmul.f32 %v2203, %v178
    %v2211 = vmul.f32 %v2206, %v178
    %v2212 = vmul.f32 %v2209, %v178
    %v2213 = vsub.f32 %v2196, %v2210
    %v2214 = vsub.f32 %v2197, %v2211
    %v2215 = vsub.f32 %v2198, %v2212
    %v2216 = vmul.f32 %v2213, %v2213
    %v2217 = vmul.f32 %v2214, %v2214
    %v2218 = vmul.f32 %v2215, %v2215
    %v2219 = vsel %vm88, %v2216, 0.0
    %2220 = vadd.xlane.f32.xlu0 %v2219
    %v2221 = vpop.xlane.xlu0 %2220
    %v2222 = vsel %vm88, %v2217, 0.0
    %2223 = vadd.xlane.f32.xlu0 %v2222
    %v2224 = vpop.xlane.xlu0 %2223
    %v2225 = vsel %vm244, %v2218, 0.0
    %2226 = vadd.xlane.f32.xlu0 %v2225
    %v2227 = vpop.xlane.xlu0 %2226
    %v2228 = vmul.f32 %v2221, %v178
    %v2229 = vmul.f32 %v2224, %v178
    %v2230 = vmul.f32 %v2227, %v178
    %v2231 = vadd.f32 %v2228, 1e-06
    %v2232 = vadd.f32 %v2229, 1e-06
    %v2233 = vadd.f32 %v2230, 1e-06
    %v2234 = vrsqrt.pop %v2231
    %v2235 = vrsqrt.pop %v2232
    %v2236 = vrsqrt.pop %v2233
    %v2237 = vmul.f32 %v2213, %v2234
    %v2238 = vmul.f32 %v2214, %v2235
    %v2239 = vmul.f32 %v2215, %v2236
    %v2241 = vlaneseq
    %v2242 = vshrl.u32 %v2241, 7
    %v2243 = vsub.s32 0, %v2242
    %v2244 = vrot.slane %v2199, %v2243
    %v2246 = vmul.f32 %v2237, %v2244
    %v2247 = vmul.f32 %v2238, %v2244
    %v2248 = vmul.f32 %v2239, %v2244
    %v2250 = vlaneseq
    %v2251 = vshrl.u32 %v2250, 7
    %v2252 = vsub.s32 0, %v2251
    %v2253 = vrot.slane %v2200, %v2252
    %v2255 = vadd.f32 %v2246, %v2253
    %v2256 = vadd.f32 %v2247, %v2253
    %v2257 = vadd.f32 %v2248, %v2253
    %v2258 = vld [vmem:[%s15] sm:$0xff]
    %v2259 = vld [vmem:[%s15 + $0x8] sm:$0xff]
    %v2260 = vld [vmem:[%s15 + $0x10] sm:$0xff]
    %v2261 = vld [vmem:[%s15 + $0x18] sm:$0xff]
    %v2262 = vld [vmem:[%s16] sm:$0x1]
    %v2264 = vlaneseq
    %v2265 = vshrl.u32 %v2264, 7
    %v2266 = vsub.s32 0, %v2265
    %v2267 = vrot.slane %v2262, %v2266
    %v2270 = vsel %vm88, %v2255, 0
    %v2273 = vsel %vm88, %v2256, 0
    %v2276 = vsel %vm88, %v2257, 0
    %2278 = vmatprep.subr.mxu0 0.0
    %2279 = vmatpush1.msra.mxu0 %v2258
    %2280 = vmatprep.subr.mxu0 0.0
    %2281 = vmatpush1.msra.mxu0 %v2259
    %2282 = vmatprep.subr.mxu0 0.0
    %2283 = vmatpush1.msra.mxu0 %v2260
    %2284 = vmatprep.subr.mxu0 0.0
    %2285 = vmatpush1.msra.mxu0 %v2261
    %2286 = vmatprep.subr.mxu0 0.0
    %2287 = vmatpush1.msra.mxu0 0.0
    %2288 = vmatprep.subr.mxu0 0.0
    %2289 = vmatpush1.msra.mxu0 0.0
    %2290 = vmatprep.subr.mxu0 0.0
    %2291 = vmatpush1.msra.mxu0 0.0
    %2292 = vmatprep.subr.mxu0 0.0
    %2293 = vmatpush1.msra.mxu0 0.0
    %2294 = vmatprep.subr.mxu0 0.0
    %2295 = vmatpush1.msra.mxu0 0.0
    %2296 = vmatprep.subr.mxu0 0.0
    %2297 = vmatpush1.msra.mxu0 0.0
    %2298 = vmatprep.subr.mxu0 0.0
    %2299 = vmatpush1.msra.mxu0 0.0
    %2300 = vmatprep.subr.mxu0 0.0
    %2301 = vmatpush1.msra.mxu0 0.0
    %2302 = vmatprep.subr.mxu0 0.0
    %2303 = vmatpush1.msra.mxu0 0.0
    %2304 = vmatprep.subr.mxu0 0.0
    %2305 = vmatpush1.msra.mxu0 0.0
    %2306 = vmatprep.subr.mxu0 0.0
    %2307 = vmatpush1.msra.mxu0 0.0
    %2308 = vmatprep.subr.mxu0 0.0
    %2309 = vmatpush1.msra.mxu0 0.0
    %2310 = vmatprep.subr.mxu0 0.0
    %2311 = vmatpush1.msra.mxu0 0.0
    %2312 = vmatprep.subr.mxu0 0.0
    %2313 = vmatpush1.msra.mxu0 0.0
    %2314 = vmatprep.subr.mxu0 0.0
    %2315 = vmatpush1.msra.mxu0 0.0
    %2316 = vmatprep.subr.mxu0 0.0
    %2317 = vmatpush1.msra.mxu0 0.0
    %2318 = vmatprep.subr.mxu0 0.0
    %2319 = vmatpush1.msra.mxu0 0.0
    %2320 = vmatprep.subr.mxu0 0.0
    %2321 = vmatpush1.msra.mxu0 0.0
    %2322 = vmatprep.subr.mxu0 0.0
    %2323 = vmatpush1.msra.mxu0 0.0
    %2324 = vmatprep.subr.mxu0 0.0
    %2325 = vmatpush1.msra.mxu0 0.0
    %2326 = vmatprep.subr.mxu0 0.0
    %2327 = vmatpush1.msra.mxu0 0.0
    %2328 = vmatprep.subr.mxu0 0.0
    %2329 = vmatpush1.msra.mxu0 0.0
    %2330 = vmatprep.subr.mxu0 0.0
    %2331 = vmatpush1.msra.mxu0 0.0
    %2332 = vmatprep.subr.mxu0 0.0
    %2333 = vmatpush1.msra.mxu0 0.0
    %2334 = vmatprep.subr.mxu0 0.0
    %2335 = vmatpush1.msra.mxu0 0.0
    %2336 = vmatprep.subr.mxu0 0.0
    %2337 = vmatpush1.msra.mxu0 0.0
    %2338 = vmatprep.subr.mxu0 0.0
    %2339 = vmatpush1.msra.mxu0 0.0
    %2340 = vmatprep.subr.mxu0 0.0
    %2341 = vmatpush1.msra.mxu0 0.0
    %2342 = vmatprep.mubr.f32.mxu0 0.0
    %2343 = vmatmul.mubr.f32.gmra.mrb[0].mxu0 %v2270
    %v2344 = vpop.f32.mrb[0].mxu0
    %v2345 = vadd.f32 %v2267, %v2344
    %v2346 = vpop.f32.mrb[0].mxu0
    %2347 = vmatprep.mubr.f32.mxu0 0.0
    %2348 = vmatmul.mubr.f32.gmra.mrb[0].mxu0 %v2273
    %v2349 = vpop.f32.mrb[0].mxu0
    %v2350 = vadd.f32 %v2267, %v2349
    %v2351 = vpop.f32.mrb[0].mxu0
    %2352 = vmatprep.mubr.f32.mxu0 0.0
    %2353 = vmatmul.mubr.f32.gmra.mrb[0].mxu0 %v2276
    %v2354 = vpop.f32.mrb[0].mxu0
    %v2355 = vadd.f32 %v2267, %v2354
    %v2356 = vpop.f32.mrb[0].mxu0
    %2357 = vdwg.mxu0
    %v2358 = vmul.f32 %v2345, 0.5
    %v2359 = vmul.f32 %v2350, 0.5
    %v2360 = vmul.f32 %v2355, 0.5
    %v2361 = vmul.f32 %v2345, 0.044715
    %v2362 = vmul.f32 %v2350, 0.044715
    %v2363 = vmul.f32 %v2355, 0.044715
    %v2364 = vmul.f32 %v2361, %v2345
    %v2365 = vmul.f32 %v2362, %v2350
    %v2366 = vmul.f32 %v2363, %v2355
    %v2367 = vmul.f32 %v2364, %v2345
    %v2368 = vmul.f32 %v2365, %v2350
    %v2369 = vmul.f32 %v2366, %v2355
    %v2370 = vadd.f32 %v2345, %v2367
    %v2371 = vadd.f32 %v2350, %v2368
    %v2372 = vadd.f32 %v2355, %v2369
    %v2373 = vmul.f32 %v2370, 0.7978846
    %v2374 = vmul.f32 %v2371, 0.7978846
    %v2375 = vmul.f32 %v2372, 0.7978846
    %v2376 = vtanh.pop %v2373
    %v2377 = vtanh.pop %v2374
    %v2378 = vtanh.pop %v2375
    %v2379 = vadd.f32 %v2376, 1.0
    %v2380 = vadd.f32 %v2377, 1.0
    %v2381 = vadd.f32 %v2378, 1.0
    %v2382 = vmul.f32 %v2358, %v2379
    %v2383 = vmul.f32 %v2359, %v2380
    %v2384 = vmul.f32 %v2360, %v2381
    %v2385 = vld [vmem:[%s17] sm:$0xff]
    %v2386 = vld [vmem:[%s17 + $0x8] sm:$0xff]
    %v2387 = vld [vmem:[%s17 + $0x10] sm:$0xff]
    %v2388 = vld [vmem:[%s17 + $0x18] sm:$0xff]
    %v2389 = vld [vmem:[%s17 + $0x20] sm:$0xff]
    %v2390 = vld [vmem:[%s17 + $0x28] sm:$0xff]
    %v2391 = vld [vmem:[%s17 + $0x30] sm:$0xff]
    %v2392 = vld [vmem:[%s17 + $0x38] sm:$0xff]
    %v2393 = vld [vmem:[%s17 + $0x40] sm:$0xff]
    %v2394 = vld [vmem:[%s17 + $0x48] sm:$0xff]
    %v2395 = vld [vmem:[%s17 + $0x50] sm:$0xff]
    %v2396 = vld [vmem:[%s17 + $0x58] sm:$0xff]
    %v2397 = vld [vmem:[%s17 + $0x60] sm:$0xff]
    %v2398 = vld [vmem:[%s17 + $0x68] sm:$0xff]
    %v2399 = vld [vmem:[%s17 + $0x70] sm:$0xff]
    %v2400 = vld [vmem:[%s17 + $0x78] sm:$0xff]
    %v2401 = vld [vmem:[%s18] sm:$0x1]
    %v2403 = vlaneseq
    %v2404 = vshrl.u32 %v2403, 7
    %v2405 = vsub.s32 0, %v2404
    %v2406 = vrot.slane %v2401, %v2405
    %2408 = vmatprep.subr.mxu0 0.0
    %2409 = vmatpush1.msra.mxu0 %v2385
    %2410 = vmatprep.subr.mxu0 0.0
    %2411 = vmatpush1.msra.mxu0 %v2386
    %2412 = vmatprep.subr.mxu0 0.0
    %2413 = vmatpush1.msra.mxu0 %v2387
    %2414 = vmatprep.subr.mxu0 0.0
    %2415 = vmatpush1.msra.mxu0 %v2388
    %2416 = vmatprep.subr.mxu0 0.0
    %2417 = vmatpush1.msra.mxu0 %v2389
    %2418 = vmatprep.subr.mxu0 0.0
    %2419 = vmatpush1.msra.mxu0 %v2390
    %2420 = vmatprep.subr.mxu0 0.0
    %2421 = vmatpush1.msra.mxu0 %v2391
    %2422 = vmatprep.subr.mxu0 0.0
    %2423 = vmatpush1.msra.mxu0 %v2392
    %2424 = vmatprep.subr.mxu0 0.0
    %2425 = vmatpush1.msra.mxu0 %v2393
    %2426 = vmatprep.subr.mxu0 0.0
    %2427 = vmatpush1.msra.mxu0 %v2394
    %2428 = vmatprep.subr.mxu0 0.0
    %2429 = vmatpush1.msra.mxu0 %v2395
    %2430 = vmatprep.subr.mxu0 0.0
    %2431 = vmatpush1.msra.mxu0 %v2396
    %2432 = vmatprep.subr.mxu0 0.0
    %2433 = vmatpush1.msra.mxu0 %v2397
    %2434 = vmatprep.subr.mxu0 0.0
    %2435 = vmatpush1.msra.mxu0 %v2398
    %2436 = vmatprep.subr.mxu0 0.0
    %2437 = vmatpush1.msra.mxu0 %v2399
    %2438 = vmatprep.subr.mxu0 0.0
    %2439 = vmatpush1.msra.mxu0 %v2400
    %2440 = vmatprep.subr.mxu0 0.0
    %2441 = vmatpush1.msra.mxu0 0.0
    %2442 = vmatprep.subr.mxu0 0.0
    %2443 = vmatpush1.msra.mxu0 0.0
    %2444 = vmatprep.subr.mxu0 0.0
    %2445 = vmatpush1.msra.mxu0 0.0
    %2446 = vmatprep.subr.mxu0 0.0
    %2447 = vmatpush1.msra.mxu0 0.0
    %2448 = vmatprep.subr.mxu0 0.0
    %2449 = vmatpush1.msra.mxu0 0.0
    %2450 = vmatprep.subr.mxu0 0.0
    %2451 = vmatpush1.msra.mxu0 0.0
    %2452 = vmatprep.subr.mxu0 0.0
    %2453 = vmatpush1.msra.mxu0 0.0
    %2454 = vmatprep.subr.mxu0 0.0
    %2455 = vmatpush1.msra.mxu0 0.0
    %2456 = vmatprep.subr.mxu0 0.0
    %2457 = vmatpush1.msra.mxu0 0.0
    %2458 = vmatprep.subr.mxu0 0.0
    %2459 = vmatpush1.msra.mxu0 0.0
    %2460 = vmatprep.subr.mxu0 0.0
    %2461 = vmatpush1.msra.mxu0 0.0
    %2462 = vmatprep.subr.mxu0 0.0
    %2463 = vmatpush1.msra.mxu0 0.0
    %2464 = vmatprep.subr.mxu0 0.0
    %2465 = vmatpush1.msra.mxu0 0.0
    %2466 = vmatprep.subr.mxu0 0.0
    %2467 = vmatpush1.msra.mxu0 0.0
    %2468 = vmatprep.subr.mxu0 0.0
    %2469 = vmatpush1.msra.mxu0 0.0
    %2470 = vmatprep.subr.mxu0 0.0
    %2471 = vmatpush1.msra.mxu0 0.0
    %2472 = vmatprep.mubr.f32.mxu0 0.0
    %2473 = vmatmul.mubr.f32.gmra.mrb[0].mxu0 %v2382
    %v2474 = vpop.f32.mrb[0].mxu0
    %v2475 = vadd.f32 %v2406, %v2474
    %v2476 = vpop.f32.mrb[0].mxu0
    %2477 = vmatprep.mubr.f32.mxu0 0.0
    %2478 = vmatmul.mubr.f32.gmra.mrb[0].mxu0 %v2383
    %v2479 = vpop.f32.mrb[0].mxu0
    %v2480 = vadd.f32 %v2406, %v2479
    %v2481 = vpop.f32.mrb[0].mxu0
    %2482 = vmatprep.mubr.f32.mxu0 0.0
    %2483 = vmatmul.mubr.f32.gmra.mrb[0].mxu0 %v2384
    %v2484 = vpop.f32.mrb[0].mxu0
    %v2485 = vadd.f32 %v2406, %v2484
    %v2486 = vpop.f32.mrb[0].mxu0
    %2487 = vdwg.mxu0
    %v2488 = vadd.f32 %v2196, %v2475
    %v2489 = vadd.f32 %v2197, %v2480
    %v2490 = vadd.f32 %v2198, %v2485
    %s2491 = scalar_lea.vmem %s7, 1
    %v2492 = vld [vmem:[%s2491] sm:$0x1]
    %s2493 = scalar_lea.vmem %s8, 1
    %v2494 = vld [vmem:[%s2493] sm:$0x1]
    %v2495 = vsel %vm88, %v2488, 0.0
    %2496 = vadd.xlane.f32.xlu0 %v2495
    %v2497 = vpop.xlane.xlu0 %2496
    %v2498 = vsel %vm88, %v2489, 0.0
    %2499 = vadd.xlane.f32.xlu0 %v2498
    %v2500 = vpop.xlane.xlu0 %2499
    %v2501 = vsel %vm244, %v2490, 0.0
    %2502 = vadd.xlane.f32.xlu0 %v2501
    %v2503 = vpop.xlane.xlu0 %2502
    %v2504 = vmul.f32 %v2497, %v178
    %v2505 = vmul.f32 %v2500, %v178
    %v2506 = vmul.f32 %v2503, %v178
    %v2507 = vsub.f32 %v2488, %v2504
    %v2508 = vsub.f32 %v2489, %v2505
    %v2509 = vsub.f32 %v2490, %v2506
    %v2510 = vmul.f32 %v2507, %v2507
    %v2511 = vmul.f32 %v2508, %v2508
    %v2512 = vmul.f32 %v2509, %v2509
    %v2513 = vsel %vm88, %v2510, 0.0
    %2514 = vadd.xlane.f32.xlu0 %v2513
    %v2515 = vpop.xlane.xlu0 %2514
    %v2516 = vsel %vm88, %v2511, 0.0
    %2517 = vadd.xlane.f32.xlu0 %v2516
    %v2518 = vpop.xlane.xlu0 %2517
    %v2519 = vsel %vm244, %v2512, 0.0
    %2520 = vadd.xlane.f32.xlu0 %v2519
    %v2521 = vpop.xlane.xlu0 %2520
    %v2522 = vmul.f32 %v2515, %v178
    %v2523 = vmul.f32 %v2518, %v178
    %v2524 = vmul.f32 %v2521, %v178
    %v2525 = vadd.f32 %v2522, 1e-06
    %v2526 = vadd.f32 %v2523, 1e-06
    %v2527 = vadd.f32 %v2524, 1e-06
    %v2528 = vrsqrt.pop %v2525
    %v2529 = vrsqrt.pop %v2526
    %v2530 = vrsqrt.pop %v2527
    %v2531 = vmul.f32 %v2507, %v2528
    %v2532 = vmul.f32 %v2508, %v2529
    %v2533 = vmul.f32 %v2509, %v2530
    %v2535 = vlaneseq
    %v2536 = vshrl.u32 %v2535, 7
    %v2537 = vsub.s32 0, %v2536
    %v2538 = vrot.slane %v2492, %v2537
    %v2540 = vmul.f32 %v2531, %v2538
    %v2541 = vmul.f32 %v2532, %v2538
    %v2542 = vmul.f32 %v2533, %v2538
    %v2544 = vlaneseq
    %v2545 = vshrl.u32 %v2544, 7
    %v2546 = vsub.s32 0, %v2545
    %v2547 = vrot.slane %v2494, %v2546
    %v2549 = vadd.f32 %v2540, %v2547
    %v2550 = vadd.f32 %v2541, %v2547
    %v2551 = vadd.f32 %v2542, %v2547
    %s2552 = scalar_lea.vmem %s9, 32
    %v2553 = vld [vmem:[%s2552] sm:$0xff]
    %v2554 = vld [vmem:[%s2552 + $0x8] sm:$0xff]
    %v2555 = vld [vmem:[%s2552 + $0x10] sm:$0xff]
    %v2556 = vld [vmem:[%s2552 + $0x18] sm:$0xff]
    %s2557 = scalar_lea.vmem %s10, 1
    %v2558 = vld [vmem:[%s2557] sm:$0x1]
    %v2560 = vlaneseq
    %v2561 = vshrl.u32 %v2560, 7
    %v2562 = vsub.s32 0, %v2561
    %v2563 = vrot.slane %v2558, %v2562
    %v2566 = vsel %vm88, %v2549, 0
    %v2569 = vsel %vm88, %v2550, 0
    %v2572 = vsel %vm88, %v2551, 0
    %2574 = vmatprep.subr.mxu0 0.0
    %2575 = vmatpush1.msra.mxu0 %v2553
    %2576 = vmatprep.subr.mxu0 0.0
    %2577 = vmatpush1.msra.mxu0 %v2554
    %2578 = vmatprep.subr.mxu0 0.0
    %2579 = vmatpush1.msra.mxu0 %v2555
    %2580 = vmatprep.subr.mxu0 0.0
    %2581 = vmatpush1.msra.mxu0 %v2556
    %2582 = vmatprep.subr.mxu0 0.0
    %2583 = vmatpush1.msra.mxu0 0.0
    %2584 = vmatprep.subr.mxu0 0.0
    %2585 = vmatpush1.msra.mxu0 0.0
    %2586 = vmatprep.subr.mxu0 0.0
    %2587 = vmatpush1.msra.mxu0 0.0
    %2588 = vmatprep.subr.mxu0 0.0
    %2589 = vmatpush1.msra.mxu0 0.0
    %2590 = vmatprep.subr.mxu0 0.0
    %2591 = vmatpush1.msra.mxu0 0.0
    %2592 = vmatprep.subr.mxu0 0.0
    %2593 = vmatpush1.msra.mxu0 0.0
    %2594 = vmatprep.subr.mxu0 0.0
    %2595 = vmatpush1.msra.mxu0 0.0
    %2596 = vmatprep.subr.mxu0 0.0
    %2597 = vmatpush1.msra.mxu0 0.0
    %2598 = vmatprep.subr.mxu0 0.0
    %2599 = vmatpush1.msra.mxu0 0.0
    %2600 = vmatprep.subr.mxu0 0.0
    %2601 = vmatpush1.msra.mxu0 0.0
    %2602 = vmatprep.subr.mxu0 0.0
    %2603 = vmatpush1.msra.mxu0 0.0
    %2604 = vmatprep.subr.mxu0 0.0
    %2605 = vmatpush1.msra.mxu0 0.0
    %2606 = vmatprep.subr.mxu0 0.0
    %2607 = vmatpush1.msra.mxu0 0.0
    %2608 = vmatprep.subr.mxu0 0.0
    %2609 = vmatpush1.msra.mxu0 0.0
    %2610 = vmatprep.subr.mxu0 0.0
    %2611 = vmatpush1.msra.mxu0 0.0
    %2612 = vmatprep.subr.mxu0 0.0
    %2613 = vmatpush1.msra.mxu0 0.0
    %2614 = vmatprep.subr.mxu0 0.0
    %2615 = vmatpush1.msra.mxu0 0.0
    %2616 = vmatprep.subr.mxu0 0.0
    %2617 = vmatpush1.msra.mxu0 0.0
    %2618 = vmatprep.subr.mxu0 0.0
    %2619 = vmatpush1.msra.mxu0 0.0
    %2620 = vmatprep.subr.mxu0 0.0
    %2621 = vmatpush1.msra.mxu0 0.0
    %2622 = vmatprep.subr.mxu0 0.0
    %2623 = vmatpush1.msra.mxu0 0.0
    %2624 = vmatprep.subr.mxu0 0.0
    %2625 = vmatpush1.msra.mxu0 0.0
    %2626 = vmatprep.subr.mxu0 0.0
    %2627 = vmatpush1.msra.mxu0 0.0
    %2628 = vmatprep.subr.mxu0 0.0
    %2629 = vmatpush1.msra.mxu0 0.0
    %2630 = vmatprep.subr.mxu0 0.0
    %2631 = vmatpush1.msra.mxu0 0.0
    %2632 = vmatprep.subr.mxu0 0.0
    %2633 = vmatpush1.msra.mxu0 0.0
    %2634 = vmatprep.subr.mxu0 0.0
    %2635 = vmatpush1.msra.mxu0 0.0
    %2636 = vmatprep.subr.mxu0 0.0
    %2637 = vmatpush1.msra.mxu0 0.0
    %2638 = vmatprep.mubr.f32.mxu0 0.0
    %2639 = vmatmul.mubr.f32.gmra.mrb[0].mxu0 %v2566
    %v2640 = vpop.f32.mrb[0].mxu0
    %v2641 = vadd.f32 %v2563, %v2640
    %v2642 = vpop.f32.mrb[0].mxu0
    %2643 = vmatprep.mubr.f32.mxu0 0.0
    %2644 = vmatmul.mubr.f32.gmra.mrb[0].mxu0 %v2569
    %v2645 = vpop.f32.mrb[0].mxu0
    %v2646 = vadd.f32 %v2563, %v2645
    %v2647 = vpop.f32.mrb[0].mxu0
    %2648 = vmatprep.mubr.f32.mxu0 0.0
    %2649 = vmatmul.mubr.f32.gmra.mrb[0].mxu0 %v2572
    %v2650 = vpop.f32.mrb[0].mxu0
    %v2651 = vadd.f32 %v2563, %v2650
    %v2652 = vpop.f32.mrb[0].mxu0
    %2653 = vdwg.mxu0
    %2656 = vrot.lane.b32.xlu0 %v2641, 96
    %v2657 = vpop.permute.xlu0 %2656
    %2658 = vrot.lane.b32.xlu0 %v2646, 96
    %v2659 = vpop.permute.xlu0 %2658
    %v2660 = vsel %vm402, %v2641, 0
    %v2662 = vsel %vm402, %v2646, 0
    %v2664 = vsel %vm402, %v2657, 0
    %v2666 = vsel %vm402, %v2659, 0
    %2668 = vmatprep.subr.mxu0 0.0
    %2669 = vmatpush1.xpose.msra.mxu0 %v2664
    %2670 = vmatprep.subr.mxu0 0.0
    %2671 = vmatpush1.xpose.msra.mxu0 %v2666
    %2672 = vmatprep.subr.mxu0 0.0
    %2673 = vmatpush1.xpose.msra.mxu0 0.0
    %2674 = vmatprep.subr.mxu0 0.0
    %2675 = vmatpush1.xpose.msra.mxu0 0.0
    %2676 = vmatprep.subr.mxu0 0.0
    %2677 = vmatpush1.xpose.msra.mxu0 0.0
    %2678 = vmatprep.subr.mxu0 0.0
    %2679 = vmatpush1.xpose.msra.mxu0 0.0
    %2680 = vmatprep.subr.mxu0 0.0
    %2681 = vmatpush1.xpose.msra.mxu0 0.0
    %2682 = vmatprep.subr.mxu0 0.0
    %2683 = vmatpush1.xpose.msra.mxu0 0.0
    %2684 = vmatprep.subr.mxu0 0.0
    %2685 = vmatpush1.xpose.msra.mxu0 0.0
    %2686 = vmatprep.subr.mxu0 0.0
    %2687 = vmatpush1.xpose.msra.mxu0 0.0
    %2688 = vmatprep.subr.mxu0 0.0
    %2689 = vmatpush1.xpose.msra.mxu0 0.0
    %2690 = vmatprep.subr.mxu0 0.0
    %2691 = vmatpush1.xpose.msra.mxu0 0.0
    %2692 = vmatprep.subr.mxu0 0.0
    %2693 = vmatpush1.xpose.msra.mxu0 0.0
    %2694 = vmatprep.subr.mxu0 0.0
    %2695 = vmatpush1.xpose.msra.mxu0 0.0
    %2696 = vmatprep.subr.mxu0 0.0
    %2697 = vmatpush1.xpose.msra.mxu0 0.0
    %2698 = vmatprep.subr.mxu0 0.0
    %2699 = vmatpush1.xpose.msra.mxu0 0.0
    %2700 = vmatprep.subr.mxu0 0.0
    %2701 = vmatpush1.xpose.msra.mxu0 0.0
    %2702 = vmatprep.subr.mxu0 0.0
    %2703 = vmatpush1.xpose.msra.mxu0 0.0
    %2704 = vmatprep.subr.mxu0 0.0
    %2705 = vmatpush1.xpose.msra.mxu0 0.0
    %2706 = vmatprep.subr.mxu0 0.0
    %2707 = vmatpush1.xpose.msra.mxu0 0.0
    %2708 = vmatprep.subr.mxu0 0.0
    %2709 = vmatpush1.xpose.msra.mxu0 0.0
    %2710 = vmatprep.subr.mxu0 0.0
    %2711 = vmatpush1.xpose.msra.mxu0 0.0
    %2712 = vmatprep.subr.mxu0 0.0
    %2713 = vmatpush1.xpose.msra.mxu0 0.0
    %2714 = vmatprep.subr.mxu0 0.0
    %2715 = vmatpush1.xpose.msra.mxu0 0.0
    %2716 = vmatprep.subr.mxu0 0.0
    %2717 = vmatpush1.xpose.msra.mxu0 0.0
    %2718 = vmatprep.subr.mxu0 0.0
    %2719 = vmatpush1.xpose.msra.mxu0 0.0
    %2720 = vmatprep.subr.mxu0 0.0
    %2721 = vmatpush1.xpose.msra.mxu0 0.0
    %2722 = vmatprep.subr.mxu0 0.0
    %2723 = vmatpush1.xpose.msra.mxu0 0.0
    %2724 = vmatprep.subr.mxu0 0.0
    %2725 = vmatpush1.xpose.msra.mxu0 0.0
    %2726 = vmatprep.subr.mxu0 0.0
    %2727 = vmatpush1.xpose.msra.mxu0 0.0
    %2728 = vmatprep.subr.mxu0 0.0
    %2729 = vmatpush1.xpose.msra.mxu0 0.0
    %2730 = vmatprep.subr.mxu0 0.0
    %2731 = vmatpush1.xpose.msra.mxu0 0.0
    %2732 = vmatprep.mubr.f32.mxu0 0.0
    %2733 = vmatmul.mubr.f32.gmra.mrb[0].mxu0 %v2660
    %v2734 = vpop.f32.mrb[0].mxu0
    %v2735 = vadd.f32 0.0, %v2734
    %v2736 = vpop.f32.mrb[0].mxu0
    %2737 = vmatprep.mubr.f32.mxu0 0.0
    %2738 = vmatmul.mubr.f32.gmra.mrb[0].mxu0 %v2662
    %v2739 = vpop.f32.mrb[0].mxu0
    %v2740 = vadd.f32 0.0, %v2739
    %v2741 = vpop.f32.mrb[0].mxu0
    %2742 = vdwg.mxu0
    %v2743 = vmul.f32 %v2735, 0.35355338
    %v2744 = vmul.f32 %v2740, 0.35355338
    %v2745 = vsel %vm488, %v2743, -inf
    %2746 = vmax.xlane.f32.xlu0 %v2745
    %v2747 = vpop.xlane.xlu0 %2746
    %v2748 = vsel %vm492, %v2744, -inf
    %2749 = vmax.xlane.f32.xlu0 %v2748
    %v2750 = vpop.xlane.xlu0 %2749
    %v2751 = vsub.f32 %v2743, %v2747
    %v2752 = vsub.f32 %v2744, %v2750
    %v2753 = vmul.f32 %v2751, 1.442695
    %v2754 = vpow.pop %v2753
    %v2755 = vmul.f32 %v2752, 1.442695
    %v2756 = vpow.pop %v2755
    %v2757 = vsel %vm488, %v2754, 0.0
    %2758 = vadd.xlane.f32.xlu0 %v2757
    %v2759 = vpop.xlane.xlu0 %2758
    %v2760 = vsel %vm492, %v2756, 0.0
    %2761 = vadd.xlane.f32.xlu0 %v2760
    %v2762 = vpop.xlane.xlu0 %2761
    %v2763 = vrcp.pop %v2759
    %v2764 = vrcp.pop %v2762
    %v2765 = vmul.f32 %v2754, %v2763
    %v2766 = vmul.f32 %v2756, %v2764
    %2767 = vrot.lane.b32.xlu0 %v2641, 64
    %v2768 = vpop.permute.xlu0 %2767
    %2769 = vrot.lane.b32.xlu0 %v2646, 64
    %v2770 = vpop.permute.xlu0 %2769
    %v2773 = vsel %vm488, %v2765, 0
    %v2776 = vsel %vm488, %v2766, 0
    %v2778 = vsel %vm523, %v2770, 0
    %2780 = vmatprep.subr.mxu0 0.0
    %2781 = vmatpush1.msra.mxu0 %v2768
    %2782 = vmatprep.subr.mxu0 0.0
    %2783 = vmatpush1.msra.mxu0 %v2778
    %2784 = vmatprep.subr.mxu0 0.0
    %2785 = vmatpush1.msra.mxu0 0.0
    %2786 = vmatprep.subr.mxu0 0.0
    %2787 = vmatpush1.msra.mxu0 0.0
    %2788 = vmatprep.subr.mxu0 0.0
    %2789 = vmatpush1.msra.mxu0 0.0
    %2790 = vmatprep.subr.mxu0 0.0
    %2791 = vmatpush1.msra.mxu0 0.0
    %2792 = vmatprep.subr.mxu0 0.0
    %2793 = vmatpush1.msra.mxu0 0.0
    %2794 = vmatprep.subr.mxu0 0.0
    %2795 = vmatpush1.msra.mxu0 0.0
    %2796 = vmatprep.subr.mxu0 0.0
    %2797 = vmatpush1.msra.mxu0 0.0
    %2798 = vmatprep.subr.mxu0 0.0
    %2799 = vmatpush1.msra.mxu0 0.0
    %2800 = vmatprep.subr.mxu0 0.0
    %2801 = vmatpush1.msra.mxu0 0.0
    %2802 = vmatprep.subr.mxu0 0.0
    %2803 = vmatpush1.msra.mxu0 0.0
    %2804 = vmatprep.subr.mxu0 0.0
    %2805 = vmatpush1.msra.mxu0 0.0
    %2806 = vmatprep.subr.mxu0 0.0
    %2807 = vmatpush1.msra.mxu0 0.0
    %2808 = vmatprep.subr.mxu0 0.0
    %2809 = vmatpush1.msra.mxu0 0.0
    %2810 = vmatprep.subr.mxu0 0.0
    %2811 = vmatpush1.msra.mxu0 0.0
    %2812 = vmatprep.subr.mxu0 0.0
    %2813 = vmatpush1.msra.mxu0 0.0
    %2814 = vmatprep.subr.mxu0 0.0
    %2815 = vmatpush1.msra.mxu0 0.0
    %2816 = vmatprep.subr.mxu0 0.0
    %2817 = vmatpush1.msra.mxu0 0.0
    %2818 = vmatprep.subr.mxu0 0.0
    %2819 = vmatpush1.msra.mxu0 0.0
    %2820 = vmatprep.subr.mxu0 0.0
    %2821 = vmatpush1.msra.mxu0 0.0
    %2822 = vmatprep.subr.mxu0 0.0
    %2823 = vmatpush1.msra.mxu0 0.0
    %2824 = vmatprep.subr.mxu0 0.0
    %2825 = vmatpush1.msra.mxu0 0.0
    %2826 = vmatprep.subr.mxu0 0.0
    %2827 = vmatpush1.msra.mxu0 0.0
    %2828 = vmatprep.subr.mxu0 0.0
    %2829 = vmatpush1.msra.mxu0 0.0
    %2830 = vmatprep.subr.mxu0 0.0
    %2831 = vmatpush1.msra.mxu0 0.0
    %2832 = vmatprep.subr.mxu0 0.0
    %2833 = vmatpush1.msra.mxu0 0.0
    %2834 = vmatprep.subr.mxu0 0.0
    %2835 = vmatpush1.msra.mxu0 0.0
    %2836 = vmatprep.subr.mxu0 0.0
    %2837 = vmatpush1.msra.mxu0 0.0
    %2838 = vmatprep.subr.mxu0 0.0
    %2839 = vmatpush1.msra.mxu0 0.0
    %2840 = vmatprep.subr.mxu0 0.0
    %2841 = vmatpush1.msra.mxu0 0.0
    %2842 = vmatprep.subr.mxu0 0.0
    %2843 = vmatpush1.msra.mxu0 0.0
    %2844 = vmatprep.mubr.f32.mxu0 0.0
    %2845 = vmatmul.mubr.f32.gmra.mrb[0].mxu0 %v2773
    %v2846 = vpop.f32.mrb[0].mxu0
    %v2847 = vadd.f32 0.0, %v2846
    %v2848 = vpop.f32.mrb[0].mxu0
    %2849 = vmatprep.mubr.f32.mxu0 0.0
    %2850 = vmatmul.mubr.f32.gmra.mrb[0].mxu0 %v2776
    %v2851 = vpop.f32.mrb[0].mxu0
    %v2852 = vadd.f32 0.0, %v2851
    %v2853 = vpop.f32.mrb[0].mxu0
    %2854 = vdwg.mxu0
    %2855 = vst.msk [vmem:[#allocation3] sm:$0xff] %vm402, %v2847
    %2856 = vst.msk [vmem:[#allocation3 + $0x8] sm:$0x1] %vm602, %v2852
    %2857 = vrot.lane.b32.xlu0 %v2641, 120
    %v2858 = vpop.permute.xlu0 %2857
    %2859 = vrot.lane.b32.xlu0 %v2646, 120
    %v2860 = vpop.permute.xlu0 %2859
    %2861 = vrot.lane.b32.xlu0 %v2641, 88
    %v2862 = vpop.permute.xlu0 %2861
    %2863 = vrot.lane.b32.xlu0 %v2646, 88
    %v2864 = vpop.permute.xlu0 %2863
    %v2865 = vsel %vm402, %v2858, 0
    %v2867 = vsel %vm402, %v2860, 0
    %v2869 = vsel %vm402, %v2862, 0
    %v2871 = vsel %vm402, %v2864, 0
    %2873 = vmatprep.subr.mxu0 0.0
    %2874 = vmatpush1.xpose.msra.mxu0 %v2869
    %2875 = vmatprep.subr.mxu0 0.0
    %2876 = vmatpush1.xpose.msra.mxu0 %v2871
    %2877 = vmatprep.subr.mxu0 0.0
    %2878 = vmatpush1.xpose.msra.mxu0 0.0
    %2879 = vmatprep.subr.mxu0 0.0
    %2880 = vmatpush1.xpose.msra.mxu0 0.0
    %2881 = vmatprep.subr.mxu0 0.0
    %2882 = vmatpush1.xpose.msra.mxu0 0.0
    %2883 = vmatprep.subr.mxu0 0.0
    %2884 = vmatpush1.xpose.msra.mxu0 0.0
    %2885 = vmatprep.subr.mxu0 0.0
    %2886 = vmatpush1.xpose.msra.mxu0 0.0
    %2887 = vmatprep.subr.mxu0 0.0
    %2888 = vmatpush1.xpose.msra.mxu0 0.0
    %2889 = vmatprep.subr.mxu0 0.0
    %2890 = vmatpush1.xpose.msra.mxu0 0.0
    %2891 = vmatprep.subr.mxu0 0.0
    %2892 = vmatpush1.xpose.msra.mxu0 0.0
    %2893 = vmatprep.subr.mxu0 0.0
    %2894 = vmatpush1.xpose.msra.mxu0 0.0
    %2895 = vmatprep.subr.mxu0 0.0
    %2896 = vmatpush1.xpose.msra.mxu0 0.0
    %2897 = vmatprep.subr.mxu0 0.0
    %2898 = vmatpush1.xpose.msra.mxu0 0.0
    %2899 = vmatprep.subr.mxu0 0.0
    %2900 = vmatpush1.xpose.msra.mxu0 0.0
    %2901 = vmatprep.subr.mxu0 0.0
    %2902 = vmatpush1.xpose.msra.mxu0 0.0
    %2903 = vmatprep.subr.mxu0 0.0
    %2904 = vmatpush1.xpose.msra.mxu0 0.0
    %2905 = vmatprep.subr.mxu0 0.0
    %2906 = vmatpush1.xpose.msra.mxu0 0.0
    %2907 = vmatprep.subr.mxu0 0.0
    %2908 = vmatpush1.xpose.msra.mxu0 0.0
    %2909 = vmatprep.subr.mxu0 0.0
    %2910 = vmatpush1.xpose.msra.mxu0 0.0
    %2911 = vmatprep.subr.mxu0 0.0
    %2912 = vmatpush1.xpose.msra.mxu0 0.0
    %2913 = vmatprep.subr.mxu0 0.0
    %2914 = vmatpush1.xpose.msra.mxu0 0.0
    %2915 = vmatprep.subr.mxu0 0.0
    %2916 = vmatpush1.xpose.msra.mxu0 0.0
    %2917 = vmatprep.subr.mxu0 0.0
    %2918 = vmatpush1.xpose.msra.mxu0 0.0
    %2919 = vmatprep.subr.mxu0 0.0
    %2920 = vmatpush1.xpose.msra.mxu0 0.0
    %2921 = vmatprep.subr.mxu0 0.0
    %2922 = vmatpush1.xpose.msra.mxu0 0.0
    %2923 = vmatprep.subr.mxu0 0.0
    %2924 = vmatpush1.xpose.msra.mxu0 0.0
    %2925 = vmatprep.subr.mxu0 0.0
    %2926 = vmatpush1.xpose.msra.mxu0 0.0
    %2927 = vmatprep.subr.mxu0 0.0
    %2928 = vmatpush1.xpose.msra.mxu0 0.0
    %2929 = vmatprep.subr.mxu0 0.0
    %2930 = vmatpush1.xpose.msra.mxu0 0.0
    %2931 = vmatprep.subr.mxu0 0.0
    %2932 = vmatpush1.xpose.msra.mxu0 0.0
    %2933 = vmatprep.subr.mxu0 0.0
    %2934 = vmatpush1.xpose.msra.mxu0 0.0
    %2935 = vmatprep.subr.mxu0 0.0
    %2936 = vmatpush1.xpose.msra.mxu0 0.0
    %2937 = vmatprep.mubr.f32.mxu0 0.0
    %2938 = vmatmul.mubr.f32.gmra.mrb[0].mxu0 %v2865
    %v2939 = vpop.f32.mrb[0].mxu0
    %v2940 = vadd.f32 0.0, %v2939
    %v2941 = vpop.f32.mrb[0].mxu0
    %2942 = vmatprep.mubr.f32.mxu0 0.0
    %2943 = vmatmul.mubr.f32.gmra.mrb[0].mxu0 %v2867
    %v2944 = vpop.f32.mrb[0].mxu0
    %v2945 = vadd.f32 0.0, %v2944
    %v2946 = vpop.f32.mrb[0].mxu0
    %2947 = vdwg.mxu0
    %v2948 = vmul.f32 %v2940, 0.35355338
    %v2949 = vmul.f32 %v2945, 0.35355338
    %v2950 = vsel %vm488, %v2948, -inf
    %2951 = vmax.xlane.f32.xlu0 %v2950
    %v2952 = vpop.xlane.xlu0 %2951
    %v2953 = vsel %vm492, %v2949, -inf
    %2954 = vmax.xlane.f32.xlu0 %v2953
    %v2955 = vpop.xlane.xlu0 %2954
    %v2956 = vsub.f32 %v2948, %v2952
    %v2957 = vsub.f32 %v2949, %v2955
    %v2958 = vmul.f32 %v2956, 1.442695
    %v2959 = vpow.pop %v2958
    %v2960 = vmul.f32 %v2957, 1.442695
    %v2961 = vpow.pop %v2960
    %v2962 = vsel %vm488, %v2959, 0.0
    %2963 = vadd.xlane.f32.xlu0 %v2962
    %v2964 = vpop.xlane.xlu0 %2963
    %v2965 = vsel %vm492, %v2961, 0.0
    %2966 = vadd.xlane.f32.xlu0 %v2965
    %v2967 = vpop.xlane.xlu0 %2966
    %v2968 = vrcp.pop %v2964
    %v2969 = vrcp.pop %v2967
    %v2970 = vmul.f32 %v2959, %v2968
    %v2971 = vmul.f32 %v2961, %v2969
    %2972 = vrot.lane.b32.xlu0 %v2641, 56
    %v2973 = vpop.permute.xlu0 %2972
    %2974 = vrot.lane.b32.xlu0 %v2646, 56
    %v2975 = vpop.permute.xlu0 %2974
    %v2978 = vsel %vm488, %v2970, 0
    %v2981 = vsel %vm488, %v2971, 0
    %v2983 = vsel %vm523, %v2975, 0
    %2985 = vmatprep.subr.mxu0 0.0
    %2986 = vmatpush1.msra.mxu0 %v2973
    %2987 = vmatprep.subr.mxu0 0.0
    %2988 = vmatpush1.msra.mxu0 %v2983
    %2989 = vmatprep.subr.mxu0 0.0
    %2990 = vmatpush1.msra.mxu0 0.0
    %2991 = vmatprep.subr.mxu0 0.0
    %2992 = vmatpush1.msra.mxu0 0.0
    %2993 = vmatprep.subr.mxu0 0.0
    %2994 = vmatpush1.msra.mxu0 0.0
    %2995 = vmatprep.subr.mxu0 0.0
    %2996 = vmatpush1.msra.mxu0 0.0
    %2997 = vmatprep.subr.mxu0 0.0
    %2998 = vmatpush1.msra.mxu0 0.0
    %2999 = vmatprep.subr.mxu0 0.0
    %3000 = vmatpush1.msra.mxu0 0.0
    %3001 = vmatprep.subr.mxu0 0.0
    %3002 = vmatpush1.msra.mxu0 0.0
    %3003 = vmatprep.subr.mxu0 0.0
    %3004 = vmatpush1.msra.mxu0 0.0
    %3005 = vmatprep.subr.mxu0 0.0
    %3006 = vmatpush1.msra.mxu0 0.0
    %3007 = vmatprep.subr.mxu0 0.0
    %3008 = vmatpush1.msra.mxu0 0.0
    %3009 = vmatprep.subr.mxu0 0.0
    %3010 = vmatpush1.msra.mxu0 0.0
    %3011 = vmatprep.subr.mxu0 0.0
    %3012 = vmatpush1.msra.mxu0 0.0
    %3013 = vmatprep.subr.mxu0 0.0
    %3014 = vmatpush1.msra.mxu0 0.0
    %3015 = vmatprep.subr.mxu0 0.0
    %3016 = vmatpush1.msra.mxu0 0.0
    %3017 = vmatprep.subr.mxu0 0.0
    %3018 = vmatpush1.msra.mxu0 0.0
    %3019 = vmatprep.subr.mxu0 0.0
    %3020 = vmatpush1.msra.mxu0 0.0
    %3021 = vmatprep.subr.mxu0 0.0
    %3022 = vmatpush1.msra.mxu0 0.0
    %3023 = vmatprep.subr.mxu0 0.0
    %3024 = vmatpush1.msra.mxu0 0.0
    %3025 = vmatprep.subr.mxu0 0.0
    %3026 = vmatpush1.msra.mxu0 0.0
    %3027 = vmatprep.subr.mxu0 0.0
    %3028 = vmatpush1.msra.mxu0 0.0
    %3029 = vmatprep.subr.mxu0 0.0
    %3030 = vmatpush1.msra.mxu0 0.0
    %3031 = vmatprep.subr.mxu0 0.0
    %3032 = vmatpush1.msra.mxu0 0.0
    %3033 = vmatprep.subr.mxu0 0.0
    %3034 = vmatpush1.msra.mxu0 0.0
    %3035 = vmatprep.subr.mxu0 0.0
    %3036 = vmatpush1.msra.mxu0 0.0
    %3037 = vmatprep.subr.mxu0 0.0
    %3038 = vmatpush1.msra.mxu0 0.0
    %3039 = vmatprep.subr.mxu0 0.0
    %3040 = vmatpush1.msra.mxu0 0.0
    %3041 = vmatprep.subr.mxu0 0.0
    %3042 = vmatpush1.msra.mxu0 0.0
    %3043 = vmatprep.subr.mxu0 0.0
    %3044 = vmatpush1.msra.mxu0 0.0
    %3045 = vmatprep.subr.mxu0 0.0
    %3046 = vmatpush1.msra.mxu0 0.0
    %3047 = vmatprep.subr.mxu0 0.0
    %3048 = vmatpush1.msra.mxu0 0.0
    %3049 = vmatprep.mubr.f32.mxu0 0.0
    %3050 = vmatmul.mubr.f32.gmra.mrb[0].mxu0 %v2978
    %v3051 = vpop.f32.mrb[0].mxu0
    %v3052 = vadd.f32 0.0, %v3051
    %v3053 = vpop.f32.mrb[0].mxu0
    %3054 = vmatprep.mubr.f32.mxu0 0.0
    %3055 = vmatmul.mubr.f32.gmra.mrb[0].mxu0 %v2981
    %v3056 = vpop.f32.mrb[0].mxu0
    %v3057 = vadd.f32 0.0, %v3056
    %v3058 = vpop.f32.mrb[0].mxu0
    %3059 = vdwg.mxu0
    %3062 = vrot.lane.b32.xlu0 %v3052, 8
    %v3063 = vpop.permute.xlu0 %3062
    %3064 = vrot.lane.b32.xlu0 %v3057, 8
    %v3065 = vpop.permute.xlu0 %3064
    %3068 = vst.msk [vmem:[#allocation3] sm:$0xff] %vm815, %v3063
    %3069 = vst.msk [vmem:[#allocation3 + $0x8] sm:$0x1] %vm817, %v3065
    %3070 = vrot.lane.b32.xlu0 %v2641, 112
    %v3071 = vpop.permute.xlu0 %3070
    %3072 = vrot.lane.b32.xlu0 %v2646, 112
    %v3073 = vpop.permute.xlu0 %3072
    %3074 = vrot.lane.b32.xlu0 %v2641, 80
    %v3075 = vpop.permute.xlu0 %3074
    %3076 = vrot.lane.b32.xlu0 %v2646, 80
    %v3077 = vpop.permute.xlu0 %3076
    %v3078 = vsel %vm402, %v3071, 0
    %v3080 = vsel %vm402, %v3073, 0
    %v3082 = vsel %vm402, %v3075, 0
    %v3084 = vsel %vm402, %v3077, 0
    %3086 = vmatprep.subr.mxu0 0.0
    %3087 = vmatpush1.xpose.msra.mxu0 %v3082
    %3088 = vmatprep.subr.mxu0 0.0
    %3089 = vmatpush1.xpose.msra.mxu0 %v3084
    %3090 = vmatprep.subr.mxu0 0.0
    %3091 = vmatpush1.xpose.msra.mxu0 0.0
    %3092 = vmatprep.subr.mxu0 0.0
    %3093 = vmatpush1.xpose.msra.mxu0 0.0
    %3094 = vmatprep.subr.mxu0 0.0
    %3095 = vmatpush1.xpose.msra.mxu0 0.0
    %3096 = vmatprep.subr.mxu0 0.0
    %3097 = vmatpush1.xpose.msra.mxu0 0.0
    %3098 = vmatprep.subr.mxu0 0.0
    %3099 = vmatpush1.xpose.msra.mxu0 0.0
    %3100 = vmatprep.subr.mxu0 0.0
    %3101 = vmatpush1.xpose.msra.mxu0 0.0
    %3102 = vmatprep.subr.mxu0 0.0
    %3103 = vmatpush1.xpose.msra.mxu0 0.0
    %3104 = vmatprep.subr.mxu0 0.0
    %3105 = vmatpush1.xpose.msra.mxu0 0.0
    %3106 = vmatprep.subr.mxu0 0.0
    %3107 = vmatpush1.xpose.msra.mxu0 0.0
    %3108 = vmatprep.subr.mxu0 0.0
    %3109 = vmatpush1.xpose.msra.mxu0 0.0
    %3110 = vmatprep.subr.mxu0 0.0
    %3111 = vmatpush1.xpose.msra.mxu0 0.0
    %3112 = vmatprep.subr.mxu0 0.0
    %3113 = vmatpush1.xpose.msra.mxu0 0.0
    %3114 = vmatprep.subr.mxu0 0.0
    %3115 = vmatpush1.xpose.msra.mxu0 0.0
    %3116 = vmatprep.subr.mxu0 0.0
    %3117 = vmatpush1.xpose.msra.mxu0 0.0
    %3118 = vmatprep.subr.mxu0 0.0
    %3119 = vmatpush1.xpose.msra.mxu0 0.0
    %3120 = vmatprep.subr.mxu0 0.0
    %3121 = vmatpush1.xpose.msra.mxu0 0.0
    %3122 = vmatprep.subr.mxu0 0.0
    %3123 = vmatpush1.xpose.msra.mxu0 0.0
    %3124 = vmatprep.subr.mxu0 0.0
    %3125 = vmatpush1.xpose.msra.mxu0 0.0
    %3126 = vmatprep.subr.mxu0 0.0
    %3127 = vmatpush1.xpose.msra.mxu0 0.0
    %3128 = vmatprep.subr.mxu0 0.0
    %3129 = vmatpush1.xpose.msra.mxu0 0.0
    %3130 = vmatprep.subr.mxu0 0.0
    %3131 = vmatpush1.xpose.msra.mxu0 0.0
    %3132 = vmatprep.subr.mxu0 0.0
    %3133 = vmatpush1.xpose.msra.mxu0 0.0
    %3134 = vmatprep.subr.mxu0 0.0
    %3135 = vmatpush1.xpose.msra.mxu0 0.0
    %3136 = vmatprep.subr.mxu0 0.0
    %3137 = vmatpush1.xpose.msra.mxu0 0.0
    %3138 = vmatprep.subr.mxu0 0.0
    %3139 = vmatpush1.xpose.msra.mxu0 0.0
    %3140 = vmatprep.subr.mxu0 0.0
    %3141 = vmatpush1.xpose.msra.mxu0 0.0
    %3142 = vmatprep.subr.mxu0 0.0
    %3143 = vmatpush1.xpose.msra.mxu0 0.0
    %3144 = vmatprep.subr.mxu0 0.0
    %3145 = vmatpush1.xpose.msra.mxu0 0.0
    %3146 = vmatprep.subr.mxu0 0.0
    %3147 = vmatpush1.xpose.msra.mxu0 0.0
    %3148 = vmatprep.subr.mxu0 0.0
    %3149 = vmatpush1.xpose.msra.mxu0 0.0
    %3150 = vmatprep.mubr.f32.mxu0 0.0
    %3151 = vmatmul.mubr.f32.gmra.mrb[0].mxu0 %v3078
    %v3152 = vpop.f32.mrb[0].mxu0
    %v3153 = vadd.f32 0.0, %v3152
    %v3154 = vpop.f32.mrb[0].mxu0
    %3155 = vmatprep.mubr.f32.mxu0 0.0
    %3156 = vmatmul.mubr.f32.gmra.mrb[0].mxu0 %v3080
    %v3157 = vpop.f32.mrb[0].mxu0
    %v3158 = vadd.f32 0.0, %v3157
    %v3159 = vpop.f32.mrb[0].mxu0
    %3160 = vdwg.mxu0
    %v3161 = vmul.f32 %v3153, 0.35355338
    %v3162 = vmul.f32 %v3158, 0.35355338
    %v3163 = vsel %vm488, %v3161, -inf
    %3164 = vmax.xlane.f32.xlu0 %v3163
    %v3165 = vpop.xlane.xlu0 %3164
    %v3166 = vsel %vm492, %v3162, -inf
    %3167 = vmax.xlane.f32.xlu0 %v3166
    %v3168 = vpop.xlane.xlu0 %3167
    %v3169 = vsub.f32 %v3161, %v3165
    %v3170 = vsub.f32 %v3162, %v3168
    %v3171 = vmul.f32 %v3169, 1.442695
    %v3172 = vpow.pop %v3171
    %v3173 = vmul.f32 %v3170, 1.442695
    %v3174 = vpow.pop %v3173
    %v3175 = vsel %vm488, %v3172, 0.0
    %3176 = vadd.xlane.f32.xlu0 %v3175
    %v3177 = vpop.xlane.xlu0 %3176
    %v3178 = vsel %vm492, %v3174, 0.0
    %3179 = vadd.xlane.f32.xlu0 %v3178
    %v3180 = vpop.xlane.xlu0 %3179
    %v3181 = vrcp.pop %v3177
    %v3182 = vrcp.pop %v3180
    %v3183 = vmul.f32 %v3172, %v3181
    %v3184 = vmul.f32 %v3174, %v3182
    %3185 = vrot.lane.b32.xlu0 %v2641, 48
    %v3186 = vpop.permute.xlu0 %3185
    %3187 = vrot.lane.b32.xlu0 %v2646, 48
    %v3188 = vpop.permute.xlu0 %3187
    %v3191 = vsel %vm488, %v3183, 0
    %v3194 = vsel %vm488, %v3184, 0
    %v3196 = vsel %vm523, %v3188, 0
    %3198 = vmatprep.subr.mxu0 0.0
    %3199 = vmatpush1.msra.mxu0 %v3186
    %3200 = vmatprep.subr.mxu0 0.0
    %3201 = vmatpush1.msra.mxu0 %v3196
    %3202 = vmatprep.subr.mxu0 0.0
    %3203 = vmatpush1.msra.mxu0 0.0
    %3204 = vmatprep.subr.mxu0 0.0
    %3205 = vmatpush1.msra.mxu0 0.0
    %3206 = vmatprep.subr.mxu0 0.0
    %3207 = vmatpush1.msra.mxu0 0.0
    %3208 = vmatprep.subr.mxu0 0.0
    %3209 = vmatpush1.msra.mxu0 0.0
    %3210 = vmatprep.subr.mxu0 0.0
    %3211 = vmatpush1.msra.mxu0 0.0
    %3212 = vmatprep.subr.mxu0 0.0
    %3213 = vmatpush1.msra.mxu0 0.0
    %3214 = vmatprep.subr.mxu0 0.0
    %3215 = vmatpush1.msra.mxu0 0.0
    %3216 = vmatprep.subr.mxu0 0.0
    %3217 = vmatpush1.msra.mxu0 0.0
    %3218 = vmatprep.subr.mxu0 0.0
    %3219 = vmatpush1.msra.mxu0 0.0
    %3220 = vmatprep.subr.mxu0 0.0
    %3221 = vmatpush1.msra.mxu0 0.0
    %3222 = vmatprep.subr.mxu0 0.0
    %3223 = vmatpush1.msra.mxu0 0.0
    %3224 = vmatprep.subr.mxu0 0.0
    %3225 = vmatpush1.msra.mxu0 0.0
    %3226 = vmatprep.subr.mxu0 0.0
    %3227 = vmatpush1.msra.mxu0 0.0
    %3228 = vmatprep.subr.mxu0 0.0
    %3229 = vmatpush1.msra.mxu0 0.0
    %3230 = vmatprep.subr.mxu0 0.0
    %3231 = vmatpush1.msra.mxu0 0.0
    %3232 = vmatprep.subr.mxu0 0.0
    %3233 = vmatpush1.msra.mxu0 0.0
    %3234 = vmatprep.subr.mxu0 0.0
    %3235 = vmatpush1.msra.mxu0 0.0
    %3236 = vmatprep.subr.mxu0 0.0
    %3237 = vmatpush1.msra.mxu0 0.0
    %3238 = vmatprep.subr.mxu0 0.0
    %3239 = vmatpush1.msra.mxu0 0.0
    %3240 = vmatprep.subr.mxu0 0.0
    %3241 = vmatpush1.msra.mxu0 0.0
    %3242 = vmatprep.subr.mxu0 0.0
    %3243 = vmatpush1.msra.mxu0 0.0
    %3244 = vmatprep.subr.mxu0 0.0
    %3245 = vmatpush1.msra.mxu0 0.0
    %3246 = vmatprep.subr.mxu0 0.0
    %3247 = vmatpush1.msra.mxu0 0.0
    %3248 = vmatprep.subr.mxu0 0.0
    %3249 = vmatpush1.msra.mxu0 0.0
    %3250 = vmatprep.subr.mxu0 0.0
    %3251 = vmatpush1.msra.mxu0 0.0
    %3252 = vmatprep.subr.mxu0 0.0
    %3253 = vmatpush1.msra.mxu0 0.0
    %3254 = vmatprep.subr.mxu0 0.0
    %3255 = vmatpush1.msra.mxu0 0.0
    %3256 = vmatprep.subr.mxu0 0.0
    %3257 = vmatpush1.msra.mxu0 0.0
    %3258 = vmatprep.subr.mxu0 0.0
    %3259 = vmatpush1.msra.mxu0 0.0
    %3260 = vmatprep.subr.mxu0 0.0
    %3261 = vmatpush1.msra.mxu0 0.0
    %3262 = vmatprep.mubr.f32.mxu0 0.0
    %3263 = vmatmul.mubr.f32.gmra.mrb[0].mxu0 %v3191
    %v3264 = vpop.f32.mrb[0].mxu0
    %v3265 = vadd.f32 0.0, %v3264
    %v3266 = vpop.f32.mrb[0].mxu0
    %3267 = vmatprep.mubr.f32.mxu0 0.0
    %3268 = vmatmul.mubr.f32.gmra.mrb[0].mxu0 %v3194
    %v3269 = vpop.f32.mrb[0].mxu0
    %v3270 = vadd.f32 0.0, %v3269
    %v3271 = vpop.f32.mrb[0].mxu0
    %3272 = vdwg.mxu0
    %3275 = vrot.lane.b32.xlu0 %v3265, 16
    %v3276 = vpop.permute.xlu0 %3275
    %3277 = vrot.lane.b32.xlu0 %v3270, 16
    %v3278 = vpop.permute.xlu0 %3277
    %3281 = vst.msk [vmem:[#allocation3] sm:$0xff] %vm1030, %v3276
    %3282 = vst.msk [vmem:[#allocation3 + $0x8] sm:$0x1] %vm1032, %v3278
    %3283 = vrot.lane.b32.xlu0 %v2641, 104
    %v3284 = vpop.permute.xlu0 %3283
    %3285 = vrot.lane.b32.xlu0 %v2646, 104
    %v3286 = vpop.permute.xlu0 %3285
    %3287 = vrot.lane.b32.xlu0 %v2641, 72
    %v3288 = vpop.permute.xlu0 %3287
    %3289 = vrot.lane.b32.xlu0 %v2646, 72
    %v3290 = vpop.permute.xlu0 %3289
    %v3291 = vsel %vm402, %v3284, 0
    %v3293 = vsel %vm402, %v3286, 0
    %v3295 = vsel %vm402, %v3288, 0
    %v3297 = vsel %vm402, %v3290, 0
    %3299 = vmatprep.subr.mxu0 0.0
    %3300 = vmatpush1.xpose.msra.mxu0 %v3295
    %3301 = vmatprep.subr.mxu0 0.0
    %3302 = vmatpush1.xpose.msra.mxu0 %v3297
    %3303 = vmatprep.subr.mxu0 0.0
    %3304 = vmatpush1.xpose.msra.mxu0 0.0
    %3305 = vmatprep.subr.mxu0 0.0
    %3306 = vmatpush1.xpose.msra.mxu0 0.0
    %3307 = vmatprep.subr.mxu0 0.0
    %3308 = vmatpush1.xpose.msra.mxu0 0.0
    %3309 = vmatprep.subr.mxu0 0.0
    %3310 = vmatpush1.xpose.msra.mxu0 0.0
    %3311 = vmatprep.subr.mxu0 0.0
    %3312 = vmatpush1.xpose.msra.mxu0 0.0
    %3313 = vmatprep.subr.mxu0 0.0
    %3314 = vmatpush1.xpose.msra.mxu0 0.0
    %3315 = vmatprep.subr.mxu0 0.0
    %3316 = vmatpush1.xpose.msra.mxu0 0.0
    %3317 = vmatprep.subr.mxu0 0.0
    %3318 = vmatpush1.xpose.msra.mxu0 0.0
    %3319 = vmatprep.subr.mxu0 0.0
    %3320 = vmatpush1.xpose.msra.mxu0 0.0
    %3321 = vmatprep.subr.mxu0 0.0
    %3322 = vmatpush1.xpose.msra.mxu0 0.0
    %3323 = vmatprep.subr.mxu0 0.0
    %3324 = vmatpush1.xpose.msra.mxu0 0.0
    %3325 = vmatprep.subr.mxu0 0.0
    %3326 = vmatpush1.xpose.msra.mxu0 0.0
    %3327 = vmatprep.subr.mxu0 0.0
    %3328 = vmatpush1.xpose.msra.mxu0 0.0
    %3329 = vmatprep.subr.mxu0 0.0
    %3330 = vmatpush1.xpose.msra.mxu0 0.0
    %3331 = vmatprep.subr.mxu0 0.0
    %3332 = vmatpush1.xpose.msra.mxu0 0.0
    %3333 = vmatprep.subr.mxu0 0.0
    %3334 = vmatpush1.xpose.msra.mxu0 0.0
    %3335 = vmatprep.subr.mxu0 0.0
    %3336 = vmatpush1.xpose.msra.mxu0 0.0
    %3337 = vmatprep.subr.mxu0 0.0
    %3338 = vmatpush1.xpose.msra.mxu0 0.0
    %3339 = vmatprep.subr.mxu0 0.0
    %3340 = vmatpush1.xpose.msra.mxu0 0.0
    %3341 = vmatprep.subr.mxu0 0.0
    %3342 = vmatpush1.xpose.msra.mxu0 0.0
    %3343 = vmatprep.subr.mxu0 0.0
    %3344 = vmatpush1.xpose.msra.mxu0 0.0
    %3345 = vmatprep.subr.mxu0 0.0
    %3346 = vmatpush1.xpose.msra.mxu0 0.0
    %3347 = vmatprep.subr.mxu0 0.0
    %3348 = vmatpush1.xpose.msra.mxu0 0.0
    %3349 = vmatprep.subr.mxu0 0.0
    %3350 = vmatpush1.xpose.msra.mxu0 0.0
    %3351 = vmatprep.subr.mxu0 0.0
    %3352 = vmatpush1.xpose.msra.mxu0 0.0
    %3353 = vmatprep.subr.mxu0 0.0
    %3354 = vmatpush1.xpose.msra.mxu0 0.0
    %3355 = vmatprep.subr.mxu0 0.0
    %3356 = vmatpush1.xpose.msra.mxu0 0.0
    %3357 = vmatprep.subr.mxu0 0.0
    %3358 = vmatpush1.xpose.msra.mxu0 0.0
    %3359 = vmatprep.subr.mxu0 0.0
    %3360 = vmatpush1.xpose.msra.mxu0 0.0
    %3361 = vmatprep.subr.mxu0 0.0
    %3362 = vmatpush1.xpose.msra.mxu0 0.0
    %3363 = vmatprep.mubr.f32.mxu0 0.0
    %3364 = vmatmul.mubr.f32.gmra.mrb[0].mxu0 %v3291
    %v3365 = vpop.f32.mrb[0].mxu0
    %v3366 = vadd.f32 0.0, %v3365
    %v3367 = vpop.f32.mrb[0].mxu0
    %3368 = vmatprep.mubr.f32.mxu0 0.0
    %3369 = vmatmul.mubr.f32.gmra.mrb[0].mxu0 %v3293
    %v3370 = vpop.f32.mrb[0].mxu0
    %v3371 = vadd.f32 0.0, %v3370
    %v3372 = vpop.f32.mrb[0].mxu0
    %3373 = vdwg.mxu0
    %v3374 = vmul.f32 %v3366, 0.35355338
    %v3375 = vmul.f32 %v3371, 0.35355338
    %v3376 = vsel %vm488, %v3374, -inf
    %3377 = vmax.xlane.f32.xlu0 %v3376
    %v3378 = vpop.xlane.xlu0 %3377
    %v3379 = vsel %vm492, %v3375, -inf
    %3380 = vmax.xlane.f32.xlu0 %v3379
    %v3381 = vpop.xlane.xlu0 %3380
    %v3382 = vsub.f32 %v3374, %v3378
    %v3383 = vsub.f32 %v3375, %v3381
    %v3384 = vmul.f32 %v3382, 1.442695
    %v3385 = vpow.pop %v3384
    %v3386 = vmul.f32 %v3383, 1.442695
    %v3387 = vpow.pop %v3386
    %v3388 = vsel %vm488, %v3385, 0.0
    %3389 = vadd.xlane.f32.xlu0 %v3388
    %v3390 = vpop.xlane.xlu0 %3389
    %v3391 = vsel %vm492, %v3387, 0.0
    %3392 = vadd.xlane.f32.xlu0 %v3391
    %v3393 = vpop.xlane.xlu0 %3392
    %v3394 = vrcp.pop %v3390
    %v3395 = vrcp.pop %v3393
    %v3396 = vmul.f32 %v3385, %v3394
    %v3397 = vmul.f32 %v3387, %v3395
    %3398 = vrot.lane.b32.xlu0 %v2641, 40
    %v3399 = vpop.permute.xlu0 %3398
    %3400 = vrot.lane.b32.xlu0 %v2646, 40
    %v3401 = vpop.permute.xlu0 %3400
    %v3404 = vsel %vm488, %v3396, 0
    %v3407 = vsel %vm488, %v3397, 0
    %v3409 = vsel %vm523, %v3401, 0
    %3411 = vmatprep.subr.mxu0 0.0
    %3412 = vmatpush1.msra.mxu0 %v3399
    %3413 = vmatprep.subr.mxu0 0.0
    %3414 = vmatpush1.msra.mxu0 %v3409
    %3415 = vmatprep.subr.mxu0 0.0
    %3416 = vmatpush1.msra.mxu0 0.0
    %3417 = vmatprep.subr.mxu0 0.0
    %3418 = vmatpush1.msra.mxu0 0.0
    %3419 = vmatprep.subr.mxu0 0.0
    %3420 = vmatpush1.msra.mxu0 0.0
    %3421 = vmatprep.subr.mxu0 0.0
    %3422 = vmatpush1.msra.mxu0 0.0
    %3423 = vmatprep.subr.mxu0 0.0
    %3424 = vmatpush1.msra.mxu0 0.0
    %3425 = vmatprep.subr.mxu0 0.0
    %3426 = vmatpush1.msra.mxu0 0.0
    %3427 = vmatprep.subr.mxu0 0.0
    %3428 = vmatpush1.msra.mxu0 0.0
    %3429 = vmatprep.subr.mxu0 0.0
    %3430 = vmatpush1.msra.mxu0 0.0
    %3431 = vmatprep.subr.mxu0 0.0
    %3432 = vmatpush1.msra.mxu0 0.0
    %3433 = vmatprep.subr.mxu0 0.0
    %3434 = vmatpush1.msra.mxu0 0.0
    %3435 = vmatprep.subr.mxu0 0.0
    %3436 = vmatpush1.msra.mxu0 0.0
    %3437 = vmatprep.subr.mxu0 0.0
    %3438 = vmatpush1.msra.mxu0 0.0
    %3439 = vmatprep.subr.mxu0 0.0
    %3440 = vmatpush1.msra.mxu0 0.0
    %3441 = vmatprep.subr.mxu0 0.0
    %3442 = vmatpush1.msra.mxu0 0.0
    %3443 = vmatprep.subr.mxu0 0.0
    %3444 = vmatpush1.msra.mxu0 0.0
    %3445 = vmatprep.subr.mxu0 0.0
    %3446 = vmatpush1.msra.mxu0 0.0
    %3447 = vmatprep.subr.mxu0 0.0
    %3448 = vmatpush1.msra.mxu0 0.0
    %3449 = vmatprep.subr.mxu0 0.0
    %3450 = vmatpush1.msra.mxu0 0.0
    %3451 = vmatprep.subr.mxu0 0.0
    %3452 = vmatpush1.msra.mxu0 0.0
    %3453 = vmatprep.subr.mxu0 0.0
    %3454 = vmatpush1.msra.mxu0 0.0
    %3455 = vmatprep.subr.mxu0 0.0
    %3456 = vmatpush1.msra.mxu0 0.0
    %3457 = vmatprep.subr.mxu0 0.0
    %3458 = vmatpush1.msra.mxu0 0.0
    %3459 = vmatprep.subr.mxu0 0.0
    %3460 = vmatpush1.msra.mxu0 0.0
    %3461 = vmatprep.subr.mxu0 0.0
    %3462 = vmatpush1.msra.mxu0 0.0
    %3463 = vmatprep.subr.mxu0 0.0
    %3464 = vmatpush1.msra.mxu0 0.0
    %3465 = vmatprep.subr.mxu0 0.0
    %3466 = vmatpush1.msra.mxu0 0.0
    %3467 = vmatprep.subr.mxu0 0.0
    %3468 = vmatpush1.msra.mxu0 0.0
    %3469 = vmatprep.subr.mxu0 0.0
    %3470 = vmatpush1.msra.mxu0 0.0
    %3471 = vmatprep.subr.mxu0 0.0
    %3472 = vmatpush1.msra.mxu0 0.0
    %3473 = vmatprep.subr.mxu0 0.0
    %3474 = vmatpush1.msra.mxu0 0.0
    %3475 = vmatprep.mubr.f32.mxu0 0.0
    %3476 = vmatmul.mubr.f32.gmra.mrb[0].mxu0 %v3404
    %v3477 = vpop.f32.mrb[0].mxu0
    %v3478 = vadd.f32 0.0, %v3477
    %v3479 = vpop.f32.mrb[0].mxu0
    %3480 = vmatprep.mubr.f32.mxu0 0.0
    %3481 = vmatmul.mubr.f32.gmra.mrb[0].mxu0 %v3407
    %v3482 = vpop.f32.mrb[0].mxu0
    %v3483 = vadd.f32 0.0, %v3482
    %v3484 = vpop.f32.mrb[0].mxu0
    %3485 = vdwg.mxu0
    %3488 = vrot.lane.b32.xlu0 %v3478, 24
    %v3489 = vpop.permute.xlu0 %3488
    %3490 = vrot.lane.b32.xlu0 %v3483, 24
    %v3491 = vpop.permute.xlu0 %3490
    %3494 = vst.msk [vmem:[#allocation3] sm:$0xff] %vm1245, %v3489
    %3495 = vst.msk [vmem:[#allocation3 + $0x8] sm:$0x1] %vm1247, %v3491
    %v3497 = vrot.slane %v2646, 1
    %v3498 = vrot.slane %v2651, 1
    %v3499 = vsel %vm223, %v3497, %v3498
    %3500 = vrot.lane.b32.xlu0 %v3499, 96
    %v3501 = vpop.permute.xlu0 %3500
    %3502 = vrot.lane.b32.xlu0 %v3498, 96
    %v3503 = vpop.permute.xlu0 %3502
    %v3504 = vsel %vm402, %v3499, 0
    %v3506 = vsel %vm402, %v3498, 0
    %v3508 = vsel %vm402, %v3501, 0
    %v3510 = vsel %vm402, %v3503, 0
    %3512 = vmatprep.subr.mxu0 0.0
    %3513 = vmatpush1.xpose.msra.mxu0 %v3508
    %3514 = vmatprep.subr.mxu0 0.0
    %3515 = vmatpush1.xpose.msra.mxu0 %v3510
    %3516 = vmatprep.subr.mxu0 0.0
    %3517 = vmatpush1.xpose.msra.mxu0 0.0
    %3518 = vmatprep.subr.mxu0 0.0
    %3519 = vmatpush1.xpose.msra.mxu0 0.0
    %3520 = vmatprep.subr.mxu0 0.0
    %3521 = vmatpush1.xpose.msra.mxu0 0.0
    %3522 = vmatprep.subr.mxu0 0.0
    %3523 = vmatpush1.xpose.msra.mxu0 0.0
    %3524 = vmatprep.subr.mxu0 0.0
    %3525 = vmatpush1.xpose.msra.mxu0 0.0
    %3526 = vmatprep.subr.mxu0 0.0
    %3527 = vmatpush1.xpose.msra.mxu0 0.0
    %3528 = vmatprep.subr.mxu0 0.0
    %3529 = vmatpush1.xpose.msra.mxu0 0.0
    %3530 = vmatprep.subr.mxu0 0.0
    %3531 = vmatpush1.xpose.msra.mxu0 0.0
    %3532 = vmatprep.subr.mxu0 0.0
    %3533 = vmatpush1.xpose.msra.mxu0 0.0
    %3534 = vmatprep.subr.mxu0 0.0
    %3535 = vmatpush1.xpose.msra.mxu0 0.0
    %3536 = vmatprep.subr.mxu0 0.0
    %3537 = vmatpush1.xpose.msra.mxu0 0.0
    %3538 = vmatprep.subr.mxu0 0.0
    %3539 = vmatpush1.xpose.msra.mxu0 0.0
    %3540 = vmatprep.subr.mxu0 0.0
    %3541 = vmatpush1.xpose.msra.mxu0 0.0
    %3542 = vmatprep.subr.mxu0 0.0
    %3543 = vmatpush1.xpose.msra.mxu0 0.0
    %3544 = vmatprep.subr.mxu0 0.0
    %3545 = vmatpush1.xpose.msra.mxu0 0.0
    %3546 = vmatprep.subr.mxu0 0.0
    %3547 = vmatpush1.xpose.msra.mxu0 0.0
    %3548 = vmatprep.subr.mxu0 0.0
    %3549 = vmatpush1.xpose.msra.mxu0 0.0
    %3550 = vmatprep.subr.mxu0 0.0
    %3551 = vmatpush1.xpose.msra.mxu0 0.0
    %3552 = vmatprep.subr.mxu0 0.0
    %3553 = vmatpush1.xpose.msra.mxu0 0.0
    %3554 = vmatprep.subr.mxu0 0.0
    %3555 = vmatpush1.xpose.msra.mxu0 0.0
    %3556 = vmatprep.subr.mxu0 0.0
    %3557 = vmatpush1.xpose.msra.mxu0 0.0
    %3558 = vmatprep.subr.mxu0 0.0
    %3559 = vmatpush1.xpose.msra.mxu0 0.0
    %3560 = vmatprep.subr.mxu0 0.0
    %3561 = vmatpush1.xpose.msra.mxu0 0.0
    %3562 = vmatprep.subr.mxu0 0.0
    %3563 = vmatpush1.xpose.msra.mxu0 0.0
    %3564 = vmatprep.subr.mxu0 0.0
    %3565 = vmatpush1.xpose.msra.mxu0 0.0
    %3566 = vmatprep.subr.mxu0 0.0
    %3567 = vmatpush1.xpose.msra.mxu0 0.0
    %3568 = vmatprep.subr.mxu0 0.0
    %3569 = vmatpush1.xpose.msra.mxu0 0.0
    %3570 = vmatprep.subr.mxu0 0.0
    %3571 = vmatpush1.xpose.msra.mxu0 0.0
    %3572 = vmatprep.subr.mxu0 0.0
    %3573 = vmatpush1.xpose.msra.mxu0 0.0
    %3574 = vmatprep.subr.mxu0 0.0
    %3575 = vmatpush1.xpose.msra.mxu0 0.0
    %3576 = vmatprep.mubr.f32.mxu0 0.0
    %3577 = vmatmul.mubr.f32.gmra.mrb[0].mxu0 %v3504
    %v3578 = vpop.f32.mrb[0].mxu0
    %v3579 = vadd.f32 0.0, %v3578
    %v3580 = vpop.f32.mrb[0].mxu0
    %3581 = vmatprep.mubr.f32.mxu0 0.0
    %3582 = vmatmul.mubr.f32.gmra.mrb[0].mxu0 %v3506
    %v3583 = vpop.f32.mrb[0].mxu0
    %v3584 = vadd.f32 0.0, %v3583
    %v3585 = vpop.f32.mrb[0].mxu0
    %3586 = vdwg.mxu0
    %v3587 = vmul.f32 %v3579, 0.35355338
    %v3588 = vmul.f32 %v3584, 0.35355338
    %v3589 = vsel %vm488, %v3587, -inf
    %3590 = vmax.xlane.f32.xlu0 %v3589
    %v3591 = vpop.xlane.xlu0 %3590
    %v3592 = vsel %vm492, %v3588, -inf
    %3593 = vmax.xlane.f32.xlu0 %v3592
    %v3594 = vpop.xlane.xlu0 %3593
    %v3595 = vsub.f32 %v3587, %v3591
    %v3596 = vsub.f32 %v3588, %v3594
    %v3597 = vmul.f32 %v3595, 1.442695
    %v3598 = vpow.pop %v3597
    %v3599 = vmul.f32 %v3596, 1.442695
    %v3600 = vpow.pop %v3599
    %v3601 = vsel %vm488, %v3598, 0.0
    %3602 = vadd.xlane.f32.xlu0 %v3601
    %v3603 = vpop.xlane.xlu0 %3602
    %v3604 = vsel %vm492, %v3600, 0.0
    %3605 = vadd.xlane.f32.xlu0 %v3604
    %v3606 = vpop.xlane.xlu0 %3605
    %v3607 = vrcp.pop %v3603
    %v3608 = vrcp.pop %v3606
    %v3609 = vmul.f32 %v3598, %v3607
    %v3610 = vmul.f32 %v3600, %v3608
    %3611 = vrot.lane.b32.xlu0 %v3499, 64
    %v3612 = vpop.permute.xlu0 %3611
    %3613 = vrot.lane.b32.xlu0 %v3498, 64
    %v3614 = vpop.permute.xlu0 %3613
    %v3617 = vsel %vm488, %v3609, 0
    %v3620 = vsel %vm488, %v3610, 0
    %v3622 = vsel %vm523, %v3614, 0
    %3624 = vmatprep.subr.mxu0 0.0
    %3625 = vmatpush1.msra.mxu0 %v3612
    %3626 = vmatprep.subr.mxu0 0.0
    %3627 = vmatpush1.msra.mxu0 %v3622
    %3628 = vmatprep.subr.mxu0 0.0
    %3629 = vmatpush1.msra.mxu0 0.0
    %3630 = vmatprep.subr.mxu0 0.0
    %3631 = vmatpush1.msra.mxu0 0.0
    %3632 = vmatprep.subr.mxu0 0.0
    %3633 = vmatpush1.msra.mxu0 0.0
    %3634 = vmatprep.subr.mxu0 0.0
    %3635 = vmatpush1.msra.mxu0 0.0
    %3636 = vmatprep.subr.mxu0 0.0
    %3637 = vmatpush1.msra.mxu0 0.0
    %3638 = vmatprep.subr.mxu0 0.0
    %3639 = vmatpush1.msra.mxu0 0.0
    %3640 = vmatprep.subr.mxu0 0.0
    %3641 = vmatpush1.msra.mxu0 0.0
    %3642 = vmatprep.subr.mxu0 0.0
    %3643 = vmatpush1.msra.mxu0 0.0
    %3644 = vmatprep.subr.mxu0 0.0
    %3645 = vmatpush1.msra.mxu0 0.0
    %3646 = vmatprep.subr.mxu0 0.0
    %3647 = vmatpush1.msra.mxu0 0.0
    %3648 = vmatprep.subr.mxu0 0.0
    %3649 = vmatpush1.msra.mxu0 0.0
    %3650 = vmatprep.subr.mxu0 0.0
    %3651 = vmatpush1.msra.mxu0 0.0
    %3652 = vmatprep.subr.mxu0 0.0
    %3653 = vmatpush1.msra.mxu0 0.0
    %3654 = vmatprep.subr.mxu0 0.0
    %3655 = vmatpush1.msra.mxu0 0.0
    %3656 = vmatprep.subr.mxu0 0.0
    %3657 = vmatpush1.msra.mxu0 0.0
    %3658 = vmatprep.subr.mxu0 0.0
    %3659 = vmatpush1.msra.mxu0 0.0
    %3660 = vmatprep.subr.mxu0 0.0
    %3661 = vmatpush1.msra.mxu0 0.0
    %3662 = vmatprep.subr.mxu0 0.0
    %3663 = vmatpush1.msra.mxu0 0.0
    %3664 = vmatprep.subr.mxu0 0.0
    %3665 = vmatpush1.msra.mxu0 0.0
    %3666 = vmatprep.subr.mxu0 0.0
    %3667 = vmatpush1.msra.mxu0 0.0
    %3668 = vmatprep.subr.mxu0 0.0
    %3669 = vmatpush1.msra.mxu0 0.0
    %3670 = vmatprep.subr.mxu0 0.0
    %3671 = vmatpush1.msra.mxu0 0.0
    %3672 = vmatprep.subr.mxu0 0.0
    %3673 = vmatpush1.msra.mxu0 0.0
    %3674 = vmatprep.subr.mxu0 0.0
    %3675 = vmatpush1.msra.mxu0 0.0
    %3676 = vmatprep.subr.mxu0 0.0
    %3677 = vmatpush1.msra.mxu0 0.0
    %3678 = vmatprep.subr.mxu0 0.0
    %3679 = vmatpush1.msra.mxu0 0.0
    %3680 = vmatprep.subr.mxu0 0.0
    %3681 = vmatpush1.msra.mxu0 0.0
    %3682 = vmatprep.subr.mxu0 0.0
    %3683 = vmatpush1.msra.mxu0 0.0
    %3684 = vmatprep.subr.mxu0 0.0
    %3685 = vmatpush1.msra.mxu0 0.0
    %3686 = vmatprep.subr.mxu0 0.0
    %3687 = vmatpush1.msra.mxu0 0.0
    %3688 = vmatprep.mubr.f32.mxu0 0.0
    %3689 = vmatmul.mubr.f32.gmra.mrb[0].mxu0 %v3617
    %v3690 = vpop.f32.mrb[0].mxu0
    %v3691 = vadd.f32 0.0, %v3690
    %v3692 = vpop.f32.mrb[0].mxu0
    %3693 = vmatprep.mubr.f32.mxu0 0.0
    %3694 = vmatmul.mubr.f32.gmra.mrb[0].mxu0 %v3620
    %v3695 = vpop.f32.mrb[0].mxu0
    %v3696 = vadd.f32 0.0, %v3695
    %v3697 = vpop.f32.mrb[0].mxu0
    %3698 = vdwg.mxu0
    %3699 = vst.msk [vmem:[#allocation3 + $0x9] sm:$0xff] %vm402, %v3691
    %3700 = vst.msk [vmem:[#allocation3 + $0x11] sm:$0x1] %vm602, %v3696
    %3701 = vrot.lane.b32.xlu0 %v3499, 120
    %v3702 = vpop.permute.xlu0 %3701
    %3703 = vrot.lane.b32.xlu0 %v3498, 120
    %v3704 = vpop.permute.xlu0 %3703
    %3705 = vrot.lane.b32.xlu0 %v3499, 88
    %v3706 = vpop.permute.xlu0 %3705
    %3707 = vrot.lane.b32.xlu0 %v3498, 88
    %v3708 = vpop.permute.xlu0 %3707
    %v3709 = vsel %vm402, %v3702, 0
    %v3711 = vsel %vm402, %v3704, 0
    %v3713 = vsel %vm402, %v3706, 0
    %v3715 = vsel %vm402, %v3708, 0
    %3717 = vmatprep.subr.mxu0 0.0
    %3718 = vmatpush1.xpose.msra.mxu0 %v3713
    %3719 = vmatprep.subr.mxu0 0.0
    %3720 = vmatpush1.xpose.msra.mxu0 %v3715
    %3721 = vmatprep.subr.mxu0 0.0
    %3722 = vmatpush1.xpose.msra.mxu0 0.0
    %3723 = vmatprep.subr.mxu0 0.0
    %3724 = vmatpush1.xpose.msra.mxu0 0.0
    %3725 = vmatprep.subr.mxu0 0.0
    %3726 = vmatpush1.xpose.msra.mxu0 0.0
    %3727 = vmatprep.subr.mxu0 0.0
    %3728 = vmatpush1.xpose.msra.mxu0 0.0
    %3729 = vmatprep.subr.mxu0 0.0
    %3730 = vmatpush1.xpose.msra.mxu0 0.0
    %3731 = vmatprep.subr.mxu0 0.0
    %3732 = vmatpush1.xpose.msra.mxu0 0.0
    %3733 = vmatprep.subr.mxu0 0.0
    %3734 = vmatpush1.xpose.msra.mxu0 0.0
    %3735 = vmatprep.subr.mxu0 0.0
    %3736 = vmatpush1.xpose.msra.mxu0 0.0
    %3737 = vmatprep.subr.mxu0 0.0
    %3738 = vmatpush1.xpose.msra.mxu0 0.0
    %3739 = vmatprep.subr.mxu0 0.0
    %3740 = vmatpush1.xpose.msra.mxu0 0.0
    %3741 = vmatprep.subr.mxu0 0.0
    %3742 = vmatpush1.xpose.msra.mxu0 0.0
    %3743 = vmatprep.subr.mxu0 0.0
    %3744 = vmatpush1.xpose.msra.mxu0 0.0
    %3745 = vmatprep.subr.mxu0 0.0
    %3746 = vmatpush1.xpose.msra.mxu0 0.0
    %3747 = vmatprep.subr.mxu0 0.0
    %3748 = vmatpush1.xpose.msra.mxu0 0.0
    %3749 = vmatprep.subr.mxu0 0.0
    %3750 = vmatpush1.xpose.msra.mxu0 0.0
    %3751 = vmatprep.subr.mxu0 0.0
    %3752 = vmatpush1.xpose.msra.mxu0 0.0
    %3753 = vmatprep.subr.mxu0 0.0
    %3754 = vmatpush1.xpose.msra.mxu0 0.0
    %3755 = vmatprep.subr.mxu0 0.0
    %3756 = vmatpush1.xpose.msra.mxu0 0.0
    %3757 = vmatprep.subr.mxu0 0.0
    %3758 = vmatpush1.xpose.msra.mxu0 0.0
    %3759 = vmatprep.subr.mxu0 0.0
    %3760 = vmatpush1.xpose.msra.mxu0 0.0
    %3761 = vmatprep.subr.mxu0 0.0
    %3762 = vmatpush1.xpose.msra.mxu0 0.0
    %3763 = vmatprep.subr.mxu0 0.0
    %3764 = vmatpush1.xpose.msra.mxu0 0.0
    %3765 = vmatprep.subr.mxu0 0.0
    %3766 = vmatpush1.xpose.msra.mxu0 0.0
    %3767 = vmatprep.subr.mxu0 0.0
    %3768 = vmatpush1.xpose.msra.mxu0 0.0
    %3769 = vmatprep.subr.mxu0 0.0
    %3770 = vmatpush1.xpose.msra.mxu0 0.0
    %3771 = vmatprep.subr.mxu0 0.0
    %3772 = vmatpush1.xpose.msra.mxu0 0.0
    %3773 = vmatprep.subr.mxu0 0.0
    %3774 = vmatpush1.xpose.msra.mxu0 0.0
    %3775 = vmatprep.subr.mxu0 0.0
    %3776 = vmatpush1.xpose.msra.mxu0 0.0
    %3777 = vmatprep.subr.mxu0 0.0
    %3778 = vmatpush1.xpose.msra.mxu0 0.0
    %3779 = vmatprep.subr.mxu0 0.0
    %3780 = vmatpush1.xpose.msra.mxu0 0.0
    %3781 = vmatprep.mubr.f32.mxu0 0.0
    %3782 = vmatmul.mubr.f32.gmra.mrb[0].mxu0 %v3709
    %v3783 = vpop.f32.mrb[0].mxu0
    %v3784 = vadd.f32 0.0, %v3783
    %v3785 = vpop.f32.mrb[0].mxu0
    %3786 = vmatprep.mubr.f32.mxu0 0.0
    %3787 = vmatmul.mubr.f32.gmra.mrb[0].mxu0 %v3711
    %v3788 = vpop.f32.mrb[0].mxu0
    %v3789 = vadd.f32 0.0, %v3788
    %v3790 = vpop.f32.mrb[0].mxu0
    %3791 = vdwg.mxu0
    %v3792 = vmul.f32 %v3784, 0.35355338
    %v3793 = vmul.f32 %v3789, 0.35355338
    %v3794 = vsel %vm488, %v3792, -inf
    %3795 = vmax.xlane.f32.xlu0 %v3794
    %v3796 = vpop.xlane.xlu0 %3795
    %v3797 = vsel %vm492, %v3793, -inf
    %3798 = vmax.xlane.f32.xlu0 %v3797
    %v3799 = vpop.xlane.xlu0 %3798
    %v3800 = vsub.f32 %v3792, %v3796
    %v3801 = vsub.f32 %v3793, %v3799
    %v3802 = vmul.f32 %v3800, 1.442695
    %v3803 = vpow.pop %v3802
    %v3804 = vmul.f32 %v3801, 1.442695
    %v3805 = vpow.pop %v3804
    %v3806 = vsel %vm488, %v3803, 0.0
    %3807 = vadd.xlane.f32.xlu0 %v3806
    %v3808 = vpop.xlane.xlu0 %3807
    %v3809 = vsel %vm492, %v3805, 0.0
    %3810 = vadd.xlane.f32.xlu0 %v3809
    %v3811 = vpop.xlane.xlu0 %3810
    %v3812 = vrcp.pop %v3808
    %v3813 = vrcp.pop %v3811
    %v3814 = vmul.f32 %v3803, %v3812
    %v3815 = vmul.f32 %v3805, %v3813
    %3816 = vrot.lane.b32.xlu0 %v3499, 56
    %v3817 = vpop.permute.xlu0 %3816
    %3818 = vrot.lane.b32.xlu0 %v3498, 56
    %v3819 = vpop.permute.xlu0 %3818
    %v3822 = vsel %vm488, %v3814, 0
    %v3825 = vsel %vm488, %v3815, 0
    %v3827 = vsel %vm523, %v3819, 0
    %3829 = vmatprep.subr.mxu0 0.0
    %3830 = vmatpush1.msra.mxu0 %v3817
    %3831 = vmatprep.subr.mxu0 0.0
    %3832 = vmatpush1.msra.mxu0 %v3827
    %3833 = vmatprep.subr.mxu0 0.0
    %3834 = vmatpush1.msra.mxu0 0.0
    %3835 = vmatprep.subr.mxu0 0.0
    %3836 = vmatpush1.msra.mxu0 0.0
    %3837 = vmatprep.subr.mxu0 0.0
    %3838 = vmatpush1.msra.mxu0 0.0
    %3839 = vmatprep.subr.mxu0 0.0
    %3840 = vmatpush1.msra.mxu0 0.0
    %3841 = vmatprep.subr.mxu0 0.0
    %3842 = vmatpush1.msra.mxu0 0.0
    %3843 = vmatprep.subr.mxu0 0.0
    %3844 = vmatpush1.msra.mxu0 0.0
    %3845 = vmatprep.subr.mxu0 0.0
    %3846 = vmatpush1.msra.mxu0 0.0
    %3847 = vmatprep.subr.mxu0 0.0
    %3848 = vmatpush1.msra.mxu0 0.0
    %3849 = vmatprep.subr.mxu0 0.0
    %3850 = vmatpush1.msra.mxu0 0.0
    %3851 = vmatprep.subr.mxu0 0.0
    %3852 = vmatpush1.msra.mxu0 0.0
    %3853 = vmatprep.subr.mxu0 0.0
    %3854 = vmatpush1.msra.mxu0 0.0
    %3855 = vmatprep.subr.mxu0 0.0
    %3856 = vmatpush1.msra.mxu0 0.0
    %3857 = vmatprep.subr.mxu0 0.0
    %3858 = vmatpush1.msra.mxu0 0.0
    %3859 = vmatprep.subr.mxu0 0.0
    %3860 = vmatpush1.msra.mxu0 0.0
    %3861 = vmatprep.subr.mxu0 0.0
    %3862 = vmatpush1.msra.mxu0 0.0
    %3863 = vmatprep.subr.mxu0 0.0
    %3864 = vmatpush1.msra.mxu0 0.0
    %3865 = vmatprep.subr.mxu0 0.0
    %3866 = vmatpush1.msra.mxu0 0.0
    %3867 = vmatprep.subr.mxu0 0.0
    %3868 = vmatpush1.msra.mxu0 0.0
    %3869 = vmatprep.subr.mxu0 0.0
    %3870 = vmatpush1.msra.mxu0 0.0
    %3871 = vmatprep.subr.mxu0 0.0
    %3872 = vmatpush1.msra.mxu0 0.0
    %3873 = vmatprep.subr.mxu0 0.0
    %3874 = vmatpush1.msra.mxu0 0.0
    %3875 = vmatprep.subr.mxu0 0.0
    %3876 = vmatpush1.msra.mxu0 0.0
    %3877 = vmatprep.subr.mxu0 0.0
    %3878 = vmatpush1.msra.mxu0 0.0
    %3879 = vmatprep.subr.mxu0 0.0
    %3880 = vmatpush1.msra.mxu0 0.0
    %3881 = vmatprep.subr.mxu0 0.0
    %3882 = vmatpush1.msra.mxu0 0.0
    %3883 = vmatprep.subr.mxu0 0.0
    %3884 = vmatpush1.msra.mxu0 0.0
    %3885 = vmatprep.subr.mxu0 0.0
    %3886 = vmatpush1.msra.mxu0 0.0
    %3887 = vmatprep.subr.mxu0 0.0
    %3888 = vmatpush1.msra.mxu0 0.0
    %3889 = vmatprep.subr.mxu0 0.0
    %3890 = vmatpush1.msra.mxu0 0.0
    %3891 = vmatprep.subr.mxu0 0.0
    %3892 = vmatpush1.msra.mxu0 0.0
    %3893 = vmatprep.mubr.f32.mxu0 0.0
    %3894 = vmatmul.mubr.f32.gmra.mrb[0].mxu0 %v3822
    %v3895 = vpop.f32.mrb[0].mxu0
    %v3896 = vadd.f32 0.0, %v3895
    %v3897 = vpop.f32.mrb[0].mxu0
    %3898 = vmatprep.mubr.f32.mxu0 0.0
    %3899 = vmatmul.mubr.f32.gmra.mrb[0].mxu0 %v3825
    %v3900 = vpop.f32.mrb[0].mxu0
    %v3901 = vadd.f32 0.0, %v3900
    %v3902 = vpop.f32.mrb[0].mxu0
    %3903 = vdwg.mxu0
    %3906 = vrot.lane.b32.xlu0 %v3896, 8
    %v3907 = vpop.permute.xlu0 %3906
    %3908 = vrot.lane.b32.xlu0 %v3901, 8
    %v3909 = vpop.permute.xlu0 %3908
    %3912 = vst.msk [vmem:[#allocation3 + $0x9] sm:$0xff] %vm815, %v3907
    %3913 = vst.msk [vmem:[#allocation3 + $0x11] sm:$0x1] %vm817, %v3909
    %3914 = vrot.lane.b32.xlu0 %v3499, 112
    %v3915 = vpop.permute.xlu0 %3914
    %3916 = vrot.lane.b32.xlu0 %v3498, 112
    %v3917 = vpop.permute.xlu0 %3916
    %3918 = vrot.lane.b32.xlu0 %v3499, 80
    %v3919 = vpop.permute.xlu0 %3918
    %3920 = vrot.lane.b32.xlu0 %v3498, 80
    %v3921 = vpop.permute.xlu0 %3920
    %v3922 = vsel %vm402, %v3915, 0
    %v3924 = vsel %vm402, %v3917, 0
    %v3926 = vsel %vm402, %v3919, 0
    %v3928 = vsel %vm402, %v3921, 0
    %3930 = vmatprep.subr.mxu0 0.0
    %3931 = vmatpush1.xpose.msra.mxu0 %v3926
    %3932 = vmatprep.subr.mxu0 0.0
    %3933 = vmatpush1.xpose.msra.mxu0 %v3928
    %3934 = vmatprep.subr.mxu0 0.0
    %3935 = vmatpush1.xpose.msra.mxu0 0.0
    %3936 = vmatprep.subr.mxu0 0.0
    %3937 = vmatpush1.xpose.msra.mxu0 0.0
    %3938 = vmatprep.subr.mxu0 0.0
    %3939 = vmatpush1.xpose.msra.mxu0 0.0
    %3940 = vmatprep.subr.mxu0 0.0
    %3941 = vmatpush1.xpose.msra.mxu0 0.0
    %3942 = vmatprep.subr.mxu0 0.0
    %3943 = vmatpush1.xpose.msra.mxu0 0.0
    %3944 = vmatprep.subr.mxu0 0.0
    %3945 = vmatpush1.xpose.msra.mxu0 0.0
    %3946 = vmatprep.subr.mxu0 0.0
    %3947 = vmatpush1.xpose.msra.mxu0 0.0
    %3948 = vmatprep.subr.mxu0 0.0
    %3949 = vmatpush1.xpose.msra.mxu0 0.0
    %3950 = vmatprep.subr.mxu0 0.0
    %3951 = vmatpush1.xpose.msra.mxu0 0.0
    %3952 = vmatprep.subr.mxu0 0.0
    %3953 = vmatpush1.xpose.msra.mxu0 0.0
    %3954 = vmatprep.subr.mxu0 0.0
    %3955 = vmatpush1.xpose.msra.mxu0 0.0
    %3956 = vmatprep.subr.mxu0 0.0
    %3957 = vmatpush1.xpose.msra.mxu0 0.0
    %3958 = vmatprep.subr.mxu0 0.0
    %3959 = vmatpush1.xpose.msra.mxu0 0.0
    %3960 = vmatprep.subr.mxu0 0.0
    %3961 = vmatpush1.xpose.msra.mxu0 0.0
    %3962 = vmatprep.subr.mxu0 0.0
    %3963 = vmatpush1.xpose.msra.mxu0 0.0
    %3964 = vmatprep.subr.mxu0 0.0
    %3965 = vmatpush1.xpose.msra.mxu0 0.0
    %3966 = vmatprep.subr.mxu0 0.0
    %3967 = vmatpush1.xpose.msra.mxu0 0.0
    %3968 = vmatprep.subr.mxu0 0.0
    %3969 = vmatpush1.xpose.msra.mxu0 0.0
    %3970 = vmatprep.subr.mxu0 0.0
    %3971 = vmatpush1.xpose.msra.mxu0 0.0
    %3972 = vmatprep.subr.mxu0 0.0
    %3973 = vmatpush1.xpose.msra.mxu0 0.0
    %3974 = vmatprep.subr.mxu0 0.0
    %3975 = vmatpush1.xpose.msra.mxu0 0.0
    %3976 = vmatprep.subr.mxu0 0.0
    %3977 = vmatpush1.xpose.msra.mxu0 0.0
    %3978 = vmatprep.subr.mxu0 0.0
    %3979 = vmatpush1.xpose.msra.mxu0 0.0
    %3980 = vmatprep.subr.mxu0 0.0
    %3981 = vmatpush1.xpose.msra.mxu0 0.0
    %3982 = vmatprep.subr.mxu0 0.0
    %3983 = vmatpush1.xpose.msra.mxu0 0.0
    %3984 = vmatprep.subr.mxu0 0.0
    %3985 = vmatpush1.xpose.msra.mxu0 0.0
    %3986 = vmatprep.subr.mxu0 0.0
    %3987 = vmatpush1.xpose.msra.mxu0 0.0
    %3988 = vmatprep.subr.mxu0 0.0
    %3989 = vmatpush1.xpose.msra.mxu0 0.0
    %3990 = vmatprep.subr.mxu0 0.0
    %3991 = vmatpush1.xpose.msra.mxu0 0.0
    %3992 = vmatprep.subr.mxu0 0.0
    %3993 = vmatpush1.xpose.msra.mxu0 0.0
    %3994 = vmatprep.mubr.f32.mxu0 0.0
    %3995 = vmatmul.mubr.f32.gmra.mrb[0].mxu0 %v3922
    %v3996 = vpop.f32.mrb[0].mxu0
    %v3997 = vadd.f32 0.0, %v3996
    %v3998 = vpop.f32.mrb[0].mxu0
    %3999 = vmatprep.mubr.f32.mxu0 0.0
    %4000 = vmatmul.mubr.f32.gmra.mrb[0].mxu0 %v3924
    %v4001 = vpop.f32.mrb[0].mxu0
    %v4002 = vadd.f32 0.0, %v4001
    %v4003 = vpop.f32.mrb[0].mxu0
    %4004 = vdwg.mxu0
    %v4005 = vmul.f32 %v3997, 0.35355338
    %v4006 = vmul.f32 %v4002, 0.35355338
    %v4007 = vsel %vm488, %v4005, -inf
    %4008 = vmax.xlane.f32.xlu0 %v4007
    %v4009 = vpop.xlane.xlu0 %4008
    %v4010 = vsel %vm492, %v4006, -inf
    %4011 = vmax.xlane.f32.xlu0 %v4010
    %v4012 = vpop.xlane.xlu0 %4011
    %v4013 = vsub.f32 %v4005, %v4009
    %v4014 = vsub.f32 %v4006, %v4012
    %v4015 = vmul.f32 %v4013, 1.442695
    %v4016 = vpow.pop %v4015
    %v4017 = vmul.f32 %v4014, 1.442695
    %v4018 = vpow.pop %v4017
    %v4019 = vsel %vm488, %v4016, 0.0
    %4020 = vadd.xlane.f32.xlu0 %v4019
    %v4021 = vpop.xlane.xlu0 %4020
    %v4022 = vsel %vm492, %v4018, 0.0
    %4023 = vadd.xlane.f32.xlu0 %v4022
    %v4024 = vpop.xlane.xlu0 %4023
    %v4025 = vrcp.pop %v4021
    %v4026 = vrcp.pop %v4024
    %v4027 = vmul.f32 %v4016, %v4025
    %v4028 = vmul.f32 %v4018, %v4026
    %4029 = vrot.lane.b32.xlu0 %v3499, 48
    %v4030 = vpop.permute.xlu0 %4029
    %4031 = vrot.lane.b32.xlu0 %v3498, 48
    %v4032 = vpop.permute.xlu0 %4031
    %v4035 = vsel %vm488, %v4027, 0
    %v4038 = vsel %vm488, %v4028, 0
    %v4040 = vsel %vm523, %v4032, 0
    %4042 = vmatprep.subr.mxu0 0.0
    %4043 = vmatpush1.msra.mxu0 %v4030
    %4044 = vmatprep.subr.mxu0 0.0
    %4045 = vmatpush1.msra.mxu0 %v4040
    %4046 = vmatprep.subr.mxu0 0.0
    %4047 = vmatpush1.msra.mxu0 0.0
    %4048 = vmatprep.subr.mxu0 0.0
    %4049 = vmatpush1.msra.mxu0 0.0
    %4050 = vmatprep.subr.mxu0 0.0
    %4051 = vmatpush1.msra.mxu0 0.0
    %4052 = vmatprep.subr.mxu0 0.0
    %4053 = vmatpush1.msra.mxu0 0.0
    %4054 = vmatprep.subr.mxu0 0.0
    %4055 = vmatpush1.msra.mxu0 0.0
    %4056 = vmatprep.subr.mxu0 0.0
    %4057 = vmatpush1.msra.mxu0 0.0
    %4058 = vmatprep.subr.mxu0 0.0
    %4059 = vmatpush1.msra.mxu0 0.0
    %4060 = vmatprep.subr.mxu0 0.0
    %4061 = vmatpush1.msra.mxu0 0.0
    %4062 = vmatprep.subr.mxu0 0.0
    %4063 = vmatpush1.msra.mxu0 0.0
    %4064 = vmatprep.subr.mxu0 0.0
    %4065 = vmatpush1.msra.mxu0 0.0
    %4066 = vmatprep.subr.mxu0 0.0
    %4067 = vmatpush1.msra.mxu0 0.0
    %4068 = vmatprep.subr.mxu0 0.0
    %4069 = vmatpush1.msra.mxu0 0.0
    %4070 = vmatprep.subr.mxu0 0.0
    %4071 = vmatpush1.msra.mxu0 0.0
    %4072 = vmatprep.subr.mxu0 0.0
    %4073 = vmatpush1.msra.mxu0 0.0
    %4074 = vmatprep.subr.mxu0 0.0
    %4075 = vmatpush1.msra.mxu0 0.0
    %4076 = vmatprep.subr.mxu0 0.0
    %4077 = vmatpush1.msra.mxu0 0.0
    %4078 = vmatprep.subr.mxu0 0.0
    %4079 = vmatpush1.msra.mxu0 0.0
    %4080 = vmatprep.subr.mxu0 0.0
    %4081 = vmatpush1.msra.mxu0 0.0
    %4082 = vmatprep.subr.mxu0 0.0
    %4083 = vmatpush1.msra.mxu0 0.0
    %4084 = vmatprep.subr.mxu0 0.0
    %4085 = vmatpush1.msra.mxu0 0.0
    %4086 = vmatprep.subr.mxu0 0.0
    %4087 = vmatpush1.msra.mxu0 0.0
    %4088 = vmatprep.subr.mxu0 0.0
    %4089 = vmatpush1.msra.mxu0 0.0
    %4090 = vmatprep.subr.mxu0 0.0
    %4091 = vmatpush1.msra.mxu0 0.0
    %4092 = vmatprep.subr.mxu0 0.0
    %4093 = vmatpush1.msra.mxu0 0.0
    %4094 = vmatprep.subr.mxu0 0.0
    %4095 = vmatpush1.msra.mxu0 0.0
    %4096 = vmatprep.subr.mxu0 0.0
    %4097 = vmatpush1.msra.mxu0 0.0
    %4098 = vmatprep.subr.mxu0 0.0
    %4099 = vmatpush1.msra.mxu0 0.0
    %4100 = vmatprep.subr.mxu0 0.0
    %4101 = vmatpush1.msra.mxu0 0.0
    %4102 = vmatprep.subr.mxu0 0.0
    %4103 = vmatpush1.msra.mxu0 0.0
    %4104 = vmatprep.subr.mxu0 0.0
    %4105 = vmatpush1.msra.mxu0 0.0
    %4106 = vmatprep.mubr.f32.mxu0 0.0
    %4107 = vmatmul.mubr.f32.gmra.mrb[0].mxu0 %v4035
    %v4108 = vpop.f32.mrb[0].mxu0
    %v4109 = vadd.f32 0.0, %v4108
    %v4110 = vpop.f32.mrb[0].mxu0
    %4111 = vmatprep.mubr.f32.mxu0 0.0
    %4112 = vmatmul.mubr.f32.gmra.mrb[0].mxu0 %v4038
    %v4113 = vpop.f32.mrb[0].mxu0
    %v4114 = vadd.f32 0.0, %v4113
    %v4115 = vpop.f32.mrb[0].mxu0
    %4116 = vdwg.mxu0
    %4119 = vrot.lane.b32.xlu0 %v4109, 16
    %v4120 = vpop.permute.xlu0 %4119
    %4121 = vrot.lane.b32.xlu0 %v4114, 16
    %v4122 = vpop.permute.xlu0 %4121
    %4125 = vst.msk [vmem:[#allocation3 + $0x9] sm:$0xff] %vm1030, %v4120
    %4126 = vst.msk [vmem:[#allocation3 + $0x11] sm:$0x1] %vm1032, %v4122
    %4127 = vrot.lane.b32.xlu0 %v3499, 104
    %v4128 = vpop.permute.xlu0 %4127
    %4129 = vrot.lane.b32.xlu0 %v3498, 104
    %v4130 = vpop.permute.xlu0 %4129
    %4131 = vrot.lane.b32.xlu0 %v3499, 72
    %v4132 = vpop.permute.xlu0 %4131
    %4133 = vrot.lane.b32.xlu0 %v3498, 72
    %v4134 = vpop.permute.xlu0 %4133
    %v4135 = vsel %vm402, %v4128, 0
    %v4137 = vsel %vm402, %v4130, 0
    %v4139 = vsel %vm402, %v4132, 0
    %v4141 = vsel %vm402, %v4134, 0
    %4143 = vmatprep.subr.mxu0 0.0
    %4144 = vmatpush1.xpose.msra.mxu0 %v4139
    %4145 = vmatprep.subr.mxu0 0.0
    %4146 = vmatpush1.xpose.msra.mxu0 %v4141
    %4147 = vmatprep.subr.mxu0 0.0
    %4148 = vmatpush1.xpose.msra.mxu0 0.0
    %4149 = vmatprep.subr.mxu0 0.0
    %4150 = vmatpush1.xpose.msra.mxu0 0.0
    %4151 = vmatprep.subr.mxu0 0.0
    %4152 = vmatpush1.xpose.msra.mxu0 0.0
    %4153 = vmatprep.subr.mxu0 0.0
    %4154 = vmatpush1.xpose.msra.mxu0 0.0
    %4155 = vmatprep.subr.mxu0 0.0
    %4156 = vmatpush1.xpose.msra.mxu0 0.0
    %4157 = vmatprep.subr.mxu0 0.0
    %4158 = vmatpush1.xpose.msra.mxu0 0.0
    %4159 = vmatprep.subr.mxu0 0.0
    %4160 = vmatpush1.xpose.msra.mxu0 0.0
    %4161 = vmatprep.subr.mxu0 0.0
    %4162 = vmatpush1.xpose.msra.mxu0 0.0
    %4163 = vmatprep.subr.mxu0 0.0
    %4164 = vmatpush1.xpose.msra.mxu0 0.0
    %4165 = vmatprep.subr.mxu0 0.0
    %4166 = vmatpush1.xpose.msra.mxu0 0.0
    %4167 = vmatprep.subr.mxu0 0.0
    %4168 = vmatpush1.xpose.msra.mxu0 0.0
    %4169 = vmatprep.subr.mxu0 0.0
    %4170 = vmatpush1.xpose.msra.mxu0 0.0
    %4171 = vmatprep.subr.mxu0 0.0
    %4172 = vmatpush1.xpose.msra.mxu0 0.0
    %4173 = vmatprep.subr.mxu0 0.0
    %4174 = vmatpush1.xpose.msra.mxu0 0.0
    %4175 = vmatprep.subr.mxu0 0.0
    %4176 = vmatpush1.xpose.msra.mxu0 0.0
    %4177 = vmatprep.subr.mxu0 0.0
    %4178 = vmatpush1.xpose.msra.mxu0 0.0
    %4179 = vmatprep.subr.mxu0 0.0
    %4180 = vmatpush1.xpose.msra.mxu0 0.0
    %4181 = vmatprep.subr.mxu0 0.0
    %4182 = vmatpush1.xpose.msra.mxu0 0.0
    %4183 = vmatprep.subr.mxu0 0.0
    %4184 = vmatpush1.xpose.msra.mxu0 0.0
    %4185 = vmatprep.subr.mxu0 0.0
    %4186 = vmatpush1.xpose.msra.mxu0 0.0
    %4187 = vmatprep.subr.mxu0 0.0
    %4188 = vmatpush1.xpose.msra.mxu0 0.0
    %4189 = vmatprep.subr.mxu0 0.0
    %4190 = vmatpush1.xpose.msra.mxu0 0.0
    %4191 = vmatprep.subr.mxu0 0.0
    %4192 = vmatpush1.xpose.msra.mxu0 0.0
    %4193 = vmatprep.subr.mxu0 0.0
    %4194 = vmatpush1.xpose.msra.mxu0 0.0
    %4195 = vmatprep.subr.mxu0 0.0
    %4196 = vmatpush1.xpose.msra.mxu0 0.0
    %4197 = vmatprep.subr.mxu0 0.0
    %4198 = vmatpush1.xpose.msra.mxu0 0.0
    %4199 = vmatprep.subr.mxu0 0.0
    %4200 = vmatpush1.xpose.msra.mxu0 0.0
    %4201 = vmatprep.subr.mxu0 0.0
    %4202 = vmatpush1.xpose.msra.mxu0 0.0
    %4203 = vmatprep.subr.mxu0 0.0
    %4204 = vmatpush1.xpose.msra.mxu0 0.0
    %4205 = vmatprep.subr.mxu0 0.0
    %4206 = vmatpush1.xpose.msra.mxu0 0.0
    %4207 = vmatprep.mubr.f32.mxu0 0.0
    %4208 = vmatmul.mubr.f32.gmra.mrb[0].mxu0 %v4135
    %v4209 = vpop.f32.mrb[0].mxu0
    %v4210 = vadd.f32 0.0, %v4209
    %v4211 = vpop.f32.mrb[0].mxu0
    %4212 = vmatprep.mubr.f32.mxu0 0.0
    %4213 = vmatmul.mubr.f32.gmra.mrb[0].mxu0 %v4137
    %v4214 = vpop.f32.mrb[0].mxu0
    %v4215 = vadd.f32 0.0, %v4214
    %v4216 = vpop.f32.mrb[0].mxu0
    %4217 = vdwg.mxu0
    %v4218 = vmul.f32 %v4210, 0.35355338
    %v4219 = vmul.f32 %v4215, 0.35355338
    %v4220 = vsel %vm488, %v4218, -inf
    %4221 = vmax.xlane.f32.xlu0 %v4220
    %v4222 = vpop.xlane.xlu0 %4221
    %v4223 = vsel %vm492, %v4219, -inf
    %4224 = vmax.xlane.f32.xlu0 %v4223
    %v4225 = vpop.xlane.xlu0 %4224
    %v4226 = vsub.f32 %v4218, %v4222
    %v4227 = vsub.f32 %v4219, %v4225
    %v4228 = vmul.f32 %v4226, 1.442695
    %v4229 = vpow.pop %v4228
    %v4230 = vmul.f32 %v4227, 1.442695
    %v4231 = vpow.pop %v4230
    %v4232 = vsel %vm488, %v4229, 0.0
    %4233 = vadd.xlane.f32.xlu0 %v4232
    %v4234 = vpop.xlane.xlu0 %4233
    %v4235 = vsel %vm492, %v4231, 0.0
    %4236 = vadd.xlane.f32.xlu0 %v4235
    %v4237 = vpop.xlane.xlu0 %4236
    %v4238 = vrcp.pop %v4234
    %v4239 = vrcp.pop %v4237
    %v4240 = vmul.f32 %v4229, %v4238
    %v4241 = vmul.f32 %v4231, %v4239
    %4242 = vrot.lane.b32.xlu0 %v3499, 40
    %v4243 = vpop.permute.xlu0 %4242
    %4244 = vrot.lane.b32.xlu0 %v3498, 40
    %v4245 = vpop.permute.xlu0 %4244
    %v4248 = vsel %vm488, %v4240, 0
    %v4251 = vsel %vm488, %v4241, 0
    %v4253 = vsel %vm523, %v4245, 0
    %4255 = vmatprep.subr.mxu0 0.0
    %4256 = vmatpush1.msra.mxu0 %v4243
    %4257 = vmatprep.subr.mxu0 0.0
    %4258 = vmatpush1.msra.mxu0 %v4253
    %4259 = vmatprep.subr.mxu0 0.0
    %4260 = vmatpush1.msra.mxu0 0.0
    %4261 = vmatprep.subr.mxu0 0.0
    %4262 = vmatpush1.msra.mxu0 0.0
    %4263 = vmatprep.subr.mxu0 0.0
    %4264 = vmatpush1.msra.mxu0 0.0
    %4265 = vmatprep.subr.mxu0 0.0
    %4266 = vmatpush1.msra.mxu0 0.0
    %4267 = vmatprep.subr.mxu0 0.0
    %4268 = vmatpush1.msra.mxu0 0.0
    %4269 = vmatprep.subr.mxu0 0.0
    %4270 = vmatpush1.msra.mxu0 0.0
    %4271 = vmatprep.subr.mxu0 0.0
    %4272 = vmatpush1.msra.mxu0 0.0
    %4273 = vmatprep.subr.mxu0 0.0
    %4274 = vmatpush1.msra.mxu0 0.0
    %4275 = vmatprep.subr.mxu0 0.0
    %4276 = vmatpush1.msra.mxu0 0.0
    %4277 = vmatprep.subr.mxu0 0.0
    %4278 = vmatpush1.msra.mxu0 0.0
    %4279 = vmatprep.subr.mxu0 0.0
    %4280 = vmatpush1.msra.mxu0 0.0
    %4281 = vmatprep.subr.mxu0 0.0
    %4282 = vmatpush1.msra.mxu0 0.0
    %4283 = vmatprep.subr.mxu0 0.0
    %4284 = vmatpush1.msra.mxu0 0.0
    %4285 = vmatprep.subr.mxu0 0.0
    %4286 = vmatpush1.msra.mxu0 0.0
    %4287 = vmatprep.subr.mxu0 0.0
    %4288 = vmatpush1.msra.mxu0 0.0
    %4289 = vmatprep.subr.mxu0 0.0
    %4290 = vmatpush1.msra.mxu0 0.0
    %4291 = vmatprep.subr.mxu0 0.0
    %4292 = vmatpush1.msra.mxu0 0.0
    %4293 = vmatprep.subr.mxu0 0.0
    %4294 = vmatpush1.msra.mxu0 0.0
    %4295 = vmatprep.subr.mxu0 0.0
    %4296 = vmatpush1.msra.mxu0 0.0
    %4297 = vmatprep.subr.mxu0 0.0
    %4298 = vmatpush1.msra.mxu0 0.0
    %4299 = vmatprep.subr.mxu0 0.0
    %4300 = vmatpush1.msra.mxu0 0.0
    %4301 = vmatprep.subr.mxu0 0.0
    %4302 = vmatpush1.msra.mxu0 0.0
    %4303 = vmatprep.subr.mxu0 0.0
    %4304 = vmatpush1.msra.mxu0 0.0
    %4305 = vmatprep.subr.mxu0 0.0
    %4306 = vmatpush1.msra.mxu0 0.0
    %4307 = vmatprep.subr.mxu0 0.0
    %4308 = vmatpush1.msra.mxu0 0.0
    %4309 = vmatprep.subr.mxu0 0.0
    %4310 = vmatpush1.msra.mxu0 0.0
    %4311 = vmatprep.subr.mxu0 0.0
    %4312 = vmatpush1.msra.mxu0 0.0
    %4313 = vmatprep.subr.mxu0 0.0
    %4314 = vmatpush1.msra.mxu0 0.0
    %4315 = vmatprep.subr.mxu0 0.0
    %4316 = vmatpush1.msra.mxu0 0.0
    %4317 = vmatprep.subr.mxu0 0.0
    %4318 = vmatpush1.msra.mxu0 0.0
    %4319 = vmatprep.mubr.f32.mxu0 0.0
    %4320 = vmatmul.mubr.f32.gmra.mrb[0].mxu0 %v4248
    %v4321 = vpop.f32.mrb[0].mxu0
    %v4322 = vadd.f32 0.0, %v4321
    %v4323 = vpop.f32.mrb[0].mxu0
    %4324 = vmatprep.mubr.f32.mxu0 0.0
    %4325 = vmatmul.mubr.f32.gmra.mrb[0].mxu0 %v4251
    %v4326 = vpop.f32.mrb[0].mxu0
    %v4327 = vadd.f32 0.0, %v4326
    %v4328 = vpop.f32.mrb[0].mxu0
    %4329 = vdwg.mxu0
    %4332 = vrot.lane.b32.xlu0 %v4322, 24
    %v4333 = vpop.permute.xlu0 %4332
    %4334 = vrot.lane.b32.xlu0 %v4327, 24
    %v4335 = vpop.permute.xlu0 %4334
    %4338 = vst.msk [vmem:[#allocation3 + $0x9] sm:$0xff] %vm1245, %v4333
    %4339 = vst.msk [vmem:[#allocation3 + $0x11] sm:$0x1] %vm1247, %v4335
    %v4340 = vld [vmem:[#allocation3] sm:$0xff]
    %v4341 = vld [vmem:[#allocation3 + $0x8] sm:$0xff]
    %v4342 = vld [vmem:[#allocation3 + $0x10] sm:$0x3]
    %s4343 = scalar_lea.vmem %s11, 32
    %v4344 = vld [vmem:[%s4343] sm:$0xff]
    %v4345 = vld [vmem:[%s4343 + $0x8] sm:$0xff]
    %v4346 = vld [vmem:[%s4343 + $0x10] sm:$0xff]
    %v4347 = vld [vmem:[%s4343 + $0x18] sm:$0xff]
    %s4348 = scalar_lea.vmem %s12, 1
    %v4349 = vld [vmem:[%s4348] sm:$0x1]
    %v4351 = vlaneseq
    %v4352 = vshrl.u32 %v4351, 7
    %v4353 = vsub.s32 0, %v4352
    %v4354 = vrot.slane %v4349, %v4353
    %v4357 = vsel %vm88, %v4340, 0
    %v4360 = vsel %vm88, %v4341, 0
    %v4363 = vsel %vm88, %v4342, 0
    %4365 = vmatprep.subr.mxu0 0.0
    %4366 = vmatpush1.msra.mxu0 %v4344
    %4367 = vmatprep.subr.mxu0 0.0
    %4368 = vmatpush1.msra.mxu0 %v4345
    %4369 = vmatprep.subr.mxu0 0.0
    %4370 = vmatpush1.msra.mxu0 %v4346
    %4371 = vmatprep.subr.mxu0 0.0
    %4372 = vmatpush1.msra.mxu0 %v4347
    %4373 = vmatprep.subr.mxu0 0.0
    %4374 = vmatpush1.msra.mxu0 0.0
    %4375 = vmatprep.subr.mxu0 0.0
    %4376 = vmatpush1.msra.mxu0 0.0
    %4377 = vmatprep.subr.mxu0 0.0
    %4378 = vmatpush1.msra.mxu0 0.0
    %4379 = vmatprep.subr.mxu0 0.0
    %4380 = vmatpush1.msra.mxu0 0.0
    %4381 = vmatprep.subr.mxu0 0.0
    %4382 = vmatpush1.msra.mxu0 0.0
    %4383 = vmatprep.subr.mxu0 0.0
    %4384 = vmatpush1.msra.mxu0 0.0
    %4385 = vmatprep.subr.mxu0 0.0
    %4386 = vmatpush1.msra.mxu0 0.0
    %4387 = vmatprep.subr.mxu0 0.0
    %4388 = vmatpush1.msra.mxu0 0.0
    %4389 = vmatprep.subr.mxu0 0.0
    %4390 = vmatpush1.msra.mxu0 0.0
    %4391 = vmatprep.subr.mxu0 0.0
    %4392 = vmatpush1.msra.mxu0 0.0
    %4393 = vmatprep.subr.mxu0 0.0
    %4394 = vmatpush1.msra.mxu0 0.0
    %4395 = vmatprep.subr.mxu0 0.0
    %4396 = vmatpush1.msra.mxu0 0.0
    %4397 = vmatprep.subr.mxu0 0.0
    %4398 = vmatpush1.msra.mxu0 0.0
    %4399 = vmatprep.subr.mxu0 0.0
    %4400 = vmatpush1.msra.mxu0 0.0
    %4401 = vmatprep.subr.mxu0 0.0
    %4402 = vmatpush1.msra.mxu0 0.0
    %4403 = vmatprep.subr.mxu0 0.0
    %4404 = vmatpush1.msra.mxu0 0.0
    %4405 = vmatprep.subr.mxu0 0.0
    %4406 = vmatpush1.msra.mxu0 0.0
    %4407 = vmatprep.subr.mxu0 0.0
    %4408 = vmatpush1.msra.mxu0 0.0
    %4409 = vmatprep.subr.mxu0 0.0
    %4410 = vmatpush1.msra.mxu0 0.0
    %4411 = vmatprep.subr.mxu0 0.0
    %4412 = vmatpush1.msra.mxu0 0.0
    %4413 = vmatprep.subr.mxu0 0.0
    %4414 = vmatpush1.msra.mxu0 0.0
    %4415 = vmatprep.subr.mxu0 0.0
    %4416 = vmatpush1.msra.mxu0 0.0
    %4417 = vmatprep.subr.mxu0 0.0
    %4418 = vmatpush1.msra.mxu0 0.0
    %4419 = vmatprep.subr.mxu0 0.0
    %4420 = vmatpush1.msra.mxu0 0.0
    %4421 = vmatprep.subr.mxu0 0.0
    %4422 = vmatpush1.msra.mxu0 0.0
    %4423 = vmatprep.subr.mxu0 0.0
    %4424 = vmatpush1.msra.mxu0 0.0
    %4425 = vmatprep.subr.mxu0 0.0
    %4426 = vmatpush1.msra.mxu0 0.0
    %4427 = vmatprep.subr.mxu0 0.0
    %4428 = vmatpush1.msra.mxu0 0.0
    %4429 = vmatprep.mubr.f32.mxu0 0.0
    %4430 = vmatmul.mubr.f32.gmra.mrb[0].mxu0 %v4357
    %v4431 = vpop.f32.mrb[0].mxu0
    %v4432 = vadd.f32 %v4354, %v4431
    %v4433 = vpop.f32.mrb[0].mxu0
    %4434 = vmatprep.mubr.f32.mxu0 0.0
    %4435 = vmatmul.mubr.f32.gmra.mrb[0].mxu0 %v4360
    %v4436 = vpop.f32.mrb[0].mxu0
    %v4437 = vadd.f32 %v4354, %v4436
    %v4438 = vpop.f32.mrb[0].mxu0
    %4439 = vmatprep.mubr.f32.mxu0 0.0
    %4440 = vmatmul.mubr.f32.gmra.mrb[0].mxu0 %v4363
    %v4441 = vpop.f32.mrb[0].mxu0
    %v4442 = vadd.f32 %v4354, %v4441
    %v4443 = vpop.f32.mrb[0].mxu0
    %4444 = vdwg.mxu0
    %v4445 = vadd.f32 %v2488, %v4432
    %v4446 = vadd.f32 %v2489, %v4437
    %v4447 = vadd.f32 %v2490, %v4442
    %s4448 = scalar_lea.vmem %s13, 1
    %v4449 = vld [vmem:[%s4448] sm:$0x1]
    %s4450 = scalar_lea.vmem %s14, 1
    %v4451 = vld [vmem:[%s4450] sm:$0x1]
    %v4452 = vsel %vm88, %v4445, 0.0
    %4453 = vadd.xlane.f32.xlu0 %v4452
    %v4454 = vpop.xlane.xlu0 %4453
    %v4455 = vsel %vm88, %v4446, 0.0
    %4456 = vadd.xlane.f32.xlu0 %v4455
    %v4457 = vpop.xlane.xlu0 %4456
    %v4458 = vsel %vm244, %v4447, 0.0
    %4459 = vadd.xlane.f32.xlu0 %v4458
    %v4460 = vpop.xlane.xlu0 %4459
    %v4461 = vmul.f32 %v4454, %v178
    %v4462 = vmul.f32 %v4457, %v178
    %v4463 = vmul.f32 %v4460, %v178
    %v4464 = vsub.f32 %v4445, %v4461
    %v4465 = vsub.f32 %v4446, %v4462
    %v4466 = vsub.f32 %v4447, %v4463
    %v4467 = vmul.f32 %v4464, %v4464
    %v4468 = vmul.f32 %v4465, %v4465
    %v4469 = vmul.f32 %v4466, %v4466
    %v4470 = vsel %vm88, %v4467, 0.0
    %4471 = vadd.xlane.f32.xlu0 %v4470
    %v4472 = vpop.xlane.xlu0 %4471
    %v4473 = vsel %vm88, %v4468, 0.0
    %4474 = vadd.xlane.f32.xlu0 %v4473
    %v4475 = vpop.xlane.xlu0 %4474
    %v4476 = vsel %vm244, %v4469, 0.0
    %4477 = vadd.xlane.f32.xlu0 %v4476
    %v4478 = vpop.xlane.xlu0 %4477
    %v4479 = vmul.f32 %v4472, %v178
    %v4480 = vmul.f32 %v4475, %v178
    %v4481 = vmul.f32 %v4478, %v178
    %v4482 = vadd.f32 %v4479, 1e-06
    %v4483 = vadd.f32 %v4480, 1e-06
    %v4484 = vadd.f32 %v4481, 1e-06
    %v4485 = vrsqrt.pop %v4482
    %v4486 = vrsqrt.pop %v4483
    %v4487 = vrsqrt.pop %v4484
    %v4488 = vmul.f32 %v4464, %v4485
    %v4489 = vmul.f32 %v4465, %v4486
    %v4490 = vmul.f32 %v4466, %v4487
    %v4492 = vlaneseq
    %v4493 = vshrl.u32 %v4492, 7
    %v4494 = vsub.s32 0, %v4493
    %v4495 = vrot.slane %v4449, %v4494
    %v4497 = vmul.f32 %v4488, %v4495
    %v4498 = vmul.f32 %v4489, %v4495
    %v4499 = vmul.f32 %v4490, %v4495
    %v4501 = vlaneseq
    %v4502 = vshrl.u32 %v4501, 7
    %v4503 = vsub.s32 0, %v4502
    %v4504 = vrot.slane %v4451, %v4503
    %v4506 = vadd.f32 %v4497, %v4504
    %v4507 = vadd.f32 %v4498, %v4504
    %v4508 = vadd.f32 %v4499, %v4504
    %s4509 = scalar_lea.vmem %s15, 32
    %v4510 = vld [vmem:[%s4509] sm:$0xff]
    %v4511 = vld [vmem:[%s4509 + $0x8] sm:$0xff]
    %v4512 = vld [vmem:[%s4509 + $0x10] sm:$0xff]
    %v4513 = vld [vmem:[%s4509 + $0x18] sm:$0xff]
    %s4514 = scalar_lea.vmem %s16, 1
    %v4515 = vld [vmem:[%s4514] sm:$0x1]
    %v4517 = vlaneseq
    %v4518 = vshrl.u32 %v4517, 7
    %v4519 = vsub.s32 0, %v4518
    %v4520 = vrot.slane %v4515, %v4519
    %v4523 = vsel %vm88, %v4506, 0
    %v4526 = vsel %vm88, %v4507, 0
    %v4529 = vsel %vm88, %v4508, 0
    %4531 = vmatprep.subr.mxu0 0.0
    %4532 = vmatpush1.msra.mxu0 %v4510
    %4533 = vmatprep.subr.mxu0 0.0
    %4534 = vmatpush1.msra.mxu0 %v4511
    %4535 = vmatprep.subr.mxu0 0.0
    %4536 = vmatpush1.msra.mxu0 %v4512
    %4537 = vmatprep.subr.mxu0 0.0
    %4538 = vmatpush1.msra.mxu0 %v4513
    %4539 = vmatprep.subr.mxu0 0.0
    %4540 = vmatpush1.msra.mxu0 0.0
    %4541 = vmatprep.subr.mxu0 0.0
    %4542 = vmatpush1.msra.mxu0 0.0
    %4543 = vmatprep.subr.mxu0 0.0
    %4544 = vmatpush1.msra.mxu0 0.0
    %4545 = vmatprep.subr.mxu0 0.0
    %4546 = vmatpush1.msra.mxu0 0.0
    %4547 = vmatprep.subr.mxu0 0.0
    %4548 = vmatpush1.msra.mxu0 0.0
    %4549 = vmatprep.subr.mxu0 0.0
    %4550 = vmatpush1.msra.mxu0 0.0
    %4551 = vmatprep.subr.mxu0 0.0
    %4552 = vmatpush1.msra.mxu0 0.0
    %4553 = vmatprep.subr.mxu0 0.0
    %4554 = vmatpush1.msra.mxu0 0.0
    %4555 = vmatprep.subr.mxu0 0.0
    %4556 = vmatpush1.msra.mxu0 0.0
    %4557 = vmatprep.subr.mxu0 0.0
    %4558 = vmatpush1.msra.mxu0 0.0
    %4559 = vmatprep.subr.mxu0 0.0
    %4560 = vmatpush1.msra.mxu0 0.0
    %4561 = vmatprep.subr.mxu0 0.0
    %4562 = vmatpush1.msra.mxu0 0.0
    %4563 = vmatprep.subr.mxu0 0.0
    %4564 = vmatpush1.msra.mxu0 0.0
    %4565 = vmatprep.subr.mxu0 0.0
    %4566 = vmatpush1.msra.mxu0 0.0
    %4567 = vmatprep.subr.mxu0 0.0
    %4568 = vmatpush1.msra.mxu0 0.0
    %4569 = vmatprep.subr.mxu0 0.0
    %4570 = vmatpush1.msra.mxu0 0.0
    %4571 = vmatprep.subr.mxu0 0.0
    %4572 = vmatpush1.msra.mxu0 0.0
    %4573 = vmatprep.subr.mxu0 0.0
    %4574 = vmatpush1.msra.mxu0 0.0
    %4575 = vmatprep.subr.mxu0 0.0
    %4576 = vmatpush1.msra.mxu0 0.0
    %4577 = vmatprep.subr.mxu0 0.0
    %4578 = vmatpush1.msra.mxu0 0.0
    %4579 = vmatprep.subr.mxu0 0.0
    %4580 = vmatpush1.msra.mxu0 0.0
    %4581 = vmatprep.subr.mxu0 0.0
    %4582 = vmatpush1.msra.mxu0 0.0
    %4583 = vmatprep.subr.mxu0 0.0
    %4584 = vmatpush1.msra.mxu0 0.0
    %4585 = vmatprep.subr.mxu0 0.0
    %4586 = vmatpush1.msra.mxu0 0.0
    %4587 = vmatprep.subr.mxu0 0.0
    %4588 = vmatpush1.msra.mxu0 0.0
    %4589 = vmatprep.subr.mxu0 0.0
    %4590 = vmatpush1.msra.mxu0 0.0
    %4591 = vmatprep.subr.mxu0 0.0
    %4592 = vmatpush1.msra.mxu0 0.0
    %4593 = vmatprep.subr.mxu0 0.0
    %4594 = vmatpush1.msra.mxu0 0.0
    %4595 = vmatprep.mubr.f32.mxu0 0.0
    %4596 = vmatmul.mubr.f32.gmra.mrb[0].mxu0 %v4523
    %v4597 = vpop.f32.mrb[0].mxu0
    %v4598 = vadd.f32 %v4520, %v4597
    %v4599 = vpop.f32.mrb[0].mxu0
    %4600 = vmatprep.mubr.f32.mxu0 0.0
    %4601 = vmatmul.mubr.f32.gmra.mrb[0].mxu0 %v4526
    %v4602 = vpop.f32.mrb[0].mxu0
    %v4603 = vadd.f32 %v4520, %v4602
    %v4604 = vpop.f32.mrb[0].mxu0
    %4605 = vmatprep.mubr.f32.mxu0 0.0
    %4606 = vmatmul.mubr.f32.gmra.mrb[0].mxu0 %v4529
    %v4607 = vpop.f32.mrb[0].mxu0
    %v4608 = vadd.f32 %v4520, %v4607
    %v4609 = vpop.f32.mrb[0].mxu0
    %4610 = vdwg.mxu0
    %v4611 = vmul.f32 %v4598, 0.5
    %v4612 = vmul.f32 %v4603, 0.5
    %v4613 = vmul.f32 %v4608, 0.5
    %v4614 = vmul.f32 %v4598, 0.044715
    %v4615 = vmul.f32 %v4603, 0.044715
    %v4616 = vmul.f32 %v4608, 0.044715
    %v4617 = vmul.f32 %v4614, %v4598
    %v4618 = vmul.f32 %v4615, %v4603
    %v4619 = vmul.f32 %v4616, %v4608
    %v4620 = vmul.f32 %v4617, %v4598
    %v4621 = vmul.f32 %v4618, %v4603
    %v4622 = vmul.f32 %v4619, %v4608
    %v4623 = vadd.f32 %v4598, %v4620
    %v4624 = vadd.f32 %v4603, %v4621
    %v4625 = vadd.f32 %v4608, %v4622
    %v4626 = vmul.f32 %v4623, 0.7978846
    %v4627 = vmul.f32 %v4624, 0.7978846
    %v4628 = vmul.f32 %v4625, 0.7978846
    %v4629 = vtanh.pop %v4626
    %v4630 = vtanh.pop %v4627
    %v4631 = vtanh.pop %v4628
    %v4632 = vadd.f32 %v4629, 1.0
    %v4633 = vadd.f32 %v4630, 1.0
    %v4634 = vadd.f32 %v4631, 1.0
    %v4635 = vmul.f32 %v4611, %v4632
    %v4636 = vmul.f32 %v4612, %v4633
    %v4637 = vmul.f32 %v4613, %v4634
    %s4638 = scalar_lea.vmem %s17, 128
    %v4639 = vld [vmem:[%s4638] sm:$0xff]
    %v4640 = vld [vmem:[%s4638 + $0x8] sm:$0xff]
    %v4641 = vld [vmem:[%s4638 + $0x10] sm:$0xff]
    %v4642 = vld [vmem:[%s4638 + $0x18] sm:$0xff]
    %v4643 = vld [vmem:[%s4638 + $0x20] sm:$0xff]
    %v4644 = vld [vmem:[%s4638 + $0x28] sm:$0xff]
    %v4645 = vld [vmem:[%s4638 + $0x30] sm:$0xff]
    %v4646 = vld [vmem:[%s4638 + $0x38] sm:$0xff]
    %v4647 = vld [vmem:[%s4638 + $0x40] sm:$0xff]
    %v4648 = vld [vmem:[%s4638 + $0x48] sm:$0xff]
    %v4649 = vld [vmem:[%s4638 + $0x50] sm:$0xff]
    %v4650 = vld [vmem:[%s4638 + $0x58] sm:$0xff]
    %v4651 = vld [vmem:[%s4638 + $0x60] sm:$0xff]
    %v4652 = vld [vmem:[%s4638 + $0x68] sm:$0xff]
    %v4653 = vld [vmem:[%s4638 + $0x70] sm:$0xff]
    %v4654 = vld [vmem:[%s4638 + $0x78] sm:$0xff]
    %s4655 = scalar_lea.vmem %s18, 1
    %v4656 = vld [vmem:[%s4655] sm:$0x1]
    %v4658 = vlaneseq
    %v4659 = vshrl.u32 %v4658, 7
    %v4660 = vsub.s32 0, %v4659
    %v4661 = vrot.slane %v4656, %v4660
    %4663 = vmatprep.subr.mxu0 0.0
    %4664 = vmatpush1.msra.mxu0 %v4639
    %4665 = vmatprep.subr.mxu0 0.0
    %4666 = vmatpush1.msra.mxu0 %v4640
    %4667 = vmatprep.subr.mxu0 0.0
    %4668 = vmatpush1.msra.mxu0 %v4641
    %4669 = vmatprep.subr.mxu0 0.0
    %4670 = vmatpush1.msra.mxu0 %v4642
    %4671 = vmatprep.subr.mxu0 0.0
    %4672 = vmatpush1.msra.mxu0 %v4643
    %4673 = vmatprep.subr.mxu0 0.0
    %4674 = vmatpush1.msra.mxu0 %v4644
    %4675 = vmatprep.subr.mxu0 0.0
    %4676 = vmatpush1.msra.mxu0 %v4645
    %4677 = vmatprep.subr.mxu0 0.0
    %4678 = vmatpush1.msra.mxu0 %v4646
    %4679 = vmatprep.subr.mxu0 0.0
    %4680 = vmatpush1.msra.mxu0 %v4647
    %4681 = vmatprep.subr.mxu0 0.0
    %4682 = vmatpush1.msra.mxu0 %v4648
    %4683 = vmatprep.subr.mxu0 0.0
    %4684 = vmatpush1.msra.mxu0 %v4649
    %4685 = vmatprep.subr.mxu0 0.0
    %4686 = vmatpush1.msra.mxu0 %v4650
    %4687 = vmatprep.subr.mxu0 0.0
    %4688 = vmatpush1.msra.mxu0 %v4651
    %4689 = vmatprep.subr.mxu0 0.0
    %4690 = vmatpush1.msra.mxu0 %v4652
    %4691 = vmatprep.subr.mxu0 0.0
    %4692 = vmatpush1.msra.mxu0 %v4653
    %4693 = vmatprep.subr.mxu0 0.0
    %4694 = vmatpush1.msra.mxu0 %v4654
    %4695 = vmatprep.subr.mxu0 0.0
    %4696 = vmatpush1.msra.mxu0 0.0
    %4697 = vmatprep.subr.mxu0 0.0
    %4698 = vmatpush1.msra.mxu0 0.0
    %4699 = vmatprep.subr.mxu0 0.0
    %4700 = vmatpush1.msra.mxu0 0.0
    %4701 = vmatprep.subr.mxu0 0.0
    %4702 = vmatpush1.msra.mxu0 0.0
    %4703 = vmatprep.subr.mxu0 0.0
    %4704 = vmatpush1.msra.mxu0 0.0
    %4705 = vmatprep.subr.mxu0 0.0
    %4706 = vmatpush1.msra.mxu0 0.0
    %4707 = vmatprep.subr.mxu0 0.0
    %4708 = vmatpush1.msra.mxu0 0.0
    %4709 = vmatprep.subr.mxu0 0.0
    %4710 = vmatpush1.msra.mxu0 0.0
    %4711 = vmatprep.subr.mxu0 0.0
    %4712 = vmatpush1.msra.mxu0 0.0
    %4713 = vmatprep.subr.mxu0 0.0
    %4714 = vmatpush1.msra.mxu0 0.0
    %4715 = vmatprep.subr.mxu0 0.0
    %4716 = vmatpush1.msra.mxu0 0.0
    %4717 = vmatprep.subr.mxu0 0.0
    %4718 = vmatpush1.msra.mxu0 0.0
    %4719 = vmatprep.subr.mxu0 0.0
    %4720 = vmatpush1.msra.mxu0 0.0
    %4721 = vmatprep.subr.mxu0 0.0
    %4722 = vmatpush1.msra.mxu0 0.0
    %4723 = vmatprep.subr.mxu0 0.0
    %4724 = vmatpush1.msra.mxu0 0.0
    %4725 = vmatprep.subr.mxu0 0.0
    %4726 = vmatpush1.msra.mxu0 0.0
    %4727 = vmatprep.mubr.f32.mxu0 0.0
    %4728 = vmatmul.mubr.f32.gmra.mrb[0].mxu0 %v4635
    %v4729 = vpop.f32.mrb[0].mxu0
    %v4730 = vadd.f32 %v4661, %v4729
    %v4731 = vpop.f32.mrb[0].mxu0
    %4732 = vmatprep.mubr.f32.mxu0 0.0
    %4733 = vmatmul.mubr.f32.gmra.mrb[0].mxu0 %v4636
    %v4734 = vpop.f32.mrb[0].mxu0
    %v4735 = vadd.f32 %v4661, %v4734
    %v4736 = vpop.f32.mrb[0].mxu0
    %4737 = vmatprep.mubr.f32.mxu0 0.0
    %4738 = vmatmul.mubr.f32.gmra.mrb[0].mxu0 %v4637
    %v4739 = vpop.f32.mrb[0].mxu0
    %v4740 = vpop.f32.mrb[0].mxu0
    %4741 = vdwg.mxu0
    %v4742 = vadd.f32 %v4445, %v4730
    %v4743 = vadd.f32 %v4446, %v4735
    %v4744 = vld [vmem:[%s19] sm:$0x1]
    %v4745 = vld [vmem:[%s20] sm:$0x1]
    %v4746 = vsel %vm219, %v4742, 0.0
    %4747 = vadd.xlane.f32.xlu0 %v4746
    %v4748 = vpop.xlane.xlu0 %4747
    %v4749 = vmul.f32 %v4748, %v178
    %v4750 = vsub.f32 %v4742, %v4749
    %v4751 = vmul.f32 %v4750, %v4750
    %v4752 = vsel %vm219, %v4751, 0.0
    %4753 = vadd.xlane.f32.xlu0 %v4752
    %v4754 = vpop.xlane.xlu0 %4753
    %v4755 = vmul.f32 %v4754, %v178
    %v4756 = vadd.f32 %v4755, 1e-06
    %v4757 = vrsqrt.pop %v4756
    %v4758 = vmul.f32 %v4750, %v4757
    %v4759 = vmul.f32 %v4758, %v4744
    %v4760 = vadd.f32 %v4759, %v4745
    %v4761 = vld [vmem:[%s21] sm:$0xff]
    %v4762 = vld [vmem:[%s21 + $0x8] sm:$0xff]
    %v4763 = vld [vmem:[%s21 + $0x10] sm:$0xff]
    %v4764 = vld [vmem:[%s21 + $0x18] sm:$0xff]
    %v4765 = vld [vmem:[%s22] sm:$0x1]
    %v4767 = vsel %vm88, %v4760, 0
    %4769 = vmatprep.subr.mxu0 0.0
    %4770 = vmatpush1.msra.mxu0 %v4761
    %4771 = vmatprep.subr.mxu0 0.0
    %4772 = vmatpush1.msra.mxu0 %v4762
    %4773 = vmatprep.subr.mxu0 0.0
    %4774 = vmatpush1.msra.mxu0 %v4763
    %4775 = vmatprep.subr.mxu0 0.0
    %4776 = vmatpush1.msra.mxu0 %v4764
    %4777 = vmatprep.subr.mxu0 0.0
    %4778 = vmatpush1.msra.mxu0 0.0
    %4779 = vmatprep.subr.mxu0 0.0
    %4780 = vmatpush1.msra.mxu0 0.0
    %4781 = vmatprep.subr.mxu0 0.0
    %4782 = vmatpush1.msra.mxu0 0.0
    %4783 = vmatprep.subr.mxu0 0.0
    %4784 = vmatpush1.msra.mxu0 0.0
    %4785 = vmatprep.subr.mxu0 0.0
    %4786 = vmatpush1.msra.mxu0 0.0
    %4787 = vmatprep.subr.mxu0 0.0
    %4788 = vmatpush1.msra.mxu0 0.0
    %4789 = vmatprep.subr.mxu0 0.0
    %4790 = vmatpush1.msra.mxu0 0.0
    %4791 = vmatprep.subr.mxu0 0.0
    %4792 = vmatpush1.msra.mxu0 0.0
    %4793 = vmatprep.subr.mxu0 0.0
    %4794 = vmatpush1.msra.mxu0 0.0
    %4795 = vmatprep.subr.mxu0 0.0
    %4796 = vmatpush1.msra.mxu0 0.0
    %4797 = vmatprep.subr.mxu0 0.0
    %4798 = vmatpush1.msra.mxu0 0.0
    %4799 = vmatprep.subr.mxu0 0.0
    %4800 = vmatpush1.msra.mxu0 0.0
    %4801 = vmatprep.subr.mxu0 0.0
    %4802 = vmatpush1.msra.mxu0 0.0
    %4803 = vmatprep.subr.mxu0 0.0
    %4804 = vmatpush1.msra.mxu0 0.0
    %4805 = vmatprep.subr.mxu0 0.0
    %4806 = vmatpush1.msra.mxu0 0.0
    %4807 = vmatprep.subr.mxu0 0.0
    %4808 = vmatpush1.msra.mxu0 0.0
    %4809 = vmatprep.subr.mxu0 0.0
    %4810 = vmatpush1.msra.mxu0 0.0
    %4811 = vmatprep.subr.mxu0 0.0
    %4812 = vmatpush1.msra.mxu0 0.0
    %4813 = vmatprep.subr.mxu0 0.0
    %4814 = vmatpush1.msra.mxu0 0.0
    %4815 = vmatprep.subr.mxu0 0.0
    %4816 = vmatpush1.msra.mxu0 0.0
    %4817 = vmatprep.subr.mxu0 0.0
    %4818 = vmatpush1.msra.mxu0 0.0
    %4819 = vmatprep.subr.mxu0 0.0
    %4820 = vmatpush1.msra.mxu0 0.0
    %4821 = vmatprep.subr.mxu0 0.0
    %4822 = vmatpush1.msra.mxu0 0.0
    %4823 = vmatprep.subr.mxu0 0.0
    %4824 = vmatpush1.msra.mxu0 0.0
    %4825 = vmatprep.subr.mxu0 0.0
    %4826 = vmatpush1.msra.mxu0 0.0
    %4827 = vmatprep.subr.mxu0 0.0
    %4828 = vmatpush1.msra.mxu0 0.0
    %4829 = vmatprep.subr.mxu0 0.0
    %4830 = vmatpush1.msra.mxu0 0.0
    %4831 = vmatprep.subr.mxu0 0.0
    %4832 = vmatpush1.msra.mxu0 0.0
    %4833 = vmatprep.mubr.f32.mxu0 0.0
    %4834 = vmatmul.mubr.f32.gmra.mrb[0].mxu0 %v4767
    %v4835 = vpop.f32.mrb[0].mxu0
    %v4836 = vadd.f32 %v4765, %v4835
    %v4837 = vpop.f32.mrb[0].mxu0
    %4838 = vdwg.mxu0
    %vm4839 = vcmask 32768
    %v4840 = vsel %vm4839, %v4836, -inf
    %4841 = vmax.xlane.f32.xlu0 %v4840
    %v4842 = vpop.xlane.xlu0 %4841
    %v4843 = vsub.f32 %v4836, %v4842
    %v4844 = vmul.f32 %v4843, 1.442695
    %v4845 = vpow.pop %v4844
    %v4846 = vsel %vm4839, %v4845, 0.0
    %4847 = vadd.xlane.f32.xlu0 %v4846
    %v4848 = vpop.xlane.xlu0 %4847
    %v4849 = vrcp.pop %v4848
    %v4850 = vmul.f32 %v4845, %v4849
    %4851 = vst.msk [vmem:[#allocation4] sm:$0x1] %vm4839, %v4850
    %v4852 = vld [vmem:[%s19] sm:$0x1]
    %v4853 = vld [vmem:[%s20] sm:$0x1]
    %vm4854 = vcmask 254977
    %v4855 = vsel %vm4854, %v4743, 0.0
    %4856 = vadd.xlane.f32.xlu0 %v4855
    %v4857 = vpop.xlane.xlu0 %4856
    %v4858 = vmul.f32 %v4857, %v178
    %v4859 = vsub.f32 %v4743, %v4858
    %v4860 = vmul.f32 %v4859, %v4859
    %v4861 = vsel %vm4854, %v4860, 0.0
    %4862 = vadd.xlane.f32.xlu0 %v4861
    %v4863 = vpop.xlane.xlu0 %4862
    %v4864 = vmul.f32 %v4863, %v178
    %v4865 = vadd.f32 %v4864, 1e-06
    %v4866 = vrsqrt.pop %v4865
    %v4867 = vmul.f32 %v4859, %v4866
    %v4869 = vlaneseq
    %v4870 = vshrl.u32 %v4869, 7
    %v4871 = vsub.s32 0, %v4870
    %v4872 = vrot.slane %v4852, %v4871
    %v4874 = vmul.f32 %v4867, %v4872
    %v4876 = vlaneseq
    %v4877 = vshrl.u32 %v4876, 7
    %v4878 = vsub.s32 0, %v4877
    %v4879 = vrot.slane %v4853, %v4878
    %v4881 = vadd.f32 %v4874, %v4879
    %v4882 = vld [vmem:[%s21] sm:$0xff]
    %v4883 = vld [vmem:[%s21 + $0x8] sm:$0xff]
    %v4884 = vld [vmem:[%s21 + $0x10] sm:$0xff]
    %v4885 = vld [vmem:[%s21 + $0x18] sm:$0xff]
    %v4886 = vld [vmem:[%s22] sm:$0x1]
    %v4888 = vrot.slane %v4881, 1
    %v4889 = vsel %vm88, %v4888, 0
    %4891 = vmatprep.subr.mxu0 0.0
    %4892 = vmatpush1.msra.mxu0 %v4882
    %4893 = vmatprep.subr.mxu0 0.0
    %4894 = vmatpush1.msra.mxu0 %v4883
    %4895 = vmatprep.subr.mxu0 0.0
    %4896 = vmatpush1.msra.mxu0 %v4884
    %4897 = vmatprep.subr.mxu0 0.0
    %4898 = vmatpush1.msra.mxu0 %v4885
    %4899 = vmatprep.subr.mxu0 0.0
    %4900 = vmatpush1.msra.mxu0 0.0
    %4901 = vmatprep.subr.mxu0 0.0
    %4902 = vmatpush1.msra.mxu0 0.0
    %4903 = vmatprep.subr.mxu0 0.0
    %4904 = vmatpush1.msra.mxu0 0.0
    %4905 = vmatprep.subr.mxu0 0.0
    %4906 = vmatpush1.msra.mxu0 0.0
    %4907 = vmatprep.subr.mxu0 0.0
    %4908 = vmatpush1.msra.mxu0 0.0
    %4909 = vmatprep.subr.mxu0 0.0
    %4910 = vmatpush1.msra.mxu0 0.0
    %4911 = vmatprep.subr.mxu0 0.0
    %4912 = vmatpush1.msra.mxu0 0.0
    %4913 = vmatprep.subr.mxu0 0.0
    %4914 = vmatpush1.msra.mxu0 0.0
    %4915 = vmatprep.subr.mxu0 0.0
    %4916 = vmatpush1.msra.mxu0 0.0
    %4917 = vmatprep.subr.mxu0 0.0
    %4918 = vmatpush1.msra.mxu0 0.0
    %4919 = vmatprep.subr.mxu0 0.0
    %4920 = vmatpush1.msra.mxu0 0.0
    %4921 = vmatprep.subr.mxu0 0.0
    %4922 = vmatpush1.msra.mxu0 0.0
    %4923 = vmatprep.subr.mxu0 0.0
    %4924 = vmatpush1.msra.mxu0 0.0
    %4925 = vmatprep.subr.mxu0 0.0
    %4926 = vmatpush1.msra.mxu0 0.0
    %4927 = vmatprep.subr.mxu0 0.0
    %4928 = vmatpush1.msra.mxu0 0.0
    %4929 = vmatprep.subr.mxu0 0.0
    %4930 = vmatpush1.msra.mxu0 0.0
    %4931 = vmatprep.subr.mxu0 0.0
    %4932 = vmatpush1.msra.mxu0 0.0
    %4933 = vmatprep.subr.mxu0 0.0
    %4934 = vmatpush1.msra.mxu0 0.0
    %4935 = vmatprep.subr.mxu0 0.0
    %4936 = vmatpush1.msra.mxu0 0.0
    %4937 = vmatprep.subr.mxu0 0.0
    %4938 = vmatpush1.msra.mxu0 0.0
    %4939 = vmatprep.subr.mxu0 0.0
    %4940 = vmatpush1.msra.mxu0 0.0
    %4941 = vmatprep.subr.mxu0 0.0
    %4942 = vmatpush1.msra.mxu0 0.0
    %4943 = vmatprep.subr.mxu0 0.0
    %4944 = vmatpush1.msra.mxu0 0.0
    %4945 = vmatprep.subr.mxu0 0.0
    %4946 = vmatpush1.msra.mxu0 0.0
    %4947 = vmatprep.subr.mxu0 0.0
    %4948 = vmatpush1.msra.mxu0 0.0
    %4949 = vmatprep.subr.mxu0 0.0
    %4950 = vmatpush1.msra.mxu0 0.0
    %4951 = vmatprep.subr.mxu0 0.0
    %4952 = vmatpush1.msra.mxu0 0.0
    %4953 = vmatprep.subr.mxu0 0.0
    %4954 = vmatpush1.msra.mxu0 0.0
    %4955 = vmatprep.mubr.f32.mxu0 0.0
    %4956 = vmatmul.mubr.f32.gmra.mrb[0].mxu0 %v4889
    %v4957 = vpop.f32.mrb[0].mxu0
    %v4958 = vadd.f32 %v4886, %v4957
    %v4959 = vpop.f32.mrb[0].mxu0
    %4960 = vdwg.mxu0
    %v4961 = vsel %vm4839, %v4958, -inf
    %4962 = vmax.xlane.f32.xlu0 %v4961
    %v4963 = vpop.xlane.xlu0 %4962
    %v4964 = vsub.f32 %v4958, %v4963
    %v4965 = vmul.f32 %v4964, 1.442695
    %v4966 = vpow.pop %v4965
    %v4967 = vsel %vm4839, %v4966, 0.0
    %4968 = vadd.xlane.f32.xlu0 %v4967
    %v4969 = vpop.xlane.xlu0 %4968
    %v4970 = vrcp.pop %v4969
    %v4971 = vmul.f32 %v4966, %v4970
    %4972 = vst.msk [vmem:[#allocation4 + $0x1] sm:$0x1] %vm4839, %v4971
    // Predicated region
    $region94: #{vit_forward_pallas.1} parent=1 // pred_check
      _
    $region95: #{vit_forward_pallas.1} parent=1 // pred_check_branch
      %4974 = sbr.rel (0) target = $region97
    $region96: #{vit_forward_pallas.1} parent=1 // pred_region
      %s4976 = ssub.s32 32, 32
      %4977 = vsyncadd [#allocation5], %s4976
      %s4979 = sshll.u32 [#allocation4], 4
      %s4980 = int_to_ptr.vmem [resolvable:$true] %s4979
      %4982 = dma.vmem_to_hbm [thread:$0]  %s4980, 32, %s23, [#allocation5]
    $region97: #{vit_forward_pallas.1} parent=1 // pred_fallthru
      _
    // Predicated region
    $region98: #{vit_forward_pallas.1} parent=1 // pred_check
      _
    $region99: #{vit_forward_pallas.1} parent=1 // pred_check_branch
      %4984 = sbr.rel (0) target = $region101
    $region100: #{vit_forward_pallas.1} parent=1 // pred_region
      %4985 = dma.done [#allocation5], 32
    $region101: #{vit_forward_pallas.1} parent=1 // pred_fallthru
      _
    %4986 = vsyncpa [#allocation5], 1

</llo_original>
